<compile_context>
chip_gen: v5e
topology: v5e:2x2
jax: 0.10.0
libtpu: 0.0.40
codegen_flags: <defaults>
</compile_context>

<pallas_src>
import numpy as np

import jax
import jax.numpy as jnp
from jax import lax
from jax.experimental import pallas as pl
from jax.experimental.pallas import tpu as pltpu


# Network geometry (fc1's 1600 = 64*5*5 inputs pin the input to 1x28x28).
_H = 28                      # input height = width (Cin = 1)
_C1, _C2 = 32, 64            # conv output channels
_WO1 = 13                    # conv1+pool output width/height
_HO2, _WO2 = 5, 5            # conv2+pool output height/width
_P1 = 512                    # lane-padded Wo1*C1 (13*32 = 416 -> 4*128)
_P2 = 384                    # lane-padded Wo2*C2 (5*64  = 320 -> 3*128)
_F1 = 128                    # lane-padded fc1 width (100 -> 128)
_NCLS = 10


# ---------------------------------------------------------------------------
# Fused whole-network kernel (one grid step == one image)
# ---------------------------------------------------------------------------
def _cnn_kernel(xr0_ref, xr1_ref, xr2_ref, xr3_ref,
                t1_ref, b1_ref, t2_ref, b2_ref,
                w1_ref, bf1_ref, w2_ref, bf2_ref, o_ref):
    f32, bf16 = jnp.float32, jnp.bfloat16

    def dot(a, b):
        return jnp.dot(a, b, preferred_element_type=f32)

    # ---- conv1 (3x3, 1->32) + 2x2 max-pool + bias + ReLU ------------------
    # xrP holds input rows with (row mod 4) == P, flattened to (7, W*Cin=28).
    x0f, x1f = xr0_ref[0], xr1_ref[0]                     # (7, 28) f32
    x2f, x3f = xr2_ref[0], xr3_ref[0]
    x0 = x0f.astype(bf16)
    x1 = x1f.astype(bf16)
    x2 = x2f.astype(bf16)
    x3 = x3f.astype(bf16)
    x0s = x0f[1:7, :].astype(bf16)                        # rows 4m+4
    x1s = x1f[1:7, :].astype(bf16)                        # rows 4m+5
    x2t = x2f[0:6, :].astype(bf16)
    x3t = x3f[0:6, :].astype(bf16)
    t1a, t1b, t1c = t1_ref[0], t1_ref[1], t1_ref[2]       # (28, 2*_P1) bf16

    a0 = dot(x0, t1a) + dot(x1, t1b) + dot(x2, t1c)       # conv rows 4m     (7,1024)
    a1 = dot(x1, t1a) + dot(x2, t1b) + dot(x3, t1c)       # conv rows 4m+1   (7,1024)
    a2 = dot(x2t, t1a) + dot(x3t, t1b) + dot(x0s, t1c)    # conv rows 4m+2   (6,1024)
    a3 = dot(x3t, t1a) + dot(x0s, t1b) + dot(x1s, t1c)    # conv rows 4m+3   (6,1024)

    e = jnp.maximum(a0, a1)                  # pooled (H-dir) rows 0,2,...,12
    o = jnp.maximum(a2, a3)                  # pooled (H-dir) rows 1,3,...,11
    e = jnp.maximum(e[:, :_P1], e[:, _P1:])  # pool along W via lane halves
    o = jnp.maximum(o[:, :_P1], o[:, _P1:])
    b1 = b1_ref[...]                         # (1, _P1) f32
    pe = jnp.maximum(e + b1, 0.0)            # (7, 512) f32, rows ho = 0,2,..,12
    po = jnp.maximum(o + b1, 0.0)            # (6, 512) f32, rows ho = 1,3,..,11

    # ---- conv2 (3x3, 32->64) + 2x2 max-pool + bias + ReLU -----------------
    pe_a = pe[0:5].astype(bf16)              # conv2 input rows 0,2,4,6,8
    pe_b = pe[1:6].astype(bf16)              # rows 2,4,6,8,10
    po_a = po[0:5].astype(bf16)              # rows 1,3,5,7,9
    po_b = po[1:6].astype(bf16)              # rows 3,5,7,9,11
    t2a, t2b, t2c = t2_ref[0], t2_ref[1], t2_ref[2]       # (512, 2*_P2) bf16

    top = dot(pe_a, t2a) + dot(po_a, t2b) + dot(pe_b, t2c)   # conv2 rows 0,2,..,8
    bot = dot(po_a, t2a) + dot(pe_b, t2b) + dot(po_b, t2c)   # conv2 rows 1,3,..,9
    c = jnp.maximum(top, bot)                # pool along H
    c = jnp.maximum(c[:, :_P2], c[:, _P2:])  # pool along W
    x5 = jnp.maximum(c + b2_ref[...], 0.0)   # (5, 384) f32

    # ---- fc1 (1600 -> 100, weights pre-permuted to the kernel layout) -----
    z1 = dot(x5[0:1, :].astype(bf16), w1_ref[0])
    for h in range(1, _HO2):
        z1 = z1 + dot(x5[h:h + 1, :].astype(bf16), w1_ref[h])
    h1 = jnp.maximum(z1 + bf1_ref[...], 0.0)               # (1, 128) f32
    # TODO(synk): Dropout2d / Dropout are identity here (eval-mode semantics).

    # ---- fc2 (100 -> 10) + softmax ----------------------------------------
    z2 = dot(h1.astype(bf16), w2_ref[...]) + bf2_ref[...]  # (1, 10) f32
    z2 = z2 - jnp.max(z2, axis=-1, keepdims=True)
    ez = jnp.exp(z2)
    denom = jnp.sum(ez, axis=-1, keepdims=True)
    o_ref[0] = (ez * pl.reciprocal(denom, approx=True)).astype(o_ref.dtype)


# ---------------------------------------------------------------------------
# One-time weight re-layout (hoisted out of the per-forward path)
# ---------------------------------------------------------------------------
def _conv_toeplitz(w_conv, cin, cout, wo, in_pad, out_pad):
    """Block-Toeplitz matrices turning a 3x3 'valid' conv into kh matmuls.

    Column order is (w-parity, wo, cout) so the W-direction 2x2 max-pool is a
    max over the two contiguous lane halves.  w_conv: (Cout, Cin, kh, kw).
    Returns (kh, in_pad, 2*out_pad) float32.
    """
    cout_, cin_, kh, kw = w_conv.shape
    assert (cout_, cin_) == (cout, cin)
    assert (2 * wo + kw - 1) * cin <= in_pad
    t = np.zeros((kh, in_pad, 2 * out_pad), np.float32)
    for i in range(kh):
        for dw in range(2):
            for w_o in range(wo):
                w_col = 2 * w_o + dw                      # conv output column
                for j in range(kw):
                    w_in = w_col + j                      # input column
                    t[i, w_in * cin:(w_in + 1) * cin,
                      dw * out_pad + w_o * cout:dw * out_pad + (w_o + 1) * cout] \
                        = w_conv[:, :, i, j].T
    return t


def prepare_params(params):
    w1 = np.asarray(params["conv1_w"], np.float32)        # (32, 1, 3, 3)
    w2 = np.asarray(params["conv2_w"], np.float32)        # (64, 32, 3, 3)
    b1 = np.asarray(params["conv1_b"], np.float32)
    b2 = np.asarray(params["conv2_b"], np.float32)
    fw1 = np.asarray(params["fc1_w"], np.float32)         # (100, 1600)
    fb1 = np.asarray(params["fc1_b"], np.float32)
    fw2 = np.asarray(params["fc2_w"], np.float32)         # (10, 100)
    fb2 = np.asarray(params["fc2_b"], np.float32)

    t1 = _conv_toeplitz(w1, cin=1, cout=_C1, wo=_WO1, in_pad=_H, out_pad=_P1)
    t2 = _conv_toeplitz(w2, cin=_C1, cout=_C2, wo=_WO2, in_pad=_P1, out_pad=_P2)

    b1c = np.zeros((1, _P1), np.float32)
    for w_o in range(_WO1):
        b1c[0, w_o * _C1:(w_o + 1) * _C1] = b1
    b2c = np.zeros((1, _P2), np.float32)
    for w_o in range(_WO2):
        b2c[0, w_o * _C2:(w_o + 1) * _C2] = b2

    # fc1: torch flattens (C, H, W); kernel activation layout is
    # [row h, lane = wo*C2 + f].  Permute (and zero-pad) the weights once.
    w1r = np.zeros((_HO2, _P2, _F1), np.float32)
    fw1_4 = fw1.reshape(100, _C2, _HO2, _WO2)             # (out, f, h, wo)
    for h in range(_HO2):
        blk = np.transpose(fw1_4[:, :, h, :], (2, 1, 0)).reshape(_WO2 * _C2, 100)
        w1r[h, :_WO2 * _C2, :100] = blk
    b1f = np.zeros((1, _F1), np.float32)
    b1f[0, :100] = fb1

    w2r = np.zeros((_F1, _NCLS), np.float32)
    w2r[:100, :] = fw2.T
    b2f = fb2.reshape(1, _NCLS)

    bf16 = jnp.bfloat16
    return {
        "T1": jnp.asarray(t1, bf16), "b1c": jnp.asarray(b1c),
        "T2": jnp.asarray(t2, bf16), "b2c": jnp.asarray(b2c),
        "W1r": jnp.asarray(w1r, bf16), "b1f": jnp.asarray(b1f),
        "W2r": jnp.asarray(w2r, bf16), "b2f": jnp.asarray(b2f),
    }


# ---------------------------------------------------------------------------
# Forward pass wrapper
# ---------------------------------------------------------------------------
def cnn_forward(prepped, x_nchw):
    """x_nchw: (N, 1, 28, 28) float32 -> (N, 10) softmax probabilities."""
    n = x_nchw.shape[0]
    x = x_nchw.reshape(n, _H, _H).astype(jnp.float32)     # Cin=1 -> (H, W*Cin)
    # Split input rows by (row mod 4): lets the kernel build both rows of
    # every 2x2 pool window from contiguous slices (no strided reads).
    xr0, xr1, xr2, xr3 = (x[:, p::4, :] for p in range(4))    # each (N, 7, 28)

    row_spec = pl.BlockSpec((1, _H // 4, _H), lambda i: (i, 0, 0))

    def const_spec(shape):
        zeros = (0,) * len(shape)
        return pl.BlockSpec(shape, lambda i: zeros)

    out = pl.pallas_call(
        _cnn_kernel,
        out_shape=jax.ShapeDtypeStruct((n, 1, _NCLS), jnp.float32),
        grid=(n,),
        in_specs=[row_spec, row_spec, row_spec, row_spec,
                  const_spec(prepped["T1"].shape),
                  const_spec(prepped["b1c"].shape),
                  const_spec(prepped["T2"].shape),
                  const_spec(prepped["b2c"].shape),
                  const_spec(prepped["W1r"].shape),
                  const_spec(prepped["b1f"].shape),
                  const_spec(prepped["W2r"].shape),
                  const_spec(prepped["b2f"].shape)],
        out_specs=pl.BlockSpec((1, 1, _NCLS), lambda i: (i, 0, 0)),
        compiler_params=pltpu.CompilerParams(
            dimension_semantics=("parallel",),
            vmem_limit_bytes=32 * 1024 * 1024),
    )(xr0, xr1, xr2, xr3,
      prepped["T1"], prepped["b1c"], prepped["T2"], prepped["b2c"],
      prepped["W1r"], prepped["b1f"], prepped["W2r"], prepped["b2f"])
    return out.reshape(n, _NCLS)


# ---------------------------------------------------------------------------
# Pure-JAX reference (same bf16-input / f32-accumulation policy)
# ---------------------------------------------------------------------------
def _maxpool_2x2(y):
    return lax.reduce_window(y, -jnp.inf, lax.max, (1, 1, 2, 2), (1, 1, 2, 2),
                             "VALID")


def cnn_reference(params, x_nchw):
    f32, bf16 = jnp.float32, jnp.bfloat16
    dn = ("NCHW", "OIHW", "NCHW")
    y = lax.conv_general_dilated(
        x_nchw.astype(bf16), params["conv1_w"].astype(bf16), (1, 1), "VALID",
        dimension_numbers=dn, preferred_element_type=f32)
    y = y + params["conv1_b"][None, :, None, None]
    y = jnp.maximum(_maxpool_2x2(y), 0.0)
    y = lax.conv_general_dilated(
        y.astype(bf16), params["conv2_w"].astype(bf16), (1, 1), "VALID",
        dimension_numbers=dn, preferred_element_type=f32)
    y = y + params["conv2_b"][None, :, None, None]
    y = jnp.maximum(_maxpool_2x2(y), 0.0)
    y = y.reshape(y.shape[0], -1)
    y = jnp.dot(y.astype(bf16), params["fc1_w"].T.astype(bf16),
                preferred_element_type=f32) + params["fc1_b"]
    y = jnp.maximum(y, 0.0)
    y = jnp.dot(y.astype(bf16), params["fc2_w"].T.astype(bf16),
                preferred_element_type=f32) + params["fc2_b"]
    return jax.nn.softmax(y, axis=-1)


# ---------------------------------------------------------------------------
# Deterministic parameter init (PyTorch default uniform(-1/sqrt(fan_in), +..))
# ---------------------------------------------------------------------------
def init_params(key):
    ks = jax.random.split(key, 8)

    def u(k, shape, fan_in):
        bound = 1.0 / float(fan_in) ** 0.5
        return jax.random.uniform(k, shape, jnp.float32, -bound, bound)

    return {
        "conv1_w": u(ks[0], (32, 1, 3, 3), 9),
        "conv1_b": u(ks[1], (32,), 9),
        "conv2_w": u(ks[2], (64, 32, 3, 3), 288),
        "conv2_b": u(ks[3], (64,), 288),
        "fc1_w": u(ks[4], (100, 1600), 1600),
        "fc1_b": u(ks[5], (100,), 1600),
        "fc2_w": u(ks[6], (10, 100), 100),
        "fc2_b": u(ks[7], (10,), 100),
    }


if __name__ == "__main__":
    key = jax.random.PRNGKey(0)
    pkey, xkey = jax.random.split(key)
    params = init_params(pkey)
    prepped = prepare_params(params)     # one-time weight re-layout (not traced)

    # fc1's 1600 = 64*5*5 inputs pin the input to (N, 1, 28, 28).
    x = jax.random.normal(xkey, (2, 1, 28, 28), jnp.float32)

    out = jax.jit(cnn_forward)(prepped, x)
    out = jax.block_until_ready(out)
    ref = jax.block_until_ready(jax.jit(cnn_reference)(params, x))

    assert out.shape == (2, 10), out.shape
    assert bool(jnp.all(jnp.isfinite(out)))
    assert bool(jnp.allclose(jnp.sum(out, axis=-1), 1.0, atol=1e-2))
    assert bool(jnp.allclose(out, ref, atol=5e-3)), float(jnp.max(jnp.abs(out - ref)))
    print("KERNEL_OK")
</pallas_src>

<mosaic_0001>
module attributes {stable_mosaic.version = 11 : i64} {
  func.func @_cnn_kernel(%arg0: i32, %arg1: memref<1x7x28xf32, #tpu.memory_space<vmem>>, %arg2: memref<1x7x28xf32, #tpu.memory_space<vmem>>, %arg3: memref<1x7x28xf32, #tpu.memory_space<vmem>>, %arg4: memref<1x7x28xf32, #tpu.memory_space<vmem>>, %arg5: memref<3x28x1024xbf16, #tpu.memory_space<vmem>>, %arg6: memref<1x512xf32, #tpu.memory_space<vmem>>, %arg7: memref<3x512x768xbf16, #tpu.memory_space<vmem>>, %arg8: memref<1x384xf32, #tpu.memory_space<vmem>>, %arg9: memref<5x384x128xbf16, #tpu.memory_space<vmem>>, %arg10: memref<1x128xf32, #tpu.memory_space<vmem>>, %arg11: memref<128x10xbf16, #tpu.memory_space<vmem>>, %arg12: memref<1x10xf32, #tpu.memory_space<vmem>>, %arg13: memref<1x1x10xf32, #tpu.memory_space<vmem>>) attributes {dimension_semantics = [#tpu.dimension_semantics<parallel>], iteration_bounds = array<i64: 2>, scalar_prefetch = 0 : i64, scratch_operands = 0 : i64, tpu.core_type = #tpu.core_type<tc>, window_params = [{transform_indices = @transform_0, window_bounds = array<i64: 1, 7, 28>}, {transform_indices = @transform_1, window_bounds = array<i64: 1, 7, 28>}, {transform_indices = @transform_2, window_bounds = array<i64: 1, 7, 28>}, {transform_indices = @transform_3, window_bounds = array<i64: 1, 7, 28>}, {pipeline_mode = #tpu.pipeline_mode<synchronous>, transform_indices = @transform_4, window_bounds = array<i64: 3, 28, 1024>}, {pipeline_mode = #tpu.pipeline_mode<synchronous>, transform_indices = @transform_5, window_bounds = array<i64: 1, 512>}, {pipeline_mode = #tpu.pipeline_mode<synchronous>, transform_indices = @transform_6, window_bounds = array<i64: 3, 512, 768>}, {pipeline_mode = #tpu.pipeline_mode<synchronous>, transform_indices = @transform_7, window_bounds = array<i64: 1, 384>}, {pipeline_mode = #tpu.pipeline_mode<synchronous>, transform_indices = @transform_8, window_bounds = array<i64: 5, 384, 128>}, {pipeline_mode = #tpu.pipeline_mode<synchronous>, transform_indices = @transform_9, window_bounds = array<i64: 1, 128>}, {pipeline_mode = #tpu.pipeline_mode<synchronous>, transform_indices = @transform_10, window_bounds = array<i64: 128, 10>}, {pipeline_mode = #tpu.pipeline_mode<synchronous>, transform_indices = @transform_11, window_bounds = array<i64: 1, 10>}, {transform_indices = @transform_12, window_bounds = array<i64: 1, 1, 10>}]} {
    %c0 = arith.constant 0 : index
    %c0_0 = arith.constant 0 : index
    %c0_1 = arith.constant 0 : index
    %0 = vector.load %arg1[%c0, %c0_0, %c0_1] : memref<1x7x28xf32, #tpu.memory_space<vmem>>, vector<1x7x28xf32>
    %1 = vector.shape_cast %0 : vector<1x7x28xf32> to vector<7x28xf32>
    %c0_2 = arith.constant 0 : index
    %c0_3 = arith.constant 0 : index
    %c0_4 = arith.constant 0 : index
    %2 = vector.load %arg2[%c0_2, %c0_3, %c0_4] : memref<1x7x28xf32, #tpu.memory_space<vmem>>, vector<1x7x28xf32>
    %3 = vector.shape_cast %2 : vector<1x7x28xf32> to vector<7x28xf32>
    %c0_5 = arith.constant 0 : index
    %c0_6 = arith.constant 0 : index
    %c0_7 = arith.constant 0 : index
    %4 = vector.load %arg3[%c0_5, %c0_6, %c0_7] : memref<1x7x28xf32, #tpu.memory_space<vmem>>, vector<1x7x28xf32>
    %5 = vector.shape_cast %4 : vector<1x7x28xf32> to vector<7x28xf32>
    %c0_8 = arith.constant 0 : index
    %c0_9 = arith.constant 0 : index
    %c0_10 = arith.constant 0 : index
    %6 = vector.load %arg4[%c0_8, %c0_9, %c0_10] : memref<1x7x28xf32, #tpu.memory_space<vmem>>, vector<1x7x28xf32>
    %7 = vector.shape_cast %6 : vector<1x7x28xf32> to vector<7x28xf32>
    %8 = arith.truncf %1 : vector<7x28xf32> to vector<7x28xbf16>
    %9 = arith.truncf %3 : vector<7x28xf32> to vector<7x28xbf16>
    %10 = arith.truncf %5 : vector<7x28xf32> to vector<7x28xbf16>
    %11 = arith.truncf %7 : vector<7x28xf32> to vector<7x28xbf16>
    %12 = vector.extract_strided_slice %1 {offsets = [1, 0], sizes = [6, 28], strides = [1, 1]} : vector<7x28xf32> to vector<6x28xf32>
    %13 = arith.truncf %12 : vector<6x28xf32> to vector<6x28xbf16>
    %14 = vector.extract_strided_slice %3 {offsets = [1, 0], sizes = [6, 28], strides = [1, 1]} : vector<7x28xf32> to vector<6x28xf32>
    %15 = arith.truncf %14 : vector<6x28xf32> to vector<6x28xbf16>
    %16 = vector.extract_strided_slice %5 {offsets = [0, 0], sizes = [6, 28], strides = [1, 1]} : vector<7x28xf32> to vector<6x28xf32>
    %17 = arith.truncf %16 : vector<6x28xf32> to vector<6x28xbf16>
    %18 = vector.extract_strided_slice %7 {offsets = [0, 0], sizes = [6, 28], strides = [1, 1]} : vector<7x28xf32> to vector<6x28xf32>
    %19 = arith.truncf %18 : vector<6x28xf32> to vector<6x28xbf16>
    %c0_11 = arith.constant 0 : index
    %c0_12 = arith.constant 0 : index
    %c0_13 = arith.constant 0 : index
    %20 = vector.load %arg5[%c0_11, %c0_12, %c0_13] : memref<3x28x1024xbf16, #tpu.memory_space<vmem>>, vector<1x28x1024xbf16>
    %21 = vector.shape_cast %20 : vector<1x28x1024xbf16> to vector<28x1024xbf16>
    %c1 = arith.constant 1 : index
    %c0_14 = arith.constant 0 : index
    %c0_15 = arith.constant 0 : index
    %22 = vector.load %arg5[%c1, %c0_14, %c0_15] : memref<3x28x1024xbf16, #tpu.memory_space<vmem>>, vector<1x28x1024xbf16>
    %23 = vector.shape_cast %22 : vector<1x28x1024xbf16> to vector<28x1024xbf16>
    %c2 = arith.constant 2 : index
    %c0_16 = arith.constant 0 : index
    %c0_17 = arith.constant 0 : index
    %24 = vector.load %arg5[%c2, %c0_16, %c0_17] : memref<3x28x1024xbf16, #tpu.memory_space<vmem>>, vector<1x28x1024xbf16>
    %25 = vector.shape_cast %24 : vector<1x28x1024xbf16> to vector<28x1024xbf16>
    %cst = arith.constant dense<0.000000e+00> : vector<7x1024xf32>
    %26 = tpu.matmul %8, %21, %cst {dimension_numbers = #tpu.dot_dimension_numbers<[1], [0], [0], [1], [0, 0, 1, 1], [], []>} : vector<7x28xbf16>, vector<28x1024xbf16>, vector<7x1024xf32> -> vector<7x1024xf32>
    %cst_18 = arith.constant dense<0.000000e+00> : vector<7x1024xf32>
    %27 = tpu.matmul %9, %23, %cst_18 {dimension_numbers = #tpu.dot_dimension_numbers<[1], [0], [0], [1], [0, 0, 1, 1], [], []>} : vector<7x28xbf16>, vector<28x1024xbf16>, vector<7x1024xf32> -> vector<7x1024xf32>
    %28 = arith.addf %26, %27 : vector<7x1024xf32>
    %cst_19 = arith.constant dense<0.000000e+00> : vector<7x1024xf32>
    %29 = tpu.matmul %10, %25, %cst_19 {dimension_numbers = #tpu.dot_dimension_numbers<[1], [0], [0], [1], [0, 0, 1, 1], [], []>} : vector<7x28xbf16>, vector<28x1024xbf16>, vector<7x1024xf32> -> vector<7x1024xf32>
    %30 = arith.addf %28, %29 : vector<7x1024xf32>
    %cst_20 = arith.constant dense<0.000000e+00> : vector<7x1024xf32>
    %31 = tpu.matmul %9, %21, %cst_20 {dimension_numbers = #tpu.dot_dimension_numbers<[1], [0], [0], [1], [0, 0, 1, 1], [], []>} : vector<7x28xbf16>, vector<28x1024xbf16>, vector<7x1024xf32> -> vector<7x1024xf32>
    %cst_21 = arith.constant dense<0.000000e+00> : vector<7x1024xf32>
    %32 = tpu.matmul %10, %23, %cst_21 {dimension_numbers = #tpu.dot_dimension_numbers<[1], [0], [0], [1], [0, 0, 1, 1], [], []>} : vector<7x28xbf16>, vector<28x1024xbf16>, vector<7x1024xf32> -> vector<7x1024xf32>
    %33 = arith.addf %31, %32 : vector<7x1024xf32>
    %cst_22 = arith.constant dense<0.000000e+00> : vector<7x1024xf32>
    %34 = tpu.matmul %11, %25, %cst_22 {dimension_numbers = #tpu.dot_dimension_numbers<[1], [0], [0], [1], [0, 0, 1, 1], [], []>} : vector<7x28xbf16>, vector<28x1024xbf16>, vector<7x1024xf32> -> vector<7x1024xf32>
    %35 = arith.addf %33, %34 : vector<7x1024xf32>
    %cst_23 = arith.constant dense<0.000000e+00> : vector<6x1024xf32>
    %36 = tpu.matmul %17, %21, %cst_23 {dimension_numbers = #tpu.dot_dimension_numbers<[1], [0], [0], [1], [0, 0, 1, 1], [], []>} : vector<6x28xbf16>, vector<28x1024xbf16>, vector<6x1024xf32> -> vector<6x1024xf32>
    %cst_24 = arith.constant dense<0.000000e+00> : vector<6x1024xf32>
    %37 = tpu.matmul %19, %23, %cst_24 {dimension_numbers = #tpu.dot_dimension_numbers<[1], [0], [0], [1], [0, 0, 1, 1], [], []>} : vector<6x28xbf16>, vector<28x1024xbf16>, vector<6x1024xf32> -> vector<6x1024xf32>
    %38 = arith.addf %36, %37 : vector<6x1024xf32>
    %cst_25 = arith.constant dense<0.000000e+00> : vector<6x1024xf32>
    %39 = tpu.matmul %13, %25, %cst_25 {dimension_numbers = #tpu.dot_dimension_numbers<[1], [0], [0], [1], [0, 0, 1, 1], [], []>} : vector<6x28xbf16>, vector<28x1024xbf16>, vector<6x1024xf32> -> vector<6x1024xf32>
    %40 = arith.addf %38, %39 : vector<6x1024xf32>
    %cst_26 = arith.constant dense<0.000000e+00> : vector<6x1024xf32>
    %41 = tpu.matmul %19, %21, %cst_26 {dimension_numbers = #tpu.dot_dimension_numbers<[1], [0], [0], [1], [0, 0, 1, 1], [], []>} : vector<6x28xbf16>, vector<28x1024xbf16>, vector<6x1024xf32> -> vector<6x1024xf32>
    %cst_27 = arith.constant dense<0.000000e+00> : vector<6x1024xf32>
    %42 = tpu.matmul %13, %23, %cst_27 {dimension_numbers = #tpu.dot_dimension_numbers<[1], [0], [0], [1], [0, 0, 1, 1], [], []>} : vector<6x28xbf16>, vector<28x1024xbf16>, vector<6x1024xf32> -> vector<6x1024xf32>
    %43 = arith.addf %41, %42 : vector<6x1024xf32>
    %cst_28 = arith.constant dense<0.000000e+00> : vector<6x1024xf32>
    %44 = tpu.matmul %15, %25, %cst_28 {dimension_numbers = #tpu.dot_dimension_numbers<[1], [0], [0], [1], [0, 0, 1, 1], [], []>} : vector<6x28xbf16>, vector<28x1024xbf16>, vector<6x1024xf32> -> vector<6x1024xf32>
    %45 = arith.addf %43, %44 : vector<6x1024xf32>
    %46 = arith.maximumf %30, %35 : vector<7x1024xf32>
    %47 = arith.maximumf %40, %45 : vector<6x1024xf32>
    %48 = vector.extract_strided_slice %46 {offsets = [0, 0], sizes = [7, 512], strides = [1, 1]} : vector<7x1024xf32> to vector<7x512xf32>
    %49 = vector.extract_strided_slice %46 {offsets = [0, 512], sizes = [7, 512], strides = [1, 1]} : vector<7x1024xf32> to vector<7x512xf32>
    %50 = arith.maximumf %48, %49 : vector<7x512xf32>
    %51 = vector.extract_strided_slice %47 {offsets = [0, 0], sizes = [6, 512], strides = [1, 1]} : vector<6x1024xf32> to vector<6x512xf32>
    %52 = vector.extract_strided_slice %47 {offsets = [0, 512], sizes = [6, 512], strides = [1, 1]} : vector<6x1024xf32> to vector<6x512xf32>
    %53 = arith.maximumf %51, %52 : vector<6x512xf32>
    %c0_29 = arith.constant 0 : index
    %c0_30 = arith.constant 0 : index
    %54 = vector.load %arg6[%c0_29, %c0_30] : memref<1x512xf32, #tpu.memory_space<vmem>>, vector<1x512xf32>
    %55 = vector.broadcast %54 : vector<1x512xf32> to vector<7x512xf32>
    %56 = arith.addf %50, %55 : vector<7x512xf32>
    %cst_31 = arith.constant 0.000000e+00 : f32
    %57 = vector.broadcast %cst_31 : f32 to vector<7x512xf32>
    %58 = arith.maximumf %56, %57 : vector<7x512xf32>
    %59 = vector.broadcast %54 : vector<1x512xf32> to vector<6x512xf32>
    %60 = arith.addf %53, %59 : vector<6x512xf32>
    %cst_32 = arith.constant 0.000000e+00 : f32
    %61 = vector.broadcast %cst_32 : f32 to vector<6x512xf32>
    %62 = arith.maximumf %60, %61 : vector<6x512xf32>
    %63 = vector.extract_strided_slice %58 {offsets = [0, 0], sizes = [5, 512], strides = [1, 1]} : vector<7x512xf32> to vector<5x512xf32>
    %64 = arith.truncf %63 : vector<5x512xf32> to vector<5x512xbf16>
    %65 = vector.extract_strided_slice %58 {offsets = [1, 0], sizes = [5, 512], strides = [1, 1]} : vector<7x512xf32> to vector<5x512xf32>
    %66 = arith.truncf %65 : vector<5x512xf32> to vector<5x512xbf16>
    %67 = vector.extract_strided_slice %62 {offsets = [0, 0], sizes = [5, 512], strides = [1, 1]} : vector<6x512xf32> to vector<5x512xf32>
    %68 = arith.truncf %67 : vector<5x512xf32> to vector<5x512xbf16>
    %69 = vector.extract_strided_slice %62 {offsets = [1, 0], sizes = [5, 512], strides = [1, 1]} : vector<6x512xf32> to vector<5x512xf32>
    %70 = arith.truncf %69 : vector<5x512xf32> to vector<5x512xbf16>
    %c0_33 = arith.constant 0 : index
    %c0_34 = arith.constant 0 : index
    %c0_35 = arith.constant 0 : index
    %71 = vector.load %arg7[%c0_33, %c0_34, %c0_35] : memref<3x512x768xbf16, #tpu.memory_space<vmem>>, vector<1x512x768xbf16>
    %72 = vector.shape_cast %71 : vector<1x512x768xbf16> to vector<512x768xbf16>
    %c1_36 = arith.constant 1 : index
    %c0_37 = arith.constant 0 : index
    %c0_38 = arith.constant 0 : index
    %73 = vector.load %arg7[%c1_36, %c0_37, %c0_38] : memref<3x512x768xbf16, #tpu.memory_space<vmem>>, vector<1x512x768xbf16>
    %74 = vector.shape_cast %73 : vector<1x512x768xbf16> to vector<512x768xbf16>
    %c2_39 = arith.constant 2 : index
    %c0_40 = arith.constant 0 : index
    %c0_41 = arith.constant 0 : index
    %75 = vector.load %arg7[%c2_39, %c0_40, %c0_41] : memref<3x512x768xbf16, #tpu.memory_space<vmem>>, vector<1x512x768xbf16>
    %76 = vector.shape_cast %75 : vector<1x512x768xbf16> to vector<512x768xbf16>
    %cst_42 = arith.constant dense<0.000000e+00> : vector<5x768xf32>
    %77 = tpu.matmul %64, %72, %cst_42 {dimension_numbers = #tpu.dot_dimension_numbers<[1], [0], [0], [1], [0, 0, 1, 1], [], []>} : vector<5x512xbf16>, vector<512x768xbf16>, vector<5x768xf32> -> vector<5x768xf32>
    %cst_43 = arith.constant dense<0.000000e+00> : vector<5x768xf32>
    %78 = tpu.matmul %68, %74, %cst_43 {dimension_numbers = #tpu.dot_dimension_numbers<[1], [0], [0], [1], [0, 0, 1, 1], [], []>} : vector<5x512xbf16>, vector<512x768xbf16>, vector<5x768xf32> -> vector<5x768xf32>
    %79 = arith.addf %77, %78 : vector<5x768xf32>
    %cst_44 = arith.constant dense<0.000000e+00> : vector<5x768xf32>
    %80 = tpu.matmul %66, %76, %cst_44 {dimension_numbers = #tpu.dot_dimension_numbers<[1], [0], [0], [1], [0, 0, 1, 1], [], []>} : vector<5x512xbf16>, vector<512x768xbf16>, vector<5x768xf32> -> vector<5x768xf32>
    %81 = arith.addf %79, %80 : vector<5x768xf32>
    %cst_45 = arith.constant dense<0.000000e+00> : vector<5x768xf32>
    %82 = tpu.matmul %68, %72, %cst_45 {dimension_numbers = #tpu.dot_dimension_numbers<[1], [0], [0], [1], [0, 0, 1, 1], [], []>} : vector<5x512xbf16>, vector<512x768xbf16>, vector<5x768xf32> -> vector<5x768xf32>
    %cst_46 = arith.constant dense<0.000000e+00> : vector<5x768xf32>
    %83 = tpu.matmul %66, %74, %cst_46 {dimension_numbers = #tpu.dot_dimension_numbers<[1], [0], [0], [1], [0, 0, 1, 1], [], []>} : vector<5x512xbf16>, vector<512x768xbf16>, vector<5x768xf32> -> vector<5x768xf32>
    %84 = arith.addf %82, %83 : vector<5x768xf32>
    %cst_47 = arith.constant dense<0.000000e+00> : vector<5x768xf32>
    %85 = tpu.matmul %70, %76, %cst_47 {dimension_numbers = #tpu.dot_dimension_numbers<[1], [0], [0], [1], [0, 0, 1, 1], [], []>} : vector<5x512xbf16>, vector<512x768xbf16>, vector<5x768xf32> -> vector<5x768xf32>
    %86 = arith.addf %84, %85 : vector<5x768xf32>
    %87 = arith.maximumf %81, %86 : vector<5x768xf32>
    %88 = vector.extract_strided_slice %87 {offsets = [0, 0], sizes = [5, 384], strides = [1, 1]} : vector<5x768xf32> to vector<5x384xf32>
    %89 = vector.extract_strided_slice %87 {offsets = [0, 384], sizes = [5, 384], strides = [1, 1]} : vector<5x768xf32> to vector<5x384xf32>
    %90 = arith.maximumf %88, %89 : vector<5x384xf32>
    %c0_48 = arith.constant 0 : index
    %c0_49 = arith.constant 0 : index
    %91 = vector.load %arg8[%c0_48, %c0_49] : memref<1x384xf32, #tpu.memory_space<vmem>>, vector<1x384xf32>
    %92 = vector.broadcast %91 : vector<1x384xf32> to vector<5x384xf32>
    %93 = arith.addf %90, %92 : vector<5x384xf32>
    %cst_50 = arith.constant 0.000000e+00 : f32
    %94 = vector.broadcast %cst_50 : f32 to vector<5x384xf32>
    %95 = arith.maximumf %93, %94 : vector<5x384xf32>
    %96 = vector.extract_strided_slice %95 {offsets = [0, 0], sizes = [1, 384], strides = [1, 1]} : vector<5x384xf32> to vector<1x384xf32>
    %97 = arith.truncf %96 : vector<1x384xf32> to vector<1x384xbf16>
    %c0_51 = arith.constant 0 : index
    %c0_52 = arith.constant 0 : index
    %c0_53 = arith.constant 0 : index
    %98 = vector.load %arg9[%c0_51, %c0_52, %c0_53] : memref<5x384x128xbf16, #tpu.memory_space<vmem>>, vector<1x384x128xbf16>
    %99 = vector.shape_cast %98 : vector<1x384x128xbf16> to vector<384x128xbf16>
    %cst_54 = arith.constant dense<0.000000e+00> : vector<1x128xf32>
    %100 = tpu.matmul %97, %99, %cst_54 {dimension_numbers = #tpu.dot_dimension_numbers<[1], [0], [0], [1], [0, 0, 1, 1], [], []>} : vector<1x384xbf16>, vector<384x128xbf16>, vector<1x128xf32> -> vector<1x128xf32>
    %101 = vector.extract_strided_slice %95 {offsets = [1, 0], sizes = [1, 384], strides = [1, 1]} : vector<5x384xf32> to vector<1x384xf32>
    %102 = arith.truncf %101 : vector<1x384xf32> to vector<1x384xbf16>
    %c1_55 = arith.constant 1 : index
    %c0_56 = arith.constant 0 : index
    %c0_57 = arith.constant 0 : index
    %103 = vector.load %arg9[%c1_55, %c0_56, %c0_57] : memref<5x384x128xbf16, #tpu.memory_space<vmem>>, vector<1x384x128xbf16>
    %104 = vector.shape_cast %103 : vector<1x384x128xbf16> to vector<384x128xbf16>
    %cst_58 = arith.constant dense<0.000000e+00> : vector<1x128xf32>
    %105 = tpu.matmul %102, %104, %cst_58 {dimension_numbers = #tpu.dot_dimension_numbers<[1], [0], [0], [1], [0, 0, 1, 1], [], []>} : vector<1x384xbf16>, vector<384x128xbf16>, vector<1x128xf32> -> vector<1x128xf32>
    %106 = arith.addf %100, %105 : vector<1x128xf32>
    %107 = vector.extract_strided_slice %95 {offsets = [2, 0], sizes = [1, 384], strides = [1, 1]} : vector<5x384xf32> to vector<1x384xf32>
    %108 = arith.truncf %107 : vector<1x384xf32> to vector<1x384xbf16>
    %c2_59 = arith.constant 2 : index
    %c0_60 = arith.constant 0 : index
    %c0_61 = arith.constant 0 : index
    %109 = vector.load %arg9[%c2_59, %c0_60, %c0_61] : memref<5x384x128xbf16, #tpu.memory_space<vmem>>, vector<1x384x128xbf16>
    %110 = vector.shape_cast %109 : vector<1x384x128xbf16> to vector<384x128xbf16>
    %cst_62 = arith.constant dense<0.000000e+00> : vector<1x128xf32>
    %111 = tpu.matmul %108, %110, %cst_62 {dimension_numbers = #tpu.dot_dimension_numbers<[1], [0], [0], [1], [0, 0, 1, 1], [], []>} : vector<1x384xbf16>, vector<384x128xbf16>, vector<1x128xf32> -> vector<1x128xf32>
    %112 = arith.addf %106, %111 : vector<1x128xf32>
    %113 = vector.extract_strided_slice %95 {offsets = [3, 0], sizes = [1, 384], strides = [1, 1]} : vector<5x384xf32> to vector<1x384xf32>
    %114 = arith.truncf %113 : vector<1x384xf32> to vector<1x384xbf16>
    %c3 = arith.constant 3 : index
    %c0_63 = arith.constant 0 : index
    %c0_64 = arith.constant 0 : index
    %115 = vector.load %arg9[%c3, %c0_63, %c0_64] : memref<5x384x128xbf16, #tpu.memory_space<vmem>>, vector<1x384x128xbf16>
    %116 = vector.shape_cast %115 : vector<1x384x128xbf16> to vector<384x128xbf16>
    %cst_65 = arith.constant dense<0.000000e+00> : vector<1x128xf32>
    %117 = tpu.matmul %114, %116, %cst_65 {dimension_numbers = #tpu.dot_dimension_numbers<[1], [0], [0], [1], [0, 0, 1, 1], [], []>} : vector<1x384xbf16>, vector<384x128xbf16>, vector<1x128xf32> -> vector<1x128xf32>
    %118 = arith.addf %112, %117 : vector<1x128xf32>
    %119 = vector.extract_strided_slice %95 {offsets = [4, 0], sizes = [1, 384], strides = [1, 1]} : vector<5x384xf32> to vector<1x384xf32>
    %120 = arith.truncf %119 : vector<1x384xf32> to vector<1x384xbf16>
    %c4 = arith.constant 4 : index
    %c0_66 = arith.constant 0 : index
    %c0_67 = arith.constant 0 : index
    %121 = vector.load %arg9[%c4, %c0_66, %c0_67] : memref<5x384x128xbf16, #tpu.memory_space<vmem>>, vector<1x384x128xbf16>
    %122 = vector.shape_cast %121 : vector<1x384x128xbf16> to vector<384x128xbf16>
    %cst_68 = arith.constant dense<0.000000e+00> : vector<1x128xf32>
    %123 = tpu.matmul %120, %122, %cst_68 {dimension_numbers = #tpu.dot_dimension_numbers<[1], [0], [0], [1], [0, 0, 1, 1], [], []>} : vector<1x384xbf16>, vector<384x128xbf16>, vector<1x128xf32> -> vector<1x128xf32>
    %124 = arith.addf %118, %123 : vector<1x128xf32>
    %c0_69 = arith.constant 0 : index
    %c0_70 = arith.constant 0 : index
    %125 = vector.load %arg10[%c0_69, %c0_70] : memref<1x128xf32, #tpu.memory_space<vmem>>, vector<1x128xf32>
    %126 = arith.addf %124, %125 : vector<1x128xf32>
    %cst_71 = arith.constant 0.000000e+00 : f32
    %127 = vector.broadcast %cst_71 : f32 to vector<1x128xf32>
    %128 = arith.maximumf %126, %127 : vector<1x128xf32>
    %129 = arith.truncf %128 : vector<1x128xf32> to vector<1x128xbf16>
    %c0_72 = arith.constant 0 : index
    %c0_73 = arith.constant 0 : index
    %130 = vector.load %arg11[%c0_72, %c0_73] : memref<128x10xbf16, #tpu.memory_space<vmem>>, vector<128x10xbf16>
    %cst_74 = arith.constant dense<0.000000e+00> : vector<1x10xf32>
    %131 = tpu.matmul %129, %130, %cst_74 {dimension_numbers = #tpu.dot_dimension_numbers<[1], [0], [0], [1], [0, 0, 1, 1], [], []>} : vector<1x128xbf16>, vector<128x10xbf16>, vector<1x10xf32> -> vector<1x10xf32>
    %c0_75 = arith.constant 0 : index
    %c0_76 = arith.constant 0 : index
    %132 = vector.load %arg12[%c0_75, %c0_76] : memref<1x10xf32, #tpu.memory_space<vmem>>, vector<1x10xf32>
    %133 = arith.addf %131, %132 : vector<1x10xf32>
    %cst_77 = arith.constant dense<0xFF800000> : vector<1xf32>
    %134 = vector.multi_reduction <maximumf>, %133, %cst_77 [1] : vector<1x10xf32> to vector<1xf32>
    %135 = vector.shape_cast %134 : vector<1xf32> to vector<1x1xf32>
    %136 = vector.broadcast %135 : vector<1x1xf32> to vector<1x10xf32>
    %137 = arith.subf %133, %136 : vector<1x10xf32>
    %138 = math.exp %137 : vector<1x10xf32>
    %cst_78 = arith.constant dense<0.000000e+00> : vector<1xf32>
    %139 = vector.multi_reduction <add>, %138, %cst_78 [1] : vector<1x10xf32> to vector<1xf32>
    %140 = vector.shape_cast %139 : vector<1xf32> to vector<1x1xf32>
    %141 = tpu.reciprocal %140 {approx = true} : vector<1x1xf32> -> vector<1x1xf32>
    %142 = vector.broadcast %141 : vector<1x1xf32> to vector<1x10xf32>
    %143 = arith.mulf %138, %142 : vector<1x10xf32>
    %c0_79 = arith.constant 0 : index
    %c0_80 = arith.constant 0 : index
    %c0_81 = arith.constant 0 : index
    %144 = vector.load %arg13[%c0_79, %c0_80, %c0_81] : memref<1x1x10xf32, #tpu.memory_space<vmem>>, vector<1x1x10xf32>
    %145 = vector.shape_cast %144 : vector<1x1x10xf32> to vector<1x10xf32>
    %146 = vector.shape_cast %143 : vector<1x10xf32> to vector<1x1x10xf32>
    tpu.vector_store %arg13[%c0_79, %c0_80, %c0_81], %146 {strides = array<i32>} : memref<1x1x10xf32, #tpu.memory_space<vmem>>, vector<1x1x10xf32>,
    return
  }
  func.func @transform_0(%arg0: i32) -> (i32, i32, i32) {
    %c0_i32 = arith.constant 0 : i32
    %c0_i32_0 = arith.constant 0 : i32
    %c0_i32_1 = arith.constant 0 : i32
    return %arg0, %c0_i32, %c0_i32_0 : i32, i32, i32
  }
  func.func @transform_1(%arg0: i32) -> (i32, i32, i32) {
    %c0_i32 = arith.constant 0 : i32
    %c0_i32_0 = arith.constant 0 : i32
    %c0_i32_1 = arith.constant 0 : i32
    return %arg0, %c0_i32, %c0_i32_0 : i32, i32, i32
  }
  func.func @transform_2(%arg0: i32) -> (i32, i32, i32) {
    %c0_i32 = arith.constant 0 : i32
    %c0_i32_0 = arith.constant 0 : i32
    %c0_i32_1 = arith.constant 0 : i32
    return %arg0, %c0_i32, %c0_i32_0 : i32, i32, i32
  }
  func.func @transform_3(%arg0: i32) -> (i32, i32, i32) {
    %c0_i32 = arith.constant 0 : i32
    %c0_i32_0 = arith.constant 0 : i32
    %c0_i32_1 = arith.constant 0 : i32
    return %arg0, %c0_i32, %c0_i32_0 : i32, i32, i32
  }
  func.func @transform_4(%arg0: i32) -> (i32, i32, i32) {
    %c0_i32 = arith.constant 0 : i32
    %c0_i32_0 = arith.constant 0 : i32
    %c0_i32_1 = arith.constant 0 : i32
    %c0_i32_2 = arith.constant 0 : i32
    return %c0_i32, %c0_i32_0, %c0_i32_1 : i32, i32, i32
  }
  func.func @transform_5(%arg0: i32) -> (i32, i32) {
    %c0_i32 = arith.constant 0 : i32
    %c0_i32_0 = arith.constant 0 : i32
    %c0_i32_1 = arith.constant 0 : i32
    return %c0_i32, %c0_i32_0 : i32, i32
  }
  func.func @transform_6(%arg0: i32) -> (i32, i32, i32) {
    %c0_i32 = arith.constant 0 : i32
    %c0_i32_0 = arith.constant 0 : i32
    %c0_i32_1 = arith.constant 0 : i32
    %c0_i32_2 = arith.constant 0 : i32
    return %c0_i32, %c0_i32_0, %c0_i32_1 : i32, i32, i32
  }
  func.func @transform_7(%arg0: i32) -> (i32, i32) {
    %c0_i32 = arith.constant 0 : i32
    %c0_i32_0 = arith.constant 0 : i32
    %c0_i32_1 = arith.constant 0 : i32
    return %c0_i32, %c0_i32_0 : i32, i32
  }
  func.func @transform_8(%arg0: i32) -> (i32, i32, i32) {
    %c0_i32 = arith.constant 0 : i32
    %c0_i32_0 = arith.constant 0 : i32
    %c0_i32_1 = arith.constant 0 : i32
    %c0_i32_2 = arith.constant 0 : i32
    return %c0_i32, %c0_i32_0, %c0_i32_1 : i32, i32, i32
  }
  func.func @transform_9(%arg0: i32) -> (i32, i32) {
    %c0_i32 = arith.constant 0 : i32
    %c0_i32_0 = arith.constant 0 : i32
    %c0_i32_1 = arith.constant 0 : i32
    return %c0_i32, %c0_i32_0 : i32, i32
  }
  func.func @transform_10(%arg0: i32) -> (i32, i32) {
    %c0_i32 = arith.constant 0 : i32
    %c0_i32_0 = arith.constant 0 : i32
    %c0_i32_1 = arith.constant 0 : i32
    return %c0_i32, %c0_i32_0 : i32, i32
  }
  func.func @transform_11(%arg0: i32) -> (i32, i32) {
    %c0_i32 = arith.constant 0 : i32
    %c0_i32_0 = arith.constant 0 : i32
    %c0_i32_1 = arith.constant 0 : i32
    return %c0_i32, %c0_i32_0 : i32, i32
  }
  func.func @transform_12(%arg0: i32) -> (i32, i32, i32) {
    %c0_i32 = arith.constant 0 : i32
    %c0_i32_0 = arith.constant 0 : i32
    %c0_i32_1 = arith.constant 0 : i32
    return %arg0, %c0_i32, %c0_i32_0 : i32, i32, i32
  }
}

</mosaic_0001>

<llo_original>
// kernel: cnn_forward.1
$region0: #{cnn_forward.1}
  #allocation0 [shape = 'u32[]', space=smem, size = 0x4, offset = 0x4, fixed_abs, tag = 'smem constant byte address 0x4 - core index']
  #allocation1 [shape = 'u32[72,128]{1,0:T(1,128)}', space=vmem, size = 0x9000, scoped, tag = 'internal scratch']
  %s0 = inlined_call_operand.vmem [shape: f32[2,7,28], index: 0, kind: input, shape index: {}]
  %s1 = inlined_call_operand.vmem [shape: f32[2,7,28], index: 1, kind: input, shape index: {}]
  %s2 = inlined_call_operand.vmem [shape: f32[2,7,28], index: 2, kind: input, shape index: {}]
  %s3 = inlined_call_operand.vmem [shape: f32[2,7,28], index: 3, kind: input, shape index: {}]
  %s4 = inlined_call_operand.hbm [shape: bf16[3,28,1024], index: 4, kind: input, shape index: {}]
  %s5 = inlined_call_operand.hbm [shape: f32[1,512], index: 5, kind: input, shape index: {}]
  %s6 = inlined_call_operand.hbm [shape: bf16[3,512,768], index: 6, kind: input, shape index: {}]
  %s7 = inlined_call_operand.hbm [shape: f32[1,384], index: 7, kind: input, shape index: {}]
  %s8 = inlined_call_operand.hbm [shape: bf16[5,384,128], index: 8, kind: input, shape index: {}]
  %s9 = inlined_call_operand.hbm [shape: f32[1,128], index: 9, kind: input, shape index: {}]
  %s10 = inlined_call_operand.vmem [shape: bf16[128,10], index: 10, kind: input, shape index: {}]
  %s11 = inlined_call_operand.hbm [shape: f32[1,10], index: 11, kind: input, shape index: {}]
  %s12 = inlined_call_operand.hbm [shape: f32[2,1,10], index: 12, kind: output, shape index: {}]
  %s13 = sld [smem:[#allocation0]]
  $region109: #{cnn_forward.1} parent=0
    _
  %s15 = ssub.s32 1, %s13
  %s16 = scalar_select 0, %s15, %s13
  $region1: #{cnn_forward.1} parent=0
    #allocation2 [shape = 'u8[196608]{0}', space=vmem, size = 0x30000, scoped, tag = 'input window, operand 4, single buffered']
    #allocation3 [shape = 's32[2]{0}', space=sflag, size = 0x8, scoped, tag = 'scoped memory for cnn_forward.1']
    #allocation4 [shape = 's32[2]{0}', space=sflag, size = 0x8, scoped, tag = 'scoped memory for cnn_forward.1']
    #allocation5 [shape = 'u8[2048]{0}', space=vmem, size = 0x800, scoped, tag = 'input window, operand 5, single buffered']
    #allocation6 [shape = 's32[1]{0}', space=sflag, size = 0x4, scoped, tag = 'scoped memory for cnn_forward.1']
    #allocation7 [shape = 'u8[2359296]{0}', space=vmem, size = 0x240000, scoped, tag = 'input window, operand 6, single buffered']
    #allocation8 [shape = 'u8[1536]{0}', space=vmem, size = 0x800, scoped, tag = 'input window, operand 7, single buffered']
    #allocation9 [shape = 's32[1]{0}', space=sflag, size = 0x4, scoped, tag = 'scoped memory for cnn_forward.1']
    #allocation10 [shape = 'u8[491520]{0}', space=vmem, size = 0x78000, scoped, tag = 'input window, operand 8, single buffered']
    #allocation11 [shape = 'u8[512]{0}', space=vmem, size = 0x400, scoped, tag = 'input window, operand 9, single buffered']
    #allocation12 [shape = 's32[1]{0}', space=sflag, size = 0x4, scoped, tag = 'scoped memory for cnn_forward.1']
    #allocation13 [shape = 'u8[512]{0}', space=vmem, size = 0x400, scoped, tag = 'input window, operand 11, single buffered']
    #allocation14 [shape = 'u8[1024]{0}', space=vmem, size = 0x400, scoped, tag = 'output window, operand 0']
    %17 = vsyncpa [#allocation3], 0
    %18 = vsyncpa [#allocation6], 0
    %19 = vsyncpa [#allocation9], 0
    %20 = vsyncpa [#allocation12], 0
    %21 = vsyncpa [#allocation4], 0
    %s22 = scalar_lea.sflag [#allocation4], 1
    %23 = vsyncpa %s22, 0
    loop: start=0, step=1, limit=4
    $region2: #{cnn_forward.1} parent=1 // loop_pre_header
      _
    $region3: #{cnn_forward.1} parent=1 // loop_header
      %s25 = sphi 0, %s29
      %p26 = scmp.ge.s32.totalorder %s25, 4
      %s35 = sphi 0, %s37
      %s38 = sphi 0, %s35
      %s39 = sphi 0, %s38
      %s55 = sphi 0, %s39
      %s61 = sphi 0, %s63
      %s64 = sphi 0, %s61
      %s65 = sphi 0, %s64
      %s81 = sphi 0, %s65
      %s87 = sphi 0, %s89
      %s90 = sphi 0, %s87
      %s91 = sphi 0, %s90
      %s107 = sphi 0, %s91
      %s113 = sphi 0, %s115
      %s116 = sphi 0, %s113
      %s117 = sphi 0, %s116
      %s133 = sphi 0, %s117
      %s137 = sphi 0, %s137
      %s139 = sphi 0, %s137
      %s140 = sphi 0, %s139
      %s154 = sphi 0, %s140
      %s158 = sphi 0, %s158
      %s160 = sphi 0, %s158
      %s161 = sphi 0, %s160
      %s175 = sphi 0, %s161
      %s179 = sphi 0, %s179
      %s181 = sphi 0, %s179
      %s182 = sphi 0, %s181
      %s196 = sphi 0, %s182
      %s200 = sphi 0, %s200
      %s202 = sphi 0, %s200
      %s203 = sphi 0, %s202
      %s217 = sphi 0, %s203
      %s221 = sphi 0, %s221
      %s223 = sphi 0, %s221
      %s224 = sphi 0, %s223
      %s238 = sphi 0, %s224
      %s242 = sphi 0, %s242
      %s244 = sphi 0, %s242
      %s245 = sphi 0, %s244
      %s259 = sphi 0, %s245
      %s263 = sphi 0, %s263
      %s265 = sphi 0, %s263
      %s266 = sphi 0, %s265
      %s280 = sphi 0, %s266
      %s284 = sphi 0, %s284
      %s286 = sphi 0, %s284
      %s287 = sphi 0, %s286
      %s301 = sphi 0, %s287
      %s307 = sphi 0, %s309
      %s310 = sphi 0, %s307
      %s311 = sphi 0, %s310
      %s327 = sphi 0, %s311
    $region4: #{cnn_forward.1} parent=1 // loop_header_branch
      %28 = sbr.rel (%p26) target = $region8
    $region5: #{cnn_forward.1} parent=1 // loop_body
      %s30 = ssub.s32 %s25, 1
      %s31 = ssub.s32 %s25, 2
      %s32 = sadd.s32 %s25, 1
      %s33 = ssub.s32 %s25, %s32
      %p34 = scmp.eq.s32.totalorder %s33, 0
      %s36 = sadd.s32 %s35, 1
      %s37 = scalar_select %p34, %s35, %s36
      %p40 = pneg %p34
      %p41 = scmp.eq.s32.totalorder %s25, 1
      %p42 = por %p40, %p41
      %p43 = scmp.ne.s32.totalorder %s35, %s38
      %p44 = scmp.eq.s32.totalorder %s25, 0
      %p45 = por %p43, %p44
      %p46 = scmp.ne.s32.totalorder %s35, %s38
      %p47 = scmp.eq.s32.totalorder %s30, 1
      %p48 = por %p46, %p47
      %p49 = scmp.ne.s32.totalorder %s38, %s39
      %p50 = scmp.eq.s32.totalorder %s30, 0
      %p51 = por %p49, %p50
      %p52 = scmp.ne.s32.totalorder %s38, %s39
      %p53 = scmp.eq.s32.totalorder %s31, 1
      %p54 = por %p52, %p53
      %p56 = scmp.ne.s32.totalorder %s39, %s55
      %p57 = scmp.eq.s32.totalorder %s31, 0
      %p58 = por %p56, %p57
      %s59 = ssub.s32 %s25, %s32
      %p60 = scmp.eq.s32.totalorder %s59, 0
      %s62 = sadd.s32 %s61, 1
      %s63 = scalar_select %p60, %s61, %s62
      %p66 = pneg %p60
      %p67 = scmp.eq.s32.totalorder %s25, 1
      %p68 = por %p66, %p67
      %p69 = scmp.ne.s32.totalorder %s61, %s64
      %p70 = scmp.eq.s32.totalorder %s25, 0
      %p71 = por %p69, %p70
      %p72 = scmp.ne.s32.totalorder %s61, %s64
      %p73 = scmp.eq.s32.totalorder %s30, 1
      %p74 = por %p72, %p73
      %p75 = scmp.ne.s32.totalorder %s64, %s65
      %p76 = scmp.eq.s32.totalorder %s30, 0
      %p77 = por %p75, %p76
      %p78 = scmp.ne.s32.totalorder %s64, %s65
      %p79 = scmp.eq.s32.totalorder %s31, 1
      %p80 = por %p78, %p79
      %p82 = scmp.ne.s32.totalorder %s65, %s81
      %p83 = scmp.eq.s32.totalorder %s31, 0
      %p84 = por %p82, %p83
      %s85 = ssub.s32 %s25, %s32
      %p86 = scmp.eq.s32.totalorder %s85, 0
      %s88 = sadd.s32 %s87, 1
      %s89 = scalar_select %p86, %s87, %s88
      %p92 = pneg %p86
      %p93 = scmp.eq.s32.totalorder %s25, 1
      %p94 = por %p92, %p93
      %p95 = scmp.ne.s32.totalorder %s87, %s90
      %p96 = scmp.eq.s32.totalorder %s25, 0
      %p97 = por %p95, %p96
      %p98 = scmp.ne.s32.totalorder %s87, %s90
      %p99 = scmp.eq.s32.totalorder %s30, 1
      %p100 = por %p98, %p99
      %p101 = scmp.ne.s32.totalorder %s90, %s91
      %p102 = scmp.eq.s32.totalorder %s30, 0
      %p103 = por %p101, %p102
      %p104 = scmp.ne.s32.totalorder %s90, %s91
      %p105 = scmp.eq.s32.totalorder %s31, 1
      %p106 = por %p104, %p105
      %p108 = scmp.ne.s32.totalorder %s91, %s107
      %p109 = scmp.eq.s32.totalorder %s31, 0
      %p110 = por %p108, %p109
      %s111 = ssub.s32 %s25, %s32
      %p112 = scmp.eq.s32.totalorder %s111, 0
      %s114 = sadd.s32 %s113, 1
      %s115 = scalar_select %p112, %s113, %s114
      %p118 = pneg %p112
      %p119 = scmp.eq.s32.totalorder %s25, 1
      %p120 = por %p118, %p119
      %p121 = scmp.ne.s32.totalorder %s113, %s116
      %p122 = scmp.eq.s32.totalorder %s25, 0
      %p123 = por %p121, %p122
      %p124 = scmp.ne.s32.totalorder %s113, %s116
      %p125 = scmp.eq.s32.totalorder %s30, 1
      %p126 = por %p124, %p125
      %p127 = scmp.ne.s32.totalorder %s116, %s117
      %p128 = scmp.eq.s32.totalorder %s30, 0
      %p129 = por %p127, %p128
      %p130 = scmp.ne.s32.totalorder %s116, %s117
      %p131 = scmp.eq.s32.totalorder %s31, 1
      %p132 = por %p130, %p131
      %p134 = scmp.ne.s32.totalorder %s117, %s133
      %p135 = scmp.eq.s32.totalorder %s31, 0
      %p136 = por %p134, %p135
      %s138 = sadd.s32 %s137, 1
      %p141 = scmp.eq.s32.totalorder %s25, 1
      %p142 = scmp.ne.s32.totalorder %s137, %s139
      %p143 = scmp.eq.s32.totalorder %s25, 0
      %p144 = por %p142, %p143
      %p145 = scmp.ne.s32.totalorder %s137, %s139
      %p146 = scmp.eq.s32.totalorder %s30, 1
      %p147 = por %p145, %p146
      %p148 = scmp.ne.s32.totalorder %s139, %s140
      %p149 = scmp.eq.s32.totalorder %s30, 0
      %p150 = por %p148, %p149
      %p151 = scmp.ne.s32.totalorder %s139, %s140
      %p152 = scmp.eq.s32.totalorder %s31, 1
      %p153 = por %p151, %p152
      %p155 = scmp.ne.s32.totalorder %s140, %s154
      %p156 = scmp.eq.s32.totalorder %s31, 0
      %p157 = por %p155, %p156
      %s159 = sadd.s32 %s158, 1
      %p162 = scmp.eq.s32.totalorder %s25, 1
      %p163 = scmp.ne.s32.totalorder %s158, %s160
      %p164 = scmp.eq.s32.totalorder %s25, 0
      %p165 = por %p163, %p164
      %p166 = scmp.ne.s32.totalorder %s158, %s160
      %p167 = scmp.eq.s32.totalorder %s30, 1
      %p168 = por %p166, %p167
      %p169 = scmp.ne.s32.totalorder %s160, %s161
      %p170 = scmp.eq.s32.totalorder %s30, 0
      %p171 = por %p169, %p170
      %p172 = scmp.ne.s32.totalorder %s160, %s161
      %p173 = scmp.eq.s32.totalorder %s31, 1
      %p174 = por %p172, %p173
      %p176 = scmp.ne.s32.totalorder %s161, %s175
      %p177 = scmp.eq.s32.totalorder %s31, 0
      %p178 = por %p176, %p177
      %s180 = sadd.s32 %s179, 1
      %p183 = scmp.eq.s32.totalorder %s25, 1
      %p184 = scmp.ne.s32.totalorder %s179, %s181
      %p185 = scmp.eq.s32.totalorder %s25, 0
      %p186 = por %p184, %p185
      %p187 = scmp.ne.s32.totalorder %s179, %s181
      %p188 = scmp.eq.s32.totalorder %s30, 1
      %p189 = por %p187, %p188
      %p190 = scmp.ne.s32.totalorder %s181, %s182
      %p191 = scmp.eq.s32.totalorder %s30, 0
      %p192 = por %p190, %p191
      %p193 = scmp.ne.s32.totalorder %s181, %s182
      %p194 = scmp.eq.s32.totalorder %s31, 1
      %p195 = por %p193, %p194
      %p197 = scmp.ne.s32.totalorder %s182, %s196
      %p198 = scmp.eq.s32.totalorder %s31, 0
      %p199 = por %p197, %p198
      %s201 = sadd.s32 %s200, 1
      %p204 = scmp.eq.s32.totalorder %s25, 1
      %p205 = scmp.ne.s32.totalorder %s200, %s202
      %p206 = scmp.eq.s32.totalorder %s25, 0
      %p207 = por %p205, %p206
      %p208 = scmp.ne.s32.totalorder %s200, %s202
      %p209 = scmp.eq.s32.totalorder %s30, 1
      %p210 = por %p208, %p209
      %p211 = scmp.ne.s32.totalorder %s202, %s203
      %p212 = scmp.eq.s32.totalorder %s30, 0
      %p213 = por %p211, %p212
      %p214 = scmp.ne.s32.totalorder %s202, %s203
      %p215 = scmp.eq.s32.totalorder %s31, 1
      %p216 = por %p214, %p215
      %p218 = scmp.ne.s32.totalorder %s203, %s217
      %p219 = scmp.eq.s32.totalorder %s31, 0
      %p220 = por %p218, %p219
      %s222 = sadd.s32 %s221, 1
      %p225 = scmp.eq.s32.totalorder %s25, 1
      %p226 = scmp.ne.s32.totalorder %s221, %s223
      %p227 = scmp.eq.s32.totalorder %s25, 0
      %p228 = por %p226, %p227
      %p229 = scmp.ne.s32.totalorder %s221, %s223
      %p230 = scmp.eq.s32.totalorder %s30, 1
      %p231 = por %p229, %p230
      %p232 = scmp.ne.s32.totalorder %s223, %s224
      %p233 = scmp.eq.s32.totalorder %s30, 0
      %p234 = por %p232, %p233
      %p235 = scmp.ne.s32.totalorder %s223, %s224
      %p236 = scmp.eq.s32.totalorder %s31, 1
      %p237 = por %p235, %p236
      %p239 = scmp.ne.s32.totalorder %s224, %s238
      %p240 = scmp.eq.s32.totalorder %s31, 0
      %p241 = por %p239, %p240
      %s243 = sadd.s32 %s242, 1
      %p246 = scmp.eq.s32.totalorder %s25, 1
      %p247 = scmp.ne.s32.totalorder %s242, %s244
      %p248 = scmp.eq.s32.totalorder %s25, 0
      %p249 = por %p247, %p248
      %p250 = scmp.ne.s32.totalorder %s242, %s244
      %p251 = scmp.eq.s32.totalorder %s30, 1
      %p252 = por %p250, %p251
      %p253 = scmp.ne.s32.totalorder %s244, %s245
      %p254 = scmp.eq.s32.totalorder %s30, 0
      %p255 = por %p253, %p254
      %p256 = scmp.ne.s32.totalorder %s244, %s245
      %p257 = scmp.eq.s32.totalorder %s31, 1
      %p258 = por %p256, %p257
      %p260 = scmp.ne.s32.totalorder %s245, %s259
      %p261 = scmp.eq.s32.totalorder %s31, 0
      %p262 = por %p260, %p261
      %s264 = sadd.s32 %s263, 1
      %p267 = scmp.eq.s32.totalorder %s25, 1
      %p268 = scmp.ne.s32.totalorder %s263, %s265
      %p269 = scmp.eq.s32.totalorder %s25, 0
      %p270 = por %p268, %p269
      %p271 = scmp.ne.s32.totalorder %s263, %s265
      %p272 = scmp.eq.s32.totalorder %s30, 1
      %p273 = por %p271, %p272
      %p274 = scmp.ne.s32.totalorder %s265, %s266
      %p275 = scmp.eq.s32.totalorder %s30, 0
      %p276 = por %p274, %p275
      %p277 = scmp.ne.s32.totalorder %s265, %s266
      %p278 = scmp.eq.s32.totalorder %s31, 1
      %p279 = por %p277, %p278
      %p281 = scmp.ne.s32.totalorder %s266, %s280
      %p282 = scmp.eq.s32.totalorder %s31, 0
      %p283 = por %p281, %p282
      %s285 = sadd.s32 %s284, 1
      %p288 = scmp.eq.s32.totalorder %s25, 1
      %p289 = scmp.ne.s32.totalorder %s284, %s286
      %p290 = scmp.eq.s32.totalorder %s25, 0
      %p291 = por %p289, %p290
      %p292 = scmp.ne.s32.totalorder %s284, %s286
      %p293 = scmp.eq.s32.totalorder %s30, 1
      %p294 = por %p292, %p293
      %p295 = scmp.ne.s32.totalorder %s286, %s287
      %p296 = scmp.eq.s32.totalorder %s30, 0
      %p297 = por %p295, %p296
      %p298 = scmp.ne.s32.totalorder %s286, %s287
      %p299 = scmp.eq.s32.totalorder %s31, 1
      %p300 = por %p298, %p299
      %p302 = scmp.ne.s32.totalorder %s287, %s301
      %p303 = scmp.eq.s32.totalorder %s31, 0
      %p304 = por %p302, %p303
      %s305 = ssub.s32 %s25, %s32
      %p306 = scmp.eq.s32.totalorder %s305, 0
      %s308 = sadd.s32 %s307, 1
      %s309 = scalar_select %p306, %s307, %s308
      %p312 = pneg %p306
      %p313 = scmp.eq.s32.totalorder %s25, 1
      %p314 = por %p312, %p313
      %p315 = scmp.ne.s32.totalorder %s307, %s310
      %p316 = scmp.eq.s32.totalorder %s25, 0
      %p317 = por %p315, %p316
      %p318 = scmp.ne.s32.totalorder %s307, %s310
      %p319 = scmp.eq.s32.totalorder %s30, 1
      %p320 = por %p318, %p319
      %p321 = scmp.ne.s32.totalorder %s310, %s311
      %p322 = scmp.eq.s32.totalorder %s30, 0
      %p323 = por %p321, %p322
      %p324 = scmp.ne.s32.totalorder %s310, %s311
      %p325 = scmp.eq.s32.totalorder %s31, 1
      %p326 = por %p324, %p325
      %p328 = scmp.ne.s32.totalorder %s311, %s327
      %p329 = scmp.eq.s32.totalorder %s31, 0
      %p330 = por %p328, %p329
      %p331 = scmp.le.s32.totalorder 1, %s25
      %p332 = scmp.lt.s32.totalorder %s25, 3
      %p333 = pnand %p331, %p332
      %p334 = pneg %p333
      // Predicated region
      $region9: #{cnn_forward.1} parent=5 // pred_check
        _
      $region10: #{cnn_forward.1} parent=5 // pred_check_branch
        %336 = sbr.rel (%p333) target = $region12
      $region11: #{cnn_forward.1} parent=5 // pred_region
        %s337 = ssub.s32 %s25, 1
        // Predicated region
        $region13: #{cnn_forward.1} parent=11 // pred_check
          %p338 = pneg %p150
        $region14: #{cnn_forward.1} parent=11 // pred_check_branch
          %340 = sbr.rel (%p338) target = $region16
        $region15: #{cnn_forward.1} parent=11 // pred_region
          %342 = vsyncadd [#allocation3], 0
          %s343 = sshll.u32 %s4, 4
          %s344 = int_to_ptr.hbm [resolvable:$true] %s343
          %s345 = sshll.u32 [#allocation2], 4
          %s346 = int_to_ptr.vmem [resolvable:$true] %s345
          %351 = dma.hbm_to_vmem [thread:$0]  %s344, 6144, %s346, [#allocation3], 512, 512, 32
        $region16: #{cnn_forward.1} parent=11 // pred_fallthru
          _
        // Predicated region
        $region17: #{cnn_forward.1} parent=11 // pred_check
          %p352 = pneg %p171
        $region18: #{cnn_forward.1} parent=11 // pred_check_branch
          %354 = sbr.rel (%p352) target = $region20
        $region19: #{cnn_forward.1} parent=11 // pred_region
          %356 = vsyncadd [#allocation6], 0
          %s358 = sshll.u32 %s5, 4
          %s359 = int_to_ptr.hbm [resolvable:$true] %s358
          %s360 = sshll.u32 [#allocation5], 4
          %s361 = int_to_ptr.vmem [resolvable:$true] %s360
          %363 = dma.hbm_to_vmem [thread:$0]  %s359, 64, %s361, [#allocation6]
        $region20: #{cnn_forward.1} parent=11 // pred_fallthru
          _
        // Predicated region
        $region21: #{cnn_forward.1} parent=11 // pred_check
          %p364 = pneg %p192
        $region22: #{cnn_forward.1} parent=11 // pred_check_branch
          %366 = sbr.rel (%p364) target = $region24
        $region23: #{cnn_forward.1} parent=11 // pred_region
          %368 = vsyncadd [#allocation6], 0
          %s369 = sshll.u32 %s6, 4
          %s370 = int_to_ptr.hbm [resolvable:$true] %s369
          %s371 = sshll.u32 [#allocation7], 4
          %s372 = int_to_ptr.vmem [resolvable:$true] %s371
          %377 = dma.hbm_to_vmem [thread:$0]  %s370, 73728, %s372, [#allocation6], 384, 384, 24
        $region24: #{cnn_forward.1} parent=11 // pred_fallthru
          _
        // Predicated region
        $region25: #{cnn_forward.1} parent=11 // pred_check
          %p378 = pneg %p213
        $region26: #{cnn_forward.1} parent=11 // pred_check_branch
          %380 = sbr.rel (%p378) target = $region28
        $region27: #{cnn_forward.1} parent=11 // pred_region
          %382 = vsyncadd [#allocation9], 0
          %s384 = sshll.u32 %s7, 4
          %s385 = int_to_ptr.hbm [resolvable:$true] %s384
          %s386 = sshll.u32 [#allocation8], 4
          %s387 = int_to_ptr.vmem [resolvable:$true] %s386
          %389 = dma.hbm_to_vmem [thread:$0]  %s385, 48, %s387, [#allocation9]
        $region28: #{cnn_forward.1} parent=11 // pred_fallthru
          _
        // Predicated region
        $region29: #{cnn_forward.1} parent=11 // pred_check
          %p390 = pneg %p234
        $region30: #{cnn_forward.1} parent=11 // pred_check_branch
          %392 = sbr.rel (%p390) target = $region32
        $region31: #{cnn_forward.1} parent=11 // pred_region
          %394 = vsyncadd [#allocation9], 0
          %s395 = sshll.u32 %s8, 4
          %s396 = int_to_ptr.hbm [resolvable:$true] %s395
          %s397 = sshll.u32 [#allocation10], 4
          %s398 = int_to_ptr.vmem [resolvable:$true] %s397
          %403 = dma.hbm_to_vmem [thread:$0]  %s396, 15360, %s398, [#allocation9], 64, 64, 4
        $region32: #{cnn_forward.1} parent=11 // pred_fallthru
          _
        // Predicated region
        $region33: #{cnn_forward.1} parent=11 // pred_check
          %p404 = pneg %p255
        $region34: #{cnn_forward.1} parent=11 // pred_check_branch
          %406 = sbr.rel (%p404) target = $region36
        $region35: #{cnn_forward.1} parent=11 // pred_region
          %408 = vsyncadd [#allocation12], 0
          %s410 = sshll.u32 %s9, 4
          %s411 = int_to_ptr.hbm [resolvable:$true] %s410
          %s412 = sshll.u32 [#allocation11], 4
          %s413 = int_to_ptr.vmem [resolvable:$true] %s412
          %415 = dma.hbm_to_vmem [thread:$0]  %s411, 16, %s413, [#allocation12]
        $region36: #{cnn_forward.1} parent=11 // pred_fallthru
          _
        // Predicated region
        $region37: #{cnn_forward.1} parent=11 // pred_check
          %p416 = pneg %p276
        $region38: #{cnn_forward.1} parent=11 // pred_check_branch
          %418 = sbr.rel (%p416) target = $region40
        $region39: #{cnn_forward.1} parent=11 // pred_region
          _
        $region40: #{cnn_forward.1} parent=11 // pred_fallthru
          _
        // Predicated region
        $region41: #{cnn_forward.1} parent=11 // pred_check
          %p419 = pneg %p297
        $region42: #{cnn_forward.1} parent=11 // pred_check_branch
          %421 = sbr.rel (%p419) target = $region44
        $region43: #{cnn_forward.1} parent=11 // pred_region
          %423 = vsyncadd [#allocation12], 0
          %s425 = sshll.u32 %s11, 4
          %s426 = int_to_ptr.hbm [resolvable:$true] %s425
          %s427 = sshll.u32 [#allocation13], 4
          %s428 = int_to_ptr.vmem [resolvable:$true] %s427
          %430 = dma.hbm_to_vmem [thread:$0]  %s426, 16, %s428, [#allocation12]
        $region44: #{cnn_forward.1} parent=11 // pred_fallthru
          _
      $region12: #{cnn_forward.1} parent=5 // pred_fallthru
        _
      %p431 = scmp.lt.s32.totalorder %s25, 2
      // Predicated region
      $region45: #{cnn_forward.1} parent=5 // pred_check
        %p432 = pneg %p431
      $region46: #{cnn_forward.1} parent=5 // pred_check_branch
        %434 = sbr.rel (%p432) target = $region48
      $region47: #{cnn_forward.1} parent=5 // pred_region
        // Predicated region
        $region49: #{cnn_forward.1} parent=47 // pred_check
          %p435 = pneg %p45
        $region50: #{cnn_forward.1} parent=47 // pred_check_branch
          %437 = sbr.rel (%p435) target = $region52
        $region51: #{cnn_forward.1} parent=47 // pred_region
          %p438 = scmp.lt.s32.totalorder %s25, 1
          %s439 = scalar_select %p438, %s25, 1
          %s440 = smul.addr %s439, 8
          %s441 = scalar_lea.vmem %s0, %s440
        $region52: #{cnn_forward.1} parent=47 // pred_fallthru
          _
        // Predicated region
        $region53: #{cnn_forward.1} parent=47 // pred_check
          %p442 = pneg %p71
        $region54: #{cnn_forward.1} parent=47 // pred_check_branch
          %444 = sbr.rel (%p442) target = $region56
        $region55: #{cnn_forward.1} parent=47 // pred_region
          %p445 = scmp.lt.s32.totalorder %s25, 1
          %s446 = scalar_select %p445, %s25, 1
          %s447 = smul.addr %s446, 8
          %s448 = scalar_lea.vmem %s1, %s447
        $region56: #{cnn_forward.1} parent=47 // pred_fallthru
          _
        // Predicated region
        $region57: #{cnn_forward.1} parent=47 // pred_check
          %p449 = pneg %p97
        $region58: #{cnn_forward.1} parent=47 // pred_check_branch
          %451 = sbr.rel (%p449) target = $region60
        $region59: #{cnn_forward.1} parent=47 // pred_region
          %p452 = scmp.lt.s32.totalorder %s25, 1
          %s453 = scalar_select %p452, %s25, 1
          %s454 = smul.addr %s453, 8
          %s455 = scalar_lea.vmem %s2, %s454
        $region60: #{cnn_forward.1} parent=47 // pred_fallthru
          _
        // Predicated region
        $region61: #{cnn_forward.1} parent=47 // pred_check
          %p456 = pneg %p123
        $region62: #{cnn_forward.1} parent=47 // pred_check_branch
          %458 = sbr.rel (%p456) target = $region64
        $region63: #{cnn_forward.1} parent=47 // pred_region
          %p459 = scmp.lt.s32.totalorder %s25, 1
          %s460 = scalar_select %p459, %s25, 1
          %s461 = smul.addr %s460, 8
          %s462 = scalar_lea.vmem %s3, %s461
        $region64: #{cnn_forward.1} parent=47 // pred_fallthru
          _
      $region48: #{cnn_forward.1} parent=5 // pred_fallthru
        _
      %p463 = scmp.le.s32.totalorder 1, %s25
      %p464 = scmp.lt.s32.totalorder %s25, 3
      %p465 = pnand %p463, %p464
      %p466 = pneg %p465
      // Predicated region
      $region65: #{cnn_forward.1} parent=5 // pred_check
        _
      $region66: #{cnn_forward.1} parent=5 // pred_check_branch
        %468 = sbr.rel (%p465) target = $region68
      $region67: #{cnn_forward.1} parent=5 // pred_region
        %s469 = ssub.s32 %s25, 1
        // Predicated region
        $region69: #{cnn_forward.1} parent=67 // pred_check
          %p470 = pneg %p150
        $region70: #{cnn_forward.1} parent=67 // pred_check_branch
          %472 = sbr.rel (%p470) target = $region72
        $region71: #{cnn_forward.1} parent=67 // pred_region
          %474 = dma.done [#allocation3], 6144
        $region72: #{cnn_forward.1} parent=67 // pred_fallthru
          _
        // Predicated region
        $region73: #{cnn_forward.1} parent=67 // pred_check
          %p475 = pneg %p171
        $region74: #{cnn_forward.1} parent=67 // pred_check_branch
          %477 = sbr.rel (%p475) target = $region76
        $region75: #{cnn_forward.1} parent=67 // pred_region
          %479 = dma.done [#allocation6], 64
        $region76: #{cnn_forward.1} parent=67 // pred_fallthru
          _
        // Predicated region
        $region77: #{cnn_forward.1} parent=67 // pred_check
          %p480 = pneg %p192
        $region78: #{cnn_forward.1} parent=67 // pred_check_branch
          %482 = sbr.rel (%p480) target = $region80
        $region79: #{cnn_forward.1} parent=67 // pred_region
          %484 = dma.done [#allocation6], 73728
        $region80: #{cnn_forward.1} parent=67 // pred_fallthru
          _
        // Predicated region
        $region81: #{cnn_forward.1} parent=67 // pred_check
          %p485 = pneg %p213
        $region82: #{cnn_forward.1} parent=67 // pred_check_branch
          %487 = sbr.rel (%p485) target = $region84
        $region83: #{cnn_forward.1} parent=67 // pred_region
          %489 = dma.done [#allocation9], 48
        $region84: #{cnn_forward.1} parent=67 // pred_fallthru
          _
        // Predicated region
        $region85: #{cnn_forward.1} parent=67 // pred_check
          %p490 = pneg %p234
        $region86: #{cnn_forward.1} parent=67 // pred_check_branch
          %492 = sbr.rel (%p490) target = $region88
        $region87: #{cnn_forward.1} parent=67 // pred_region
          %494 = dma.done [#allocation9], 15360
        $region88: #{cnn_forward.1} parent=67 // pred_fallthru
          _
        // Predicated region
        $region89: #{cnn_forward.1} parent=67 // pred_check
          %p495 = pneg %p255
        $region90: #{cnn_forward.1} parent=67 // pred_check_branch
          %497 = sbr.rel (%p495) target = $region92
        $region91: #{cnn_forward.1} parent=67 // pred_region
          %499 = dma.done [#allocation12], 16
        $region92: #{cnn_forward.1} parent=67 // pred_fallthru
          _
        // Predicated region
        $region93: #{cnn_forward.1} parent=67 // pred_check
          %p500 = pneg %p297
        $region94: #{cnn_forward.1} parent=67 // pred_check_branch
          %502 = sbr.rel (%p500) target = $region96
        $region95: #{cnn_forward.1} parent=67 // pred_region
          %504 = dma.done [#allocation12], 16
        $region96: #{cnn_forward.1} parent=67 // pred_fallthru
          _
        %p505 = scmp.lt.s32.totalorder %s30, 1
        %s506 = scalar_select %p505, %s30, 1
        %s507 = smul.addr %s506, 8
        %s508 = scalar_lea.vmem %s0, %s507
        %p509 = pneg %p51
        %p510 = pneg %p48
        %p511 = scmp.lt.s32.totalorder %s30, 1
        %s512 = scalar_select %p511, %s30, 1
        %s513 = smul.addr %s512, 8
        %s514 = scalar_lea.vmem %s1, %s513
        %p515 = pneg %p77
        %p516 = pneg %p74
        %p517 = scmp.lt.s32.totalorder %s30, 1
        %s518 = scalar_select %p517, %s30, 1
        %s519 = smul.addr %s518, 8
        %s520 = scalar_lea.vmem %s2, %s519
        %p521 = pneg %p103
        %p522 = pneg %p100
        %p523 = scmp.lt.s32.totalorder %s30, 1
        %s524 = scalar_select %p523, %s30, 1
        %s525 = smul.addr %s524, 8
        %s526 = scalar_lea.vmem %s3, %s525
        %p527 = pneg %p129
        %p528 = pneg %p126
        %p529 = pneg %p150
        %p530 = pneg %p147
        %p531 = pneg %p171
        %p532 = pneg %p168
        %p533 = pneg %p192
        %p534 = pneg %p189
        %p535 = pneg %p213
        %p536 = pneg %p210
        %p537 = pneg %p234
        %p538 = pneg %p231
        %p539 = pneg %p255
        %p540 = pneg %p252
        %p541 = pneg %p276
        %p542 = pneg %p273
        %p543 = pneg %p297
        %p544 = pneg %p294
        %p545 = pneg %p323
        %p546 = pneg %p320
        %s547 = sand.u32 %s310, 1
        %s548 = scalar_lea.sflag [#allocation4], %s547
        %s549 = sand.u32 %s310, 1
        %s550 = scalar_lea.vmem [#allocation14], %s549
        %p551 = scmp.lt.s32.totalorder %s30, 1
        %s552 = scalar_select %p551, %s30, 1
        %s553 = smul.addr %s552, 8
        %s554 = scalar_lea.vmem %s0, %s553
        %p555 = scmp.lt.s32.totalorder %s30, 1
        %s556 = scalar_select %p555, %s30, 1
        %s557 = smul.addr %s556, 8
        %s558 = scalar_lea.vmem %s1, %s557
        %p559 = scmp.lt.s32.totalorder %s30, 1
        %s560 = scalar_select %p559, %s30, 1
        %s561 = smul.addr %s560, 8
        %s562 = scalar_lea.vmem %s2, %s561
        %p563 = scmp.lt.s32.totalorder %s30, 1
        %s564 = scalar_select %p563, %s30, 1
        %s565 = smul.addr %s564, 8
        %s566 = scalar_lea.vmem %s3, %s565
        %v568 = vld [vmem:[%s554] sm:$0x7f]
        %v569 = vld [vmem:[%s558] sm:$0x7f]
        %v570 = vld [vmem:[%s562] sm:$0x7f]
        %v571 = vld [vmem:[%s566] sm:$0x7f]
        %v572 = vpack.c.bf16 %v568, %v568
        %v573 = vpack.c.bf16 %v569, %v569
        %v574 = vpack.c.bf16 %v570, %v570
        %v575 = vpack.c.bf16 %v571, %v571
        %v576 = vld [vmem:[#allocation2] sm:$0xff]
        %v577 = vld [vmem:[#allocation2 + $0x8] sm:$0xff]
        %v578 = vld [vmem:[#allocation2 + $0x10] sm:$0xff]
        %v579 = vld [vmem:[#allocation2 + $0x18] sm:$0xff]
        %v580 = vld [vmem:[#allocation2 + $0x20] sm:$0xff]
        %v581 = vld [vmem:[#allocation2 + $0x28] sm:$0xff]
        %v582 = vld [vmem:[#allocation2 + $0x30] sm:$0xff]
        %v583 = vld [vmem:[#allocation2 + $0x38] sm:$0xff]
        %v584 = vld [vmem:[#allocation2 + $0x40] sm:$0xff]
        %v585 = vld [vmem:[#allocation2 + $0x48] sm:$0xff]
        %v586 = vld [vmem:[#allocation2 + $0x50] sm:$0xff]
        %v587 = vld [vmem:[#allocation2 + $0x58] sm:$0xff]
        %v588 = vld [vmem:[#allocation2 + $0x60] sm:$0x33]
        %v589 = vld [vmem:[#allocation2 + $0x68] sm:$0x33]
        %v590 = vld [vmem:[#allocation2 + $0x70] sm:$0x33]
        %v591 = vld [vmem:[#allocation2 + $0x78] sm:$0x33]
        %s592 = scalar_lea.vmem [#allocation2], 128
        %v593 = vld [vmem:[%s592] sm:$0xff]
        %v594 = vld [vmem:[%s592 + $0x8] sm:$0xff]
        %v595 = vld [vmem:[%s592 + $0x10] sm:$0xff]
        %v596 = vld [vmem:[%s592 + $0x18] sm:$0xff]
        %v597 = vld [vmem:[%s592 + $0x20] sm:$0xff]
        %v598 = vld [vmem:[%s592 + $0x28] sm:$0xff]
        %v599 = vld [vmem:[%s592 + $0x30] sm:$0xff]
        %v600 = vld [vmem:[%s592 + $0x38] sm:$0xff]
        %v601 = vld [vmem:[%s592 + $0x40] sm:$0xff]
        %v602 = vld [vmem:[%s592 + $0x48] sm:$0xff]
        %v603 = vld [vmem:[%s592 + $0x50] sm:$0xff]
        %v604 = vld [vmem:[%s592 + $0x58] sm:$0xff]
        %v605 = vld [vmem:[%s592 + $0x60] sm:$0x33]
        %v606 = vld [vmem:[%s592 + $0x68] sm:$0x33]
        %v607 = vld [vmem:[%s592 + $0x70] sm:$0x33]
        %v608 = vld [vmem:[%s592 + $0x78] sm:$0x33]
        %s609 = scalar_lea.vmem [#allocation2], 256
        %v610 = vld [vmem:[%s609] sm:$0xff]
        %v611 = vld [vmem:[%s609 + $0x8] sm:$0xff]
        %v612 = vld [vmem:[%s609 + $0x10] sm:$0xff]
        %v613 = vld [vmem:[%s609 + $0x18] sm:$0xff]
        %v614 = vld [vmem:[%s609 + $0x20] sm:$0xff]
        %v615 = vld [vmem:[%s609 + $0x28] sm:$0xff]
        %v616 = vld [vmem:[%s609 + $0x30] sm:$0xff]
        %v617 = vld [vmem:[%s609 + $0x38] sm:$0xff]
        %v618 = vld [vmem:[%s609 + $0x40] sm:$0xff]
        %v619 = vld [vmem:[%s609 + $0x48] sm:$0xff]
        %v620 = vld [vmem:[%s609 + $0x50] sm:$0xff]
        %v621 = vld [vmem:[%s609 + $0x58] sm:$0xff]
        %v622 = vld [vmem:[%s609 + $0x60] sm:$0x33]
        %v623 = vld [vmem:[%s609 + $0x68] sm:$0x33]
        %v624 = vld [vmem:[%s609 + $0x70] sm:$0x33]
        %v625 = vld [vmem:[%s609 + $0x78] sm:$0x33]
        %v642 = vunpack.c.l.b16 %v593
        %v643 = vunpack.c.h.b16 %v593
        %v644 = vunpack.c.l.b16 %v594
        %v645 = vunpack.c.h.b16 %v594
        %v646 = vunpack.c.l.b16 %v595
        %v647 = vunpack.c.h.b16 %v595
        %v648 = vunpack.c.l.b16 %v596
        %v649 = vunpack.c.h.b16 %v596
        %v650 = vunpack.c.l.b16 %v597
        %v651 = vunpack.c.h.b16 %v597
        %v652 = vunpack.c.l.b16 %v598
        %v653 = vunpack.c.h.b16 %v598
        %v654 = vunpack.c.l.b16 %v599
        %v655 = vunpack.c.h.b16 %v599
        %v656 = vunpack.c.l.b16 %v600
        %v657 = vunpack.c.h.b16 %v600
        %v658 = vunpack.c.l.b16 %v601
        %v659 = vunpack.c.h.b16 %v601
        %v660 = vunpack.c.l.b16 %v602
        %v661 = vunpack.c.h.b16 %v602
        %v662 = vunpack.c.l.b16 %v603
        %v663 = vunpack.c.h.b16 %v603
        %v664 = vunpack.c.l.b16 %v604
        %v665 = vunpack.c.h.b16 %v604
        %v666 = vunpack.c.l.b16 %v605
        %v667 = vunpack.c.h.b16 %v605
        %v668 = vunpack.c.l.b16 %v606
        %v669 = vunpack.c.h.b16 %v606
        %v670 = vunpack.c.l.b16 %v607
        %v671 = vunpack.c.h.b16 %v607
        %v672 = vunpack.c.l.b16 %v608
        %v673 = vunpack.c.h.b16 %v608
        %v674 = vpack.c.b16 %v650, %v642
        %v675 = vpack.c.b16 %v651, %v643
        %v676 = vpack.c.b16 %v652, %v644
        %v677 = vpack.c.b16 %v653, %v645
        %v678 = vpack.c.b16 %v654, %v646
        %v679 = vpack.c.b16 %v655, %v647
        %v680 = vpack.c.b16 %v656, %v648
        %v681 = vpack.c.b16 %v657, %v649
        %v682 = vpack.c.b16 %v666, %v658
        %v683 = vpack.c.b16 %v667, %v659
        %v684 = vpack.c.b16 %v668, %v660
        %v685 = vpack.c.b16 %v669, %v661
        %v686 = vpack.c.b16 %v670, %v662
        %v687 = vpack.c.b16 %v671, %v663
        %v688 = vpack.c.b16 %v672, %v664
        %v689 = vpack.c.b16 %v673, %v665
        %vm698 = vcmask 228352
        %v700 = vsel %vm698, %v573, 0
        %vm702 = vcmask 1045504
        %v704 = vsel %vm702, %v682, 0
        %v707 = vsel %vm702, %v683, 0
        %v710 = vsel %vm702, %v684, 0
        %v713 = vsel %vm702, %v685, 0
        %v716 = vsel %vm702, %v686, 0
        %v719 = vsel %vm702, %v687, 0
        %v722 = vsel %vm702, %v688, 0
        %v725 = vsel %vm702, %v689, 0
        %727 = vmatpush.bf16.msra.mxu0 0
        %728 = vmatpush.bf16.msra.mxu0 0
        %729 = vmatpush.bf16.msra.mxu0 0
        %730 = vmatpush.bf16.msra.mxu0 0
        %731 = vmatpush.bf16.msra.mxu0 0
        %732 = vmatpush.bf16.msra.mxu0 0
        %733 = vmatpush.bf16.msra.mxu0 %v704
        %734 = vmatpush.bf16.msra.mxu0 %v674
        %735 = vmatmul.bf16.gmra.mxu0 %v700
        %v736 = vpop.f32.mrf.mxu0
        %v737 = vadd.f32 0.0, %v736
        %v738 = vpop.f32.mrf.mxu0
        %739 = vdwg.mxu0
        %740 = vmatpush.bf16.msra.mxu0 0
        %741 = vmatpush.bf16.msra.mxu0 0
        %742 = vmatpush.bf16.msra.mxu0 0
        %743 = vmatpush.bf16.msra.mxu0 0
        %744 = vmatpush.bf16.msra.mxu0 0
        %745 = vmatpush.bf16.msra.mxu0 0
        %746 = vmatpush.bf16.msra.mxu0 %v707
        %747 = vmatpush.bf16.msra.mxu0 %v675
        %748 = vmatmul.bf16.gmra.mxu0 %v700
        %v749 = vpop.f32.mrf.mxu0
        %v750 = vadd.f32 0.0, %v749
        %v751 = vpop.f32.mrf.mxu0
        %752 = vdwg.mxu0
        %753 = vmatpush.bf16.msra.mxu0 0
        %754 = vmatpush.bf16.msra.mxu0 0
        %755 = vmatpush.bf16.msra.mxu0 0
        %756 = vmatpush.bf16.msra.mxu0 0
        %757 = vmatpush.bf16.msra.mxu0 0
        %758 = vmatpush.bf16.msra.mxu0 0
        %759 = vmatpush.bf16.msra.mxu0 %v710
        %760 = vmatpush.bf16.msra.mxu0 %v676
        %761 = vmatmul.bf16.gmra.mxu0 %v700
        %v762 = vpop.f32.mrf.mxu0
        %v763 = vadd.f32 0.0, %v762
        %v764 = vpop.f32.mrf.mxu0
        %765 = vdwg.mxu0
        %766 = vmatpush.bf16.msra.mxu0 0
        %767 = vmatpush.bf16.msra.mxu0 0
        %768 = vmatpush.bf16.msra.mxu0 0
        %769 = vmatpush.bf16.msra.mxu0 0
        %770 = vmatpush.bf16.msra.mxu0 0
        %771 = vmatpush.bf16.msra.mxu0 0
        %772 = vmatpush.bf16.msra.mxu0 %v713
        %773 = vmatpush.bf16.msra.mxu0 %v677
        %774 = vmatmul.bf16.gmra.mxu0 %v700
        %v775 = vpop.f32.mrf.mxu0
        %v776 = vadd.f32 0.0, %v775
        %v777 = vpop.f32.mrf.mxu0
        %778 = vdwg.mxu0
        %779 = vmatpush.bf16.msra.mxu0 0
        %780 = vmatpush.bf16.msra.mxu0 0
        %781 = vmatpush.bf16.msra.mxu0 0
        %782 = vmatpush.bf16.msra.mxu0 0
        %783 = vmatpush.bf16.msra.mxu0 0
        %784 = vmatpush.bf16.msra.mxu0 0
        %785 = vmatpush.bf16.msra.mxu0 %v716
        %786 = vmatpush.bf16.msra.mxu0 %v678
        %787 = vmatmul.bf16.gmra.mxu0 %v700
        %v788 = vpop.f32.mrf.mxu0
        %v789 = vadd.f32 0.0, %v788
        %v790 = vpop.f32.mrf.mxu0
        %791 = vdwg.mxu0
        %792 = vmatpush.bf16.msra.mxu0 0
        %793 = vmatpush.bf16.msra.mxu0 0
        %794 = vmatpush.bf16.msra.mxu0 0
        %795 = vmatpush.bf16.msra.mxu0 0
        %796 = vmatpush.bf16.msra.mxu0 0
        %797 = vmatpush.bf16.msra.mxu0 0
        %798 = vmatpush.bf16.msra.mxu0 %v719
        %799 = vmatpush.bf16.msra.mxu0 %v679
        %800 = vmatmul.bf16.gmra.mxu0 %v700
        %v801 = vpop.f32.mrf.mxu0
        %v802 = vadd.f32 0.0, %v801
        %v803 = vpop.f32.mrf.mxu0
        %804 = vdwg.mxu0
        %805 = vmatpush.bf16.msra.mxu0 0
        %806 = vmatpush.bf16.msra.mxu0 0
        %807 = vmatpush.bf16.msra.mxu0 0
        %808 = vmatpush.bf16.msra.mxu0 0
        %809 = vmatpush.bf16.msra.mxu0 0
        %810 = vmatpush.bf16.msra.mxu0 0
        %811 = vmatpush.bf16.msra.mxu0 %v722
        %812 = vmatpush.bf16.msra.mxu0 %v680
        %813 = vmatmul.bf16.gmra.mxu0 %v700
        %v814 = vpop.f32.mrf.mxu0
        %v815 = vadd.f32 0.0, %v814
        %v816 = vpop.f32.mrf.mxu0
        %817 = vdwg.mxu0
        %818 = vmatpush.bf16.msra.mxu0 0
        %819 = vmatpush.bf16.msra.mxu0 0
        %820 = vmatpush.bf16.msra.mxu0 0
        %821 = vmatpush.bf16.msra.mxu0 0
        %822 = vmatpush.bf16.msra.mxu0 0
        %823 = vmatpush.bf16.msra.mxu0 0
        %824 = vmatpush.bf16.msra.mxu0 %v725
        %825 = vmatpush.bf16.msra.mxu0 %v681
        %826 = vmatmul.bf16.gmra.mxu0 %v700
        %v827 = vpop.f32.mrf.mxu0
        %v828 = vadd.f32 0.0, %v827
        %v829 = vpop.f32.mrf.mxu0
        %830 = vdwg.mxu0
        %v847 = vunpack.c.l.b16 %v576
        %v848 = vunpack.c.h.b16 %v576
        %v849 = vunpack.c.l.b16 %v577
        %v850 = vunpack.c.h.b16 %v577
        %v851 = vunpack.c.l.b16 %v578
        %v852 = vunpack.c.h.b16 %v578
        %v853 = vunpack.c.l.b16 %v579
        %v854 = vunpack.c.h.b16 %v579
        %v855 = vunpack.c.l.b16 %v580
        %v856 = vunpack.c.h.b16 %v580
        %v857 = vunpack.c.l.b16 %v581
        %v858 = vunpack.c.h.b16 %v581
        %v859 = vunpack.c.l.b16 %v582
        %v860 = vunpack.c.h.b16 %v582
        %v861 = vunpack.c.l.b16 %v583
        %v862 = vunpack.c.h.b16 %v583
        %v863 = vunpack.c.l.b16 %v584
        %v864 = vunpack.c.h.b16 %v584
        %v865 = vunpack.c.l.b16 %v585
        %v866 = vunpack.c.h.b16 %v585
        %v867 = vunpack.c.l.b16 %v586
        %v868 = vunpack.c.h.b16 %v586
        %v869 = vunpack.c.l.b16 %v587
        %v870 = vunpack.c.h.b16 %v587
        %v871 = vunpack.c.l.b16 %v588
        %v872 = vunpack.c.h.b16 %v588
        %v873 = vunpack.c.l.b16 %v589
        %v874 = vunpack.c.h.b16 %v589
        %v875 = vunpack.c.l.b16 %v590
        %v876 = vunpack.c.h.b16 %v590
        %v877 = vunpack.c.l.b16 %v591
        %v878 = vunpack.c.h.b16 %v591
        %v879 = vpack.c.b16 %v855, %v847
        %v880 = vpack.c.b16 %v856, %v848
        %v881 = vpack.c.b16 %v857, %v849
        %v882 = vpack.c.b16 %v858, %v850
        %v883 = vpack.c.b16 %v859, %v851
        %v884 = vpack.c.b16 %v860, %v852
        %v885 = vpack.c.b16 %v861, %v853
        %v886 = vpack.c.b16 %v862, %v854
        %v887 = vpack.c.b16 %v871, %v863
        %v888 = vpack.c.b16 %v872, %v864
        %v889 = vpack.c.b16 %v873, %v865
        %v890 = vpack.c.b16 %v874, %v866
        %v891 = vpack.c.b16 %v875, %v867
        %v892 = vpack.c.b16 %v876, %v868
        %v893 = vpack.c.b16 %v877, %v869
        %v894 = vpack.c.b16 %v878, %v870
        %v904 = vsel %vm698, %v572, 0
        %v907 = vsel %vm702, %v887, 0
        %v910 = vsel %vm702, %v888, 0
        %v913 = vsel %vm702, %v889, 0
        %v916 = vsel %vm702, %v890, 0
        %v919 = vsel %vm702, %v891, 0
        %v922 = vsel %vm702, %v892, 0
        %v925 = vsel %vm702, %v893, 0
        %v928 = vsel %vm702, %v894, 0
        %930 = vmatpush.bf16.msra.mxu0 0
        %931 = vmatpush.bf16.msra.mxu0 0
        %932 = vmatpush.bf16.msra.mxu0 0
        %933 = vmatpush.bf16.msra.mxu0 0
        %934 = vmatpush.bf16.msra.mxu0 0
        %935 = vmatpush.bf16.msra.mxu0 0
        %936 = vmatpush.bf16.msra.mxu0 %v907
        %937 = vmatpush.bf16.msra.mxu0 %v879
        %938 = vmatmul.bf16.gmra.mxu0 %v904
        %v939 = vpop.f32.mrf.mxu0
        %v940 = vadd.f32 %v737, %v939
        %v941 = vpop.f32.mrf.mxu0
        %942 = vdwg.mxu0
        %943 = vmatpush.bf16.msra.mxu0 0
        %944 = vmatpush.bf16.msra.mxu0 0
        %945 = vmatpush.bf16.msra.mxu0 0
        %946 = vmatpush.bf16.msra.mxu0 0
        %947 = vmatpush.bf16.msra.mxu0 0
        %948 = vmatpush.bf16.msra.mxu0 0
        %949 = vmatpush.bf16.msra.mxu0 %v910
        %950 = vmatpush.bf16.msra.mxu0 %v880
        %951 = vmatmul.bf16.gmra.mxu0 %v904
        %v952 = vpop.f32.mrf.mxu0
        %v953 = vadd.f32 %v750, %v952
        %v954 = vpop.f32.mrf.mxu0
        %955 = vdwg.mxu0
        %956 = vmatpush.bf16.msra.mxu0 0
        %957 = vmatpush.bf16.msra.mxu0 0
        %958 = vmatpush.bf16.msra.mxu0 0
        %959 = vmatpush.bf16.msra.mxu0 0
        %960 = vmatpush.bf16.msra.mxu0 0
        %961 = vmatpush.bf16.msra.mxu0 0
        %962 = vmatpush.bf16.msra.mxu0 %v913
        %963 = vmatpush.bf16.msra.mxu0 %v881
        %964 = vmatmul.bf16.gmra.mxu0 %v904
        %v965 = vpop.f32.mrf.mxu0
        %v966 = vadd.f32 %v763, %v965
        %v967 = vpop.f32.mrf.mxu0
        %968 = vdwg.mxu0
        %969 = vmatpush.bf16.msra.mxu0 0
        %970 = vmatpush.bf16.msra.mxu0 0
        %971 = vmatpush.bf16.msra.mxu0 0
        %972 = vmatpush.bf16.msra.mxu0 0
        %973 = vmatpush.bf16.msra.mxu0 0
        %974 = vmatpush.bf16.msra.mxu0 0
        %975 = vmatpush.bf16.msra.mxu0 %v916
        %976 = vmatpush.bf16.msra.mxu0 %v882
        %977 = vmatmul.bf16.gmra.mxu0 %v904
        %v978 = vpop.f32.mrf.mxu0
        %v979 = vadd.f32 %v776, %v978
        %v980 = vpop.f32.mrf.mxu0
        %981 = vdwg.mxu0
        %982 = vmatpush.bf16.msra.mxu0 0
        %983 = vmatpush.bf16.msra.mxu0 0
        %984 = vmatpush.bf16.msra.mxu0 0
        %985 = vmatpush.bf16.msra.mxu0 0
        %986 = vmatpush.bf16.msra.mxu0 0
        %987 = vmatpush.bf16.msra.mxu0 0
        %988 = vmatpush.bf16.msra.mxu0 %v919
        %989 = vmatpush.bf16.msra.mxu0 %v883
        %990 = vmatmul.bf16.gmra.mxu0 %v904
        %v991 = vpop.f32.mrf.mxu0
        %v992 = vadd.f32 %v789, %v991
        %v993 = vpop.f32.mrf.mxu0
        %994 = vdwg.mxu0
        %995 = vmatpush.bf16.msra.mxu0 0
        %996 = vmatpush.bf16.msra.mxu0 0
        %997 = vmatpush.bf16.msra.mxu0 0
        %998 = vmatpush.bf16.msra.mxu0 0
        %999 = vmatpush.bf16.msra.mxu0 0
        %1000 = vmatpush.bf16.msra.mxu0 0
        %1001 = vmatpush.bf16.msra.mxu0 %v922
        %1002 = vmatpush.bf16.msra.mxu0 %v884
        %1003 = vmatmul.bf16.gmra.mxu0 %v904
        %v1004 = vpop.f32.mrf.mxu0
        %v1005 = vadd.f32 %v802, %v1004
        %v1006 = vpop.f32.mrf.mxu0
        %1007 = vdwg.mxu0
        %1008 = vmatpush.bf16.msra.mxu0 0
        %1009 = vmatpush.bf16.msra.mxu0 0
        %1010 = vmatpush.bf16.msra.mxu0 0
        %1011 = vmatpush.bf16.msra.mxu0 0
        %1012 = vmatpush.bf16.msra.mxu0 0
        %1013 = vmatpush.bf16.msra.mxu0 0
        %1014 = vmatpush.bf16.msra.mxu0 %v925
        %1015 = vmatpush.bf16.msra.mxu0 %v885
        %1016 = vmatmul.bf16.gmra.mxu0 %v904
        %v1017 = vpop.f32.mrf.mxu0
        %v1018 = vadd.f32 %v815, %v1017
        %v1019 = vpop.f32.mrf.mxu0
        %1020 = vdwg.mxu0
        %1021 = vmatpush.bf16.msra.mxu0 0
        %1022 = vmatpush.bf16.msra.mxu0 0
        %1023 = vmatpush.bf16.msra.mxu0 0
        %1024 = vmatpush.bf16.msra.mxu0 0
        %1025 = vmatpush.bf16.msra.mxu0 0
        %1026 = vmatpush.bf16.msra.mxu0 0
        %1027 = vmatpush.bf16.msra.mxu0 %v928
        %1028 = vmatpush.bf16.msra.mxu0 %v886
        %1029 = vmatmul.bf16.gmra.mxu0 %v904
        %v1030 = vpop.f32.mrf.mxu0
        %v1031 = vadd.f32 %v828, %v1030
        %v1032 = vpop.f32.mrf.mxu0
        %1033 = vdwg.mxu0
        %v1050 = vunpack.c.l.b16 %v610
        %v1051 = vunpack.c.h.b16 %v610
        %v1052 = vunpack.c.l.b16 %v611
        %v1053 = vunpack.c.h.b16 %v611
        %v1054 = vunpack.c.l.b16 %v612
        %v1055 = vunpack.c.h.b16 %v612
        %v1056 = vunpack.c.l.b16 %v613
        %v1057 = vunpack.c.h.b16 %v613
        %v1058 = vunpack.c.l.b16 %v614
        %v1059 = vunpack.c.h.b16 %v614
        %v1060 = vunpack.c.l.b16 %v615
        %v1061 = vunpack.c.h.b16 %v615
        %v1062 = vunpack.c.l.b16 %v616
        %v1063 = vunpack.c.h.b16 %v616
        %v1064 = vunpack.c.l.b16 %v617
        %v1065 = vunpack.c.h.b16 %v617
        %v1066 = vunpack.c.l.b16 %v618
        %v1067 = vunpack.c.h.b16 %v618
        %v1068 = vunpack.c.l.b16 %v619
        %v1069 = vunpack.c.h.b16 %v619
        %v1070 = vunpack.c.l.b16 %v620
        %v1071 = vunpack.c.h.b16 %v620
        %v1072 = vunpack.c.l.b16 %v621
        %v1073 = vunpack.c.h.b16 %v621
        %v1074 = vunpack.c.l.b16 %v622
        %v1075 = vunpack.c.h.b16 %v622
        %v1076 = vunpack.c.l.b16 %v623
        %v1077 = vunpack.c.h.b16 %v623
        %v1078 = vunpack.c.l.b16 %v624
        %v1079 = vunpack.c.h.b16 %v624
        %v1080 = vunpack.c.l.b16 %v625
        %v1081 = vunpack.c.h.b16 %v625
        %v1082 = vpack.c.b16 %v1058, %v1050
        %v1083 = vpack.c.b16 %v1059, %v1051
        %v1084 = vpack.c.b16 %v1060, %v1052
        %v1085 = vpack.c.b16 %v1061, %v1053
        %v1086 = vpack.c.b16 %v1062, %v1054
        %v1087 = vpack.c.b16 %v1063, %v1055
        %v1088 = vpack.c.b16 %v1064, %v1056
        %v1089 = vpack.c.b16 %v1065, %v1057
        %v1090 = vpack.c.b16 %v1074, %v1066
        %v1091 = vpack.c.b16 %v1075, %v1067
        %v1092 = vpack.c.b16 %v1076, %v1068
        %v1093 = vpack.c.b16 %v1077, %v1069
        %v1094 = vpack.c.b16 %v1078, %v1070
        %v1095 = vpack.c.b16 %v1079, %v1071
        %v1096 = vpack.c.b16 %v1080, %v1072
        %v1097 = vpack.c.b16 %v1081, %v1073
        %v1107 = vsel %vm698, %v574, 0
        %v1110 = vsel %vm702, %v1090, 0
        %v1113 = vsel %vm702, %v1091, 0
        %v1116 = vsel %vm702, %v1092, 0
        %v1119 = vsel %vm702, %v1093, 0
        %v1122 = vsel %vm702, %v1094, 0
        %v1125 = vsel %vm702, %v1095, 0
        %v1128 = vsel %vm702, %v1096, 0
        %v1131 = vsel %vm702, %v1097, 0
        %1133 = vmatpush.bf16.msra.mxu0 0
        %1134 = vmatpush.bf16.msra.mxu0 0
        %1135 = vmatpush.bf16.msra.mxu0 0
        %1136 = vmatpush.bf16.msra.mxu0 0
        %1137 = vmatpush.bf16.msra.mxu0 0
        %1138 = vmatpush.bf16.msra.mxu0 0
        %1139 = vmatpush.bf16.msra.mxu0 %v1110
        %1140 = vmatpush.bf16.msra.mxu0 %v1082
        %1141 = vmatmul.bf16.gmra.mxu0 %v1107
        %v1142 = vpop.f32.mrf.mxu0
        %v1143 = vadd.f32 0.0, %v1142
        %v1144 = vpop.f32.mrf.mxu0
        %1145 = vdwg.mxu0
        %1146 = vmatpush.bf16.msra.mxu0 0
        %1147 = vmatpush.bf16.msra.mxu0 0
        %1148 = vmatpush.bf16.msra.mxu0 0
        %1149 = vmatpush.bf16.msra.mxu0 0
        %1150 = vmatpush.bf16.msra.mxu0 0
        %1151 = vmatpush.bf16.msra.mxu0 0
        %1152 = vmatpush.bf16.msra.mxu0 %v1113
        %1153 = vmatpush.bf16.msra.mxu0 %v1083
        %1154 = vmatmul.bf16.gmra.mxu0 %v1107
        %v1155 = vpop.f32.mrf.mxu0
        %v1156 = vadd.f32 0.0, %v1155
        %v1157 = vpop.f32.mrf.mxu0
        %1158 = vdwg.mxu0
        %1159 = vmatpush.bf16.msra.mxu0 0
        %1160 = vmatpush.bf16.msra.mxu0 0
        %1161 = vmatpush.bf16.msra.mxu0 0
        %1162 = vmatpush.bf16.msra.mxu0 0
        %1163 = vmatpush.bf16.msra.mxu0 0
        %1164 = vmatpush.bf16.msra.mxu0 0
        %1165 = vmatpush.bf16.msra.mxu0 %v1116
        %1166 = vmatpush.bf16.msra.mxu0 %v1084
        %1167 = vmatmul.bf16.gmra.mxu0 %v1107
        %v1168 = vpop.f32.mrf.mxu0
        %v1169 = vadd.f32 0.0, %v1168
        %v1170 = vpop.f32.mrf.mxu0
        %1171 = vdwg.mxu0
        %1172 = vmatpush.bf16.msra.mxu0 0
        %1173 = vmatpush.bf16.msra.mxu0 0
        %1174 = vmatpush.bf16.msra.mxu0 0
        %1175 = vmatpush.bf16.msra.mxu0 0
        %1176 = vmatpush.bf16.msra.mxu0 0
        %1177 = vmatpush.bf16.msra.mxu0 0
        %1178 = vmatpush.bf16.msra.mxu0 %v1119
        %1179 = vmatpush.bf16.msra.mxu0 %v1085
        %1180 = vmatmul.bf16.gmra.mxu0 %v1107
        %v1181 = vpop.f32.mrf.mxu0
        %v1182 = vadd.f32 0.0, %v1181
        %v1183 = vpop.f32.mrf.mxu0
        %1184 = vdwg.mxu0
        %1185 = vmatpush.bf16.msra.mxu0 0
        %1186 = vmatpush.bf16.msra.mxu0 0
        %1187 = vmatpush.bf16.msra.mxu0 0
        %1188 = vmatpush.bf16.msra.mxu0 0
        %1189 = vmatpush.bf16.msra.mxu0 0
        %1190 = vmatpush.bf16.msra.mxu0 0
        %1191 = vmatpush.bf16.msra.mxu0 %v1122
        %1192 = vmatpush.bf16.msra.mxu0 %v1086
        %1193 = vmatmul.bf16.gmra.mxu0 %v1107
        %v1194 = vpop.f32.mrf.mxu0
        %v1195 = vadd.f32 0.0, %v1194
        %v1196 = vpop.f32.mrf.mxu0
        %1197 = vdwg.mxu0
        %1198 = vmatpush.bf16.msra.mxu0 0
        %1199 = vmatpush.bf16.msra.mxu0 0
        %1200 = vmatpush.bf16.msra.mxu0 0
        %1201 = vmatpush.bf16.msra.mxu0 0
        %1202 = vmatpush.bf16.msra.mxu0 0
        %1203 = vmatpush.bf16.msra.mxu0 0
        %1204 = vmatpush.bf16.msra.mxu0 %v1125
        %1205 = vmatpush.bf16.msra.mxu0 %v1087
        %1206 = vmatmul.bf16.gmra.mxu0 %v1107
        %v1207 = vpop.f32.mrf.mxu0
        %v1208 = vadd.f32 0.0, %v1207
        %v1209 = vpop.f32.mrf.mxu0
        %1210 = vdwg.mxu0
        %1211 = vmatpush.bf16.msra.mxu0 0
        %1212 = vmatpush.bf16.msra.mxu0 0
        %1213 = vmatpush.bf16.msra.mxu0 0
        %1214 = vmatpush.bf16.msra.mxu0 0
        %1215 = vmatpush.bf16.msra.mxu0 0
        %1216 = vmatpush.bf16.msra.mxu0 0
        %1217 = vmatpush.bf16.msra.mxu0 %v1128
        %1218 = vmatpush.bf16.msra.mxu0 %v1088
        %1219 = vmatmul.bf16.gmra.mxu0 %v1107
        %v1220 = vpop.f32.mrf.mxu0
        %v1221 = vadd.f32 0.0, %v1220
        %v1222 = vpop.f32.mrf.mxu0
        %1223 = vdwg.mxu0
        %1224 = vmatpush.bf16.msra.mxu0 0
        %1225 = vmatpush.bf16.msra.mxu0 0
        %1226 = vmatpush.bf16.msra.mxu0 0
        %1227 = vmatpush.bf16.msra.mxu0 0
        %1228 = vmatpush.bf16.msra.mxu0 0
        %1229 = vmatpush.bf16.msra.mxu0 0
        %1230 = vmatpush.bf16.msra.mxu0 %v1131
        %1231 = vmatpush.bf16.msra.mxu0 %v1089
        %1232 = vmatmul.bf16.gmra.mxu0 %v1107
        %v1233 = vpop.f32.mrf.mxu0
        %v1234 = vadd.f32 0.0, %v1233
        %v1235 = vpop.f32.mrf.mxu0
        %1236 = vdwg.mxu0
        %v1237 = vadd.f32 %v940, %v1143
        %v1238 = vadd.f32 %v953, %v1156
        %v1239 = vadd.f32 %v966, %v1169
        %v1240 = vadd.f32 %v979, %v1182
        %v1241 = vadd.f32 %v992, %v1195
        %v1242 = vadd.f32 %v1005, %v1208
        %v1243 = vadd.f32 %v1018, %v1221
        %v1244 = vadd.f32 %v1031, %v1234
        %1245 = vmatpush.bf16.msra.mxu0 0
        %1246 = vmatpush.bf16.msra.mxu0 0
        %1247 = vmatpush.bf16.msra.mxu0 0
        %1248 = vmatpush.bf16.msra.mxu0 0
        %1249 = vmatpush.bf16.msra.mxu0 0
        %1250 = vmatpush.bf16.msra.mxu0 0
        %1251 = vmatpush.bf16.msra.mxu0 %v704
        %1252 = vmatpush.bf16.msra.mxu0 %v674
        %1253 = vmatmul.bf16.gmra.mxu0 %v1107
        %v1254 = vpop.f32.mrf.mxu0
        %v1255 = vadd.f32 0.0, %v1254
        %v1256 = vpop.f32.mrf.mxu0
        %1257 = vdwg.mxu0
        %1258 = vmatpush.bf16.msra.mxu0 0
        %1259 = vmatpush.bf16.msra.mxu0 0
        %1260 = vmatpush.bf16.msra.mxu0 0
        %1261 = vmatpush.bf16.msra.mxu0 0
        %1262 = vmatpush.bf16.msra.mxu0 0
        %1263 = vmatpush.bf16.msra.mxu0 0
        %1264 = vmatpush.bf16.msra.mxu0 %v707
        %1265 = vmatpush.bf16.msra.mxu0 %v675
        %1266 = vmatmul.bf16.gmra.mxu0 %v1107
        %v1267 = vpop.f32.mrf.mxu0
        %v1268 = vadd.f32 0.0, %v1267
        %v1269 = vpop.f32.mrf.mxu0
        %1270 = vdwg.mxu0
        %1271 = vmatpush.bf16.msra.mxu0 0
        %1272 = vmatpush.bf16.msra.mxu0 0
        %1273 = vmatpush.bf16.msra.mxu0 0
        %1274 = vmatpush.bf16.msra.mxu0 0
        %1275 = vmatpush.bf16.msra.mxu0 0
        %1276 = vmatpush.bf16.msra.mxu0 0
        %1277 = vmatpush.bf16.msra.mxu0 %v710
        %1278 = vmatpush.bf16.msra.mxu0 %v676
        %1279 = vmatmul.bf16.gmra.mxu0 %v1107
        %v1280 = vpop.f32.mrf.mxu0
        %v1281 = vadd.f32 0.0, %v1280
        %v1282 = vpop.f32.mrf.mxu0
        %1283 = vdwg.mxu0
        %1284 = vmatpush.bf16.msra.mxu0 0
        %1285 = vmatpush.bf16.msra.mxu0 0
        %1286 = vmatpush.bf16.msra.mxu0 0
        %1287 = vmatpush.bf16.msra.mxu0 0
        %1288 = vmatpush.bf16.msra.mxu0 0
        %1289 = vmatpush.bf16.msra.mxu0 0
        %1290 = vmatpush.bf16.msra.mxu0 %v713
        %1291 = vmatpush.bf16.msra.mxu0 %v677
        %1292 = vmatmul.bf16.gmra.mxu0 %v1107
        %v1293 = vpop.f32.mrf.mxu0
        %v1294 = vadd.f32 0.0, %v1293
        %v1295 = vpop.f32.mrf.mxu0
        %1296 = vdwg.mxu0
        %1297 = vmatpush.bf16.msra.mxu0 0
        %1298 = vmatpush.bf16.msra.mxu0 0
        %1299 = vmatpush.bf16.msra.mxu0 0
        %1300 = vmatpush.bf16.msra.mxu0 0
        %1301 = vmatpush.bf16.msra.mxu0 0
        %1302 = vmatpush.bf16.msra.mxu0 0
        %1303 = vmatpush.bf16.msra.mxu0 %v716
        %1304 = vmatpush.bf16.msra.mxu0 %v678
        %1305 = vmatmul.bf16.gmra.mxu0 %v1107
        %v1306 = vpop.f32.mrf.mxu0
        %v1307 = vadd.f32 0.0, %v1306
        %v1308 = vpop.f32.mrf.mxu0
        %1309 = vdwg.mxu0
        %1310 = vmatpush.bf16.msra.mxu0 0
        %1311 = vmatpush.bf16.msra.mxu0 0
        %1312 = vmatpush.bf16.msra.mxu0 0
        %1313 = vmatpush.bf16.msra.mxu0 0
        %1314 = vmatpush.bf16.msra.mxu0 0
        %1315 = vmatpush.bf16.msra.mxu0 0
        %1316 = vmatpush.bf16.msra.mxu0 %v719
        %1317 = vmatpush.bf16.msra.mxu0 %v679
        %1318 = vmatmul.bf16.gmra.mxu0 %v1107
        %v1319 = vpop.f32.mrf.mxu0
        %v1320 = vadd.f32 0.0, %v1319
        %v1321 = vpop.f32.mrf.mxu0
        %1322 = vdwg.mxu0
        %1323 = vmatpush.bf16.msra.mxu0 0
        %1324 = vmatpush.bf16.msra.mxu0 0
        %1325 = vmatpush.bf16.msra.mxu0 0
        %1326 = vmatpush.bf16.msra.mxu0 0
        %1327 = vmatpush.bf16.msra.mxu0 0
        %1328 = vmatpush.bf16.msra.mxu0 0
        %1329 = vmatpush.bf16.msra.mxu0 %v722
        %1330 = vmatpush.bf16.msra.mxu0 %v680
        %1331 = vmatmul.bf16.gmra.mxu0 %v1107
        %v1332 = vpop.f32.mrf.mxu0
        %v1333 = vadd.f32 0.0, %v1332
        %v1334 = vpop.f32.mrf.mxu0
        %1335 = vdwg.mxu0
        %1336 = vmatpush.bf16.msra.mxu0 0
        %1337 = vmatpush.bf16.msra.mxu0 0
        %1338 = vmatpush.bf16.msra.mxu0 0
        %1339 = vmatpush.bf16.msra.mxu0 0
        %1340 = vmatpush.bf16.msra.mxu0 0
        %1341 = vmatpush.bf16.msra.mxu0 0
        %1342 = vmatpush.bf16.msra.mxu0 %v725
        %1343 = vmatpush.bf16.msra.mxu0 %v681
        %1344 = vmatmul.bf16.gmra.mxu0 %v1107
        %v1345 = vpop.f32.mrf.mxu0
        %v1346 = vadd.f32 0.0, %v1345
        %v1347 = vpop.f32.mrf.mxu0
        %1348 = vdwg.mxu0
        %1349 = vmatpush.bf16.msra.mxu0 0
        %1350 = vmatpush.bf16.msra.mxu0 0
        %1351 = vmatpush.bf16.msra.mxu0 0
        %1352 = vmatpush.bf16.msra.mxu0 0
        %1353 = vmatpush.bf16.msra.mxu0 0
        %1354 = vmatpush.bf16.msra.mxu0 0
        %1355 = vmatpush.bf16.msra.mxu0 %v907
        %1356 = vmatpush.bf16.msra.mxu0 %v879
        %1357 = vmatmul.bf16.gmra.mxu0 %v700
        %v1358 = vpop.f32.mrf.mxu0
        %v1359 = vadd.f32 %v1255, %v1358
        %v1360 = vpop.f32.mrf.mxu0
        %1361 = vdwg.mxu0
        %1362 = vmatpush.bf16.msra.mxu0 0
        %1363 = vmatpush.bf16.msra.mxu0 0
        %1364 = vmatpush.bf16.msra.mxu0 0
        %1365 = vmatpush.bf16.msra.mxu0 0
        %1366 = vmatpush.bf16.msra.mxu0 0
        %1367 = vmatpush.bf16.msra.mxu0 0
        %1368 = vmatpush.bf16.msra.mxu0 %v910
        %1369 = vmatpush.bf16.msra.mxu0 %v880
        %1370 = vmatmul.bf16.gmra.mxu0 %v700
        %v1371 = vpop.f32.mrf.mxu0
        %v1372 = vadd.f32 %v1268, %v1371
        %v1373 = vpop.f32.mrf.mxu0
        %1374 = vdwg.mxu0
        %1375 = vmatpush.bf16.msra.mxu0 0
        %1376 = vmatpush.bf16.msra.mxu0 0
        %1377 = vmatpush.bf16.msra.mxu0 0
        %1378 = vmatpush.bf16.msra.mxu0 0
        %1379 = vmatpush.bf16.msra.mxu0 0
        %1380 = vmatpush.bf16.msra.mxu0 0
        %1381 = vmatpush.bf16.msra.mxu0 %v913
        %1382 = vmatpush.bf16.msra.mxu0 %v881
        %1383 = vmatmul.bf16.gmra.mxu0 %v700
        %v1384 = vpop.f32.mrf.mxu0
        %v1385 = vadd.f32 %v1281, %v1384
        %v1386 = vpop.f32.mrf.mxu0
        %1387 = vdwg.mxu0
        %1388 = vmatpush.bf16.msra.mxu0 0
        %1389 = vmatpush.bf16.msra.mxu0 0
        %1390 = vmatpush.bf16.msra.mxu0 0
        %1391 = vmatpush.bf16.msra.mxu0 0
        %1392 = vmatpush.bf16.msra.mxu0 0
        %1393 = vmatpush.bf16.msra.mxu0 0
        %1394 = vmatpush.bf16.msra.mxu0 %v916
        %1395 = vmatpush.bf16.msra.mxu0 %v882
        %1396 = vmatmul.bf16.gmra.mxu0 %v700
        %v1397 = vpop.f32.mrf.mxu0
        %v1398 = vadd.f32 %v1294, %v1397
        %v1399 = vpop.f32.mrf.mxu0
        %1400 = vdwg.mxu0
        %1401 = vmatpush.bf16.msra.mxu0 0
        %1402 = vmatpush.bf16.msra.mxu0 0
        %1403 = vmatpush.bf16.msra.mxu0 0
        %1404 = vmatpush.bf16.msra.mxu0 0
        %1405 = vmatpush.bf16.msra.mxu0 0
        %1406 = vmatpush.bf16.msra.mxu0 0
        %1407 = vmatpush.bf16.msra.mxu0 %v919
        %1408 = vmatpush.bf16.msra.mxu0 %v883
        %1409 = vmatmul.bf16.gmra.mxu0 %v700
        %v1410 = vpop.f32.mrf.mxu0
        %v1411 = vadd.f32 %v1307, %v1410
        %v1412 = vpop.f32.mrf.mxu0
        %1413 = vdwg.mxu0
        %1414 = vmatpush.bf16.msra.mxu0 0
        %1415 = vmatpush.bf16.msra.mxu0 0
        %1416 = vmatpush.bf16.msra.mxu0 0
        %1417 = vmatpush.bf16.msra.mxu0 0
        %1418 = vmatpush.bf16.msra.mxu0 0
        %1419 = vmatpush.bf16.msra.mxu0 0
        %1420 = vmatpush.bf16.msra.mxu0 %v922
        %1421 = vmatpush.bf16.msra.mxu0 %v884
        %1422 = vmatmul.bf16.gmra.mxu0 %v700
        %v1423 = vpop.f32.mrf.mxu0
        %v1424 = vadd.f32 %v1320, %v1423
        %v1425 = vpop.f32.mrf.mxu0
        %1426 = vdwg.mxu0
        %1427 = vmatpush.bf16.msra.mxu0 0
        %1428 = vmatpush.bf16.msra.mxu0 0
        %1429 = vmatpush.bf16.msra.mxu0 0
        %1430 = vmatpush.bf16.msra.mxu0 0
        %1431 = vmatpush.bf16.msra.mxu0 0
        %1432 = vmatpush.bf16.msra.mxu0 0
        %1433 = vmatpush.bf16.msra.mxu0 %v925
        %1434 = vmatpush.bf16.msra.mxu0 %v885
        %1435 = vmatmul.bf16.gmra.mxu0 %v700
        %v1436 = vpop.f32.mrf.mxu0
        %v1437 = vadd.f32 %v1333, %v1436
        %v1438 = vpop.f32.mrf.mxu0
        %1439 = vdwg.mxu0
        %1440 = vmatpush.bf16.msra.mxu0 0
        %1441 = vmatpush.bf16.msra.mxu0 0
        %1442 = vmatpush.bf16.msra.mxu0 0
        %1443 = vmatpush.bf16.msra.mxu0 0
        %1444 = vmatpush.bf16.msra.mxu0 0
        %1445 = vmatpush.bf16.msra.mxu0 0
        %1446 = vmatpush.bf16.msra.mxu0 %v928
        %1447 = vmatpush.bf16.msra.mxu0 %v886
        %1448 = vmatmul.bf16.gmra.mxu0 %v700
        %v1449 = vpop.f32.mrf.mxu0
        %v1450 = vadd.f32 %v1346, %v1449
        %v1451 = vpop.f32.mrf.mxu0
        %1452 = vdwg.mxu0
        %v1454 = vsel %vm698, %v575, 0
        %1456 = vmatpush.bf16.msra.mxu0 0
        %1457 = vmatpush.bf16.msra.mxu0 0
        %1458 = vmatpush.bf16.msra.mxu0 0
        %1459 = vmatpush.bf16.msra.mxu0 0
        %1460 = vmatpush.bf16.msra.mxu0 0
        %1461 = vmatpush.bf16.msra.mxu0 0
        %1462 = vmatpush.bf16.msra.mxu0 %v1110
        %1463 = vmatpush.bf16.msra.mxu0 %v1082
        %1464 = vmatmul.bf16.gmra.mxu0 %v1454
        %v1465 = vpop.f32.mrf.mxu0
        %v1466 = vadd.f32 0.0, %v1465
        %v1467 = vpop.f32.mrf.mxu0
        %1468 = vdwg.mxu0
        %1469 = vmatpush.bf16.msra.mxu0 0
        %1470 = vmatpush.bf16.msra.mxu0 0
        %1471 = vmatpush.bf16.msra.mxu0 0
        %1472 = vmatpush.bf16.msra.mxu0 0
        %1473 = vmatpush.bf16.msra.mxu0 0
        %1474 = vmatpush.bf16.msra.mxu0 0
        %1475 = vmatpush.bf16.msra.mxu0 %v1113
        %1476 = vmatpush.bf16.msra.mxu0 %v1083
        %1477 = vmatmul.bf16.gmra.mxu0 %v1454
        %v1478 = vpop.f32.mrf.mxu0
        %v1479 = vadd.f32 0.0, %v1478
        %v1480 = vpop.f32.mrf.mxu0
        %1481 = vdwg.mxu0
        %1482 = vmatpush.bf16.msra.mxu0 0
        %1483 = vmatpush.bf16.msra.mxu0 0
        %1484 = vmatpush.bf16.msra.mxu0 0
        %1485 = vmatpush.bf16.msra.mxu0 0
        %1486 = vmatpush.bf16.msra.mxu0 0
        %1487 = vmatpush.bf16.msra.mxu0 0
        %1488 = vmatpush.bf16.msra.mxu0 %v1116
        %1489 = vmatpush.bf16.msra.mxu0 %v1084
        %1490 = vmatmul.bf16.gmra.mxu0 %v1454
        %v1491 = vpop.f32.mrf.mxu0
        %v1492 = vadd.f32 0.0, %v1491
        %v1493 = vpop.f32.mrf.mxu0
        %1494 = vdwg.mxu0
        %1495 = vmatpush.bf16.msra.mxu0 0
        %1496 = vmatpush.bf16.msra.mxu0 0
        %1497 = vmatpush.bf16.msra.mxu0 0
        %1498 = vmatpush.bf16.msra.mxu0 0
        %1499 = vmatpush.bf16.msra.mxu0 0
        %1500 = vmatpush.bf16.msra.mxu0 0
        %1501 = vmatpush.bf16.msra.mxu0 %v1119
        %1502 = vmatpush.bf16.msra.mxu0 %v1085
        %1503 = vmatmul.bf16.gmra.mxu0 %v1454
        %v1504 = vpop.f32.mrf.mxu0
        %v1505 = vadd.f32 0.0, %v1504
        %v1506 = vpop.f32.mrf.mxu0
        %1507 = vdwg.mxu0
        %1508 = vmatpush.bf16.msra.mxu0 0
        %1509 = vmatpush.bf16.msra.mxu0 0
        %1510 = vmatpush.bf16.msra.mxu0 0
        %1511 = vmatpush.bf16.msra.mxu0 0
        %1512 = vmatpush.bf16.msra.mxu0 0
        %1513 = vmatpush.bf16.msra.mxu0 0
        %1514 = vmatpush.bf16.msra.mxu0 %v1122
        %1515 = vmatpush.bf16.msra.mxu0 %v1086
        %1516 = vmatmul.bf16.gmra.mxu0 %v1454
        %v1517 = vpop.f32.mrf.mxu0
        %v1518 = vadd.f32 0.0, %v1517
        %v1519 = vpop.f32.mrf.mxu0
        %1520 = vdwg.mxu0
        %1521 = vmatpush.bf16.msra.mxu0 0
        %1522 = vmatpush.bf16.msra.mxu0 0
        %1523 = vmatpush.bf16.msra.mxu0 0
        %1524 = vmatpush.bf16.msra.mxu0 0
        %1525 = vmatpush.bf16.msra.mxu0 0
        %1526 = vmatpush.bf16.msra.mxu0 0
        %1527 = vmatpush.bf16.msra.mxu0 %v1125
        %1528 = vmatpush.bf16.msra.mxu0 %v1087
        %1529 = vmatmul.bf16.gmra.mxu0 %v1454
        %v1530 = vpop.f32.mrf.mxu0
        %v1531 = vadd.f32 0.0, %v1530
        %v1532 = vpop.f32.mrf.mxu0
        %1533 = vdwg.mxu0
        %1534 = vmatpush.bf16.msra.mxu0 0
        %1535 = vmatpush.bf16.msra.mxu0 0
        %1536 = vmatpush.bf16.msra.mxu0 0
        %1537 = vmatpush.bf16.msra.mxu0 0
        %1538 = vmatpush.bf16.msra.mxu0 0
        %1539 = vmatpush.bf16.msra.mxu0 0
        %1540 = vmatpush.bf16.msra.mxu0 %v1128
        %1541 = vmatpush.bf16.msra.mxu0 %v1088
        %1542 = vmatmul.bf16.gmra.mxu0 %v1454
        %v1543 = vpop.f32.mrf.mxu0
        %v1544 = vadd.f32 0.0, %v1543
        %v1545 = vpop.f32.mrf.mxu0
        %1546 = vdwg.mxu0
        %1547 = vmatpush.bf16.msra.mxu0 0
        %1548 = vmatpush.bf16.msra.mxu0 0
        %1549 = vmatpush.bf16.msra.mxu0 0
        %1550 = vmatpush.bf16.msra.mxu0 0
        %1551 = vmatpush.bf16.msra.mxu0 0
        %1552 = vmatpush.bf16.msra.mxu0 0
        %1553 = vmatpush.bf16.msra.mxu0 %v1131
        %1554 = vmatpush.bf16.msra.mxu0 %v1089
        %1555 = vmatmul.bf16.gmra.mxu0 %v1454
        %v1556 = vpop.f32.mrf.mxu0
        %v1557 = vadd.f32 0.0, %v1556
        %v1558 = vpop.f32.mrf.mxu0
        %1559 = vdwg.mxu0
        %v1560 = vadd.f32 %v1359, %v1466
        %v1561 = vadd.f32 %v1372, %v1479
        %v1562 = vadd.f32 %v1385, %v1492
        %v1563 = vadd.f32 %v1398, %v1505
        %v1564 = vadd.f32 %v1411, %v1518
        %v1565 = vadd.f32 %v1424, %v1531
        %v1566 = vadd.f32 %v1437, %v1544
        %v1567 = vadd.f32 %v1450, %v1557
        %1568 = vmatpush.bf16.msra.mxu0 0
        %1569 = vmatpush.bf16.msra.mxu0 0
        %1570 = vmatpush.bf16.msra.mxu0 0
        %1571 = vmatpush.bf16.msra.mxu0 0
        %1572 = vmatpush.bf16.msra.mxu0 0
        %1573 = vmatpush.bf16.msra.mxu0 0
        %1574 = vmatpush.bf16.msra.mxu0 %v704
        %1575 = vmatpush.bf16.msra.mxu0 %v674
        %1576 = vmatmul.bf16.gmra.mxu0 %v1454
        %v1577 = vpop.f32.mrf.mxu0
        %v1578 = vadd.f32 0.0, %v1577
        %v1579 = vpop.f32.mrf.mxu0
        %1580 = vdwg.mxu0
        %1581 = vmatpush.bf16.msra.mxu0 0
        %1582 = vmatpush.bf16.msra.mxu0 0
        %1583 = vmatpush.bf16.msra.mxu0 0
        %1584 = vmatpush.bf16.msra.mxu0 0
        %1585 = vmatpush.bf16.msra.mxu0 0
        %1586 = vmatpush.bf16.msra.mxu0 0
        %1587 = vmatpush.bf16.msra.mxu0 %v707
        %1588 = vmatpush.bf16.msra.mxu0 %v675
        %1589 = vmatmul.bf16.gmra.mxu0 %v1454
        %v1590 = vpop.f32.mrf.mxu0
        %v1591 = vadd.f32 0.0, %v1590
        %v1592 = vpop.f32.mrf.mxu0
        %1593 = vdwg.mxu0
        %1594 = vmatpush.bf16.msra.mxu0 0
        %1595 = vmatpush.bf16.msra.mxu0 0
        %1596 = vmatpush.bf16.msra.mxu0 0
        %1597 = vmatpush.bf16.msra.mxu0 0
        %1598 = vmatpush.bf16.msra.mxu0 0
        %1599 = vmatpush.bf16.msra.mxu0 0
        %1600 = vmatpush.bf16.msra.mxu0 %v710
        %1601 = vmatpush.bf16.msra.mxu0 %v676
        %1602 = vmatmul.bf16.gmra.mxu0 %v1454
        %v1603 = vpop.f32.mrf.mxu0
        %v1604 = vadd.f32 0.0, %v1603
        %v1605 = vpop.f32.mrf.mxu0
        %1606 = vdwg.mxu0
        %1607 = vmatpush.bf16.msra.mxu0 0
        %1608 = vmatpush.bf16.msra.mxu0 0
        %1609 = vmatpush.bf16.msra.mxu0 0
        %1610 = vmatpush.bf16.msra.mxu0 0
        %1611 = vmatpush.bf16.msra.mxu0 0
        %1612 = vmatpush.bf16.msra.mxu0 0
        %1613 = vmatpush.bf16.msra.mxu0 %v713
        %1614 = vmatpush.bf16.msra.mxu0 %v677
        %1615 = vmatmul.bf16.gmra.mxu0 %v1454
        %v1616 = vpop.f32.mrf.mxu0
        %v1617 = vadd.f32 0.0, %v1616
        %v1618 = vpop.f32.mrf.mxu0
        %1619 = vdwg.mxu0
        %1620 = vmatpush.bf16.msra.mxu0 0
        %1621 = vmatpush.bf16.msra.mxu0 0
        %1622 = vmatpush.bf16.msra.mxu0 0
        %1623 = vmatpush.bf16.msra.mxu0 0
        %1624 = vmatpush.bf16.msra.mxu0 0
        %1625 = vmatpush.bf16.msra.mxu0 0
        %1626 = vmatpush.bf16.msra.mxu0 %v716
        %1627 = vmatpush.bf16.msra.mxu0 %v678
        %1628 = vmatmul.bf16.gmra.mxu0 %v1454
        %v1629 = vpop.f32.mrf.mxu0
        %v1630 = vadd.f32 0.0, %v1629
        %v1631 = vpop.f32.mrf.mxu0
        %1632 = vdwg.mxu0
        %1633 = vmatpush.bf16.msra.mxu0 0
        %1634 = vmatpush.bf16.msra.mxu0 0
        %1635 = vmatpush.bf16.msra.mxu0 0
        %1636 = vmatpush.bf16.msra.mxu0 0
        %1637 = vmatpush.bf16.msra.mxu0 0
        %1638 = vmatpush.bf16.msra.mxu0 0
        %1639 = vmatpush.bf16.msra.mxu0 %v719
        %1640 = vmatpush.bf16.msra.mxu0 %v679
        %1641 = vmatmul.bf16.gmra.mxu0 %v1454
        %v1642 = vpop.f32.mrf.mxu0
        %v1643 = vadd.f32 0.0, %v1642
        %v1644 = vpop.f32.mrf.mxu0
        %1645 = vdwg.mxu0
        %1646 = vmatpush.bf16.msra.mxu0 0
        %1647 = vmatpush.bf16.msra.mxu0 0
        %1648 = vmatpush.bf16.msra.mxu0 0
        %1649 = vmatpush.bf16.msra.mxu0 0
        %1650 = vmatpush.bf16.msra.mxu0 0
        %1651 = vmatpush.bf16.msra.mxu0 0
        %1652 = vmatpush.bf16.msra.mxu0 %v722
        %1653 = vmatpush.bf16.msra.mxu0 %v680
        %1654 = vmatmul.bf16.gmra.mxu0 %v1454
        %v1655 = vpop.f32.mrf.mxu0
        %v1656 = vadd.f32 0.0, %v1655
        %v1657 = vpop.f32.mrf.mxu0
        %1658 = vdwg.mxu0
        %1659 = vmatpush.bf16.msra.mxu0 0
        %1660 = vmatpush.bf16.msra.mxu0 0
        %1661 = vmatpush.bf16.msra.mxu0 0
        %1662 = vmatpush.bf16.msra.mxu0 0
        %1663 = vmatpush.bf16.msra.mxu0 0
        %1664 = vmatpush.bf16.msra.mxu0 0
        %1665 = vmatpush.bf16.msra.mxu0 %v725
        %1666 = vmatpush.bf16.msra.mxu0 %v681
        %1667 = vmatmul.bf16.gmra.mxu0 %v1454
        %v1668 = vpop.f32.mrf.mxu0
        %v1669 = vadd.f32 0.0, %v1668
        %v1670 = vpop.f32.mrf.mxu0
        %1671 = vdwg.mxu0
        %1672 = vmatpush.bf16.msra.mxu0 0
        %1673 = vmatpush.bf16.msra.mxu0 0
        %1674 = vmatpush.bf16.msra.mxu0 0
        %1675 = vmatpush.bf16.msra.mxu0 0
        %1676 = vmatpush.bf16.msra.mxu0 0
        %1677 = vmatpush.bf16.msra.mxu0 0
        %1678 = vmatpush.bf16.msra.mxu0 %v907
        %1679 = vmatpush.bf16.msra.mxu0 %v879
        %1680 = vmatmul.bf16.gmra.mxu0 %v1107
        %v1681 = vpop.f32.mrf.mxu0
        %v1682 = vadd.f32 %v1578, %v1681
        %v1683 = vpop.f32.mrf.mxu0
        %1684 = vdwg.mxu0
        %1685 = vmatpush.bf16.msra.mxu0 0
        %1686 = vmatpush.bf16.msra.mxu0 0
        %1687 = vmatpush.bf16.msra.mxu0 0
        %1688 = vmatpush.bf16.msra.mxu0 0
        %1689 = vmatpush.bf16.msra.mxu0 0
        %1690 = vmatpush.bf16.msra.mxu0 0
        %1691 = vmatpush.bf16.msra.mxu0 %v910
        %1692 = vmatpush.bf16.msra.mxu0 %v880
        %1693 = vmatmul.bf16.gmra.mxu0 %v1107
        %v1694 = vpop.f32.mrf.mxu0
        %v1695 = vadd.f32 %v1591, %v1694
        %v1696 = vpop.f32.mrf.mxu0
        %1697 = vdwg.mxu0
        %1698 = vmatpush.bf16.msra.mxu0 0
        %1699 = vmatpush.bf16.msra.mxu0 0
        %1700 = vmatpush.bf16.msra.mxu0 0
        %1701 = vmatpush.bf16.msra.mxu0 0
        %1702 = vmatpush.bf16.msra.mxu0 0
        %1703 = vmatpush.bf16.msra.mxu0 0
        %1704 = vmatpush.bf16.msra.mxu0 %v913
        %1705 = vmatpush.bf16.msra.mxu0 %v881
        %1706 = vmatmul.bf16.gmra.mxu0 %v1107
        %v1707 = vpop.f32.mrf.mxu0
        %v1708 = vadd.f32 %v1604, %v1707
        %v1709 = vpop.f32.mrf.mxu0
        %1710 = vdwg.mxu0
        %1711 = vmatpush.bf16.msra.mxu0 0
        %1712 = vmatpush.bf16.msra.mxu0 0
        %1713 = vmatpush.bf16.msra.mxu0 0
        %1714 = vmatpush.bf16.msra.mxu0 0
        %1715 = vmatpush.bf16.msra.mxu0 0
        %1716 = vmatpush.bf16.msra.mxu0 0
        %1717 = vmatpush.bf16.msra.mxu0 %v916
        %1718 = vmatpush.bf16.msra.mxu0 %v882
        %1719 = vmatmul.bf16.gmra.mxu0 %v1107
        %v1720 = vpop.f32.mrf.mxu0
        %v1721 = vadd.f32 %v1617, %v1720
        %v1722 = vpop.f32.mrf.mxu0
        %1723 = vdwg.mxu0
        %1724 = vmatpush.bf16.msra.mxu0 0
        %1725 = vmatpush.bf16.msra.mxu0 0
        %1726 = vmatpush.bf16.msra.mxu0 0
        %1727 = vmatpush.bf16.msra.mxu0 0
        %1728 = vmatpush.bf16.msra.mxu0 0
        %1729 = vmatpush.bf16.msra.mxu0 0
        %1730 = vmatpush.bf16.msra.mxu0 %v919
        %1731 = vmatpush.bf16.msra.mxu0 %v883
        %1732 = vmatmul.bf16.gmra.mxu0 %v1107
        %v1733 = vpop.f32.mrf.mxu0
        %v1734 = vadd.f32 %v1630, %v1733
        %v1735 = vpop.f32.mrf.mxu0
        %1736 = vdwg.mxu0
        %1737 = vmatpush.bf16.msra.mxu0 0
        %1738 = vmatpush.bf16.msra.mxu0 0
        %1739 = vmatpush.bf16.msra.mxu0 0
        %1740 = vmatpush.bf16.msra.mxu0 0
        %1741 = vmatpush.bf16.msra.mxu0 0
        %1742 = vmatpush.bf16.msra.mxu0 0
        %1743 = vmatpush.bf16.msra.mxu0 %v922
        %1744 = vmatpush.bf16.msra.mxu0 %v884
        %1745 = vmatmul.bf16.gmra.mxu0 %v1107
        %v1746 = vpop.f32.mrf.mxu0
        %v1747 = vadd.f32 %v1643, %v1746
        %v1748 = vpop.f32.mrf.mxu0
        %1749 = vdwg.mxu0
        %1750 = vmatpush.bf16.msra.mxu0 0
        %1751 = vmatpush.bf16.msra.mxu0 0
        %1752 = vmatpush.bf16.msra.mxu0 0
        %1753 = vmatpush.bf16.msra.mxu0 0
        %1754 = vmatpush.bf16.msra.mxu0 0
        %1755 = vmatpush.bf16.msra.mxu0 0
        %1756 = vmatpush.bf16.msra.mxu0 %v925
        %1757 = vmatpush.bf16.msra.mxu0 %v885
        %1758 = vmatmul.bf16.gmra.mxu0 %v1107
        %v1759 = vpop.f32.mrf.mxu0
        %v1760 = vadd.f32 %v1656, %v1759
        %v1761 = vpop.f32.mrf.mxu0
        %1762 = vdwg.mxu0
        %1763 = vmatpush.bf16.msra.mxu0 0
        %1764 = vmatpush.bf16.msra.mxu0 0
        %1765 = vmatpush.bf16.msra.mxu0 0
        %1766 = vmatpush.bf16.msra.mxu0 0
        %1767 = vmatpush.bf16.msra.mxu0 0
        %1768 = vmatpush.bf16.msra.mxu0 0
        %1769 = vmatpush.bf16.msra.mxu0 %v928
        %1770 = vmatpush.bf16.msra.mxu0 %v886
        %1771 = vmatmul.bf16.gmra.mxu0 %v1107
        %v1772 = vpop.f32.mrf.mxu0
        %v1773 = vadd.f32 %v1669, %v1772
        %v1774 = vpop.f32.mrf.mxu0
        %1775 = vdwg.mxu0
        %v1776 = vshrl.u32 %v572, 16
        %v1778 = vshll.u32 %v572, 16
        %v1780 = vrot.slane %v1778, 1
        %v1781 = vor.u32 %v1776, %v1780
        %v1783 = vsel %vm698, %v1781, 0
        %1785 = vmatpush.bf16.msra.mxu0 0
        %1786 = vmatpush.bf16.msra.mxu0 0
        %1787 = vmatpush.bf16.msra.mxu0 0
        %1788 = vmatpush.bf16.msra.mxu0 0
        %1789 = vmatpush.bf16.msra.mxu0 0
        %1790 = vmatpush.bf16.msra.mxu0 0
        %1791 = vmatpush.bf16.msra.mxu0 %v1110
        %1792 = vmatpush.bf16.msra.mxu0 %v1082
        %1793 = vmatmul.bf16.gmra.mxu0 %v1783
        %v1794 = vpop.f32.mrf.mxu0
        %v1795 = vadd.f32 0.0, %v1794
        %v1796 = vpop.f32.mrf.mxu0
        %1797 = vdwg.mxu0
        %1798 = vmatpush.bf16.msra.mxu0 0
        %1799 = vmatpush.bf16.msra.mxu0 0
        %1800 = vmatpush.bf16.msra.mxu0 0
        %1801 = vmatpush.bf16.msra.mxu0 0
        %1802 = vmatpush.bf16.msra.mxu0 0
        %1803 = vmatpush.bf16.msra.mxu0 0
        %1804 = vmatpush.bf16.msra.mxu0 %v1113
        %1805 = vmatpush.bf16.msra.mxu0 %v1083
        %1806 = vmatmul.bf16.gmra.mxu0 %v1783
        %v1807 = vpop.f32.mrf.mxu0
        %v1808 = vadd.f32 0.0, %v1807
        %v1809 = vpop.f32.mrf.mxu0
        %1810 = vdwg.mxu0
        %1811 = vmatpush.bf16.msra.mxu0 0
        %1812 = vmatpush.bf16.msra.mxu0 0
        %1813 = vmatpush.bf16.msra.mxu0 0
        %1814 = vmatpush.bf16.msra.mxu0 0
        %1815 = vmatpush.bf16.msra.mxu0 0
        %1816 = vmatpush.bf16.msra.mxu0 0
        %1817 = vmatpush.bf16.msra.mxu0 %v1116
        %1818 = vmatpush.bf16.msra.mxu0 %v1084
        %1819 = vmatmul.bf16.gmra.mxu0 %v1783
        %v1820 = vpop.f32.mrf.mxu0
        %v1821 = vadd.f32 0.0, %v1820
        %v1822 = vpop.f32.mrf.mxu0
        %1823 = vdwg.mxu0
        %1824 = vmatpush.bf16.msra.mxu0 0
        %1825 = vmatpush.bf16.msra.mxu0 0
        %1826 = vmatpush.bf16.msra.mxu0 0
        %1827 = vmatpush.bf16.msra.mxu0 0
        %1828 = vmatpush.bf16.msra.mxu0 0
        %1829 = vmatpush.bf16.msra.mxu0 0
        %1830 = vmatpush.bf16.msra.mxu0 %v1119
        %1831 = vmatpush.bf16.msra.mxu0 %v1085
        %1832 = vmatmul.bf16.gmra.mxu0 %v1783
        %v1833 = vpop.f32.mrf.mxu0
        %v1834 = vadd.f32 0.0, %v1833
        %v1835 = vpop.f32.mrf.mxu0
        %1836 = vdwg.mxu0
        %1837 = vmatpush.bf16.msra.mxu0 0
        %1838 = vmatpush.bf16.msra.mxu0 0
        %1839 = vmatpush.bf16.msra.mxu0 0
        %1840 = vmatpush.bf16.msra.mxu0 0
        %1841 = vmatpush.bf16.msra.mxu0 0
        %1842 = vmatpush.bf16.msra.mxu0 0
        %1843 = vmatpush.bf16.msra.mxu0 %v1122
        %1844 = vmatpush.bf16.msra.mxu0 %v1086
        %1845 = vmatmul.bf16.gmra.mxu0 %v1783
        %v1846 = vpop.f32.mrf.mxu0
        %v1847 = vadd.f32 0.0, %v1846
        %v1848 = vpop.f32.mrf.mxu0
        %1849 = vdwg.mxu0
        %1850 = vmatpush.bf16.msra.mxu0 0
        %1851 = vmatpush.bf16.msra.mxu0 0
        %1852 = vmatpush.bf16.msra.mxu0 0
        %1853 = vmatpush.bf16.msra.mxu0 0
        %1854 = vmatpush.bf16.msra.mxu0 0
        %1855 = vmatpush.bf16.msra.mxu0 0
        %1856 = vmatpush.bf16.msra.mxu0 %v1125
        %1857 = vmatpush.bf16.msra.mxu0 %v1087
        %1858 = vmatmul.bf16.gmra.mxu0 %v1783
        %v1859 = vpop.f32.mrf.mxu0
        %v1860 = vadd.f32 0.0, %v1859
        %v1861 = vpop.f32.mrf.mxu0
        %1862 = vdwg.mxu0
        %1863 = vmatpush.bf16.msra.mxu0 0
        %1864 = vmatpush.bf16.msra.mxu0 0
        %1865 = vmatpush.bf16.msra.mxu0 0
        %1866 = vmatpush.bf16.msra.mxu0 0
        %1867 = vmatpush.bf16.msra.mxu0 0
        %1868 = vmatpush.bf16.msra.mxu0 0
        %1869 = vmatpush.bf16.msra.mxu0 %v1128
        %1870 = vmatpush.bf16.msra.mxu0 %v1088
        %1871 = vmatmul.bf16.gmra.mxu0 %v1783
        %v1872 = vpop.f32.mrf.mxu0
        %v1873 = vadd.f32 0.0, %v1872
        %v1874 = vpop.f32.mrf.mxu0
        %1875 = vdwg.mxu0
        %1876 = vmatpush.bf16.msra.mxu0 0
        %1877 = vmatpush.bf16.msra.mxu0 0
        %1878 = vmatpush.bf16.msra.mxu0 0
        %1879 = vmatpush.bf16.msra.mxu0 0
        %1880 = vmatpush.bf16.msra.mxu0 0
        %1881 = vmatpush.bf16.msra.mxu0 0
        %1882 = vmatpush.bf16.msra.mxu0 %v1131
        %1883 = vmatpush.bf16.msra.mxu0 %v1089
        %1884 = vmatmul.bf16.gmra.mxu0 %v1783
        %v1885 = vpop.f32.mrf.mxu0
        %v1886 = vadd.f32 0.0, %v1885
        %v1887 = vpop.f32.mrf.mxu0
        %1888 = vdwg.mxu0
        %v1889 = vadd.f32 %v1682, %v1795
        %v1890 = vadd.f32 %v1695, %v1808
        %v1891 = vadd.f32 %v1708, %v1821
        %v1892 = vadd.f32 %v1721, %v1834
        %v1893 = vadd.f32 %v1734, %v1847
        %v1894 = vadd.f32 %v1747, %v1860
        %v1895 = vadd.f32 %v1760, %v1873
        %v1896 = vadd.f32 %v1773, %v1886
        %1897 = vmatpush.bf16.msra.mxu0 0
        %1898 = vmatpush.bf16.msra.mxu0 0
        %1899 = vmatpush.bf16.msra.mxu0 0
        %1900 = vmatpush.bf16.msra.mxu0 0
        %1901 = vmatpush.bf16.msra.mxu0 0
        %1902 = vmatpush.bf16.msra.mxu0 0
        %1903 = vmatpush.bf16.msra.mxu0 %v704
        %1904 = vmatpush.bf16.msra.mxu0 %v674
        %1905 = vmatmul.bf16.gmra.mxu0 %v1783
        %v1906 = vpop.f32.mrf.mxu0
        %v1907 = vadd.f32 0.0, %v1906
        %v1908 = vpop.f32.mrf.mxu0
        %1909 = vdwg.mxu0
        %1910 = vmatpush.bf16.msra.mxu0 0
        %1911 = vmatpush.bf16.msra.mxu0 0
        %1912 = vmatpush.bf16.msra.mxu0 0
        %1913 = vmatpush.bf16.msra.mxu0 0
        %1914 = vmatpush.bf16.msra.mxu0 0
        %1915 = vmatpush.bf16.msra.mxu0 0
        %1916 = vmatpush.bf16.msra.mxu0 %v707
        %1917 = vmatpush.bf16.msra.mxu0 %v675
        %1918 = vmatmul.bf16.gmra.mxu0 %v1783
        %v1919 = vpop.f32.mrf.mxu0
        %v1920 = vadd.f32 0.0, %v1919
        %v1921 = vpop.f32.mrf.mxu0
        %1922 = vdwg.mxu0
        %1923 = vmatpush.bf16.msra.mxu0 0
        %1924 = vmatpush.bf16.msra.mxu0 0
        %1925 = vmatpush.bf16.msra.mxu0 0
        %1926 = vmatpush.bf16.msra.mxu0 0
        %1927 = vmatpush.bf16.msra.mxu0 0
        %1928 = vmatpush.bf16.msra.mxu0 0
        %1929 = vmatpush.bf16.msra.mxu0 %v710
        %1930 = vmatpush.bf16.msra.mxu0 %v676
        %1931 = vmatmul.bf16.gmra.mxu0 %v1783
        %v1932 = vpop.f32.mrf.mxu0
        %v1933 = vadd.f32 0.0, %v1932
        %v1934 = vpop.f32.mrf.mxu0
        %1935 = vdwg.mxu0
        %1936 = vmatpush.bf16.msra.mxu0 0
        %1937 = vmatpush.bf16.msra.mxu0 0
        %1938 = vmatpush.bf16.msra.mxu0 0
        %1939 = vmatpush.bf16.msra.mxu0 0
        %1940 = vmatpush.bf16.msra.mxu0 0
        %1941 = vmatpush.bf16.msra.mxu0 0
        %1942 = vmatpush.bf16.msra.mxu0 %v713
        %1943 = vmatpush.bf16.msra.mxu0 %v677
        %1944 = vmatmul.bf16.gmra.mxu0 %v1783
        %v1945 = vpop.f32.mrf.mxu0
        %v1946 = vadd.f32 0.0, %v1945
        %v1947 = vpop.f32.mrf.mxu0
        %1948 = vdwg.mxu0
        %1949 = vmatpush.bf16.msra.mxu0 0
        %1950 = vmatpush.bf16.msra.mxu0 0
        %1951 = vmatpush.bf16.msra.mxu0 0
        %1952 = vmatpush.bf16.msra.mxu0 0
        %1953 = vmatpush.bf16.msra.mxu0 0
        %1954 = vmatpush.bf16.msra.mxu0 0
        %1955 = vmatpush.bf16.msra.mxu0 %v716
        %1956 = vmatpush.bf16.msra.mxu0 %v678
        %1957 = vmatmul.bf16.gmra.mxu0 %v1783
        %v1958 = vpop.f32.mrf.mxu0
        %v1959 = vadd.f32 0.0, %v1958
        %v1960 = vpop.f32.mrf.mxu0
        %1961 = vdwg.mxu0
        %1962 = vmatpush.bf16.msra.mxu0 0
        %1963 = vmatpush.bf16.msra.mxu0 0
        %1964 = vmatpush.bf16.msra.mxu0 0
        %1965 = vmatpush.bf16.msra.mxu0 0
        %1966 = vmatpush.bf16.msra.mxu0 0
        %1967 = vmatpush.bf16.msra.mxu0 0
        %1968 = vmatpush.bf16.msra.mxu0 %v719
        %1969 = vmatpush.bf16.msra.mxu0 %v679
        %1970 = vmatmul.bf16.gmra.mxu0 %v1783
        %v1971 = vpop.f32.mrf.mxu0
        %v1972 = vadd.f32 0.0, %v1971
        %v1973 = vpop.f32.mrf.mxu0
        %1974 = vdwg.mxu0
        %1975 = vmatpush.bf16.msra.mxu0 0
        %1976 = vmatpush.bf16.msra.mxu0 0
        %1977 = vmatpush.bf16.msra.mxu0 0
        %1978 = vmatpush.bf16.msra.mxu0 0
        %1979 = vmatpush.bf16.msra.mxu0 0
        %1980 = vmatpush.bf16.msra.mxu0 0
        %1981 = vmatpush.bf16.msra.mxu0 %v722
        %1982 = vmatpush.bf16.msra.mxu0 %v680
        %1983 = vmatmul.bf16.gmra.mxu0 %v1783
        %v1984 = vpop.f32.mrf.mxu0
        %v1985 = vadd.f32 0.0, %v1984
        %v1986 = vpop.f32.mrf.mxu0
        %1987 = vdwg.mxu0
        %1988 = vmatpush.bf16.msra.mxu0 0
        %1989 = vmatpush.bf16.msra.mxu0 0
        %1990 = vmatpush.bf16.msra.mxu0 0
        %1991 = vmatpush.bf16.msra.mxu0 0
        %1992 = vmatpush.bf16.msra.mxu0 0
        %1993 = vmatpush.bf16.msra.mxu0 0
        %1994 = vmatpush.bf16.msra.mxu0 %v725
        %1995 = vmatpush.bf16.msra.mxu0 %v681
        %1996 = vmatmul.bf16.gmra.mxu0 %v1783
        %v1997 = vpop.f32.mrf.mxu0
        %v1998 = vadd.f32 0.0, %v1997
        %v1999 = vpop.f32.mrf.mxu0
        %2000 = vdwg.mxu0
        %2001 = vmatpush.bf16.msra.mxu0 0
        %2002 = vmatpush.bf16.msra.mxu0 0
        %2003 = vmatpush.bf16.msra.mxu0 0
        %2004 = vmatpush.bf16.msra.mxu0 0
        %2005 = vmatpush.bf16.msra.mxu0 0
        %2006 = vmatpush.bf16.msra.mxu0 0
        %2007 = vmatpush.bf16.msra.mxu0 %v907
        %2008 = vmatpush.bf16.msra.mxu0 %v879
        %2009 = vmatmul.bf16.gmra.mxu0 %v1454
        %v2010 = vpop.f32.mrf.mxu0
        %v2011 = vadd.f32 %v1907, %v2010
        %v2012 = vpop.f32.mrf.mxu0
        %2013 = vdwg.mxu0
        %2014 = vmatpush.bf16.msra.mxu0 0
        %2015 = vmatpush.bf16.msra.mxu0 0
        %2016 = vmatpush.bf16.msra.mxu0 0
        %2017 = vmatpush.bf16.msra.mxu0 0
        %2018 = vmatpush.bf16.msra.mxu0 0
        %2019 = vmatpush.bf16.msra.mxu0 0
        %2020 = vmatpush.bf16.msra.mxu0 %v910
        %2021 = vmatpush.bf16.msra.mxu0 %v880
        %2022 = vmatmul.bf16.gmra.mxu0 %v1454
        %v2023 = vpop.f32.mrf.mxu0
        %v2024 = vadd.f32 %v1920, %v2023
        %v2025 = vpop.f32.mrf.mxu0
        %2026 = vdwg.mxu0
        %2027 = vmatpush.bf16.msra.mxu0 0
        %2028 = vmatpush.bf16.msra.mxu0 0
        %2029 = vmatpush.bf16.msra.mxu0 0
        %2030 = vmatpush.bf16.msra.mxu0 0
        %2031 = vmatpush.bf16.msra.mxu0 0
        %2032 = vmatpush.bf16.msra.mxu0 0
        %2033 = vmatpush.bf16.msra.mxu0 %v913
        %2034 = vmatpush.bf16.msra.mxu0 %v881
        %2035 = vmatmul.bf16.gmra.mxu0 %v1454
        %v2036 = vpop.f32.mrf.mxu0
        %v2037 = vadd.f32 %v1933, %v2036
        %v2038 = vpop.f32.mrf.mxu0
        %2039 = vdwg.mxu0
        %2040 = vmatpush.bf16.msra.mxu0 0
        %2041 = vmatpush.bf16.msra.mxu0 0
        %2042 = vmatpush.bf16.msra.mxu0 0
        %2043 = vmatpush.bf16.msra.mxu0 0
        %2044 = vmatpush.bf16.msra.mxu0 0
        %2045 = vmatpush.bf16.msra.mxu0 0
        %2046 = vmatpush.bf16.msra.mxu0 %v916
        %2047 = vmatpush.bf16.msra.mxu0 %v882
        %2048 = vmatmul.bf16.gmra.mxu0 %v1454
        %v2049 = vpop.f32.mrf.mxu0
        %v2050 = vadd.f32 %v1946, %v2049
        %v2051 = vpop.f32.mrf.mxu0
        %2052 = vdwg.mxu0
        %2053 = vmatpush.bf16.msra.mxu0 0
        %2054 = vmatpush.bf16.msra.mxu0 0
        %2055 = vmatpush.bf16.msra.mxu0 0
        %2056 = vmatpush.bf16.msra.mxu0 0
        %2057 = vmatpush.bf16.msra.mxu0 0
        %2058 = vmatpush.bf16.msra.mxu0 0
        %2059 = vmatpush.bf16.msra.mxu0 %v919
        %2060 = vmatpush.bf16.msra.mxu0 %v883
        %2061 = vmatmul.bf16.gmra.mxu0 %v1454
        %v2062 = vpop.f32.mrf.mxu0
        %v2063 = vadd.f32 %v1959, %v2062
        %v2064 = vpop.f32.mrf.mxu0
        %2065 = vdwg.mxu0
        %2066 = vmatpush.bf16.msra.mxu0 0
        %2067 = vmatpush.bf16.msra.mxu0 0
        %2068 = vmatpush.bf16.msra.mxu0 0
        %2069 = vmatpush.bf16.msra.mxu0 0
        %2070 = vmatpush.bf16.msra.mxu0 0
        %2071 = vmatpush.bf16.msra.mxu0 0
        %2072 = vmatpush.bf16.msra.mxu0 %v922
        %2073 = vmatpush.bf16.msra.mxu0 %v884
        %2074 = vmatmul.bf16.gmra.mxu0 %v1454
        %v2075 = vpop.f32.mrf.mxu0
        %v2076 = vadd.f32 %v1972, %v2075
        %v2077 = vpop.f32.mrf.mxu0
        %2078 = vdwg.mxu0
        %2079 = vmatpush.bf16.msra.mxu0 0
        %2080 = vmatpush.bf16.msra.mxu0 0
        %2081 = vmatpush.bf16.msra.mxu0 0
        %2082 = vmatpush.bf16.msra.mxu0 0
        %2083 = vmatpush.bf16.msra.mxu0 0
        %2084 = vmatpush.bf16.msra.mxu0 0
        %2085 = vmatpush.bf16.msra.mxu0 %v925
        %2086 = vmatpush.bf16.msra.mxu0 %v885
        %2087 = vmatmul.bf16.gmra.mxu0 %v1454
        %v2088 = vpop.f32.mrf.mxu0
        %v2089 = vadd.f32 %v1985, %v2088
        %v2090 = vpop.f32.mrf.mxu0
        %2091 = vdwg.mxu0
        %2092 = vmatpush.bf16.msra.mxu0 0
        %2093 = vmatpush.bf16.msra.mxu0 0
        %2094 = vmatpush.bf16.msra.mxu0 0
        %2095 = vmatpush.bf16.msra.mxu0 0
        %2096 = vmatpush.bf16.msra.mxu0 0
        %2097 = vmatpush.bf16.msra.mxu0 0
        %2098 = vmatpush.bf16.msra.mxu0 %v928
        %2099 = vmatpush.bf16.msra.mxu0 %v886
        %2100 = vmatmul.bf16.gmra.mxu0 %v1454
        %v2101 = vpop.f32.mrf.mxu0
        %v2102 = vadd.f32 %v1998, %v2101
        %v2103 = vpop.f32.mrf.mxu0
        %2104 = vdwg.mxu0
        %v2105 = vshrl.u32 %v573, 16
        %v2107 = vshll.u32 %v573, 16
        %v2109 = vrot.slane %v2107, 1
        %v2110 = vor.u32 %v2105, %v2109
        %v2112 = vsel %vm698, %v2110, 0
        %2114 = vmatpush.bf16.msra.mxu0 0
        %2115 = vmatpush.bf16.msra.mxu0 0
        %2116 = vmatpush.bf16.msra.mxu0 0
        %2117 = vmatpush.bf16.msra.mxu0 0
        %2118 = vmatpush.bf16.msra.mxu0 0
        %2119 = vmatpush.bf16.msra.mxu0 0
        %2120 = vmatpush.bf16.msra.mxu0 %v1110
        %2121 = vmatpush.bf16.msra.mxu0 %v1082
        %2122 = vmatmul.bf16.gmra.mxu0 %v2112
        %v2123 = vpop.f32.mrf.mxu0
        %v2124 = vadd.f32 0.0, %v2123
        %v2125 = vpop.f32.mrf.mxu0
        %2126 = vdwg.mxu0
        %2127 = vmatpush.bf16.msra.mxu0 0
        %2128 = vmatpush.bf16.msra.mxu0 0
        %2129 = vmatpush.bf16.msra.mxu0 0
        %2130 = vmatpush.bf16.msra.mxu0 0
        %2131 = vmatpush.bf16.msra.mxu0 0
        %2132 = vmatpush.bf16.msra.mxu0 0
        %2133 = vmatpush.bf16.msra.mxu0 %v1113
        %2134 = vmatpush.bf16.msra.mxu0 %v1083
        %2135 = vmatmul.bf16.gmra.mxu0 %v2112
        %v2136 = vpop.f32.mrf.mxu0
        %v2137 = vadd.f32 0.0, %v2136
        %v2138 = vpop.f32.mrf.mxu0
        %2139 = vdwg.mxu0
        %2140 = vmatpush.bf16.msra.mxu0 0
        %2141 = vmatpush.bf16.msra.mxu0 0
        %2142 = vmatpush.bf16.msra.mxu0 0
        %2143 = vmatpush.bf16.msra.mxu0 0
        %2144 = vmatpush.bf16.msra.mxu0 0
        %2145 = vmatpush.bf16.msra.mxu0 0
        %2146 = vmatpush.bf16.msra.mxu0 %v1116
        %2147 = vmatpush.bf16.msra.mxu0 %v1084
        %2148 = vmatmul.bf16.gmra.mxu0 %v2112
        %v2149 = vpop.f32.mrf.mxu0
        %v2150 = vadd.f32 0.0, %v2149
        %v2151 = vpop.f32.mrf.mxu0
        %2152 = vdwg.mxu0
        %2153 = vmatpush.bf16.msra.mxu0 0
        %2154 = vmatpush.bf16.msra.mxu0 0
        %2155 = vmatpush.bf16.msra.mxu0 0
        %2156 = vmatpush.bf16.msra.mxu0 0
        %2157 = vmatpush.bf16.msra.mxu0 0
        %2158 = vmatpush.bf16.msra.mxu0 0
        %2159 = vmatpush.bf16.msra.mxu0 %v1119
        %2160 = vmatpush.bf16.msra.mxu0 %v1085
        %2161 = vmatmul.bf16.gmra.mxu0 %v2112
        %v2162 = vpop.f32.mrf.mxu0
        %v2163 = vadd.f32 0.0, %v2162
        %v2164 = vpop.f32.mrf.mxu0
        %2165 = vdwg.mxu0
        %2166 = vmatpush.bf16.msra.mxu0 0
        %2167 = vmatpush.bf16.msra.mxu0 0
        %2168 = vmatpush.bf16.msra.mxu0 0
        %2169 = vmatpush.bf16.msra.mxu0 0
        %2170 = vmatpush.bf16.msra.mxu0 0
        %2171 = vmatpush.bf16.msra.mxu0 0
        %2172 = vmatpush.bf16.msra.mxu0 %v1122
        %2173 = vmatpush.bf16.msra.mxu0 %v1086
        %2174 = vmatmul.bf16.gmra.mxu0 %v2112
        %v2175 = vpop.f32.mrf.mxu0
        %v2176 = vadd.f32 0.0, %v2175
        %v2177 = vpop.f32.mrf.mxu0
        %2178 = vdwg.mxu0
        %2179 = vmatpush.bf16.msra.mxu0 0
        %2180 = vmatpush.bf16.msra.mxu0 0
        %2181 = vmatpush.bf16.msra.mxu0 0
        %2182 = vmatpush.bf16.msra.mxu0 0
        %2183 = vmatpush.bf16.msra.mxu0 0
        %2184 = vmatpush.bf16.msra.mxu0 0
        %2185 = vmatpush.bf16.msra.mxu0 %v1125
        %2186 = vmatpush.bf16.msra.mxu0 %v1087
        %2187 = vmatmul.bf16.gmra.mxu0 %v2112
        %v2188 = vpop.f32.mrf.mxu0
        %v2189 = vadd.f32 0.0, %v2188
        %v2190 = vpop.f32.mrf.mxu0
        %2191 = vdwg.mxu0
        %2192 = vmatpush.bf16.msra.mxu0 0
        %2193 = vmatpush.bf16.msra.mxu0 0
        %2194 = vmatpush.bf16.msra.mxu0 0
        %2195 = vmatpush.bf16.msra.mxu0 0
        %2196 = vmatpush.bf16.msra.mxu0 0
        %2197 = vmatpush.bf16.msra.mxu0 0
        %2198 = vmatpush.bf16.msra.mxu0 %v1128
        %2199 = vmatpush.bf16.msra.mxu0 %v1088
        %2200 = vmatmul.bf16.gmra.mxu0 %v2112
        %v2201 = vpop.f32.mrf.mxu0
        %v2202 = vadd.f32 0.0, %v2201
        %v2203 = vpop.f32.mrf.mxu0
        %2204 = vdwg.mxu0
        %2205 = vmatpush.bf16.msra.mxu0 0
        %2206 = vmatpush.bf16.msra.mxu0 0
        %2207 = vmatpush.bf16.msra.mxu0 0
        %2208 = vmatpush.bf16.msra.mxu0 0
        %2209 = vmatpush.bf16.msra.mxu0 0
        %2210 = vmatpush.bf16.msra.mxu0 0
        %2211 = vmatpush.bf16.msra.mxu0 %v1131
        %2212 = vmatpush.bf16.msra.mxu0 %v1089
        %2213 = vmatmul.bf16.gmra.mxu0 %v2112
        %v2214 = vpop.f32.mrf.mxu0
        %v2215 = vadd.f32 0.0, %v2214
        %v2216 = vpop.f32.mrf.mxu0
        %2217 = vdwg.mxu0
        %v2218 = vadd.f32 %v2011, %v2124
        %v2219 = vadd.f32 %v2024, %v2137
        %v2220 = vadd.f32 %v2037, %v2150
        %v2221 = vadd.f32 %v2050, %v2163
        %v2222 = vadd.f32 %v2063, %v2176
        %v2223 = vadd.f32 %v2076, %v2189
        %v2224 = vadd.f32 %v2089, %v2202
        %v2225 = vadd.f32 %v2102, %v2215
        %v2226 = vmax.f32 %v1237, %v1560
        %v2227 = vmax.f32 %v1238, %v1561
        %v2228 = vmax.f32 %v1239, %v1562
        %v2229 = vmax.f32 %v1240, %v1563
        %v2230 = vmax.f32 %v1241, %v1564
        %v2231 = vmax.f32 %v1242, %v1565
        %v2232 = vmax.f32 %v1243, %v1566
        %v2233 = vmax.f32 %v1244, %v1567
        %v2234 = vmax.f32 %v1889, %v2218
        %v2235 = vmax.f32 %v1890, %v2219
        %v2236 = vmax.f32 %v1891, %v2220
        %v2237 = vmax.f32 %v1892, %v2221
        %v2238 = vmax.f32 %v1893, %v2222
        %v2239 = vmax.f32 %v1894, %v2223
        %v2240 = vmax.f32 %v1895, %v2224
        %v2241 = vmax.f32 %v1896, %v2225
        %v2242 = vmax.f32 %v2226, %v2230
        %v2243 = vmax.f32 %v2227, %v2231
        %v2244 = vmax.f32 %v2228, %v2232
        %v2245 = vmax.f32 %v2229, %v2233
        %v2246 = vmax.f32 %v2234, %v2238
        %v2247 = vmax.f32 %v2235, %v2239
        %v2248 = vmax.f32 %v2236, %v2240
        %v2249 = vmax.f32 %v2237, %v2241
        %v2250 = vld [vmem:[#allocation5] sm:$0xf]
        %v2252 = vperm.slane %v2250, 0
        %v2253 = vperm.slane %v2250, 1
        %v2254 = vperm.slane %v2250, 2
        %v2255 = vperm.slane %v2250, 3
        %v2260 = vadd.f32 %v2242, %v2252
        %v2261 = vadd.f32 %v2243, %v2253
        %v2262 = vadd.f32 %v2244, %v2254
        %v2263 = vadd.f32 %v2245, %v2255
        %v2264 = vmax.f32 %v2260, 0.0
        %v2265 = vmax.f32 %v2261, 0.0
        %v2266 = vmax.f32 %v2262, 0.0
        %v2267 = vmax.f32 %v2263, 0.0
        %v2268 = vadd.f32 %v2246, %v2252
        %v2269 = vadd.f32 %v2247, %v2253
        %v2270 = vadd.f32 %v2248, %v2254
        %v2271 = vadd.f32 %v2249, %v2255
        %v2272 = vmax.f32 %v2268, 0.0
        %v2273 = vmax.f32 %v2269, 0.0
        %v2274 = vmax.f32 %v2270, 0.0
        %v2275 = vmax.f32 %v2271, 0.0
        %v2276 = vpack.c.bf16 %v2264, %v2264
        %v2277 = vpack.c.bf16 %v2265, %v2265
        %v2278 = vpack.c.bf16 %v2266, %v2266
        %v2279 = vpack.c.bf16 %v2267, %v2267
        %v2280 = vpack.c.bf16 %v2272, %v2272
        %v2281 = vpack.c.bf16 %v2273, %v2273
        %v2282 = vpack.c.bf16 %v2274, %v2274
        %v2283 = vpack.c.bf16 %v2275, %v2275
        %v2284 = vld [vmem:[#allocation7] sm:$0xff]
        %v2285 = vld [vmem:[#allocation7 + $0x8] sm:$0xff]
        %v2286 = vld [vmem:[#allocation7 + $0x10] sm:$0xff]
        %v2287 = vld [vmem:[#allocation7 + $0x18] sm:$0xff]
        %v2288 = vld [vmem:[#allocation7 + $0x20] sm:$0xff]
        %v2289 = vld [vmem:[#allocation7 + $0x28] sm:$0xff]
        %v2290 = vld [vmem:[#allocation7 + $0x30] sm:$0xff]
        %v2291 = vld [vmem:[#allocation7 + $0x38] sm:$0xff]
        %v2292 = vld [vmem:[#allocation7 + $0x40] sm:$0xff]
        %v2293 = vld [vmem:[#allocation7 + $0x48] sm:$0xff]
        %v2294 = vld [vmem:[#allocation7 + $0x50] sm:$0xff]
        %v2295 = vld [vmem:[#allocation7 + $0x58] sm:$0xff]
        %v2296 = vld [vmem:[#allocation7 + $0x60] sm:$0xff]
        %v2297 = vld [vmem:[#allocation7 + $0x68] sm:$0xff]
        %v2298 = vld [vmem:[#allocation7 + $0x70] sm:$0xff]
        %v2299 = vld [vmem:[#allocation7 + $0x78] sm:$0xff]
        %v2300 = vld [vmem:[#allocation7 + $0x80] sm:$0xff]
        %v2301 = vld [vmem:[#allocation7 + $0x88] sm:$0xff]
        %v2302 = vld [vmem:[#allocation7 + $0x90] sm:$0xff]
        %v2303 = vld [vmem:[#allocation7 + $0x98] sm:$0xff]
        %v2304 = vld [vmem:[#allocation7 + $0xa0] sm:$0xff]
        %v2305 = vld [vmem:[#allocation7 + $0xa8] sm:$0xff]
        %v2306 = vld [vmem:[#allocation7 + $0xb0] sm:$0xff]
        %v2307 = vld [vmem:[#allocation7 + $0xb8] sm:$0xff]
        %v2308 = vld [vmem:[#allocation7 + $0xc0] sm:$0xff]
        %v2309 = vld [vmem:[#allocation7 + $0xc8] sm:$0xff]
        %v2310 = vld [vmem:[#allocation7 + $0xd0] sm:$0xff]
        %v2311 = vld [vmem:[#allocation7 + $0xd8] sm:$0xff]
        %v2312 = vld [vmem:[#allocation7 + $0xe0] sm:$0xff]
        %v2313 = vld [vmem:[#allocation7 + $0xe8] sm:$0xff]
        %v2314 = vld [vmem:[#allocation7 + $0xf0] sm:$0xff]
        %v2315 = vld [vmem:[#allocation7 + $0xf8] sm:$0xff]
        %v2316 = vld [vmem:[#allocation7 + $0x100] sm:$0xff]
        %v2317 = vld [vmem:[#allocation7 + $0x108] sm:$0xff]
        %v2318 = vld [vmem:[#allocation7 + $0x110] sm:$0xff]
        %v2319 = vld [vmem:[#allocation7 + $0x118] sm:$0xff]
        %v2320 = vld [vmem:[#allocation7 + $0x120] sm:$0xff]
        %v2321 = vld [vmem:[#allocation7 + $0x128] sm:$0xff]
        %v2322 = vld [vmem:[#allocation7 + $0x130] sm:$0xff]
        %v2323 = vld [vmem:[#allocation7 + $0x138] sm:$0xff]
        %v2324 = vld [vmem:[#allocation7 + $0x140] sm:$0xff]
        %v2325 = vld [vmem:[#allocation7 + $0x148] sm:$0xff]
        %v2326 = vld [vmem:[#allocation7 + $0x150] sm:$0xff]
        %v2327 = vld [vmem:[#allocation7 + $0x158] sm:$0xff]
        %v2328 = vld [vmem:[#allocation7 + $0x160] sm:$0xff]
        %v2329 = vld [vmem:[#allocation7 + $0x168] sm:$0xff]
        %v2330 = vld [vmem:[#allocation7 + $0x170] sm:$0xff]
        %v2331 = vld [vmem:[#allocation7 + $0x178] sm:$0xff]
        %v2332 = vld [vmem:[#allocation7 + $0x180] sm:$0xff]
        %v2333 = vld [vmem:[#allocation7 + $0x188] sm:$0xff]
        %v2334 = vld [vmem:[#allocation7 + $0x190] sm:$0xff]
        %v2335 = vld [vmem:[#allocation7 + $0x198] sm:$0xff]
        %v2336 = vld [vmem:[#allocation7 + $0x1a0] sm:$0xff]
        %v2337 = vld [vmem:[#allocation7 + $0x1a8] sm:$0xff]
        %v2338 = vld [vmem:[#allocation7 + $0x1b0] sm:$0xff]
        %v2339 = vld [vmem:[#allocation7 + $0x1b8] sm:$0xff]
        %v2340 = vld [vmem:[#allocation7 + $0x1c0] sm:$0xff]
        %v2341 = vld [vmem:[#allocation7 + $0x1c8] sm:$0xff]
        %v2342 = vld [vmem:[#allocation7 + $0x1d0] sm:$0xff]
        %v2343 = vld [vmem:[#allocation7 + $0x1d8] sm:$0xff]
        %v2344 = vld [vmem:[#allocation7 + $0x1e0] sm:$0xff]
        %v2345 = vld [vmem:[#allocation7 + $0x1e8] sm:$0xff]
        %v2346 = vld [vmem:[#allocation7 + $0x1f0] sm:$0xff]
        %v2347 = vld [vmem:[#allocation7 + $0x1f8] sm:$0xff]
        %v2348 = vld [vmem:[#allocation7 + $0x200] sm:$0xff]
        %v2349 = vld [vmem:[#allocation7 + $0x208] sm:$0xff]
        %v2350 = vld [vmem:[#allocation7 + $0x210] sm:$0xff]
        %v2351 = vld [vmem:[#allocation7 + $0x218] sm:$0xff]
        %v2352 = vld [vmem:[#allocation7 + $0x220] sm:$0xff]
        %v2353 = vld [vmem:[#allocation7 + $0x228] sm:$0xff]
        %v2354 = vld [vmem:[#allocation7 + $0x230] sm:$0xff]
        %v2355 = vld [vmem:[#allocation7 + $0x238] sm:$0xff]
        %v2356 = vld [vmem:[#allocation7 + $0x240] sm:$0xff]
        %v2357 = vld [vmem:[#allocation7 + $0x248] sm:$0xff]
        %v2358 = vld [vmem:[#allocation7 + $0x250] sm:$0xff]
        %v2359 = vld [vmem:[#allocation7 + $0x258] sm:$0xff]
        %v2360 = vld [vmem:[#allocation7 + $0x260] sm:$0xff]
        %v2361 = vld [vmem:[#allocation7 + $0x268] sm:$0xff]
        %v2362 = vld [vmem:[#allocation7 + $0x270] sm:$0xff]
        %v2363 = vld [vmem:[#allocation7 + $0x278] sm:$0xff]
        %v2364 = vld [vmem:[#allocation7 + $0x280] sm:$0xff]
        %v2365 = vld [vmem:[#allocation7 + $0x288] sm:$0xff]
        %v2366 = vld [vmem:[#allocation7 + $0x290] sm:$0xff]
        %v2367 = vld [vmem:[#allocation7 + $0x298] sm:$0xff]
        %v2368 = vld [vmem:[#allocation7 + $0x2a0] sm:$0xff]
        %v2369 = vld [vmem:[#allocation7 + $0x2a8] sm:$0xff]
        %v2370 = vld [vmem:[#allocation7 + $0x2b0] sm:$0xff]
        %v2371 = vld [vmem:[#allocation7 + $0x2b8] sm:$0xff]
        %v2372 = vld [vmem:[#allocation7 + $0x2c0] sm:$0xff]
        %v2373 = vld [vmem:[#allocation7 + $0x2c8] sm:$0xff]
        %v2374 = vld [vmem:[#allocation7 + $0x2d0] sm:$0xff]
        %v2375 = vld [vmem:[#allocation7 + $0x2d8] sm:$0xff]
        %v2376 = vld [vmem:[#allocation7 + $0x2e0] sm:$0xff]
        %v2377 = vld [vmem:[#allocation7 + $0x2e8] sm:$0xff]
        %v2378 = vld [vmem:[#allocation7 + $0x2f0] sm:$0xff]
        %v2379 = vld [vmem:[#allocation7 + $0x2f8] sm:$0xff]
        %v2380 = vld [vmem:[#allocation7 + $0x300] sm:$0xff]
        %v2381 = vld [vmem:[#allocation7 + $0x308] sm:$0xff]
        %v2382 = vld [vmem:[#allocation7 + $0x310] sm:$0xff]
        %v2383 = vld [vmem:[#allocation7 + $0x318] sm:$0xff]
        %v2384 = vld [vmem:[#allocation7 + $0x320] sm:$0xff]
        %v2385 = vld [vmem:[#allocation7 + $0x328] sm:$0xff]
        %v2386 = vld [vmem:[#allocation7 + $0x330] sm:$0xff]
        %v2387 = vld [vmem:[#allocation7 + $0x338] sm:$0xff]
        %v2388 = vld [vmem:[#allocation7 + $0x340] sm:$0xff]
        %v2389 = vld [vmem:[#allocation7 + $0x348] sm:$0xff]
        %v2390 = vld [vmem:[#allocation7 + $0x350] sm:$0xff]
        %v2391 = vld [vmem:[#allocation7 + $0x358] sm:$0xff]
        %v2392 = vld [vmem:[#allocation7 + $0x360] sm:$0xff]
        %v2393 = vld [vmem:[#allocation7 + $0x368] sm:$0xff]
        %v2394 = vld [vmem:[#allocation7 + $0x370] sm:$0xff]
        %v2395 = vld [vmem:[#allocation7 + $0x378] sm:$0xff]
        %v2396 = vld [vmem:[#allocation7 + $0x380] sm:$0xff]
        %v2397 = vld [vmem:[#allocation7 + $0x388] sm:$0xff]
        %v2398 = vld [vmem:[#allocation7 + $0x390] sm:$0xff]
        %v2399 = vld [vmem:[#allocation7 + $0x398] sm:$0xff]
        %v2400 = vld [vmem:[#allocation7 + $0x3a0] sm:$0xff]
        %v2401 = vld [vmem:[#allocation7 + $0x3a8] sm:$0xff]
        %v2402 = vld [vmem:[#allocation7 + $0x3b0] sm:$0xff]
        %v2403 = vld [vmem:[#allocation7 + $0x3b8] sm:$0xff]
        %v2404 = vld [vmem:[#allocation7 + $0x3c0] sm:$0xff]
        %v2405 = vld [vmem:[#allocation7 + $0x3c8] sm:$0xff]
        %v2406 = vld [vmem:[#allocation7 + $0x3d0] sm:$0xff]
        %v2407 = vld [vmem:[#allocation7 + $0x3d8] sm:$0xff]
        %v2408 = vld [vmem:[#allocation7 + $0x3e0] sm:$0xff]
        %v2409 = vld [vmem:[#allocation7 + $0x3e8] sm:$0xff]
        %v2410 = vld [vmem:[#allocation7 + $0x3f0] sm:$0xff]
        %v2411 = vld [vmem:[#allocation7 + $0x3f8] sm:$0xff]
        %v2412 = vld [vmem:[#allocation7 + $0x400] sm:$0xff]
        %v2413 = vld [vmem:[#allocation7 + $0x408] sm:$0xff]
        %v2414 = vld [vmem:[#allocation7 + $0x410] sm:$0xff]
        %v2415 = vld [vmem:[#allocation7 + $0x418] sm:$0xff]
        %v2416 = vld [vmem:[#allocation7 + $0x420] sm:$0xff]
        %v2417 = vld [vmem:[#allocation7 + $0x428] sm:$0xff]
        %v2418 = vld [vmem:[#allocation7 + $0x430] sm:$0xff]
        %v2419 = vld [vmem:[#allocation7 + $0x438] sm:$0xff]
        %v2420 = vld [vmem:[#allocation7 + $0x440] sm:$0xff]
        %v2421 = vld [vmem:[#allocation7 + $0x448] sm:$0xff]
        %v2422 = vld [vmem:[#allocation7 + $0x450] sm:$0xff]
        %v2423 = vld [vmem:[#allocation7 + $0x458] sm:$0xff]
        %v2424 = vld [vmem:[#allocation7 + $0x460] sm:$0xff]
        %v2425 = vld [vmem:[#allocation7 + $0x468] sm:$0xff]
        %v2426 = vld [vmem:[#allocation7 + $0x470] sm:$0xff]
        %v2427 = vld [vmem:[#allocation7 + $0x478] sm:$0xff]
        %v2428 = vld [vmem:[#allocation7 + $0x480] sm:$0xff]
        %v2429 = vld [vmem:[#allocation7 + $0x488] sm:$0xff]
        %v2430 = vld [vmem:[#allocation7 + $0x490] sm:$0xff]
        %v2431 = vld [vmem:[#allocation7 + $0x498] sm:$0xff]
        %v2432 = vld [vmem:[#allocation7 + $0x4a0] sm:$0xff]
        %v2433 = vld [vmem:[#allocation7 + $0x4a8] sm:$0xff]
        %v2434 = vld [vmem:[#allocation7 + $0x4b0] sm:$0xff]
        %v2435 = vld [vmem:[#allocation7 + $0x4b8] sm:$0xff]
        %v2436 = vld [vmem:[#allocation7 + $0x4c0] sm:$0xff]
        %v2437 = vld [vmem:[#allocation7 + $0x4c8] sm:$0xff]
        %v2438 = vld [vmem:[#allocation7 + $0x4d0] sm:$0xff]
        %v2439 = vld [vmem:[#allocation7 + $0x4d8] sm:$0xff]
        %v2440 = vld [vmem:[#allocation7 + $0x4e0] sm:$0xff]
        %v2441 = vld [vmem:[#allocation7 + $0x4e8] sm:$0xff]
        %v2442 = vld [vmem:[#allocation7 + $0x4f0] sm:$0xff]
        %v2443 = vld [vmem:[#allocation7 + $0x4f8] sm:$0xff]
        %v2444 = vld [vmem:[#allocation7 + $0x500] sm:$0xff]
        %v2445 = vld [vmem:[#allocation7 + $0x508] sm:$0xff]
        %v2446 = vld [vmem:[#allocation7 + $0x510] sm:$0xff]
        %v2447 = vld [vmem:[#allocation7 + $0x518] sm:$0xff]
        %v2448 = vld [vmem:[#allocation7 + $0x520] sm:$0xff]
        %v2449 = vld [vmem:[#allocation7 + $0x528] sm:$0xff]
        %v2450 = vld [vmem:[#allocation7 + $0x530] sm:$0xff]
        %v2451 = vld [vmem:[#allocation7 + $0x538] sm:$0xff]
        %v2452 = vld [vmem:[#allocation7 + $0x540] sm:$0xff]
        %v2453 = vld [vmem:[#allocation7 + $0x548] sm:$0xff]
        %v2454 = vld [vmem:[#allocation7 + $0x550] sm:$0xff]
        %v2455 = vld [vmem:[#allocation7 + $0x558] sm:$0xff]
        %v2456 = vld [vmem:[#allocation7 + $0x560] sm:$0xff]
        %v2457 = vld [vmem:[#allocation7 + $0x568] sm:$0xff]
        %v2458 = vld [vmem:[#allocation7 + $0x570] sm:$0xff]
        %v2459 = vld [vmem:[#allocation7 + $0x578] sm:$0xff]
        %v2460 = vld [vmem:[#allocation7 + $0x580] sm:$0xff]
        %v2461 = vld [vmem:[#allocation7 + $0x588] sm:$0xff]
        %v2462 = vld [vmem:[#allocation7 + $0x590] sm:$0xff]
        %v2463 = vld [vmem:[#allocation7 + $0x598] sm:$0xff]
        %v2464 = vld [vmem:[#allocation7 + $0x5a0] sm:$0xff]
        %v2465 = vld [vmem:[#allocation7 + $0x5a8] sm:$0xff]
        %v2466 = vld [vmem:[#allocation7 + $0x5b0] sm:$0xff]
        %v2467 = vld [vmem:[#allocation7 + $0x5b8] sm:$0xff]
        %v2468 = vld [vmem:[#allocation7 + $0x5c0] sm:$0xff]
        %v2469 = vld [vmem:[#allocation7 + $0x5c8] sm:$0xff]
        %v2470 = vld [vmem:[#allocation7 + $0x5d0] sm:$0xff]
        %v2471 = vld [vmem:[#allocation7 + $0x5d8] sm:$0xff]
        %v2472 = vld [vmem:[#allocation7 + $0x5e0] sm:$0xff]
        %v2473 = vld [vmem:[#allocation7 + $0x5e8] sm:$0xff]
        %v2474 = vld [vmem:[#allocation7 + $0x5f0] sm:$0xff]
        %v2475 = vld [vmem:[#allocation7 + $0x5f8] sm:$0xff]
        %s2476 = scalar_lea.vmem [#allocation7], 1536
        %v2477 = vld [vmem:[%s2476] sm:$0xff]
        %v2478 = vld [vmem:[%s2476 + $0x8] sm:$0xff]
        %v2479 = vld [vmem:[%s2476 + $0x10] sm:$0xff]
        %v2480 = vld [vmem:[%s2476 + $0x18] sm:$0xff]
        %v2481 = vld [vmem:[%s2476 + $0x20] sm:$0xff]
        %v2482 = vld [vmem:[%s2476 + $0x28] sm:$0xff]
        %v2483 = vld [vmem:[%s2476 + $0x30] sm:$0xff]
        %v2484 = vld [vmem:[%s2476 + $0x38] sm:$0xff]
        %v2485 = vld [vmem:[%s2476 + $0x40] sm:$0xff]
        %v2486 = vld [vmem:[%s2476 + $0x48] sm:$0xff]
        %v2487 = vld [vmem:[%s2476 + $0x50] sm:$0xff]
        %v2488 = vld [vmem:[%s2476 + $0x58] sm:$0xff]
        %v2489 = vld [vmem:[%s2476 + $0x60] sm:$0xff]
        %v2490 = vld [vmem:[%s2476 + $0x68] sm:$0xff]
        %v2491 = vld [vmem:[%s2476 + $0x70] sm:$0xff]
        %v2492 = vld [vmem:[%s2476 + $0x78] sm:$0xff]
        %v2493 = vld [vmem:[%s2476 + $0x80] sm:$0xff]
        %v2494 = vld [vmem:[%s2476 + $0x88] sm:$0xff]
        %v2495 = vld [vmem:[%s2476 + $0x90] sm:$0xff]
        %v2496 = vld [vmem:[%s2476 + $0x98] sm:$0xff]
        %v2497 = vld [vmem:[%s2476 + $0xa0] sm:$0xff]
        %v2498 = vld [vmem:[%s2476 + $0xa8] sm:$0xff]
        %v2499 = vld [vmem:[%s2476 + $0xb0] sm:$0xff]
        %v2500 = vld [vmem:[%s2476 + $0xb8] sm:$0xff]
        %v2501 = vld [vmem:[%s2476 + $0xc0] sm:$0xff]
        %v2502 = vld [vmem:[%s2476 + $0xc8] sm:$0xff]
        %v2503 = vld [vmem:[%s2476 + $0xd0] sm:$0xff]
        %v2504 = vld [vmem:[%s2476 + $0xd8] sm:$0xff]
        %v2505 = vld [vmem:[%s2476 + $0xe0] sm:$0xff]
        %v2506 = vld [vmem:[%s2476 + $0xe8] sm:$0xff]
        %v2507 = vld [vmem:[%s2476 + $0xf0] sm:$0xff]
        %v2508 = vld [vmem:[%s2476 + $0xf8] sm:$0xff]
        %v2509 = vld [vmem:[%s2476 + $0x100] sm:$0xff]
        %v2510 = vld [vmem:[%s2476 + $0x108] sm:$0xff]
        %v2511 = vld [vmem:[%s2476 + $0x110] sm:$0xff]
        %v2512 = vld [vmem:[%s2476 + $0x118] sm:$0xff]
        %v2513 = vld [vmem:[%s2476 + $0x120] sm:$0xff]
        %v2514 = vld [vmem:[%s2476 + $0x128] sm:$0xff]
        %v2515 = vld [vmem:[%s2476 + $0x130] sm:$0xff]
        %v2516 = vld [vmem:[%s2476 + $0x138] sm:$0xff]
        %v2517 = vld [vmem:[%s2476 + $0x140] sm:$0xff]
        %v2518 = vld [vmem:[%s2476 + $0x148] sm:$0xff]
        %v2519 = vld [vmem:[%s2476 + $0x150] sm:$0xff]
        %v2520 = vld [vmem:[%s2476 + $0x158] sm:$0xff]
        %v2521 = vld [vmem:[%s2476 + $0x160] sm:$0xff]
        %v2522 = vld [vmem:[%s2476 + $0x168] sm:$0xff]
        %v2523 = vld [vmem:[%s2476 + $0x170] sm:$0xff]
        %v2524 = vld [vmem:[%s2476 + $0x178] sm:$0xff]
        %v2525 = vld [vmem:[%s2476 + $0x180] sm:$0xff]
        %v2526 = vld [vmem:[%s2476 + $0x188] sm:$0xff]
        %v2527 = vld [vmem:[%s2476 + $0x190] sm:$0xff]
        %v2528 = vld [vmem:[%s2476 + $0x198] sm:$0xff]
        %v2529 = vld [vmem:[%s2476 + $0x1a0] sm:$0xff]
        %v2530 = vld [vmem:[%s2476 + $0x1a8] sm:$0xff]
        %v2531 = vld [vmem:[%s2476 + $0x1b0] sm:$0xff]
        %v2532 = vld [vmem:[%s2476 + $0x1b8] sm:$0xff]
        %v2533 = vld [vmem:[%s2476 + $0x1c0] sm:$0xff]
        %v2534 = vld [vmem:[%s2476 + $0x1c8] sm:$0xff]
        %v2535 = vld [vmem:[%s2476 + $0x1d0] sm:$0xff]
        %v2536 = vld [vmem:[%s2476 + $0x1d8] sm:$0xff]
        %v2537 = vld [vmem:[%s2476 + $0x1e0] sm:$0xff]
        %v2538 = vld [vmem:[%s2476 + $0x1e8] sm:$0xff]
        %v2539 = vld [vmem:[%s2476 + $0x1f0] sm:$0xff]
        %v2540 = vld [vmem:[%s2476 + $0x1f8] sm:$0xff]
        %v2541 = vld [vmem:[%s2476 + $0x200] sm:$0xff]
        %v2542 = vld [vmem:[%s2476 + $0x208] sm:$0xff]
        %v2543 = vld [vmem:[%s2476 + $0x210] sm:$0xff]
        %v2544 = vld [vmem:[%s2476 + $0x218] sm:$0xff]
        %v2545 = vld [vmem:[%s2476 + $0x220] sm:$0xff]
        %v2546 = vld [vmem:[%s2476 + $0x228] sm:$0xff]
        %v2547 = vld [vmem:[%s2476 + $0x230] sm:$0xff]
        %v2548 = vld [vmem:[%s2476 + $0x238] sm:$0xff]
        %v2549 = vld [vmem:[%s2476 + $0x240] sm:$0xff]
        %v2550 = vld [vmem:[%s2476 + $0x248] sm:$0xff]
        %v2551 = vld [vmem:[%s2476 + $0x250] sm:$0xff]
        %v2552 = vld [vmem:[%s2476 + $0x258] sm:$0xff]
        %v2553 = vld [vmem:[%s2476 + $0x260] sm:$0xff]
        %v2554 = vld [vmem:[%s2476 + $0x268] sm:$0xff]
        %v2555 = vld [vmem:[%s2476 + $0x270] sm:$0xff]
        %v2556 = vld [vmem:[%s2476 + $0x278] sm:$0xff]
        %v2557 = vld [vmem:[%s2476 + $0x280] sm:$0xff]
        %v2558 = vld [vmem:[%s2476 + $0x288] sm:$0xff]
        %v2559 = vld [vmem:[%s2476 + $0x290] sm:$0xff]
        %v2560 = vld [vmem:[%s2476 + $0x298] sm:$0xff]
        %v2561 = vld [vmem:[%s2476 + $0x2a0] sm:$0xff]
        %v2562 = vld [vmem:[%s2476 + $0x2a8] sm:$0xff]
        %v2563 = vld [vmem:[%s2476 + $0x2b0] sm:$0xff]
        %v2564 = vld [vmem:[%s2476 + $0x2b8] sm:$0xff]
        %v2565 = vld [vmem:[%s2476 + $0x2c0] sm:$0xff]
        %v2566 = vld [vmem:[%s2476 + $0x2c8] sm:$0xff]
        %v2567 = vld [vmem:[%s2476 + $0x2d0] sm:$0xff]
        %v2568 = vld [vmem:[%s2476 + $0x2d8] sm:$0xff]
        %v2569 = vld [vmem:[%s2476 + $0x2e0] sm:$0xff]
        %v2570 = vld [vmem:[%s2476 + $0x2e8] sm:$0xff]
        %v2571 = vld [vmem:[%s2476 + $0x2f0] sm:$0xff]
        %v2572 = vld [vmem:[%s2476 + $0x2f8] sm:$0xff]
        %v2573 = vld [vmem:[%s2476 + $0x300] sm:$0xff]
        %v2574 = vld [vmem:[%s2476 + $0x308] sm:$0xff]
        %v2575 = vld [vmem:[%s2476 + $0x310] sm:$0xff]
        %v2576 = vld [vmem:[%s2476 + $0x318] sm:$0xff]
        %v2577 = vld [vmem:[%s2476 + $0x320] sm:$0xff]
        %v2578 = vld [vmem:[%s2476 + $0x328] sm:$0xff]
        %v2579 = vld [vmem:[%s2476 + $0x330] sm:$0xff]
        %v2580 = vld [vmem:[%s2476 + $0x338] sm:$0xff]
        %v2581 = vld [vmem:[%s2476 + $0x340] sm:$0xff]
        %v2582 = vld [vmem:[%s2476 + $0x348] sm:$0xff]
        %v2583 = vld [vmem:[%s2476 + $0x350] sm:$0xff]
        %v2584 = vld [vmem:[%s2476 + $0x358] sm:$0xff]
        %v2585 = vld [vmem:[%s2476 + $0x360] sm:$0xff]
        %v2586 = vld [vmem:[%s2476 + $0x368] sm:$0xff]
        %v2587 = vld [vmem:[%s2476 + $0x370] sm:$0xff]
        %v2588 = vld [vmem:[%s2476 + $0x378] sm:$0xff]
        %v2589 = vld [vmem:[%s2476 + $0x380] sm:$0xff]
        %v2590 = vld [vmem:[%s2476 + $0x388] sm:$0xff]
        %v2591 = vld [vmem:[%s2476 + $0x390] sm:$0xff]
        %v2592 = vld [vmem:[%s2476 + $0x398] sm:$0xff]
        %v2593 = vld [vmem:[%s2476 + $0x3a0] sm:$0xff]
        %v2594 = vld [vmem:[%s2476 + $0x3a8] sm:$0xff]
        %v2595 = vld [vmem:[%s2476 + $0x3b0] sm:$0xff]
        %v2596 = vld [vmem:[%s2476 + $0x3b8] sm:$0xff]
        %v2597 = vld [vmem:[%s2476 + $0x3c0] sm:$0xff]
        %v2598 = vld [vmem:[%s2476 + $0x3c8] sm:$0xff]
        %v2599 = vld [vmem:[%s2476 + $0x3d0] sm:$0xff]
        %v2600 = vld [vmem:[%s2476 + $0x3d8] sm:$0xff]
        %v2601 = vld [vmem:[%s2476 + $0x3e0] sm:$0xff]
        %v2602 = vld [vmem:[%s2476 + $0x3e8] sm:$0xff]
        %v2603 = vld [vmem:[%s2476 + $0x3f0] sm:$0xff]
        %v2604 = vld [vmem:[%s2476 + $0x3f8] sm:$0xff]
        %v2605 = vld [vmem:[%s2476 + $0x400] sm:$0xff]
        %v2606 = vld [vmem:[%s2476 + $0x408] sm:$0xff]
        %v2607 = vld [vmem:[%s2476 + $0x410] sm:$0xff]
        %v2608 = vld [vmem:[%s2476 + $0x418] sm:$0xff]
        %v2609 = vld [vmem:[%s2476 + $0x420] sm:$0xff]
        %v2610 = vld [vmem:[%s2476 + $0x428] sm:$0xff]
        %v2611 = vld [vmem:[%s2476 + $0x430] sm:$0xff]
        %v2612 = vld [vmem:[%s2476 + $0x438] sm:$0xff]
        %v2613 = vld [vmem:[%s2476 + $0x440] sm:$0xff]
        %v2614 = vld [vmem:[%s2476 + $0x448] sm:$0xff]
        %v2615 = vld [vmem:[%s2476 + $0x450] sm:$0xff]
        %v2616 = vld [vmem:[%s2476 + $0x458] sm:$0xff]
        %v2617 = vld [vmem:[%s2476 + $0x460] sm:$0xff]
        %v2618 = vld [vmem:[%s2476 + $0x468] sm:$0xff]
        %v2619 = vld [vmem:[%s2476 + $0x470] sm:$0xff]
        %v2620 = vld [vmem:[%s2476 + $0x478] sm:$0xff]
        %v2621 = vld [vmem:[%s2476 + $0x480] sm:$0xff]
        %v2622 = vld [vmem:[%s2476 + $0x488] sm:$0xff]
        %v2623 = vld [vmem:[%s2476 + $0x490] sm:$0xff]
        %v2624 = vld [vmem:[%s2476 + $0x498] sm:$0xff]
        %v2625 = vld [vmem:[%s2476 + $0x4a0] sm:$0xff]
        %v2626 = vld [vmem:[%s2476 + $0x4a8] sm:$0xff]
        %v2627 = vld [vmem:[%s2476 + $0x4b0] sm:$0xff]
        %v2628 = vld [vmem:[%s2476 + $0x4b8] sm:$0xff]
        %v2629 = vld [vmem:[%s2476 + $0x4c0] sm:$0xff]
        %v2630 = vld [vmem:[%s2476 + $0x4c8] sm:$0xff]
        %v2631 = vld [vmem:[%s2476 + $0x4d0] sm:$0xff]
        %v2632 = vld [vmem:[%s2476 + $0x4d8] sm:$0xff]
        %v2633 = vld [vmem:[%s2476 + $0x4e0] sm:$0xff]
        %v2634 = vld [vmem:[%s2476 + $0x4e8] sm:$0xff]
        %v2635 = vld [vmem:[%s2476 + $0x4f0] sm:$0xff]
        %v2636 = vld [vmem:[%s2476 + $0x4f8] sm:$0xff]
        %v2637 = vld [vmem:[%s2476 + $0x500] sm:$0xff]
        %v2638 = vld [vmem:[%s2476 + $0x508] sm:$0xff]
        %v2639 = vld [vmem:[%s2476 + $0x510] sm:$0xff]
        %v2640 = vld [vmem:[%s2476 + $0x518] sm:$0xff]
        %v2641 = vld [vmem:[%s2476 + $0x520] sm:$0xff]
        %v2642 = vld [vmem:[%s2476 + $0x528] sm:$0xff]
        %v2643 = vld [vmem:[%s2476 + $0x530] sm:$0xff]
        %v2644 = vld [vmem:[%s2476 + $0x538] sm:$0xff]
        %v2645 = vld [vmem:[%s2476 + $0x540] sm:$0xff]
        %v2646 = vld [vmem:[%s2476 + $0x548] sm:$0xff]
        %v2647 = vld [vmem:[%s2476 + $0x550] sm:$0xff]
        %v2648 = vld [vmem:[%s2476 + $0x558] sm:$0xff]
        %v2649 = vld [vmem:[%s2476 + $0x560] sm:$0xff]
        %v2650 = vld [vmem:[%s2476 + $0x568] sm:$0xff]
        %v2651 = vld [vmem:[%s2476 + $0x570] sm:$0xff]
        %v2652 = vld [vmem:[%s2476 + $0x578] sm:$0xff]
        %v2653 = vld [vmem:[%s2476 + $0x580] sm:$0xff]
        %v2654 = vld [vmem:[%s2476 + $0x588] sm:$0xff]
        %v2655 = vld [vmem:[%s2476 + $0x590] sm:$0xff]
        %v2656 = vld [vmem:[%s2476 + $0x598] sm:$0xff]
        %v2657 = vld [vmem:[%s2476 + $0x5a0] sm:$0xff]
        %v2658 = vld [vmem:[%s2476 + $0x5a8] sm:$0xff]
        %v2659 = vld [vmem:[%s2476 + $0x5b0] sm:$0xff]
        %v2660 = vld [vmem:[%s2476 + $0x5b8] sm:$0xff]
        %v2661 = vld [vmem:[%s2476 + $0x5c0] sm:$0xff]
        %v2662 = vld [vmem:[%s2476 + $0x5c8] sm:$0xff]
        %v2663 = vld [vmem:[%s2476 + $0x5d0] sm:$0xff]
        %v2664 = vld [vmem:[%s2476 + $0x5d8] sm:$0xff]
        %v2665 = vld [vmem:[%s2476 + $0x5e0] sm:$0xff]
        %v2666 = vld [vmem:[%s2476 + $0x5e8] sm:$0xff]
        %v2667 = vld [vmem:[%s2476 + $0x5f0] sm:$0xff]
        %v2668 = vld [vmem:[%s2476 + $0x5f8] sm:$0xff]
        %s2669 = scalar_lea.vmem [#allocation7], 3072
        %v2670 = vld [vmem:[%s2669] sm:$0xff]
        %v2671 = vld [vmem:[%s2669 + $0x8] sm:$0xff]
        %v2672 = vld [vmem:[%s2669 + $0x10] sm:$0xff]
        %v2673 = vld [vmem:[%s2669 + $0x18] sm:$0xff]
        %v2674 = vld [vmem:[%s2669 + $0x20] sm:$0xff]
        %v2675 = vld [vmem:[%s2669 + $0x28] sm:$0xff]
        %v2676 = vld [vmem:[%s2669 + $0x30] sm:$0xff]
        %v2677 = vld [vmem:[%s2669 + $0x38] sm:$0xff]
        %v2678 = vld [vmem:[%s2669 + $0x40] sm:$0xff]
        %v2679 = vld [vmem:[%s2669 + $0x48] sm:$0xff]
        %v2680 = vld [vmem:[%s2669 + $0x50] sm:$0xff]
        %v2681 = vld [vmem:[%s2669 + $0x58] sm:$0xff]
        %v2682 = vld [vmem:[%s2669 + $0x60] sm:$0xff]
        %v2683 = vld [vmem:[%s2669 + $0x68] sm:$0xff]
        %v2684 = vld [vmem:[%s2669 + $0x70] sm:$0xff]
        %v2685 = vld [vmem:[%s2669 + $0x78] sm:$0xff]
        %v2686 = vld [vmem:[%s2669 + $0x80] sm:$0xff]
        %v2687 = vld [vmem:[%s2669 + $0x88] sm:$0xff]
        %v2688 = vld [vmem:[%s2669 + $0x90] sm:$0xff]
        %v2689 = vld [vmem:[%s2669 + $0x98] sm:$0xff]
        %v2690 = vld [vmem:[%s2669 + $0xa0] sm:$0xff]
        %v2691 = vld [vmem:[%s2669 + $0xa8] sm:$0xff]
        %v2692 = vld [vmem:[%s2669 + $0xb0] sm:$0xff]
        %v2693 = vld [vmem:[%s2669 + $0xb8] sm:$0xff]
        %v2694 = vld [vmem:[%s2669 + $0xc0] sm:$0xff]
        %v2695 = vld [vmem:[%s2669 + $0xc8] sm:$0xff]
        %v2696 = vld [vmem:[%s2669 + $0xd0] sm:$0xff]
        %v2697 = vld [vmem:[%s2669 + $0xd8] sm:$0xff]
        %v2698 = vld [vmem:[%s2669 + $0xe0] sm:$0xff]
        %v2699 = vld [vmem:[%s2669 + $0xe8] sm:$0xff]
        %v2700 = vld [vmem:[%s2669 + $0xf0] sm:$0xff]
        %v2701 = vld [vmem:[%s2669 + $0xf8] sm:$0xff]
        %v2702 = vld [vmem:[%s2669 + $0x100] sm:$0xff]
        %v2703 = vld [vmem:[%s2669 + $0x108] sm:$0xff]
        %v2704 = vld [vmem:[%s2669 + $0x110] sm:$0xff]
        %v2705 = vld [vmem:[%s2669 + $0x118] sm:$0xff]
        %v2706 = vld [vmem:[%s2669 + $0x120] sm:$0xff]
        %v2707 = vld [vmem:[%s2669 + $0x128] sm:$0xff]
        %v2708 = vld [vmem:[%s2669 + $0x130] sm:$0xff]
        %v2709 = vld [vmem:[%s2669 + $0x138] sm:$0xff]
        %v2710 = vld [vmem:[%s2669 + $0x140] sm:$0xff]
        %v2711 = vld [vmem:[%s2669 + $0x148] sm:$0xff]
        %v2712 = vld [vmem:[%s2669 + $0x150] sm:$0xff]
        %v2713 = vld [vmem:[%s2669 + $0x158] sm:$0xff]
        %v2714 = vld [vmem:[%s2669 + $0x160] sm:$0xff]
        %v2715 = vld [vmem:[%s2669 + $0x168] sm:$0xff]
        %v2716 = vld [vmem:[%s2669 + $0x170] sm:$0xff]
        %v2717 = vld [vmem:[%s2669 + $0x178] sm:$0xff]
        %v2718 = vld [vmem:[%s2669 + $0x180] sm:$0xff]
        %v2719 = vld [vmem:[%s2669 + $0x188] sm:$0xff]
        %v2720 = vld [vmem:[%s2669 + $0x190] sm:$0xff]
        %v2721 = vld [vmem:[%s2669 + $0x198] sm:$0xff]
        %v2722 = vld [vmem:[%s2669 + $0x1a0] sm:$0xff]
        %v2723 = vld [vmem:[%s2669 + $0x1a8] sm:$0xff]
        %v2724 = vld [vmem:[%s2669 + $0x1b0] sm:$0xff]
        %v2725 = vld [vmem:[%s2669 + $0x1b8] sm:$0xff]
        %v2726 = vld [vmem:[%s2669 + $0x1c0] sm:$0xff]
        %v2727 = vld [vmem:[%s2669 + $0x1c8] sm:$0xff]
        %v2728 = vld [vmem:[%s2669 + $0x1d0] sm:$0xff]
        %v2729 = vld [vmem:[%s2669 + $0x1d8] sm:$0xff]
        %v2730 = vld [vmem:[%s2669 + $0x1e0] sm:$0xff]
        %v2731 = vld [vmem:[%s2669 + $0x1e8] sm:$0xff]
        %v2732 = vld [vmem:[%s2669 + $0x1f0] sm:$0xff]
        %v2733 = vld [vmem:[%s2669 + $0x1f8] sm:$0xff]
        %v2734 = vld [vmem:[%s2669 + $0x200] sm:$0xff]
        %v2735 = vld [vmem:[%s2669 + $0x208] sm:$0xff]
        %v2736 = vld [vmem:[%s2669 + $0x210] sm:$0xff]
        %v2737 = vld [vmem:[%s2669 + $0x218] sm:$0xff]
        %v2738 = vld [vmem:[%s2669 + $0x220] sm:$0xff]
        %v2739 = vld [vmem:[%s2669 + $0x228] sm:$0xff]
        %v2740 = vld [vmem:[%s2669 + $0x230] sm:$0xff]
        %v2741 = vld [vmem:[%s2669 + $0x238] sm:$0xff]
        %v2742 = vld [vmem:[%s2669 + $0x240] sm:$0xff]
        %v2743 = vld [vmem:[%s2669 + $0x248] sm:$0xff]
        %v2744 = vld [vmem:[%s2669 + $0x250] sm:$0xff]
        %v2745 = vld [vmem:[%s2669 + $0x258] sm:$0xff]
        %v2746 = vld [vmem:[%s2669 + $0x260] sm:$0xff]
        %v2747 = vld [vmem:[%s2669 + $0x268] sm:$0xff]
        %v2748 = vld [vmem:[%s2669 + $0x270] sm:$0xff]
        %v2749 = vld [vmem:[%s2669 + $0x278] sm:$0xff]
        %v2750 = vld [vmem:[%s2669 + $0x280] sm:$0xff]
        %v2751 = vld [vmem:[%s2669 + $0x288] sm:$0xff]
        %v2752 = vld [vmem:[%s2669 + $0x290] sm:$0xff]
        %v2753 = vld [vmem:[%s2669 + $0x298] sm:$0xff]
        %v2754 = vld [vmem:[%s2669 + $0x2a0] sm:$0xff]
        %v2755 = vld [vmem:[%s2669 + $0x2a8] sm:$0xff]
        %v2756 = vld [vmem:[%s2669 + $0x2b0] sm:$0xff]
        %v2757 = vld [vmem:[%s2669 + $0x2b8] sm:$0xff]
        %v2758 = vld [vmem:[%s2669 + $0x2c0] sm:$0xff]
        %v2759 = vld [vmem:[%s2669 + $0x2c8] sm:$0xff]
        %v2760 = vld [vmem:[%s2669 + $0x2d0] sm:$0xff]
        %v2761 = vld [vmem:[%s2669 + $0x2d8] sm:$0xff]
        %v2762 = vld [vmem:[%s2669 + $0x2e0] sm:$0xff]
        %v2763 = vld [vmem:[%s2669 + $0x2e8] sm:$0xff]
        %v2764 = vld [vmem:[%s2669 + $0x2f0] sm:$0xff]
        %v2765 = vld [vmem:[%s2669 + $0x2f8] sm:$0xff]
        %v2766 = vld [vmem:[%s2669 + $0x300] sm:$0xff]
        %v2767 = vld [vmem:[%s2669 + $0x308] sm:$0xff]
        %v2768 = vld [vmem:[%s2669 + $0x310] sm:$0xff]
        %v2769 = vld [vmem:[%s2669 + $0x318] sm:$0xff]
        %v2770 = vld [vmem:[%s2669 + $0x320] sm:$0xff]
        %v2771 = vld [vmem:[%s2669 + $0x328] sm:$0xff]
        %v2772 = vld [vmem:[%s2669 + $0x330] sm:$0xff]
        %v2773 = vld [vmem:[%s2669 + $0x338] sm:$0xff]
        %v2774 = vld [vmem:[%s2669 + $0x340] sm:$0xff]
        %v2775 = vld [vmem:[%s2669 + $0x348] sm:$0xff]
        %v2776 = vld [vmem:[%s2669 + $0x350] sm:$0xff]
        %v2777 = vld [vmem:[%s2669 + $0x358] sm:$0xff]
        %v2778 = vld [vmem:[%s2669 + $0x360] sm:$0xff]
        %v2779 = vld [vmem:[%s2669 + $0x368] sm:$0xff]
        %v2780 = vld [vmem:[%s2669 + $0x370] sm:$0xff]
        %v2781 = vld [vmem:[%s2669 + $0x378] sm:$0xff]
        %v2782 = vld [vmem:[%s2669 + $0x380] sm:$0xff]
        %v2783 = vld [vmem:[%s2669 + $0x388] sm:$0xff]
        %v2784 = vld [vmem:[%s2669 + $0x390] sm:$0xff]
        %v2785 = vld [vmem:[%s2669 + $0x398] sm:$0xff]
        %v2786 = vld [vmem:[%s2669 + $0x3a0] sm:$0xff]
        %v2787 = vld [vmem:[%s2669 + $0x3a8] sm:$0xff]
        %v2788 = vld [vmem:[%s2669 + $0x3b0] sm:$0xff]
        %v2789 = vld [vmem:[%s2669 + $0x3b8] sm:$0xff]
        %v2790 = vld [vmem:[%s2669 + $0x3c0] sm:$0xff]
        %v2791 = vld [vmem:[%s2669 + $0x3c8] sm:$0xff]
        %v2792 = vld [vmem:[%s2669 + $0x3d0] sm:$0xff]
        %v2793 = vld [vmem:[%s2669 + $0x3d8] sm:$0xff]
        %v2794 = vld [vmem:[%s2669 + $0x3e0] sm:$0xff]
        %v2795 = vld [vmem:[%s2669 + $0x3e8] sm:$0xff]
        %v2796 = vld [vmem:[%s2669 + $0x3f0] sm:$0xff]
        %v2797 = vld [vmem:[%s2669 + $0x3f8] sm:$0xff]
        %v2798 = vld [vmem:[%s2669 + $0x400] sm:$0xff]
        %v2799 = vld [vmem:[%s2669 + $0x408] sm:$0xff]
        %v2800 = vld [vmem:[%s2669 + $0x410] sm:$0xff]
        %v2801 = vld [vmem:[%s2669 + $0x418] sm:$0xff]
        %v2802 = vld [vmem:[%s2669 + $0x420] sm:$0xff]
        %v2803 = vld [vmem:[%s2669 + $0x428] sm:$0xff]
        %v2804 = vld [vmem:[%s2669 + $0x430] sm:$0xff]
        %v2805 = vld [vmem:[%s2669 + $0x438] sm:$0xff]
        %v2806 = vld [vmem:[%s2669 + $0x440] sm:$0xff]
        %v2807 = vld [vmem:[%s2669 + $0x448] sm:$0xff]
        %v2808 = vld [vmem:[%s2669 + $0x450] sm:$0xff]
        %v2809 = vld [vmem:[%s2669 + $0x458] sm:$0xff]
        %v2810 = vld [vmem:[%s2669 + $0x460] sm:$0xff]
        %v2811 = vld [vmem:[%s2669 + $0x468] sm:$0xff]
        %v2812 = vld [vmem:[%s2669 + $0x470] sm:$0xff]
        %v2813 = vld [vmem:[%s2669 + $0x478] sm:$0xff]
        %v2814 = vld [vmem:[%s2669 + $0x480] sm:$0xff]
        %v2815 = vld [vmem:[%s2669 + $0x488] sm:$0xff]
        %v2816 = vld [vmem:[%s2669 + $0x490] sm:$0xff]
        %v2817 = vld [vmem:[%s2669 + $0x498] sm:$0xff]
        %v2818 = vld [vmem:[%s2669 + $0x4a0] sm:$0xff]
        %v2819 = vld [vmem:[%s2669 + $0x4a8] sm:$0xff]
        %v2820 = vld [vmem:[%s2669 + $0x4b0] sm:$0xff]
        %v2821 = vld [vmem:[%s2669 + $0x4b8] sm:$0xff]
        %v2822 = vld [vmem:[%s2669 + $0x4c0] sm:$0xff]
        %v2823 = vld [vmem:[%s2669 + $0x4c8] sm:$0xff]
        %v2824 = vld [vmem:[%s2669 + $0x4d0] sm:$0xff]
        %v2825 = vld [vmem:[%s2669 + $0x4d8] sm:$0xff]
        %v2826 = vld [vmem:[%s2669 + $0x4e0] sm:$0xff]
        %v2827 = vld [vmem:[%s2669 + $0x4e8] sm:$0xff]
        %v2828 = vld [vmem:[%s2669 + $0x4f0] sm:$0xff]
        %v2829 = vld [vmem:[%s2669 + $0x4f8] sm:$0xff]
        %v2830 = vld [vmem:[%s2669 + $0x500] sm:$0xff]
        %v2831 = vld [vmem:[%s2669 + $0x508] sm:$0xff]
        %v2832 = vld [vmem:[%s2669 + $0x510] sm:$0xff]
        %v2833 = vld [vmem:[%s2669 + $0x518] sm:$0xff]
        %v2834 = vld [vmem:[%s2669 + $0x520] sm:$0xff]
        %v2835 = vld [vmem:[%s2669 + $0x528] sm:$0xff]
        %v2836 = vld [vmem:[%s2669 + $0x530] sm:$0xff]
        %v2837 = vld [vmem:[%s2669 + $0x538] sm:$0xff]
        %v2838 = vld [vmem:[%s2669 + $0x540] sm:$0xff]
        %v2839 = vld [vmem:[%s2669 + $0x548] sm:$0xff]
        %v2840 = vld [vmem:[%s2669 + $0x550] sm:$0xff]
        %v2841 = vld [vmem:[%s2669 + $0x558] sm:$0xff]
        %v2842 = vld [vmem:[%s2669 + $0x560] sm:$0xff]
        %v2843 = vld [vmem:[%s2669 + $0x568] sm:$0xff]
        %v2844 = vld [vmem:[%s2669 + $0x570] sm:$0xff]
        %v2845 = vld [vmem:[%s2669 + $0x578] sm:$0xff]
        %v2846 = vld [vmem:[%s2669 + $0x580] sm:$0xff]
        %v2847 = vld [vmem:[%s2669 + $0x588] sm:$0xff]
        %v2848 = vld [vmem:[%s2669 + $0x590] sm:$0xff]
        %v2849 = vld [vmem:[%s2669 + $0x598] sm:$0xff]
        %v2850 = vld [vmem:[%s2669 + $0x5a0] sm:$0xff]
        %v2851 = vld [vmem:[%s2669 + $0x5a8] sm:$0xff]
        %v2852 = vld [vmem:[%s2669 + $0x5b0] sm:$0xff]
        %v2853 = vld [vmem:[%s2669 + $0x5b8] sm:$0xff]
        %v2854 = vld [vmem:[%s2669 + $0x5c0] sm:$0xff]
        %v2855 = vld [vmem:[%s2669 + $0x5c8] sm:$0xff]
        %v2856 = vld [vmem:[%s2669 + $0x5d0] sm:$0xff]
        %v2857 = vld [vmem:[%s2669 + $0x5d8] sm:$0xff]
        %v2858 = vld [vmem:[%s2669 + $0x5e0] sm:$0xff]
        %v2859 = vld [vmem:[%s2669 + $0x5e8] sm:$0xff]
        %v2860 = vld [vmem:[%s2669 + $0x5f0] sm:$0xff]
        %v2861 = vld [vmem:[%s2669 + $0x5f8] sm:$0xff]
        %v3054 = vunpack.c.l.b16 %v2477
        %v3055 = vunpack.c.h.b16 %v2477
        %v3056 = vunpack.c.l.b16 %v2478
        %v3057 = vunpack.c.h.b16 %v2478
        %v3058 = vunpack.c.l.b16 %v2479
        %v3059 = vunpack.c.h.b16 %v2479
        %v3060 = vunpack.c.l.b16 %v2480
        %v3061 = vunpack.c.h.b16 %v2480
        %v3062 = vunpack.c.l.b16 %v2481
        %v3063 = vunpack.c.h.b16 %v2481
        %v3064 = vunpack.c.l.b16 %v2482
        %v3065 = vunpack.c.h.b16 %v2482
        %v3066 = vunpack.c.l.b16 %v2483
        %v3067 = vunpack.c.h.b16 %v2483
        %v3068 = vunpack.c.l.b16 %v2484
        %v3069 = vunpack.c.h.b16 %v2484
        %v3070 = vunpack.c.l.b16 %v2485
        %v3071 = vunpack.c.h.b16 %v2485
        %v3072 = vunpack.c.l.b16 %v2486
        %v3073 = vunpack.c.h.b16 %v2486
        %v3074 = vunpack.c.l.b16 %v2487
        %v3075 = vunpack.c.h.b16 %v2487
        %v3076 = vunpack.c.l.b16 %v2488
        %v3077 = vunpack.c.h.b16 %v2488
        %v3078 = vunpack.c.l.b16 %v2489
        %v3079 = vunpack.c.h.b16 %v2489
        %v3080 = vunpack.c.l.b16 %v2490
        %v3081 = vunpack.c.h.b16 %v2490
        %v3082 = vunpack.c.l.b16 %v2491
        %v3083 = vunpack.c.h.b16 %v2491
        %v3084 = vunpack.c.l.b16 %v2492
        %v3085 = vunpack.c.h.b16 %v2492
        %v3086 = vunpack.c.l.b16 %v2493
        %v3087 = vunpack.c.h.b16 %v2493
        %v3088 = vunpack.c.l.b16 %v2494
        %v3089 = vunpack.c.h.b16 %v2494
        %v3090 = vunpack.c.l.b16 %v2495
        %v3091 = vunpack.c.h.b16 %v2495
        %v3092 = vunpack.c.l.b16 %v2496
        %v3093 = vunpack.c.h.b16 %v2496
        %v3094 = vunpack.c.l.b16 %v2497
        %v3095 = vunpack.c.h.b16 %v2497
        %v3096 = vunpack.c.l.b16 %v2498
        %v3097 = vunpack.c.h.b16 %v2498
        %v3098 = vunpack.c.l.b16 %v2499
        %v3099 = vunpack.c.h.b16 %v2499
        %v3100 = vunpack.c.l.b16 %v2500
        %v3101 = vunpack.c.h.b16 %v2500
        %v3102 = vunpack.c.l.b16 %v2501
        %v3103 = vunpack.c.h.b16 %v2501
        %v3104 = vunpack.c.l.b16 %v2502
        %v3105 = vunpack.c.h.b16 %v2502
        %v3106 = vunpack.c.l.b16 %v2503
        %v3107 = vunpack.c.h.b16 %v2503
        %v3108 = vunpack.c.l.b16 %v2504
        %v3109 = vunpack.c.h.b16 %v2504
        %v3110 = vunpack.c.l.b16 %v2505
        %v3111 = vunpack.c.h.b16 %v2505
        %v3112 = vunpack.c.l.b16 %v2506
        %v3113 = vunpack.c.h.b16 %v2506
        %v3114 = vunpack.c.l.b16 %v2507
        %v3115 = vunpack.c.h.b16 %v2507
        %v3116 = vunpack.c.l.b16 %v2508
        %v3117 = vunpack.c.h.b16 %v2508
        %v3118 = vunpack.c.l.b16 %v2509
        %v3119 = vunpack.c.h.b16 %v2509
        %v3120 = vunpack.c.l.b16 %v2510
        %v3121 = vunpack.c.h.b16 %v2510
        %v3122 = vunpack.c.l.b16 %v2511
        %v3123 = vunpack.c.h.b16 %v2511
        %v3124 = vunpack.c.l.b16 %v2512
        %v3125 = vunpack.c.h.b16 %v2512
        %v3126 = vunpack.c.l.b16 %v2513
        %v3127 = vunpack.c.h.b16 %v2513
        %v3128 = vunpack.c.l.b16 %v2514
        %v3129 = vunpack.c.h.b16 %v2514
        %v3130 = vunpack.c.l.b16 %v2515
        %v3131 = vunpack.c.h.b16 %v2515
        %v3132 = vunpack.c.l.b16 %v2516
        %v3133 = vunpack.c.h.b16 %v2516
        %v3134 = vunpack.c.l.b16 %v2517
        %v3135 = vunpack.c.h.b16 %v2517
        %v3136 = vunpack.c.l.b16 %v2518
        %v3137 = vunpack.c.h.b16 %v2518
        %v3138 = vunpack.c.l.b16 %v2519
        %v3139 = vunpack.c.h.b16 %v2519
        %v3140 = vunpack.c.l.b16 %v2520
        %v3141 = vunpack.c.h.b16 %v2520
        %v3142 = vunpack.c.l.b16 %v2521
        %v3143 = vunpack.c.h.b16 %v2521
        %v3144 = vunpack.c.l.b16 %v2522
        %v3145 = vunpack.c.h.b16 %v2522
        %v3146 = vunpack.c.l.b16 %v2523
        %v3147 = vunpack.c.h.b16 %v2523
        %v3148 = vunpack.c.l.b16 %v2524
        %v3149 = vunpack.c.h.b16 %v2524
        %v3150 = vunpack.c.l.b16 %v2525
        %v3151 = vunpack.c.h.b16 %v2525
        %v3152 = vunpack.c.l.b16 %v2526
        %v3153 = vunpack.c.h.b16 %v2526
        %v3154 = vunpack.c.l.b16 %v2527
        %v3155 = vunpack.c.h.b16 %v2527
        %v3156 = vunpack.c.l.b16 %v2528
        %v3157 = vunpack.c.h.b16 %v2528
        %v3158 = vunpack.c.l.b16 %v2529
        %v3159 = vunpack.c.h.b16 %v2529
        %v3160 = vunpack.c.l.b16 %v2530
        %v3161 = vunpack.c.h.b16 %v2530
        %v3162 = vunpack.c.l.b16 %v2531
        %v3163 = vunpack.c.h.b16 %v2531
        %v3164 = vunpack.c.l.b16 %v2532
        %v3165 = vunpack.c.h.b16 %v2532
        %v3166 = vunpack.c.l.b16 %v2533
        %v3167 = vunpack.c.h.b16 %v2533
        %v3168 = vunpack.c.l.b16 %v2534
        %v3169 = vunpack.c.h.b16 %v2534
        %v3170 = vunpack.c.l.b16 %v2535
        %v3171 = vunpack.c.h.b16 %v2535
        %v3172 = vunpack.c.l.b16 %v2536
        %v3173 = vunpack.c.h.b16 %v2536
        %v3174 = vunpack.c.l.b16 %v2537
        %v3175 = vunpack.c.h.b16 %v2537
        %v3176 = vunpack.c.l.b16 %v2538
        %v3177 = vunpack.c.h.b16 %v2538
        %v3178 = vunpack.c.l.b16 %v2539
        %v3179 = vunpack.c.h.b16 %v2539
        %v3180 = vunpack.c.l.b16 %v2540
        %v3181 = vunpack.c.h.b16 %v2540
        %v3182 = vunpack.c.l.b16 %v2541
        %v3183 = vunpack.c.h.b16 %v2541
        %v3184 = vunpack.c.l.b16 %v2542
        %v3185 = vunpack.c.h.b16 %v2542
        %v3186 = vunpack.c.l.b16 %v2543
        %v3187 = vunpack.c.h.b16 %v2543
        %v3188 = vunpack.c.l.b16 %v2544
        %v3189 = vunpack.c.h.b16 %v2544
        %v3190 = vunpack.c.l.b16 %v2545
        %v3191 = vunpack.c.h.b16 %v2545
        %v3192 = vunpack.c.l.b16 %v2546
        %v3193 = vunpack.c.h.b16 %v2546
        %v3194 = vunpack.c.l.b16 %v2547
        %v3195 = vunpack.c.h.b16 %v2547
        %v3196 = vunpack.c.l.b16 %v2548
        %v3197 = vunpack.c.h.b16 %v2548
        %v3198 = vunpack.c.l.b16 %v2549
        %v3199 = vunpack.c.h.b16 %v2549
        %v3200 = vunpack.c.l.b16 %v2550
        %v3201 = vunpack.c.h.b16 %v2550
        %v3202 = vunpack.c.l.b16 %v2551
        %v3203 = vunpack.c.h.b16 %v2551
        %v3204 = vunpack.c.l.b16 %v2552
        %v3205 = vunpack.c.h.b16 %v2552
        %v3206 = vunpack.c.l.b16 %v2553
        %v3207 = vunpack.c.h.b16 %v2553
        %v3208 = vunpack.c.l.b16 %v2554
        %v3209 = vunpack.c.h.b16 %v2554
        %v3210 = vunpack.c.l.b16 %v2555
        %v3211 = vunpack.c.h.b16 %v2555
        %v3212 = vunpack.c.l.b16 %v2556
        %v3213 = vunpack.c.h.b16 %v2556
        %v3214 = vunpack.c.l.b16 %v2557
        %v3215 = vunpack.c.h.b16 %v2557
        %v3216 = vunpack.c.l.b16 %v2558
        %v3217 = vunpack.c.h.b16 %v2558
        %v3218 = vunpack.c.l.b16 %v2559
        %v3219 = vunpack.c.h.b16 %v2559
        %v3220 = vunpack.c.l.b16 %v2560
        %v3221 = vunpack.c.h.b16 %v2560
        %v3222 = vunpack.c.l.b16 %v2561
        %v3223 = vunpack.c.h.b16 %v2561
        %v3224 = vunpack.c.l.b16 %v2562
        %v3225 = vunpack.c.h.b16 %v2562
        %v3226 = vunpack.c.l.b16 %v2563
        %v3227 = vunpack.c.h.b16 %v2563
        %v3228 = vunpack.c.l.b16 %v2564
        %v3229 = vunpack.c.h.b16 %v2564
        %v3230 = vunpack.c.l.b16 %v2565
        %v3231 = vunpack.c.h.b16 %v2565
        %v3232 = vunpack.c.l.b16 %v2566
        %v3233 = vunpack.c.h.b16 %v2566
        %v3234 = vunpack.c.l.b16 %v2567
        %v3235 = vunpack.c.h.b16 %v2567
        %v3236 = vunpack.c.l.b16 %v2568
        %v3237 = vunpack.c.h.b16 %v2568
        %v3238 = vunpack.c.l.b16 %v2569
        %v3239 = vunpack.c.h.b16 %v2569
        %v3240 = vunpack.c.l.b16 %v2570
        %v3241 = vunpack.c.h.b16 %v2570
        %v3242 = vunpack.c.l.b16 %v2571
        %v3243 = vunpack.c.h.b16 %v2571
        %v3244 = vunpack.c.l.b16 %v2572
        %v3245 = vunpack.c.h.b16 %v2572
        %v3246 = vunpack.c.l.b16 %v2573
        %v3247 = vunpack.c.h.b16 %v2573
        %v3248 = vunpack.c.l.b16 %v2574
        %v3249 = vunpack.c.h.b16 %v2574
        %v3250 = vunpack.c.l.b16 %v2575
        %v3251 = vunpack.c.h.b16 %v2575
        %v3252 = vunpack.c.l.b16 %v2576
        %v3253 = vunpack.c.h.b16 %v2576
        %v3254 = vunpack.c.l.b16 %v2577
        %v3255 = vunpack.c.h.b16 %v2577
        %v3256 = vunpack.c.l.b16 %v2578
        %v3257 = vunpack.c.h.b16 %v2578
        %v3258 = vunpack.c.l.b16 %v2579
        %v3259 = vunpack.c.h.b16 %v2579
        %v3260 = vunpack.c.l.b16 %v2580
        %v3261 = vunpack.c.h.b16 %v2580
        %v3262 = vunpack.c.l.b16 %v2581
        %v3263 = vunpack.c.h.b16 %v2581
        %v3264 = vunpack.c.l.b16 %v2582
        %v3265 = vunpack.c.h.b16 %v2582
        %v3266 = vunpack.c.l.b16 %v2583
        %v3267 = vunpack.c.h.b16 %v2583
        %v3268 = vunpack.c.l.b16 %v2584
        %v3269 = vunpack.c.h.b16 %v2584
        %v3270 = vunpack.c.l.b16 %v2585
        %v3271 = vunpack.c.h.b16 %v2585
        %v3272 = vunpack.c.l.b16 %v2586
        %v3273 = vunpack.c.h.b16 %v2586
        %v3274 = vunpack.c.l.b16 %v2587
        %v3275 = vunpack.c.h.b16 %v2587
        %v3276 = vunpack.c.l.b16 %v2588
        %v3277 = vunpack.c.h.b16 %v2588
        %v3278 = vunpack.c.l.b16 %v2589
        %v3279 = vunpack.c.h.b16 %v2589
        %v3280 = vunpack.c.l.b16 %v2590
        %v3281 = vunpack.c.h.b16 %v2590
        %v3282 = vunpack.c.l.b16 %v2591
        %v3283 = vunpack.c.h.b16 %v2591
        %v3284 = vunpack.c.l.b16 %v2592
        %v3285 = vunpack.c.h.b16 %v2592
        %v3286 = vunpack.c.l.b16 %v2593
        %v3287 = vunpack.c.h.b16 %v2593
        %v3288 = vunpack.c.l.b16 %v2594
        %v3289 = vunpack.c.h.b16 %v2594
        %v3290 = vunpack.c.l.b16 %v2595
        %v3291 = vunpack.c.h.b16 %v2595
        %v3292 = vunpack.c.l.b16 %v2596
        %v3293 = vunpack.c.h.b16 %v2596
        %v3294 = vunpack.c.l.b16 %v2597
        %v3295 = vunpack.c.h.b16 %v2597
        %v3296 = vunpack.c.l.b16 %v2598
        %v3297 = vunpack.c.h.b16 %v2598
        %v3298 = vunpack.c.l.b16 %v2599
        %v3299 = vunpack.c.h.b16 %v2599
        %v3300 = vunpack.c.l.b16 %v2600
        %v3301 = vunpack.c.h.b16 %v2600
        %v3302 = vunpack.c.l.b16 %v2601
        %v3303 = vunpack.c.h.b16 %v2601
        %v3304 = vunpack.c.l.b16 %v2602
        %v3305 = vunpack.c.h.b16 %v2602
        %v3306 = vunpack.c.l.b16 %v2603
        %v3307 = vunpack.c.h.b16 %v2603
        %v3308 = vunpack.c.l.b16 %v2604
        %v3309 = vunpack.c.h.b16 %v2604
        %v3310 = vunpack.c.l.b16 %v2605
        %v3311 = vunpack.c.h.b16 %v2605
        %v3312 = vunpack.c.l.b16 %v2606
        %v3313 = vunpack.c.h.b16 %v2606
        %v3314 = vunpack.c.l.b16 %v2607
        %v3315 = vunpack.c.h.b16 %v2607
        %v3316 = vunpack.c.l.b16 %v2608
        %v3317 = vunpack.c.h.b16 %v2608
        %v3318 = vunpack.c.l.b16 %v2609
        %v3319 = vunpack.c.h.b16 %v2609
        %v3320 = vunpack.c.l.b16 %v2610
        %v3321 = vunpack.c.h.b16 %v2610
        %v3322 = vunpack.c.l.b16 %v2611
        %v3323 = vunpack.c.h.b16 %v2611
        %v3324 = vunpack.c.l.b16 %v2612
        %v3325 = vunpack.c.h.b16 %v2612
        %v3326 = vunpack.c.l.b16 %v2613
        %v3327 = vunpack.c.h.b16 %v2613
        %v3328 = vunpack.c.l.b16 %v2614
        %v3329 = vunpack.c.h.b16 %v2614
        %v3330 = vunpack.c.l.b16 %v2615
        %v3331 = vunpack.c.h.b16 %v2615
        %v3332 = vunpack.c.l.b16 %v2616
        %v3333 = vunpack.c.h.b16 %v2616
        %v3334 = vunpack.c.l.b16 %v2617
        %v3335 = vunpack.c.h.b16 %v2617
        %v3336 = vunpack.c.l.b16 %v2618
        %v3337 = vunpack.c.h.b16 %v2618
        %v3338 = vunpack.c.l.b16 %v2619
        %v3339 = vunpack.c.h.b16 %v2619
        %v3340 = vunpack.c.l.b16 %v2620
        %v3341 = vunpack.c.h.b16 %v2620
        %v3342 = vunpack.c.l.b16 %v2621
        %v3343 = vunpack.c.h.b16 %v2621
        %v3344 = vunpack.c.l.b16 %v2622
        %v3345 = vunpack.c.h.b16 %v2622
        %v3346 = vunpack.c.l.b16 %v2623
        %v3347 = vunpack.c.h.b16 %v2623
        %v3348 = vunpack.c.l.b16 %v2624
        %v3349 = vunpack.c.h.b16 %v2624
        %v3350 = vunpack.c.l.b16 %v2625
        %v3351 = vunpack.c.h.b16 %v2625
        %v3352 = vunpack.c.l.b16 %v2626
        %v3353 = vunpack.c.h.b16 %v2626
        %v3354 = vunpack.c.l.b16 %v2627
        %v3355 = vunpack.c.h.b16 %v2627
        %v3356 = vunpack.c.l.b16 %v2628
        %v3357 = vunpack.c.h.b16 %v2628
        %v3358 = vunpack.c.l.b16 %v2629
        %v3359 = vunpack.c.h.b16 %v2629
        %v3360 = vunpack.c.l.b16 %v2630
        %v3361 = vunpack.c.h.b16 %v2630
        %v3362 = vunpack.c.l.b16 %v2631
        %v3363 = vunpack.c.h.b16 %v2631
        %v3364 = vunpack.c.l.b16 %v2632
        %v3365 = vunpack.c.h.b16 %v2632
        %v3366 = vunpack.c.l.b16 %v2633
        %v3367 = vunpack.c.h.b16 %v2633
        %v3368 = vunpack.c.l.b16 %v2634
        %v3369 = vunpack.c.h.b16 %v2634
        %v3370 = vunpack.c.l.b16 %v2635
        %v3371 = vunpack.c.h.b16 %v2635
        %v3372 = vunpack.c.l.b16 %v2636
        %v3373 = vunpack.c.h.b16 %v2636
        %v3374 = vunpack.c.l.b16 %v2637
        %v3375 = vunpack.c.h.b16 %v2637
        %v3376 = vunpack.c.l.b16 %v2638
        %v3377 = vunpack.c.h.b16 %v2638
        %v3378 = vunpack.c.l.b16 %v2639
        %v3379 = vunpack.c.h.b16 %v2639
        %v3380 = vunpack.c.l.b16 %v2640
        %v3381 = vunpack.c.h.b16 %v2640
        %v3382 = vunpack.c.l.b16 %v2641
        %v3383 = vunpack.c.h.b16 %v2641
        %v3384 = vunpack.c.l.b16 %v2642
        %v3385 = vunpack.c.h.b16 %v2642
        %v3386 = vunpack.c.l.b16 %v2643
        %v3387 = vunpack.c.h.b16 %v2643
        %v3388 = vunpack.c.l.b16 %v2644
        %v3389 = vunpack.c.h.b16 %v2644
        %v3390 = vunpack.c.l.b16 %v2645
        %v3391 = vunpack.c.h.b16 %v2645
        %v3392 = vunpack.c.l.b16 %v2646
        %v3393 = vunpack.c.h.b16 %v2646
        %v3394 = vunpack.c.l.b16 %v2647
        %v3395 = vunpack.c.h.b16 %v2647
        %v3396 = vunpack.c.l.b16 %v2648
        %v3397 = vunpack.c.h.b16 %v2648
        %v3398 = vunpack.c.l.b16 %v2649
        %v3399 = vunpack.c.h.b16 %v2649
        %v3400 = vunpack.c.l.b16 %v2650
        %v3401 = vunpack.c.h.b16 %v2650
        %v3402 = vunpack.c.l.b16 %v2651
        %v3403 = vunpack.c.h.b16 %v2651
        %v3404 = vunpack.c.l.b16 %v2652
        %v3405 = vunpack.c.h.b16 %v2652
        %v3406 = vunpack.c.l.b16 %v2653
        %v3407 = vunpack.c.h.b16 %v2653
        %v3408 = vunpack.c.l.b16 %v2654
        %v3409 = vunpack.c.h.b16 %v2654
        %v3410 = vunpack.c.l.b16 %v2655
        %v3411 = vunpack.c.h.b16 %v2655
        %v3412 = vunpack.c.l.b16 %v2656
        %v3413 = vunpack.c.h.b16 %v2656
        %v3414 = vunpack.c.l.b16 %v2657
        %v3415 = vunpack.c.h.b16 %v2657
        %v3416 = vunpack.c.l.b16 %v2658
        %v3417 = vunpack.c.h.b16 %v2658
        %v3418 = vunpack.c.l.b16 %v2659
        %v3419 = vunpack.c.h.b16 %v2659
        %v3420 = vunpack.c.l.b16 %v2660
        %v3421 = vunpack.c.h.b16 %v2660
        %v3422 = vunpack.c.l.b16 %v2661
        %v3423 = vunpack.c.h.b16 %v2661
        %v3424 = vunpack.c.l.b16 %v2662
        %v3425 = vunpack.c.h.b16 %v2662
        %v3426 = vunpack.c.l.b16 %v2663
        %v3427 = vunpack.c.h.b16 %v2663
        %v3428 = vunpack.c.l.b16 %v2664
        %v3429 = vunpack.c.h.b16 %v2664
        %v3430 = vunpack.c.l.b16 %v2665
        %v3431 = vunpack.c.h.b16 %v2665
        %v3432 = vunpack.c.l.b16 %v2666
        %v3433 = vunpack.c.h.b16 %v2666
        %v3434 = vunpack.c.l.b16 %v2667
        %v3435 = vunpack.c.h.b16 %v2667
        %v3436 = vunpack.c.l.b16 %v2668
        %v3437 = vunpack.c.h.b16 %v2668
        %v3438 = vpack.c.b16 %v3060, %v3054
        %v3439 = vpack.c.b16 %v3061, %v3055
        %v3440 = vpack.c.b16 %v3062, %v3056
        %v3441 = vpack.c.b16 %v3063, %v3057
        %v3442 = vpack.c.b16 %v3064, %v3058
        %v3443 = vpack.c.b16 %v3065, %v3059
        %v3444 = vpack.c.b16 %v3072, %v3066
        %v3445 = vpack.c.b16 %v3073, %v3067
        %v3446 = vpack.c.b16 %v3074, %v3068
        %v3447 = vpack.c.b16 %v3075, %v3069
        %v3448 = vpack.c.b16 %v3076, %v3070
        %v3449 = vpack.c.b16 %v3077, %v3071
        %v3450 = vpack.c.b16 %v3084, %v3078
        %v3451 = vpack.c.b16 %v3085, %v3079
        %v3452 = vpack.c.b16 %v3086, %v3080
        %v3453 = vpack.c.b16 %v3087, %v3081
        %v3454 = vpack.c.b16 %v3088, %v3082
        %v3455 = vpack.c.b16 %v3089, %v3083
        %v3456 = vpack.c.b16 %v3096, %v3090
        %v3457 = vpack.c.b16 %v3097, %v3091
        %v3458 = vpack.c.b16 %v3098, %v3092
        %v3459 = vpack.c.b16 %v3099, %v3093
        %v3460 = vpack.c.b16 %v3100, %v3094
        %v3461 = vpack.c.b16 %v3101, %v3095
        %v3462 = vpack.c.b16 %v3108, %v3102
        %v3463 = vpack.c.b16 %v3109, %v3103
        %v3464 = vpack.c.b16 %v3110, %v3104
        %v3465 = vpack.c.b16 %v3111, %v3105
        %v3466 = vpack.c.b16 %v3112, %v3106
        %v3467 = vpack.c.b16 %v3113, %v3107
        %v3468 = vpack.c.b16 %v3120, %v3114
        %v3469 = vpack.c.b16 %v3121, %v3115
        %v3470 = vpack.c.b16 %v3122, %v3116
        %v3471 = vpack.c.b16 %v3123, %v3117
        %v3472 = vpack.c.b16 %v3124, %v3118
        %v3473 = vpack.c.b16 %v3125, %v3119
        %v3474 = vpack.c.b16 %v3132, %v3126
        %v3475 = vpack.c.b16 %v3133, %v3127
        %v3476 = vpack.c.b16 %v3134, %v3128
        %v3477 = vpack.c.b16 %v3135, %v3129
        %v3478 = vpack.c.b16 %v3136, %v3130
        %v3479 = vpack.c.b16 %v3137, %v3131
        %v3480 = vpack.c.b16 %v3144, %v3138
        %v3481 = vpack.c.b16 %v3145, %v3139
        %v3482 = vpack.c.b16 %v3146, %v3140
        %v3483 = vpack.c.b16 %v3147, %v3141
        %v3484 = vpack.c.b16 %v3148, %v3142
        %v3485 = vpack.c.b16 %v3149, %v3143
        %v3486 = vpack.c.b16 %v3156, %v3150
        %v3487 = vpack.c.b16 %v3157, %v3151
        %v3488 = vpack.c.b16 %v3158, %v3152
        %v3489 = vpack.c.b16 %v3159, %v3153
        %v3490 = vpack.c.b16 %v3160, %v3154
        %v3491 = vpack.c.b16 %v3161, %v3155
        %v3492 = vpack.c.b16 %v3168, %v3162
        %v3493 = vpack.c.b16 %v3169, %v3163
        %v3494 = vpack.c.b16 %v3170, %v3164
        %v3495 = vpack.c.b16 %v3171, %v3165
        %v3496 = vpack.c.b16 %v3172, %v3166
        %v3497 = vpack.c.b16 %v3173, %v3167
        %v3498 = vpack.c.b16 %v3180, %v3174
        %v3499 = vpack.c.b16 %v3181, %v3175
        %v3500 = vpack.c.b16 %v3182, %v3176
        %v3501 = vpack.c.b16 %v3183, %v3177
        %v3502 = vpack.c.b16 %v3184, %v3178
        %v3503 = vpack.c.b16 %v3185, %v3179
        %v3504 = vpack.c.b16 %v3192, %v3186
        %v3505 = vpack.c.b16 %v3193, %v3187
        %v3506 = vpack.c.b16 %v3194, %v3188
        %v3507 = vpack.c.b16 %v3195, %v3189
        %v3508 = vpack.c.b16 %v3196, %v3190
        %v3509 = vpack.c.b16 %v3197, %v3191
        %v3510 = vpack.c.b16 %v3204, %v3198
        %v3511 = vpack.c.b16 %v3205, %v3199
        %v3512 = vpack.c.b16 %v3206, %v3200
        %v3513 = vpack.c.b16 %v3207, %v3201
        %v3514 = vpack.c.b16 %v3208, %v3202
        %v3515 = vpack.c.b16 %v3209, %v3203
        %v3516 = vpack.c.b16 %v3216, %v3210
        %v3517 = vpack.c.b16 %v3217, %v3211
        %v3518 = vpack.c.b16 %v3218, %v3212
        %v3519 = vpack.c.b16 %v3219, %v3213
        %v3520 = vpack.c.b16 %v3220, %v3214
        %v3521 = vpack.c.b16 %v3221, %v3215
        %v3522 = vpack.c.b16 %v3228, %v3222
        %v3523 = vpack.c.b16 %v3229, %v3223
        %v3524 = vpack.c.b16 %v3230, %v3224
        %v3525 = vpack.c.b16 %v3231, %v3225
        %v3526 = vpack.c.b16 %v3232, %v3226
        %v3527 = vpack.c.b16 %v3233, %v3227
        %v3528 = vpack.c.b16 %v3240, %v3234
        %v3529 = vpack.c.b16 %v3241, %v3235
        %v3530 = vpack.c.b16 %v3242, %v3236
        %v3531 = vpack.c.b16 %v3243, %v3237
        %v3532 = vpack.c.b16 %v3244, %v3238
        %v3533 = vpack.c.b16 %v3245, %v3239
        %v3534 = vpack.c.b16 %v3252, %v3246
        %v3535 = vpack.c.b16 %v3253, %v3247
        %v3536 = vpack.c.b16 %v3254, %v3248
        %v3537 = vpack.c.b16 %v3255, %v3249
        %v3538 = vpack.c.b16 %v3256, %v3250
        %v3539 = vpack.c.b16 %v3257, %v3251
        %v3540 = vpack.c.b16 %v3264, %v3258
        %v3541 = vpack.c.b16 %v3265, %v3259
        %v3542 = vpack.c.b16 %v3266, %v3260
        %v3543 = vpack.c.b16 %v3267, %v3261
        %v3544 = vpack.c.b16 %v3268, %v3262
        %v3545 = vpack.c.b16 %v3269, %v3263
        %v3546 = vpack.c.b16 %v3276, %v3270
        %v3547 = vpack.c.b16 %v3277, %v3271
        %v3548 = vpack.c.b16 %v3278, %v3272
        %v3549 = vpack.c.b16 %v3279, %v3273
        %v3550 = vpack.c.b16 %v3280, %v3274
        %v3551 = vpack.c.b16 %v3281, %v3275
        %v3552 = vpack.c.b16 %v3288, %v3282
        %v3553 = vpack.c.b16 %v3289, %v3283
        %v3554 = vpack.c.b16 %v3290, %v3284
        %v3555 = vpack.c.b16 %v3291, %v3285
        %v3556 = vpack.c.b16 %v3292, %v3286
        %v3557 = vpack.c.b16 %v3293, %v3287
        %v3558 = vpack.c.b16 %v3300, %v3294
        %v3559 = vpack.c.b16 %v3301, %v3295
        %v3560 = vpack.c.b16 %v3302, %v3296
        %v3561 = vpack.c.b16 %v3303, %v3297
        %v3562 = vpack.c.b16 %v3304, %v3298
        %v3563 = vpack.c.b16 %v3305, %v3299
        %v3564 = vpack.c.b16 %v3312, %v3306
        %v3565 = vpack.c.b16 %v3313, %v3307
        %v3566 = vpack.c.b16 %v3314, %v3308
        %v3567 = vpack.c.b16 %v3315, %v3309
        %v3568 = vpack.c.b16 %v3316, %v3310
        %v3569 = vpack.c.b16 %v3317, %v3311
        %v3570 = vpack.c.b16 %v3324, %v3318
        %v3571 = vpack.c.b16 %v3325, %v3319
        %v3572 = vpack.c.b16 %v3326, %v3320
        %v3573 = vpack.c.b16 %v3327, %v3321
        %v3574 = vpack.c.b16 %v3328, %v3322
        %v3575 = vpack.c.b16 %v3329, %v3323
        %v3576 = vpack.c.b16 %v3336, %v3330
        %v3577 = vpack.c.b16 %v3337, %v3331
        %v3578 = vpack.c.b16 %v3338, %v3332
        %v3579 = vpack.c.b16 %v3339, %v3333
        %v3580 = vpack.c.b16 %v3340, %v3334
        %v3581 = vpack.c.b16 %v3341, %v3335
        %v3582 = vpack.c.b16 %v3348, %v3342
        %v3583 = vpack.c.b16 %v3349, %v3343
        %v3584 = vpack.c.b16 %v3350, %v3344
        %v3585 = vpack.c.b16 %v3351, %v3345
        %v3586 = vpack.c.b16 %v3352, %v3346
        %v3587 = vpack.c.b16 %v3353, %v3347
        %v3588 = vpack.c.b16 %v3360, %v3354
        %v3589 = vpack.c.b16 %v3361, %v3355
        %v3590 = vpack.c.b16 %v3362, %v3356
        %v3591 = vpack.c.b16 %v3363, %v3357
        %v3592 = vpack.c.b16 %v3364, %v3358
        %v3593 = vpack.c.b16 %v3365, %v3359
        %v3594 = vpack.c.b16 %v3372, %v3366
        %v3595 = vpack.c.b16 %v3373, %v3367
        %v3596 = vpack.c.b16 %v3374, %v3368
        %v3597 = vpack.c.b16 %v3375, %v3369
        %v3598 = vpack.c.b16 %v3376, %v3370
        %v3599 = vpack.c.b16 %v3377, %v3371
        %v3600 = vpack.c.b16 %v3384, %v3378
        %v3601 = vpack.c.b16 %v3385, %v3379
        %v3602 = vpack.c.b16 %v3386, %v3380
        %v3603 = vpack.c.b16 %v3387, %v3381
        %v3604 = vpack.c.b16 %v3388, %v3382
        %v3605 = vpack.c.b16 %v3389, %v3383
        %v3606 = vpack.c.b16 %v3396, %v3390
        %v3607 = vpack.c.b16 %v3397, %v3391
        %v3608 = vpack.c.b16 %v3398, %v3392
        %v3609 = vpack.c.b16 %v3399, %v3393
        %v3610 = vpack.c.b16 %v3400, %v3394
        %v3611 = vpack.c.b16 %v3401, %v3395
        %v3612 = vpack.c.b16 %v3408, %v3402
        %v3613 = vpack.c.b16 %v3409, %v3403
        %v3614 = vpack.c.b16 %v3410, %v3404
        %v3615 = vpack.c.b16 %v3411, %v3405
        %v3616 = vpack.c.b16 %v3412, %v3406
        %v3617 = vpack.c.b16 %v3413, %v3407
        %v3618 = vpack.c.b16 %v3420, %v3414
        %v3619 = vpack.c.b16 %v3421, %v3415
        %v3620 = vpack.c.b16 %v3422, %v3416
        %v3621 = vpack.c.b16 %v3423, %v3417
        %v3622 = vpack.c.b16 %v3424, %v3418
        %v3623 = vpack.c.b16 %v3425, %v3419
        %v3624 = vpack.c.b16 %v3432, %v3426
        %v3625 = vpack.c.b16 %v3433, %v3427
        %v3626 = vpack.c.b16 %v3434, %v3428
        %v3627 = vpack.c.b16 %v3435, %v3429
        %v3628 = vpack.c.b16 %v3436, %v3430
        %v3629 = vpack.c.b16 %v3437, %v3431
        %3822 = vmatpush.bf16.msra.mxu0 %v3480
        %3823 = vmatpush.bf16.msra.mxu0 %v3474
        %3824 = vmatpush.bf16.msra.mxu0 %v3468
        %3825 = vmatpush.bf16.msra.mxu0 %v3462
        %3826 = vmatpush.bf16.msra.mxu0 %v3456
        %3827 = vmatpush.bf16.msra.mxu0 %v3450
        %3828 = vmatpush.bf16.msra.mxu0 %v3444
        %3829 = vmatpush.bf16.msra.mxu0 %v3438
        %3830 = vmatmul.bf16.gmra.mxu0 %v2280
        %v3831 = vpop.f32.mrf.mxu0
        %v3832 = vadd.f32 0.0, %v3831
        %v3833 = vpop.f32.mrf.mxu0
        %3834 = vdwg.mxu0
        %3835 = vmatpush.bf16.msra.mxu0 %v3528
        %3836 = vmatpush.bf16.msra.mxu0 %v3522
        %3837 = vmatpush.bf16.msra.mxu0 %v3516
        %3838 = vmatpush.bf16.msra.mxu0 %v3510
        %3839 = vmatpush.bf16.msra.mxu0 %v3504
        %3840 = vmatpush.bf16.msra.mxu0 %v3498
        %3841 = vmatpush.bf16.msra.mxu0 %v3492
        %3842 = vmatpush.bf16.msra.mxu0 %v3486
        %3843 = vmatmul.bf16.gmra.mxu0 %v2281
        %v3844 = vpop.f32.mrf.mxu0
        %v3845 = vadd.f32 %v3832, %v3844
        %v3846 = vpop.f32.mrf.mxu0
        %3847 = vdwg.mxu0
        %3848 = vmatpush.bf16.msra.mxu0 %v3576
        %3849 = vmatpush.bf16.msra.mxu0 %v3570
        %3850 = vmatpush.bf16.msra.mxu0 %v3564
        %3851 = vmatpush.bf16.msra.mxu0 %v3558
        %3852 = vmatpush.bf16.msra.mxu0 %v3552
        %3853 = vmatpush.bf16.msra.mxu0 %v3546
        %3854 = vmatpush.bf16.msra.mxu0 %v3540
        %3855 = vmatpush.bf16.msra.mxu0 %v3534
        %3856 = vmatmul.bf16.gmra.mxu0 %v2282
        %v3857 = vpop.f32.mrf.mxu0
        %v3858 = vadd.f32 %v3845, %v3857
        %v3859 = vpop.f32.mrf.mxu0
        %3860 = vdwg.mxu0
        %3861 = vmatpush.bf16.msra.mxu0 %v3624
        %3862 = vmatpush.bf16.msra.mxu0 %v3618
        %3863 = vmatpush.bf16.msra.mxu0 %v3612
        %3864 = vmatpush.bf16.msra.mxu0 %v3606
        %3865 = vmatpush.bf16.msra.mxu0 %v3600
        %3866 = vmatpush.bf16.msra.mxu0 %v3594
        %3867 = vmatpush.bf16.msra.mxu0 %v3588
        %3868 = vmatpush.bf16.msra.mxu0 %v3582
        %3869 = vmatmul.bf16.gmra.mxu0 %v2283
        %v3870 = vpop.f32.mrf.mxu0
        %v3871 = vadd.f32 %v3858, %v3870
        %v3872 = vpop.f32.mrf.mxu0
        %3873 = vdwg.mxu0
        %3874 = vmatpush.bf16.msra.mxu0 %v3481
        %3875 = vmatpush.bf16.msra.mxu0 %v3475
        %3876 = vmatpush.bf16.msra.mxu0 %v3469
        %3877 = vmatpush.bf16.msra.mxu0 %v3463
        %3878 = vmatpush.bf16.msra.mxu0 %v3457
        %3879 = vmatpush.bf16.msra.mxu0 %v3451
        %3880 = vmatpush.bf16.msra.mxu0 %v3445
        %3881 = vmatpush.bf16.msra.mxu0 %v3439
        %3882 = vmatmul.bf16.gmra.mxu0 %v2280
        %v3883 = vpop.f32.mrf.mxu0
        %v3884 = vadd.f32 0.0, %v3883
        %v3885 = vpop.f32.mrf.mxu0
        %3886 = vdwg.mxu0
        %3887 = vmatpush.bf16.msra.mxu0 %v3529
        %3888 = vmatpush.bf16.msra.mxu0 %v3523
        %3889 = vmatpush.bf16.msra.mxu0 %v3517
        %3890 = vmatpush.bf16.msra.mxu0 %v3511
        %3891 = vmatpush.bf16.msra.mxu0 %v3505
        %3892 = vmatpush.bf16.msra.mxu0 %v3499
        %3893 = vmatpush.bf16.msra.mxu0 %v3493
        %3894 = vmatpush.bf16.msra.mxu0 %v3487
        %3895 = vmatmul.bf16.gmra.mxu0 %v2281
        %v3896 = vpop.f32.mrf.mxu0
        %v3897 = vadd.f32 %v3884, %v3896
        %v3898 = vpop.f32.mrf.mxu0
        %3899 = vdwg.mxu0
        %3900 = vmatpush.bf16.msra.mxu0 %v3577
        %3901 = vmatpush.bf16.msra.mxu0 %v3571
        %3902 = vmatpush.bf16.msra.mxu0 %v3565
        %3903 = vmatpush.bf16.msra.mxu0 %v3559
        %3904 = vmatpush.bf16.msra.mxu0 %v3553
        %3905 = vmatpush.bf16.msra.mxu0 %v3547
        %3906 = vmatpush.bf16.msra.mxu0 %v3541
        %3907 = vmatpush.bf16.msra.mxu0 %v3535
        %3908 = vmatmul.bf16.gmra.mxu0 %v2282
        %v3909 = vpop.f32.mrf.mxu0
        %v3910 = vadd.f32 %v3897, %v3909
        %v3911 = vpop.f32.mrf.mxu0
        %3912 = vdwg.mxu0
        %3913 = vmatpush.bf16.msra.mxu0 %v3625
        %3914 = vmatpush.bf16.msra.mxu0 %v3619
        %3915 = vmatpush.bf16.msra.mxu0 %v3613
        %3916 = vmatpush.bf16.msra.mxu0 %v3607
        %3917 = vmatpush.bf16.msra.mxu0 %v3601
        %3918 = vmatpush.bf16.msra.mxu0 %v3595
        %3919 = vmatpush.bf16.msra.mxu0 %v3589
        %3920 = vmatpush.bf16.msra.mxu0 %v3583
        %3921 = vmatmul.bf16.gmra.mxu0 %v2283
        %v3922 = vpop.f32.mrf.mxu0
        %v3923 = vadd.f32 %v3910, %v3922
        %v3924 = vpop.f32.mrf.mxu0
        %3925 = vdwg.mxu0
        %3926 = vmatpush.bf16.msra.mxu0 %v3482
        %3927 = vmatpush.bf16.msra.mxu0 %v3476
        %3928 = vmatpush.bf16.msra.mxu0 %v3470
        %3929 = vmatpush.bf16.msra.mxu0 %v3464
        %3930 = vmatpush.bf16.msra.mxu0 %v3458
        %3931 = vmatpush.bf16.msra.mxu0 %v3452
        %3932 = vmatpush.bf16.msra.mxu0 %v3446
        %3933 = vmatpush.bf16.msra.mxu0 %v3440
        %3934 = vmatmul.bf16.gmra.mxu0 %v2280
        %v3935 = vpop.f32.mrf.mxu0
        %v3936 = vadd.f32 0.0, %v3935
        %v3937 = vpop.f32.mrf.mxu0
        %3938 = vdwg.mxu0
        %3939 = vmatpush.bf16.msra.mxu0 %v3530
        %3940 = vmatpush.bf16.msra.mxu0 %v3524
        %3941 = vmatpush.bf16.msra.mxu0 %v3518
        %3942 = vmatpush.bf16.msra.mxu0 %v3512
        %3943 = vmatpush.bf16.msra.mxu0 %v3506
        %3944 = vmatpush.bf16.msra.mxu0 %v3500
        %3945 = vmatpush.bf16.msra.mxu0 %v3494
        %3946 = vmatpush.bf16.msra.mxu0 %v3488
        %3947 = vmatmul.bf16.gmra.mxu0 %v2281
        %v3948 = vpop.f32.mrf.mxu0
        %v3949 = vadd.f32 %v3936, %v3948
        %v3950 = vpop.f32.mrf.mxu0
        %3951 = vdwg.mxu0
        %3952 = vmatpush.bf16.msra.mxu0 %v3578
        %3953 = vmatpush.bf16.msra.mxu0 %v3572
        %3954 = vmatpush.bf16.msra.mxu0 %v3566
        %3955 = vmatpush.bf16.msra.mxu0 %v3560
        %3956 = vmatpush.bf16.msra.mxu0 %v3554
        %3957 = vmatpush.bf16.msra.mxu0 %v3548
        %3958 = vmatpush.bf16.msra.mxu0 %v3542
        %3959 = vmatpush.bf16.msra.mxu0 %v3536
        %3960 = vmatmul.bf16.gmra.mxu0 %v2282
        %v3961 = vpop.f32.mrf.mxu0
        %v3962 = vadd.f32 %v3949, %v3961
        %v3963 = vpop.f32.mrf.mxu0
        %3964 = vdwg.mxu0
        %3965 = vmatpush.bf16.msra.mxu0 %v3626
        %3966 = vmatpush.bf16.msra.mxu0 %v3620
        %3967 = vmatpush.bf16.msra.mxu0 %v3614
        %3968 = vmatpush.bf16.msra.mxu0 %v3608
        %3969 = vmatpush.bf16.msra.mxu0 %v3602
        %3970 = vmatpush.bf16.msra.mxu0 %v3596
        %3971 = vmatpush.bf16.msra.mxu0 %v3590
        %3972 = vmatpush.bf16.msra.mxu0 %v3584
        %3973 = vmatmul.bf16.gmra.mxu0 %v2283
        %v3974 = vpop.f32.mrf.mxu0
        %v3975 = vadd.f32 %v3962, %v3974
        %v3976 = vpop.f32.mrf.mxu0
        %3977 = vdwg.mxu0
        %3978 = vmatpush.bf16.msra.mxu0 %v3483
        %3979 = vmatpush.bf16.msra.mxu0 %v3477
        %3980 = vmatpush.bf16.msra.mxu0 %v3471
        %3981 = vmatpush.bf16.msra.mxu0 %v3465
        %3982 = vmatpush.bf16.msra.mxu0 %v3459
        %3983 = vmatpush.bf16.msra.mxu0 %v3453
        %3984 = vmatpush.bf16.msra.mxu0 %v3447
        %3985 = vmatpush.bf16.msra.mxu0 %v3441
        %3986 = vmatmul.bf16.gmra.mxu0 %v2280
        %v3987 = vpop.f32.mrf.mxu0
        %v3988 = vadd.f32 0.0, %v3987
        %v3989 = vpop.f32.mrf.mxu0
        %3990 = vdwg.mxu0
        %3991 = vmatpush.bf16.msra.mxu0 %v3531
        %3992 = vmatpush.bf16.msra.mxu0 %v3525
        %3993 = vmatpush.bf16.msra.mxu0 %v3519
        %3994 = vmatpush.bf16.msra.mxu0 %v3513
        %3995 = vmatpush.bf16.msra.mxu0 %v3507
        %3996 = vmatpush.bf16.msra.mxu0 %v3501
        %3997 = vmatpush.bf16.msra.mxu0 %v3495
        %3998 = vmatpush.bf16.msra.mxu0 %v3489
        %3999 = vmatmul.bf16.gmra.mxu0 %v2281
        %v4000 = vpop.f32.mrf.mxu0
        %v4001 = vadd.f32 %v3988, %v4000
        %v4002 = vpop.f32.mrf.mxu0
        %4003 = vdwg.mxu0
        %4004 = vmatpush.bf16.msra.mxu0 %v3579
        %4005 = vmatpush.bf16.msra.mxu0 %v3573
        %4006 = vmatpush.bf16.msra.mxu0 %v3567
        %4007 = vmatpush.bf16.msra.mxu0 %v3561
        %4008 = vmatpush.bf16.msra.mxu0 %v3555
        %4009 = vmatpush.bf16.msra.mxu0 %v3549
        %4010 = vmatpush.bf16.msra.mxu0 %v3543
        %4011 = vmatpush.bf16.msra.mxu0 %v3537
        %4012 = vmatmul.bf16.gmra.mxu0 %v2282
        %v4013 = vpop.f32.mrf.mxu0
        %v4014 = vadd.f32 %v4001, %v4013
        %v4015 = vpop.f32.mrf.mxu0
        %4016 = vdwg.mxu0
        %4017 = vmatpush.bf16.msra.mxu0 %v3627
        %4018 = vmatpush.bf16.msra.mxu0 %v3621
        %4019 = vmatpush.bf16.msra.mxu0 %v3615
        %4020 = vmatpush.bf16.msra.mxu0 %v3609
        %4021 = vmatpush.bf16.msra.mxu0 %v3603
        %4022 = vmatpush.bf16.msra.mxu0 %v3597
        %4023 = vmatpush.bf16.msra.mxu0 %v3591
        %4024 = vmatpush.bf16.msra.mxu0 %v3585
        %4025 = vmatmul.bf16.gmra.mxu0 %v2283
        %v4026 = vpop.f32.mrf.mxu0
        %v4027 = vadd.f32 %v4014, %v4026
        %v4028 = vpop.f32.mrf.mxu0
        %4029 = vdwg.mxu0
        %4030 = vmatpush.bf16.msra.mxu0 %v3484
        %4031 = vmatpush.bf16.msra.mxu0 %v3478
        %4032 = vmatpush.bf16.msra.mxu0 %v3472
        %4033 = vmatpush.bf16.msra.mxu0 %v3466
        %4034 = vmatpush.bf16.msra.mxu0 %v3460
        %4035 = vmatpush.bf16.msra.mxu0 %v3454
        %4036 = vmatpush.bf16.msra.mxu0 %v3448
        %4037 = vmatpush.bf16.msra.mxu0 %v3442
        %4038 = vmatmul.bf16.gmra.mxu0 %v2280
        %v4039 = vpop.f32.mrf.mxu0
        %v4040 = vadd.f32 0.0, %v4039
        %v4041 = vpop.f32.mrf.mxu0
        %4042 = vdwg.mxu0
        %4043 = vmatpush.bf16.msra.mxu0 %v3532
        %4044 = vmatpush.bf16.msra.mxu0 %v3526
        %4045 = vmatpush.bf16.msra.mxu0 %v3520
        %4046 = vmatpush.bf16.msra.mxu0 %v3514
        %4047 = vmatpush.bf16.msra.mxu0 %v3508
        %4048 = vmatpush.bf16.msra.mxu0 %v3502
        %4049 = vmatpush.bf16.msra.mxu0 %v3496
        %4050 = vmatpush.bf16.msra.mxu0 %v3490
        %4051 = vmatmul.bf16.gmra.mxu0 %v2281
        %v4052 = vpop.f32.mrf.mxu0
        %v4053 = vadd.f32 %v4040, %v4052
        %v4054 = vpop.f32.mrf.mxu0
        %4055 = vdwg.mxu0
        %4056 = vmatpush.bf16.msra.mxu0 %v3580
        %4057 = vmatpush.bf16.msra.mxu0 %v3574
        %4058 = vmatpush.bf16.msra.mxu0 %v3568
        %4059 = vmatpush.bf16.msra.mxu0 %v3562
        %4060 = vmatpush.bf16.msra.mxu0 %v3556
        %4061 = vmatpush.bf16.msra.mxu0 %v3550
        %4062 = vmatpush.bf16.msra.mxu0 %v3544
        %4063 = vmatpush.bf16.msra.mxu0 %v3538
        %4064 = vmatmul.bf16.gmra.mxu0 %v2282
        %v4065 = vpop.f32.mrf.mxu0
        %v4066 = vadd.f32 %v4053, %v4065
        %v4067 = vpop.f32.mrf.mxu0
        %4068 = vdwg.mxu0
        %4069 = vmatpush.bf16.msra.mxu0 %v3628
        %4070 = vmatpush.bf16.msra.mxu0 %v3622
        %4071 = vmatpush.bf16.msra.mxu0 %v3616
        %4072 = vmatpush.bf16.msra.mxu0 %v3610
        %4073 = vmatpush.bf16.msra.mxu0 %v3604
        %4074 = vmatpush.bf16.msra.mxu0 %v3598
        %4075 = vmatpush.bf16.msra.mxu0 %v3592
        %4076 = vmatpush.bf16.msra.mxu0 %v3586
        %4077 = vmatmul.bf16.gmra.mxu0 %v2283
        %v4078 = vpop.f32.mrf.mxu0
        %v4079 = vadd.f32 %v4066, %v4078
        %v4080 = vpop.f32.mrf.mxu0
        %4081 = vdwg.mxu0
        %4082 = vmatpush.bf16.msra.mxu0 %v3485
        %4083 = vmatpush.bf16.msra.mxu0 %v3479
        %4084 = vmatpush.bf16.msra.mxu0 %v3473
        %4085 = vmatpush.bf16.msra.mxu0 %v3467
        %4086 = vmatpush.bf16.msra.mxu0 %v3461
        %4087 = vmatpush.bf16.msra.mxu0 %v3455
        %4088 = vmatpush.bf16.msra.mxu0 %v3449
        %4089 = vmatpush.bf16.msra.mxu0 %v3443
        %4090 = vmatmul.bf16.gmra.mxu0 %v2280
        %v4091 = vpop.f32.mrf.mxu0
        %v4092 = vadd.f32 0.0, %v4091
        %v4093 = vpop.f32.mrf.mxu0
        %4094 = vdwg.mxu0
        %4095 = vmatpush.bf16.msra.mxu0 %v3533
        %4096 = vmatpush.bf16.msra.mxu0 %v3527
        %4097 = vmatpush.bf16.msra.mxu0 %v3521
        %4098 = vmatpush.bf16.msra.mxu0 %v3515
        %4099 = vmatpush.bf16.msra.mxu0 %v3509
        %4100 = vmatpush.bf16.msra.mxu0 %v3503
        %4101 = vmatpush.bf16.msra.mxu0 %v3497
        %4102 = vmatpush.bf16.msra.mxu0 %v3491
        %4103 = vmatmul.bf16.gmra.mxu0 %v2281
        %v4104 = vpop.f32.mrf.mxu0
        %v4105 = vadd.f32 %v4092, %v4104
        %v4106 = vpop.f32.mrf.mxu0
        %4107 = vdwg.mxu0
        %4108 = vmatpush.bf16.msra.mxu0 %v3581
        %4109 = vmatpush.bf16.msra.mxu0 %v3575
        %4110 = vmatpush.bf16.msra.mxu0 %v3569
        %4111 = vmatpush.bf16.msra.mxu0 %v3563
        %4112 = vmatpush.bf16.msra.mxu0 %v3557
        %4113 = vmatpush.bf16.msra.mxu0 %v3551
        %4114 = vmatpush.bf16.msra.mxu0 %v3545
        %4115 = vmatpush.bf16.msra.mxu0 %v3539
        %4116 = vmatmul.bf16.gmra.mxu0 %v2282
        %v4117 = vpop.f32.mrf.mxu0
        %v4118 = vadd.f32 %v4105, %v4117
        %v4119 = vpop.f32.mrf.mxu0
        %4120 = vdwg.mxu0
        %4121 = vmatpush.bf16.msra.mxu0 %v3629
        %4122 = vmatpush.bf16.msra.mxu0 %v3623
        %4123 = vmatpush.bf16.msra.mxu0 %v3617
        %4124 = vmatpush.bf16.msra.mxu0 %v3611
        %4125 = vmatpush.bf16.msra.mxu0 %v3605
        %4126 = vmatpush.bf16.msra.mxu0 %v3599
        %4127 = vmatpush.bf16.msra.mxu0 %v3593
        %4128 = vmatpush.bf16.msra.mxu0 %v3587
        %4129 = vmatmul.bf16.gmra.mxu0 %v2283
        %v4130 = vpop.f32.mrf.mxu0
        %v4131 = vadd.f32 %v4118, %v4130
        %v4132 = vpop.f32.mrf.mxu0
        %4133 = vdwg.mxu0
        %v4326 = vunpack.c.l.b16 %v2284
        %v4327 = vunpack.c.h.b16 %v2284
        %v4328 = vunpack.c.l.b16 %v2285
        %v4329 = vunpack.c.h.b16 %v2285
        %v4330 = vunpack.c.l.b16 %v2286
        %v4331 = vunpack.c.h.b16 %v2286
        %v4332 = vunpack.c.l.b16 %v2287
        %v4333 = vunpack.c.h.b16 %v2287
        %v4334 = vunpack.c.l.b16 %v2288
        %v4335 = vunpack.c.h.b16 %v2288
        %v4336 = vunpack.c.l.b16 %v2289
        %v4337 = vunpack.c.h.b16 %v2289
        %v4338 = vunpack.c.l.b16 %v2290
        %v4339 = vunpack.c.h.b16 %v2290
        %v4340 = vunpack.c.l.b16 %v2291
        %v4341 = vunpack.c.h.b16 %v2291
        %v4342 = vunpack.c.l.b16 %v2292
        %v4343 = vunpack.c.h.b16 %v2292
        %v4344 = vunpack.c.l.b16 %v2293
        %v4345 = vunpack.c.h.b16 %v2293
        %v4346 = vunpack.c.l.b16 %v2294
        %v4347 = vunpack.c.h.b16 %v2294
        %v4348 = vunpack.c.l.b16 %v2295
        %v4349 = vunpack.c.h.b16 %v2295
        %v4350 = vunpack.c.l.b16 %v2296
        %v4351 = vunpack.c.h.b16 %v2296
        %v4352 = vunpack.c.l.b16 %v2297
        %v4353 = vunpack.c.h.b16 %v2297
        %v4354 = vunpack.c.l.b16 %v2298
        %v4355 = vunpack.c.h.b16 %v2298
        %v4356 = vunpack.c.l.b16 %v2299
        %v4357 = vunpack.c.h.b16 %v2299
        %v4358 = vunpack.c.l.b16 %v2300
        %v4359 = vunpack.c.h.b16 %v2300
        %v4360 = vunpack.c.l.b16 %v2301
        %v4361 = vunpack.c.h.b16 %v2301
        %v4362 = vunpack.c.l.b16 %v2302
        %v4363 = vunpack.c.h.b16 %v2302
        %v4364 = vunpack.c.l.b16 %v2303
        %v4365 = vunpack.c.h.b16 %v2303
        %v4366 = vunpack.c.l.b16 %v2304
        %v4367 = vunpack.c.h.b16 %v2304
        %v4368 = vunpack.c.l.b16 %v2305
        %v4369 = vunpack.c.h.b16 %v2305
        %v4370 = vunpack.c.l.b16 %v2306
        %v4371 = vunpack.c.h.b16 %v2306
        %v4372 = vunpack.c.l.b16 %v2307
        %v4373 = vunpack.c.h.b16 %v2307
        %v4374 = vunpack.c.l.b16 %v2308
        %v4375 = vunpack.c.h.b16 %v2308
        %v4376 = vunpack.c.l.b16 %v2309
        %v4377 = vunpack.c.h.b16 %v2309
        %v4378 = vunpack.c.l.b16 %v2310
        %v4379 = vunpack.c.h.b16 %v2310
        %v4380 = vunpack.c.l.b16 %v2311
        %v4381 = vunpack.c.h.b16 %v2311
        %v4382 = vunpack.c.l.b16 %v2312
        %v4383 = vunpack.c.h.b16 %v2312
        %v4384 = vunpack.c.l.b16 %v2313
        %v4385 = vunpack.c.h.b16 %v2313
        %v4386 = vunpack.c.l.b16 %v2314
        %v4387 = vunpack.c.h.b16 %v2314
        %v4388 = vunpack.c.l.b16 %v2315
        %v4389 = vunpack.c.h.b16 %v2315
        %v4390 = vunpack.c.l.b16 %v2316
        %v4391 = vunpack.c.h.b16 %v2316
        %v4392 = vunpack.c.l.b16 %v2317
        %v4393 = vunpack.c.h.b16 %v2317
        %v4394 = vunpack.c.l.b16 %v2318
        %v4395 = vunpack.c.h.b16 %v2318
        %v4396 = vunpack.c.l.b16 %v2319
        %v4397 = vunpack.c.h.b16 %v2319
        %v4398 = vunpack.c.l.b16 %v2320
        %v4399 = vunpack.c.h.b16 %v2320
        %v4400 = vunpack.c.l.b16 %v2321
        %v4401 = vunpack.c.h.b16 %v2321
        %v4402 = vunpack.c.l.b16 %v2322
        %v4403 = vunpack.c.h.b16 %v2322
        %v4404 = vunpack.c.l.b16 %v2323
        %v4405 = vunpack.c.h.b16 %v2323
        %v4406 = vunpack.c.l.b16 %v2324
        %v4407 = vunpack.c.h.b16 %v2324
        %v4408 = vunpack.c.l.b16 %v2325
        %v4409 = vunpack.c.h.b16 %v2325
        %v4410 = vunpack.c.l.b16 %v2326
        %v4411 = vunpack.c.h.b16 %v2326
        %v4412 = vunpack.c.l.b16 %v2327
        %v4413 = vunpack.c.h.b16 %v2327
        %v4414 = vunpack.c.l.b16 %v2328
        %v4415 = vunpack.c.h.b16 %v2328
        %v4416 = vunpack.c.l.b16 %v2329
        %v4417 = vunpack.c.h.b16 %v2329
        %v4418 = vunpack.c.l.b16 %v2330
        %v4419 = vunpack.c.h.b16 %v2330
        %v4420 = vunpack.c.l.b16 %v2331
        %v4421 = vunpack.c.h.b16 %v2331
        %v4422 = vunpack.c.l.b16 %v2332
        %v4423 = vunpack.c.h.b16 %v2332
        %v4424 = vunpack.c.l.b16 %v2333
        %v4425 = vunpack.c.h.b16 %v2333
        %v4426 = vunpack.c.l.b16 %v2334
        %v4427 = vunpack.c.h.b16 %v2334
        %v4428 = vunpack.c.l.b16 %v2335
        %v4429 = vunpack.c.h.b16 %v2335
        %v4430 = vunpack.c.l.b16 %v2336
        %v4431 = vunpack.c.h.b16 %v2336
        %v4432 = vunpack.c.l.b16 %v2337
        %v4433 = vunpack.c.h.b16 %v2337
        %v4434 = vunpack.c.l.b16 %v2338
        %v4435 = vunpack.c.h.b16 %v2338
        %v4436 = vunpack.c.l.b16 %v2339
        %v4437 = vunpack.c.h.b16 %v2339
        %v4438 = vunpack.c.l.b16 %v2340
        %v4439 = vunpack.c.h.b16 %v2340
        %v4440 = vunpack.c.l.b16 %v2341
        %v4441 = vunpack.c.h.b16 %v2341
        %v4442 = vunpack.c.l.b16 %v2342
        %v4443 = vunpack.c.h.b16 %v2342
        %v4444 = vunpack.c.l.b16 %v2343
        %v4445 = vunpack.c.h.b16 %v2343
        %v4446 = vunpack.c.l.b16 %v2344
        %v4447 = vunpack.c.h.b16 %v2344
        %v4448 = vunpack.c.l.b16 %v2345
        %v4449 = vunpack.c.h.b16 %v2345
        %v4450 = vunpack.c.l.b16 %v2346
        %v4451 = vunpack.c.h.b16 %v2346
        %v4452 = vunpack.c.l.b16 %v2347
        %v4453 = vunpack.c.h.b16 %v2347
        %v4454 = vunpack.c.l.b16 %v2348
        %v4455 = vunpack.c.h.b16 %v2348
        %v4456 = vunpack.c.l.b16 %v2349
        %v4457 = vunpack.c.h.b16 %v2349
        %v4458 = vunpack.c.l.b16 %v2350
        %v4459 = vunpack.c.h.b16 %v2350
        %v4460 = vunpack.c.l.b16 %v2351
        %v4461 = vunpack.c.h.b16 %v2351
        %v4462 = vunpack.c.l.b16 %v2352
        %v4463 = vunpack.c.h.b16 %v2352
        %v4464 = vunpack.c.l.b16 %v2353
        %v4465 = vunpack.c.h.b16 %v2353
        %v4466 = vunpack.c.l.b16 %v2354
        %v4467 = vunpack.c.h.b16 %v2354
        %v4468 = vunpack.c.l.b16 %v2355
        %v4469 = vunpack.c.h.b16 %v2355
        %v4470 = vunpack.c.l.b16 %v2356
        %v4471 = vunpack.c.h.b16 %v2356
        %v4472 = vunpack.c.l.b16 %v2357
        %v4473 = vunpack.c.h.b16 %v2357
        %v4474 = vunpack.c.l.b16 %v2358
        %v4475 = vunpack.c.h.b16 %v2358
        %v4476 = vunpack.c.l.b16 %v2359
        %v4477 = vunpack.c.h.b16 %v2359
        %v4478 = vunpack.c.l.b16 %v2360
        %v4479 = vunpack.c.h.b16 %v2360
        %v4480 = vunpack.c.l.b16 %v2361
        %v4481 = vunpack.c.h.b16 %v2361
        %v4482 = vunpack.c.l.b16 %v2362
        %v4483 = vunpack.c.h.b16 %v2362
        %v4484 = vunpack.c.l.b16 %v2363
        %v4485 = vunpack.c.h.b16 %v2363
        %v4486 = vunpack.c.l.b16 %v2364
        %v4487 = vunpack.c.h.b16 %v2364
        %v4488 = vunpack.c.l.b16 %v2365
        %v4489 = vunpack.c.h.b16 %v2365
        %v4490 = vunpack.c.l.b16 %v2366
        %v4491 = vunpack.c.h.b16 %v2366
        %v4492 = vunpack.c.l.b16 %v2367
        %v4493 = vunpack.c.h.b16 %v2367
        %v4494 = vunpack.c.l.b16 %v2368
        %v4495 = vunpack.c.h.b16 %v2368
        %v4496 = vunpack.c.l.b16 %v2369
        %v4497 = vunpack.c.h.b16 %v2369
        %v4498 = vunpack.c.l.b16 %v2370
        %v4499 = vunpack.c.h.b16 %v2370
        %v4500 = vunpack.c.l.b16 %v2371
        %v4501 = vunpack.c.h.b16 %v2371
        %v4502 = vunpack.c.l.b16 %v2372
        %v4503 = vunpack.c.h.b16 %v2372
        %v4504 = vunpack.c.l.b16 %v2373
        %v4505 = vunpack.c.h.b16 %v2373
        %v4506 = vunpack.c.l.b16 %v2374
        %v4507 = vunpack.c.h.b16 %v2374
        %v4508 = vunpack.c.l.b16 %v2375
        %v4509 = vunpack.c.h.b16 %v2375
        %v4510 = vunpack.c.l.b16 %v2376
        %v4511 = vunpack.c.h.b16 %v2376
        %v4512 = vunpack.c.l.b16 %v2377
        %v4513 = vunpack.c.h.b16 %v2377
        %v4514 = vunpack.c.l.b16 %v2378
        %v4515 = vunpack.c.h.b16 %v2378
        %v4516 = vunpack.c.l.b16 %v2379
        %v4517 = vunpack.c.h.b16 %v2379
        %v4518 = vunpack.c.l.b16 %v2380
        %v4519 = vunpack.c.h.b16 %v2380
        %v4520 = vunpack.c.l.b16 %v2381
        %v4521 = vunpack.c.h.b16 %v2381
        %v4522 = vunpack.c.l.b16 %v2382
        %v4523 = vunpack.c.h.b16 %v2382
        %v4524 = vunpack.c.l.b16 %v2383
        %v4525 = vunpack.c.h.b16 %v2383
        %v4526 = vunpack.c.l.b16 %v2384
        %v4527 = vunpack.c.h.b16 %v2384
        %v4528 = vunpack.c.l.b16 %v2385
        %v4529 = vunpack.c.h.b16 %v2385
        %v4530 = vunpack.c.l.b16 %v2386
        %v4531 = vunpack.c.h.b16 %v2386
        %v4532 = vunpack.c.l.b16 %v2387
        %v4533 = vunpack.c.h.b16 %v2387
        %v4534 = vunpack.c.l.b16 %v2388
        %v4535 = vunpack.c.h.b16 %v2388
        %v4536 = vunpack.c.l.b16 %v2389
        %v4537 = vunpack.c.h.b16 %v2389
        %v4538 = vunpack.c.l.b16 %v2390
        %v4539 = vunpack.c.h.b16 %v2390
        %v4540 = vunpack.c.l.b16 %v2391
        %v4541 = vunpack.c.h.b16 %v2391
        %v4542 = vunpack.c.l.b16 %v2392
        %v4543 = vunpack.c.h.b16 %v2392
        %v4544 = vunpack.c.l.b16 %v2393
        %v4545 = vunpack.c.h.b16 %v2393
        %v4546 = vunpack.c.l.b16 %v2394
        %v4547 = vunpack.c.h.b16 %v2394
        %v4548 = vunpack.c.l.b16 %v2395
        %v4549 = vunpack.c.h.b16 %v2395
        %v4550 = vunpack.c.l.b16 %v2396
        %v4551 = vunpack.c.h.b16 %v2396
        %v4552 = vunpack.c.l.b16 %v2397
        %v4553 = vunpack.c.h.b16 %v2397
        %v4554 = vunpack.c.l.b16 %v2398
        %v4555 = vunpack.c.h.b16 %v2398
        %v4556 = vunpack.c.l.b16 %v2399
        %v4557 = vunpack.c.h.b16 %v2399
        %v4558 = vunpack.c.l.b16 %v2400
        %v4559 = vunpack.c.h.b16 %v2400
        %v4560 = vunpack.c.l.b16 %v2401
        %v4561 = vunpack.c.h.b16 %v2401
        %v4562 = vunpack.c.l.b16 %v2402
        %v4563 = vunpack.c.h.b16 %v2402
        %v4564 = vunpack.c.l.b16 %v2403
        %v4565 = vunpack.c.h.b16 %v2403
        %v4566 = vunpack.c.l.b16 %v2404
        %v4567 = vunpack.c.h.b16 %v2404
        %v4568 = vunpack.c.l.b16 %v2405
        %v4569 = vunpack.c.h.b16 %v2405
        %v4570 = vunpack.c.l.b16 %v2406
        %v4571 = vunpack.c.h.b16 %v2406
        %v4572 = vunpack.c.l.b16 %v2407
        %v4573 = vunpack.c.h.b16 %v2407
        %v4574 = vunpack.c.l.b16 %v2408
        %v4575 = vunpack.c.h.b16 %v2408
        %v4576 = vunpack.c.l.b16 %v2409
        %v4577 = vunpack.c.h.b16 %v2409
        %v4578 = vunpack.c.l.b16 %v2410
        %v4579 = vunpack.c.h.b16 %v2410
        %v4580 = vunpack.c.l.b16 %v2411
        %v4581 = vunpack.c.h.b16 %v2411
        %v4582 = vunpack.c.l.b16 %v2412
        %v4583 = vunpack.c.h.b16 %v2412
        %v4584 = vunpack.c.l.b16 %v2413
        %v4585 = vunpack.c.h.b16 %v2413
        %v4586 = vunpack.c.l.b16 %v2414
        %v4587 = vunpack.c.h.b16 %v2414
        %v4588 = vunpack.c.l.b16 %v2415
        %v4589 = vunpack.c.h.b16 %v2415
        %v4590 = vunpack.c.l.b16 %v2416
        %v4591 = vunpack.c.h.b16 %v2416
        %v4592 = vunpack.c.l.b16 %v2417
        %v4593 = vunpack.c.h.b16 %v2417
        %v4594 = vunpack.c.l.b16 %v2418
        %v4595 = vunpack.c.h.b16 %v2418
        %v4596 = vunpack.c.l.b16 %v2419
        %v4597 = vunpack.c.h.b16 %v2419
        %v4598 = vunpack.c.l.b16 %v2420
        %v4599 = vunpack.c.h.b16 %v2420
        %v4600 = vunpack.c.l.b16 %v2421
        %v4601 = vunpack.c.h.b16 %v2421
        %v4602 = vunpack.c.l.b16 %v2422
        %v4603 = vunpack.c.h.b16 %v2422
        %v4604 = vunpack.c.l.b16 %v2423
        %v4605 = vunpack.c.h.b16 %v2423
        %v4606 = vunpack.c.l.b16 %v2424
        %v4607 = vunpack.c.h.b16 %v2424
        %v4608 = vunpack.c.l.b16 %v2425
        %v4609 = vunpack.c.h.b16 %v2425
        %v4610 = vunpack.c.l.b16 %v2426
        %v4611 = vunpack.c.h.b16 %v2426
        %v4612 = vunpack.c.l.b16 %v2427
        %v4613 = vunpack.c.h.b16 %v2427
        %v4614 = vunpack.c.l.b16 %v2428
        %v4615 = vunpack.c.h.b16 %v2428
        %v4616 = vunpack.c.l.b16 %v2429
        %v4617 = vunpack.c.h.b16 %v2429
        %v4618 = vunpack.c.l.b16 %v2430
        %v4619 = vunpack.c.h.b16 %v2430
        %v4620 = vunpack.c.l.b16 %v2431
        %v4621 = vunpack.c.h.b16 %v2431
        %v4622 = vunpack.c.l.b16 %v2432
        %v4623 = vunpack.c.h.b16 %v2432
        %v4624 = vunpack.c.l.b16 %v2433
        %v4625 = vunpack.c.h.b16 %v2433
        %v4626 = vunpack.c.l.b16 %v2434
        %v4627 = vunpack.c.h.b16 %v2434
        %v4628 = vunpack.c.l.b16 %v2435
        %v4629 = vunpack.c.h.b16 %v2435
        %v4630 = vunpack.c.l.b16 %v2436
        %v4631 = vunpack.c.h.b16 %v2436
        %v4632 = vunpack.c.l.b16 %v2437
        %v4633 = vunpack.c.h.b16 %v2437
        %v4634 = vunpack.c.l.b16 %v2438
        %v4635 = vunpack.c.h.b16 %v2438
        %v4636 = vunpack.c.l.b16 %v2439
        %v4637 = vunpack.c.h.b16 %v2439
        %v4638 = vunpack.c.l.b16 %v2440
        %v4639 = vunpack.c.h.b16 %v2440
        %v4640 = vunpack.c.l.b16 %v2441
        %v4641 = vunpack.c.h.b16 %v2441
        %v4642 = vunpack.c.l.b16 %v2442
        %v4643 = vunpack.c.h.b16 %v2442
        %v4644 = vunpack.c.l.b16 %v2443
        %v4645 = vunpack.c.h.b16 %v2443
        %v4646 = vunpack.c.l.b16 %v2444
        %v4647 = vunpack.c.h.b16 %v2444
        %v4648 = vunpack.c.l.b16 %v2445
        %v4649 = vunpack.c.h.b16 %v2445
        %v4650 = vunpack.c.l.b16 %v2446
        %v4651 = vunpack.c.h.b16 %v2446
        %v4652 = vunpack.c.l.b16 %v2447
        %v4653 = vunpack.c.h.b16 %v2447
        %v4654 = vunpack.c.l.b16 %v2448
        %v4655 = vunpack.c.h.b16 %v2448
        %v4656 = vunpack.c.l.b16 %v2449
        %v4657 = vunpack.c.h.b16 %v2449
        %v4658 = vunpack.c.l.b16 %v2450
        %v4659 = vunpack.c.h.b16 %v2450
        %v4660 = vunpack.c.l.b16 %v2451
        %v4661 = vunpack.c.h.b16 %v2451
        %v4662 = vunpack.c.l.b16 %v2452
        %v4663 = vunpack.c.h.b16 %v2452
        %v4664 = vunpack.c.l.b16 %v2453
        %v4665 = vunpack.c.h.b16 %v2453
        %v4666 = vunpack.c.l.b16 %v2454
        %v4667 = vunpack.c.h.b16 %v2454
        %v4668 = vunpack.c.l.b16 %v2455
        %v4669 = vunpack.c.h.b16 %v2455
        %v4670 = vunpack.c.l.b16 %v2456
        %v4671 = vunpack.c.h.b16 %v2456
        %v4672 = vunpack.c.l.b16 %v2457
        %v4673 = vunpack.c.h.b16 %v2457
        %v4674 = vunpack.c.l.b16 %v2458
        %v4675 = vunpack.c.h.b16 %v2458
        %v4676 = vunpack.c.l.b16 %v2459
        %v4677 = vunpack.c.h.b16 %v2459
        %v4678 = vunpack.c.l.b16 %v2460
        %v4679 = vunpack.c.h.b16 %v2460
        %v4680 = vunpack.c.l.b16 %v2461
        %v4681 = vunpack.c.h.b16 %v2461
        %v4682 = vunpack.c.l.b16 %v2462
        %v4683 = vunpack.c.h.b16 %v2462
        %v4684 = vunpack.c.l.b16 %v2463
        %v4685 = vunpack.c.h.b16 %v2463
        %v4686 = vunpack.c.l.b16 %v2464
        %v4687 = vunpack.c.h.b16 %v2464
        %v4688 = vunpack.c.l.b16 %v2465
        %v4689 = vunpack.c.h.b16 %v2465
        %v4690 = vunpack.c.l.b16 %v2466
        %v4691 = vunpack.c.h.b16 %v2466
        %v4692 = vunpack.c.l.b16 %v2467
        %v4693 = vunpack.c.h.b16 %v2467
        %v4694 = vunpack.c.l.b16 %v2468
        %v4695 = vunpack.c.h.b16 %v2468
        %v4696 = vunpack.c.l.b16 %v2469
        %v4697 = vunpack.c.h.b16 %v2469
        %v4698 = vunpack.c.l.b16 %v2470
        %v4699 = vunpack.c.h.b16 %v2470
        %v4700 = vunpack.c.l.b16 %v2471
        %v4701 = vunpack.c.h.b16 %v2471
        %v4702 = vunpack.c.l.b16 %v2472
        %v4703 = vunpack.c.h.b16 %v2472
        %v4704 = vunpack.c.l.b16 %v2473
        %v4705 = vunpack.c.h.b16 %v2473
        %v4706 = vunpack.c.l.b16 %v2474
        %v4707 = vunpack.c.h.b16 %v2474
        %v4708 = vunpack.c.l.b16 %v2475
        %v4709 = vunpack.c.h.b16 %v2475
        %v4710 = vpack.c.b16 %v4332, %v4326
        %v4711 = vpack.c.b16 %v4333, %v4327
        %v4712 = vpack.c.b16 %v4334, %v4328
        %v4713 = vpack.c.b16 %v4335, %v4329
        %v4714 = vpack.c.b16 %v4336, %v4330
        %v4715 = vpack.c.b16 %v4337, %v4331
        %v4716 = vpack.c.b16 %v4344, %v4338
        %v4717 = vpack.c.b16 %v4345, %v4339
        %v4718 = vpack.c.b16 %v4346, %v4340
        %v4719 = vpack.c.b16 %v4347, %v4341
        %v4720 = vpack.c.b16 %v4348, %v4342
        %v4721 = vpack.c.b16 %v4349, %v4343
        %v4722 = vpack.c.b16 %v4356, %v4350
        %v4723 = vpack.c.b16 %v4357, %v4351
        %v4724 = vpack.c.b16 %v4358, %v4352
        %v4725 = vpack.c.b16 %v4359, %v4353
        %v4726 = vpack.c.b16 %v4360, %v4354
        %v4727 = vpack.c.b16 %v4361, %v4355
        %v4728 = vpack.c.b16 %v4368, %v4362
        %v4729 = vpack.c.b16 %v4369, %v4363
        %v4730 = vpack.c.b16 %v4370, %v4364
        %v4731 = vpack.c.b16 %v4371, %v4365
        %v4732 = vpack.c.b16 %v4372, %v4366
        %v4733 = vpack.c.b16 %v4373, %v4367
        %v4734 = vpack.c.b16 %v4380, %v4374
        %v4735 = vpack.c.b16 %v4381, %v4375
        %v4736 = vpack.c.b16 %v4382, %v4376
        %v4737 = vpack.c.b16 %v4383, %v4377
        %v4738 = vpack.c.b16 %v4384, %v4378
        %v4739 = vpack.c.b16 %v4385, %v4379
        %v4740 = vpack.c.b16 %v4392, %v4386
        %v4741 = vpack.c.b16 %v4393, %v4387
        %v4742 = vpack.c.b16 %v4394, %v4388
        %v4743 = vpack.c.b16 %v4395, %v4389
        %v4744 = vpack.c.b16 %v4396, %v4390
        %v4745 = vpack.c.b16 %v4397, %v4391
        %v4746 = vpack.c.b16 %v4404, %v4398
        %v4747 = vpack.c.b16 %v4405, %v4399
        %v4748 = vpack.c.b16 %v4406, %v4400
        %v4749 = vpack.c.b16 %v4407, %v4401
        %v4750 = vpack.c.b16 %v4408, %v4402
        %v4751 = vpack.c.b16 %v4409, %v4403
        %v4752 = vpack.c.b16 %v4416, %v4410
        %v4753 = vpack.c.b16 %v4417, %v4411
        %v4754 = vpack.c.b16 %v4418, %v4412
        %v4755 = vpack.c.b16 %v4419, %v4413
        %v4756 = vpack.c.b16 %v4420, %v4414
        %v4757 = vpack.c.b16 %v4421, %v4415
        %v4758 = vpack.c.b16 %v4428, %v4422
        %v4759 = vpack.c.b16 %v4429, %v4423
        %v4760 = vpack.c.b16 %v4430, %v4424
        %v4761 = vpack.c.b16 %v4431, %v4425
        %v4762 = vpack.c.b16 %v4432, %v4426
        %v4763 = vpack.c.b16 %v4433, %v4427
        %v4764 = vpack.c.b16 %v4440, %v4434
        %v4765 = vpack.c.b16 %v4441, %v4435
        %v4766 = vpack.c.b16 %v4442, %v4436
        %v4767 = vpack.c.b16 %v4443, %v4437
        %v4768 = vpack.c.b16 %v4444, %v4438
        %v4769 = vpack.c.b16 %v4445, %v4439
        %v4770 = vpack.c.b16 %v4452, %v4446
        %v4771 = vpack.c.b16 %v4453, %v4447
        %v4772 = vpack.c.b16 %v4454, %v4448
        %v4773 = vpack.c.b16 %v4455, %v4449
        %v4774 = vpack.c.b16 %v4456, %v4450
        %v4775 = vpack.c.b16 %v4457, %v4451
        %v4776 = vpack.c.b16 %v4464, %v4458
        %v4777 = vpack.c.b16 %v4465, %v4459
        %v4778 = vpack.c.b16 %v4466, %v4460
        %v4779 = vpack.c.b16 %v4467, %v4461
        %v4780 = vpack.c.b16 %v4468, %v4462
        %v4781 = vpack.c.b16 %v4469, %v4463
        %v4782 = vpack.c.b16 %v4476, %v4470
        %v4783 = vpack.c.b16 %v4477, %v4471
        %v4784 = vpack.c.b16 %v4478, %v4472
        %v4785 = vpack.c.b16 %v4479, %v4473
        %v4786 = vpack.c.b16 %v4480, %v4474
        %v4787 = vpack.c.b16 %v4481, %v4475
        %v4788 = vpack.c.b16 %v4488, %v4482
        %v4789 = vpack.c.b16 %v4489, %v4483
        %v4790 = vpack.c.b16 %v4490, %v4484
        %v4791 = vpack.c.b16 %v4491, %v4485
        %v4792 = vpack.c.b16 %v4492, %v4486
        %v4793 = vpack.c.b16 %v4493, %v4487
        %v4794 = vpack.c.b16 %v4500, %v4494
        %v4795 = vpack.c.b16 %v4501, %v4495
        %v4796 = vpack.c.b16 %v4502, %v4496
        %v4797 = vpack.c.b16 %v4503, %v4497
        %v4798 = vpack.c.b16 %v4504, %v4498
        %v4799 = vpack.c.b16 %v4505, %v4499
        %v4800 = vpack.c.b16 %v4512, %v4506
        %v4801 = vpack.c.b16 %v4513, %v4507
        %v4802 = vpack.c.b16 %v4514, %v4508
        %v4803 = vpack.c.b16 %v4515, %v4509
        %v4804 = vpack.c.b16 %v4516, %v4510
        %v4805 = vpack.c.b16 %v4517, %v4511
        %v4806 = vpack.c.b16 %v4524, %v4518
        %v4807 = vpack.c.b16 %v4525, %v4519
        %v4808 = vpack.c.b16 %v4526, %v4520
        %v4809 = vpack.c.b16 %v4527, %v4521
        %v4810 = vpack.c.b16 %v4528, %v4522
        %v4811 = vpack.c.b16 %v4529, %v4523
        %v4812 = vpack.c.b16 %v4536, %v4530
        %v4813 = vpack.c.b16 %v4537, %v4531
        %v4814 = vpack.c.b16 %v4538, %v4532
        %v4815 = vpack.c.b16 %v4539, %v4533
        %v4816 = vpack.c.b16 %v4540, %v4534
        %v4817 = vpack.c.b16 %v4541, %v4535
        %v4818 = vpack.c.b16 %v4548, %v4542
        %v4819 = vpack.c.b16 %v4549, %v4543
        %v4820 = vpack.c.b16 %v4550, %v4544
        %v4821 = vpack.c.b16 %v4551, %v4545
        %v4822 = vpack.c.b16 %v4552, %v4546
        %v4823 = vpack.c.b16 %v4553, %v4547
        %v4824 = vpack.c.b16 %v4560, %v4554
        %v4825 = vpack.c.b16 %v4561, %v4555
        %v4826 = vpack.c.b16 %v4562, %v4556
        %v4827 = vpack.c.b16 %v4563, %v4557
        %v4828 = vpack.c.b16 %v4564, %v4558
        %v4829 = vpack.c.b16 %v4565, %v4559
        %v4830 = vpack.c.b16 %v4572, %v4566
        %v4831 = vpack.c.b16 %v4573, %v4567
        %v4832 = vpack.c.b16 %v4574, %v4568
        %v4833 = vpack.c.b16 %v4575, %v4569
        %v4834 = vpack.c.b16 %v4576, %v4570
        %v4835 = vpack.c.b16 %v4577, %v4571
        %v4836 = vpack.c.b16 %v4584, %v4578
        %v4837 = vpack.c.b16 %v4585, %v4579
        %v4838 = vpack.c.b16 %v4586, %v4580
        %v4839 = vpack.c.b16 %v4587, %v4581
        %v4840 = vpack.c.b16 %v4588, %v4582
        %v4841 = vpack.c.b16 %v4589, %v4583
        %v4842 = vpack.c.b16 %v4596, %v4590
        %v4843 = vpack.c.b16 %v4597, %v4591
        %v4844 = vpack.c.b16 %v4598, %v4592
        %v4845 = vpack.c.b16 %v4599, %v4593
        %v4846 = vpack.c.b16 %v4600, %v4594
        %v4847 = vpack.c.b16 %v4601, %v4595
        %v4848 = vpack.c.b16 %v4608, %v4602
        %v4849 = vpack.c.b16 %v4609, %v4603
        %v4850 = vpack.c.b16 %v4610, %v4604
        %v4851 = vpack.c.b16 %v4611, %v4605
        %v4852 = vpack.c.b16 %v4612, %v4606
        %v4853 = vpack.c.b16 %v4613, %v4607
        %v4854 = vpack.c.b16 %v4620, %v4614
        %v4855 = vpack.c.b16 %v4621, %v4615
        %v4856 = vpack.c.b16 %v4622, %v4616
        %v4857 = vpack.c.b16 %v4623, %v4617
        %v4858 = vpack.c.b16 %v4624, %v4618
        %v4859 = vpack.c.b16 %v4625, %v4619
        %v4860 = vpack.c.b16 %v4632, %v4626
        %v4861 = vpack.c.b16 %v4633, %v4627
        %v4862 = vpack.c.b16 %v4634, %v4628
        %v4863 = vpack.c.b16 %v4635, %v4629
        %v4864 = vpack.c.b16 %v4636, %v4630
        %v4865 = vpack.c.b16 %v4637, %v4631
        %v4866 = vpack.c.b16 %v4644, %v4638
        %v4867 = vpack.c.b16 %v4645, %v4639
        %v4868 = vpack.c.b16 %v4646, %v4640
        %v4869 = vpack.c.b16 %v4647, %v4641
        %v4870 = vpack.c.b16 %v4648, %v4642
        %v4871 = vpack.c.b16 %v4649, %v4643
        %v4872 = vpack.c.b16 %v4656, %v4650
        %v4873 = vpack.c.b16 %v4657, %v4651
        %v4874 = vpack.c.b16 %v4658, %v4652
        %v4875 = vpack.c.b16 %v4659, %v4653
        %v4876 = vpack.c.b16 %v4660, %v4654
        %v4877 = vpack.c.b16 %v4661, %v4655
        %v4878 = vpack.c.b16 %v4668, %v4662
        %v4879 = vpack.c.b16 %v4669, %v4663
        %v4880 = vpack.c.b16 %v4670, %v4664
        %v4881 = vpack.c.b16 %v4671, %v4665
        %v4882 = vpack.c.b16 %v4672, %v4666
        %v4883 = vpack.c.b16 %v4673, %v4667
        %v4884 = vpack.c.b16 %v4680, %v4674
        %v4885 = vpack.c.b16 %v4681, %v4675
        %v4886 = vpack.c.b16 %v4682, %v4676
        %v4887 = vpack.c.b16 %v4683, %v4677
        %v4888 = vpack.c.b16 %v4684, %v4678
        %v4889 = vpack.c.b16 %v4685, %v4679
        %v4890 = vpack.c.b16 %v4692, %v4686
        %v4891 = vpack.c.b16 %v4693, %v4687
        %v4892 = vpack.c.b16 %v4694, %v4688
        %v4893 = vpack.c.b16 %v4695, %v4689
        %v4894 = vpack.c.b16 %v4696, %v4690
        %v4895 = vpack.c.b16 %v4697, %v4691
        %v4896 = vpack.c.b16 %v4704, %v4698
        %v4897 = vpack.c.b16 %v4705, %v4699
        %v4898 = vpack.c.b16 %v4706, %v4700
        %v4899 = vpack.c.b16 %v4707, %v4701
        %v4900 = vpack.c.b16 %v4708, %v4702
        %v4901 = vpack.c.b16 %v4709, %v4703
        %5094 = vmatpush.bf16.msra.mxu0 %v4752
        %5095 = vmatpush.bf16.msra.mxu0 %v4746
        %5096 = vmatpush.bf16.msra.mxu0 %v4740
        %5097 = vmatpush.bf16.msra.mxu0 %v4734
        %5098 = vmatpush.bf16.msra.mxu0 %v4728
        %5099 = vmatpush.bf16.msra.mxu0 %v4722
        %5100 = vmatpush.bf16.msra.mxu0 %v4716
        %5101 = vmatpush.bf16.msra.mxu0 %v4710
        %5102 = vmatmul.bf16.gmra.mxu0 %v2276
        %v5103 = vpop.f32.mrf.mxu0
        %v5104 = vadd.f32 %v3871, %v5103
        %v5105 = vpop.f32.mrf.mxu0
        %5106 = vdwg.mxu0
        %5107 = vmatpush.bf16.msra.mxu0 %v4800
        %5108 = vmatpush.bf16.msra.mxu0 %v4794
        %5109 = vmatpush.bf16.msra.mxu0 %v4788
        %5110 = vmatpush.bf16.msra.mxu0 %v4782
        %5111 = vmatpush.bf16.msra.mxu0 %v4776
        %5112 = vmatpush.bf16.msra.mxu0 %v4770
        %5113 = vmatpush.bf16.msra.mxu0 %v4764
        %5114 = vmatpush.bf16.msra.mxu0 %v4758
        %5115 = vmatmul.bf16.gmra.mxu0 %v2277
        %v5116 = vpop.f32.mrf.mxu0
        %v5117 = vadd.f32 %v5104, %v5116
        %v5118 = vpop.f32.mrf.mxu0
        %5119 = vdwg.mxu0
        %5120 = vmatpush.bf16.msra.mxu0 %v4848
        %5121 = vmatpush.bf16.msra.mxu0 %v4842
        %5122 = vmatpush.bf16.msra.mxu0 %v4836
        %5123 = vmatpush.bf16.msra.mxu0 %v4830
        %5124 = vmatpush.bf16.msra.mxu0 %v4824
        %5125 = vmatpush.bf16.msra.mxu0 %v4818
        %5126 = vmatpush.bf16.msra.mxu0 %v4812
        %5127 = vmatpush.bf16.msra.mxu0 %v4806
        %5128 = vmatmul.bf16.gmra.mxu0 %v2278
        %v5129 = vpop.f32.mrf.mxu0
        %v5130 = vadd.f32 %v5117, %v5129
        %v5131 = vpop.f32.mrf.mxu0
        %5132 = vdwg.mxu0
        %5133 = vmatpush.bf16.msra.mxu0 %v4896
        %5134 = vmatpush.bf16.msra.mxu0 %v4890
        %5135 = vmatpush.bf16.msra.mxu0 %v4884
        %5136 = vmatpush.bf16.msra.mxu0 %v4878
        %5137 = vmatpush.bf16.msra.mxu0 %v4872
        %5138 = vmatpush.bf16.msra.mxu0 %v4866
        %5139 = vmatpush.bf16.msra.mxu0 %v4860
        %5140 = vmatpush.bf16.msra.mxu0 %v4854
        %5141 = vmatmul.bf16.gmra.mxu0 %v2279
        %v5142 = vpop.f32.mrf.mxu0
        %v5143 = vadd.f32 %v5130, %v5142
        %v5144 = vpop.f32.mrf.mxu0
        %5145 = vdwg.mxu0
        %5146 = vmatpush.bf16.msra.mxu0 %v4753
        %5147 = vmatpush.bf16.msra.mxu0 %v4747
        %5148 = vmatpush.bf16.msra.mxu0 %v4741
        %5149 = vmatpush.bf16.msra.mxu0 %v4735
        %5150 = vmatpush.bf16.msra.mxu0 %v4729
        %5151 = vmatpush.bf16.msra.mxu0 %v4723
        %5152 = vmatpush.bf16.msra.mxu0 %v4717
        %5153 = vmatpush.bf16.msra.mxu0 %v4711
        %5154 = vmatmul.bf16.gmra.mxu0 %v2276
        %v5155 = vpop.f32.mrf.mxu0
        %v5156 = vadd.f32 %v3923, %v5155
        %v5157 = vpop.f32.mrf.mxu0
        %5158 = vdwg.mxu0
        %5159 = vmatpush.bf16.msra.mxu0 %v4801
        %5160 = vmatpush.bf16.msra.mxu0 %v4795
        %5161 = vmatpush.bf16.msra.mxu0 %v4789
        %5162 = vmatpush.bf16.msra.mxu0 %v4783
        %5163 = vmatpush.bf16.msra.mxu0 %v4777
        %5164 = vmatpush.bf16.msra.mxu0 %v4771
        %5165 = vmatpush.bf16.msra.mxu0 %v4765
        %5166 = vmatpush.bf16.msra.mxu0 %v4759
        %5167 = vmatmul.bf16.gmra.mxu0 %v2277
        %v5168 = vpop.f32.mrf.mxu0
        %v5169 = vadd.f32 %v5156, %v5168
        %v5170 = vpop.f32.mrf.mxu0
        %5171 = vdwg.mxu0
        %5172 = vmatpush.bf16.msra.mxu0 %v4849
        %5173 = vmatpush.bf16.msra.mxu0 %v4843
        %5174 = vmatpush.bf16.msra.mxu0 %v4837
        %5175 = vmatpush.bf16.msra.mxu0 %v4831
        %5176 = vmatpush.bf16.msra.mxu0 %v4825
        %5177 = vmatpush.bf16.msra.mxu0 %v4819
        %5178 = vmatpush.bf16.msra.mxu0 %v4813
        %5179 = vmatpush.bf16.msra.mxu0 %v4807
        %5180 = vmatmul.bf16.gmra.mxu0 %v2278
        %v5181 = vpop.f32.mrf.mxu0
        %v5182 = vadd.f32 %v5169, %v5181
        %v5183 = vpop.f32.mrf.mxu0
        %5184 = vdwg.mxu0
        %5185 = vmatpush.bf16.msra.mxu0 %v4897
        %5186 = vmatpush.bf16.msra.mxu0 %v4891
        %5187 = vmatpush.bf16.msra.mxu0 %v4885
        %5188 = vmatpush.bf16.msra.mxu0 %v4879
        %5189 = vmatpush.bf16.msra.mxu0 %v4873
        %5190 = vmatpush.bf16.msra.mxu0 %v4867
        %5191 = vmatpush.bf16.msra.mxu0 %v4861
        %5192 = vmatpush.bf16.msra.mxu0 %v4855
        %5193 = vmatmul.bf16.gmra.mxu0 %v2279
        %v5194 = vpop.f32.mrf.mxu0
        %v5195 = vadd.f32 %v5182, %v5194
        %v5196 = vpop.f32.mrf.mxu0
        %5197 = vdwg.mxu0
        %5198 = vmatpush.bf16.msra.mxu0 %v4754
        %5199 = vmatpush.bf16.msra.mxu0 %v4748
        %5200 = vmatpush.bf16.msra.mxu0 %v4742
        %5201 = vmatpush.bf16.msra.mxu0 %v4736
        %5202 = vmatpush.bf16.msra.mxu0 %v4730
        %5203 = vmatpush.bf16.msra.mxu0 %v4724
        %5204 = vmatpush.bf16.msra.mxu0 %v4718
        %5205 = vmatpush.bf16.msra.mxu0 %v4712
        %5206 = vmatmul.bf16.gmra.mxu0 %v2276
        %v5207 = vpop.f32.mrf.mxu0
        %v5208 = vadd.f32 %v3975, %v5207
        %v5209 = vpop.f32.mrf.mxu0
        %5210 = vdwg.mxu0
        %5211 = vmatpush.bf16.msra.mxu0 %v4802
        %5212 = vmatpush.bf16.msra.mxu0 %v4796
        %5213 = vmatpush.bf16.msra.mxu0 %v4790
        %5214 = vmatpush.bf16.msra.mxu0 %v4784
        %5215 = vmatpush.bf16.msra.mxu0 %v4778
        %5216 = vmatpush.bf16.msra.mxu0 %v4772
        %5217 = vmatpush.bf16.msra.mxu0 %v4766
        %5218 = vmatpush.bf16.msra.mxu0 %v4760
        %5219 = vmatmul.bf16.gmra.mxu0 %v2277
        %v5220 = vpop.f32.mrf.mxu0
        %v5221 = vadd.f32 %v5208, %v5220
        %v5222 = vpop.f32.mrf.mxu0
        %5223 = vdwg.mxu0
        %5224 = vmatpush.bf16.msra.mxu0 %v4850
        %5225 = vmatpush.bf16.msra.mxu0 %v4844
        %5226 = vmatpush.bf16.msra.mxu0 %v4838
        %5227 = vmatpush.bf16.msra.mxu0 %v4832
        %5228 = vmatpush.bf16.msra.mxu0 %v4826
        %5229 = vmatpush.bf16.msra.mxu0 %v4820
        %5230 = vmatpush.bf16.msra.mxu0 %v4814
        %5231 = vmatpush.bf16.msra.mxu0 %v4808
        %5232 = vmatmul.bf16.gmra.mxu0 %v2278
        %v5233 = vpop.f32.mrf.mxu0
        %v5234 = vadd.f32 %v5221, %v5233
        %v5235 = vpop.f32.mrf.mxu0
        %5236 = vdwg.mxu0
        %5237 = vmatpush.bf16.msra.mxu0 %v4898
        %5238 = vmatpush.bf16.msra.mxu0 %v4892
        %5239 = vmatpush.bf16.msra.mxu0 %v4886
        %5240 = vmatpush.bf16.msra.mxu0 %v4880
        %5241 = vmatpush.bf16.msra.mxu0 %v4874
        %5242 = vmatpush.bf16.msra.mxu0 %v4868
        %5243 = vmatpush.bf16.msra.mxu0 %v4862
        %5244 = vmatpush.bf16.msra.mxu0 %v4856
        %5245 = vmatmul.bf16.gmra.mxu0 %v2279
        %v5246 = vpop.f32.mrf.mxu0
        %v5247 = vadd.f32 %v5234, %v5246
        %v5248 = vpop.f32.mrf.mxu0
        %5249 = vdwg.mxu0
        %5250 = vmatpush.bf16.msra.mxu0 %v4755
        %5251 = vmatpush.bf16.msra.mxu0 %v4749
        %5252 = vmatpush.bf16.msra.mxu0 %v4743
        %5253 = vmatpush.bf16.msra.mxu0 %v4737
        %5254 = vmatpush.bf16.msra.mxu0 %v4731
        %5255 = vmatpush.bf16.msra.mxu0 %v4725
        %5256 = vmatpush.bf16.msra.mxu0 %v4719
        %5257 = vmatpush.bf16.msra.mxu0 %v4713
        %5258 = vmatmul.bf16.gmra.mxu0 %v2276
        %v5259 = vpop.f32.mrf.mxu0
        %v5260 = vadd.f32 %v4027, %v5259
        %v5261 = vpop.f32.mrf.mxu0
        %5262 = vdwg.mxu0
        %5263 = vmatpush.bf16.msra.mxu0 %v4803
        %5264 = vmatpush.bf16.msra.mxu0 %v4797
        %5265 = vmatpush.bf16.msra.mxu0 %v4791
        %5266 = vmatpush.bf16.msra.mxu0 %v4785
        %5267 = vmatpush.bf16.msra.mxu0 %v4779
        %5268 = vmatpush.bf16.msra.mxu0 %v4773
        %5269 = vmatpush.bf16.msra.mxu0 %v4767
        %5270 = vmatpush.bf16.msra.mxu0 %v4761
        %5271 = vmatmul.bf16.gmra.mxu0 %v2277
        %v5272 = vpop.f32.mrf.mxu0
        %v5273 = vadd.f32 %v5260, %v5272
        %v5274 = vpop.f32.mrf.mxu0
        %5275 = vdwg.mxu0
        %5276 = vmatpush.bf16.msra.mxu0 %v4851
        %5277 = vmatpush.bf16.msra.mxu0 %v4845
        %5278 = vmatpush.bf16.msra.mxu0 %v4839
        %5279 = vmatpush.bf16.msra.mxu0 %v4833
        %5280 = vmatpush.bf16.msra.mxu0 %v4827
        %5281 = vmatpush.bf16.msra.mxu0 %v4821
        %5282 = vmatpush.bf16.msra.mxu0 %v4815
        %5283 = vmatpush.bf16.msra.mxu0 %v4809
        %5284 = vmatmul.bf16.gmra.mxu0 %v2278
        %v5285 = vpop.f32.mrf.mxu0
        %v5286 = vadd.f32 %v5273, %v5285
        %v5287 = vpop.f32.mrf.mxu0
        %5288 = vdwg.mxu0
        %5289 = vmatpush.bf16.msra.mxu0 %v4899
        %5290 = vmatpush.bf16.msra.mxu0 %v4893
        %5291 = vmatpush.bf16.msra.mxu0 %v4887
        %5292 = vmatpush.bf16.msra.mxu0 %v4881
        %5293 = vmatpush.bf16.msra.mxu0 %v4875
        %5294 = vmatpush.bf16.msra.mxu0 %v4869
        %5295 = vmatpush.bf16.msra.mxu0 %v4863
        %5296 = vmatpush.bf16.msra.mxu0 %v4857
        %5297 = vmatmul.bf16.gmra.mxu0 %v2279
        %v5298 = vpop.f32.mrf.mxu0
        %v5299 = vadd.f32 %v5286, %v5298
        %v5300 = vpop.f32.mrf.mxu0
        %5301 = vdwg.mxu0
        %5302 = vmatpush.bf16.msra.mxu0 %v4756
        %5303 = vmatpush.bf16.msra.mxu0 %v4750
        %5304 = vmatpush.bf16.msra.mxu0 %v4744
        %5305 = vmatpush.bf16.msra.mxu0 %v4738
        %5306 = vmatpush.bf16.msra.mxu0 %v4732
        %5307 = vmatpush.bf16.msra.mxu0 %v4726
        %5308 = vmatpush.bf16.msra.mxu0 %v4720
        %5309 = vmatpush.bf16.msra.mxu0 %v4714
        %5310 = vmatmul.bf16.gmra.mxu0 %v2276
        %v5311 = vpop.f32.mrf.mxu0
        %v5312 = vadd.f32 %v4079, %v5311
        %v5313 = vpop.f32.mrf.mxu0
        %5314 = vdwg.mxu0
        %5315 = vmatpush.bf16.msra.mxu0 %v4804
        %5316 = vmatpush.bf16.msra.mxu0 %v4798
        %5317 = vmatpush.bf16.msra.mxu0 %v4792
        %5318 = vmatpush.bf16.msra.mxu0 %v4786
        %5319 = vmatpush.bf16.msra.mxu0 %v4780
        %5320 = vmatpush.bf16.msra.mxu0 %v4774
        %5321 = vmatpush.bf16.msra.mxu0 %v4768
        %5322 = vmatpush.bf16.msra.mxu0 %v4762
        %5323 = vmatmul.bf16.gmra.mxu0 %v2277
        %v5324 = vpop.f32.mrf.mxu0
        %v5325 = vadd.f32 %v5312, %v5324
        %v5326 = vpop.f32.mrf.mxu0
        %5327 = vdwg.mxu0
        %5328 = vmatpush.bf16.msra.mxu0 %v4852
        %5329 = vmatpush.bf16.msra.mxu0 %v4846
        %5330 = vmatpush.bf16.msra.mxu0 %v4840
        %5331 = vmatpush.bf16.msra.mxu0 %v4834
        %5332 = vmatpush.bf16.msra.mxu0 %v4828
        %5333 = vmatpush.bf16.msra.mxu0 %v4822
        %5334 = vmatpush.bf16.msra.mxu0 %v4816
        %5335 = vmatpush.bf16.msra.mxu0 %v4810
        %5336 = vmatmul.bf16.gmra.mxu0 %v2278
        %v5337 = vpop.f32.mrf.mxu0
        %v5338 = vadd.f32 %v5325, %v5337
        %v5339 = vpop.f32.mrf.mxu0
        %5340 = vdwg.mxu0
        %5341 = vmatpush.bf16.msra.mxu0 %v4900
        %5342 = vmatpush.bf16.msra.mxu0 %v4894
        %5343 = vmatpush.bf16.msra.mxu0 %v4888
        %5344 = vmatpush.bf16.msra.mxu0 %v4882
        %5345 = vmatpush.bf16.msra.mxu0 %v4876
        %5346 = vmatpush.bf16.msra.mxu0 %v4870
        %5347 = vmatpush.bf16.msra.mxu0 %v4864
        %5348 = vmatpush.bf16.msra.mxu0 %v4858
        %5349 = vmatmul.bf16.gmra.mxu0 %v2279
        %v5350 = vpop.f32.mrf.mxu0
        %v5351 = vadd.f32 %v5338, %v5350
        %v5352 = vpop.f32.mrf.mxu0
        %5353 = vdwg.mxu0
        %5354 = vmatpush.bf16.msra.mxu0 %v4757
        %5355 = vmatpush.bf16.msra.mxu0 %v4751
        %5356 = vmatpush.bf16.msra.mxu0 %v4745
        %5357 = vmatpush.bf16.msra.mxu0 %v4739
        %5358 = vmatpush.bf16.msra.mxu0 %v4733
        %5359 = vmatpush.bf16.msra.mxu0 %v4727
        %5360 = vmatpush.bf16.msra.mxu0 %v4721
        %5361 = vmatpush.bf16.msra.mxu0 %v4715
        %5362 = vmatmul.bf16.gmra.mxu0 %v2276
        %v5363 = vpop.f32.mrf.mxu0
        %v5364 = vadd.f32 %v4131, %v5363
        %v5365 = vpop.f32.mrf.mxu0
        %5366 = vdwg.mxu0
        %5367 = vmatpush.bf16.msra.mxu0 %v4805
        %5368 = vmatpush.bf16.msra.mxu0 %v4799
        %5369 = vmatpush.bf16.msra.mxu0 %v4793
        %5370 = vmatpush.bf16.msra.mxu0 %v4787
        %5371 = vmatpush.bf16.msra.mxu0 %v4781
        %5372 = vmatpush.bf16.msra.mxu0 %v4775
        %5373 = vmatpush.bf16.msra.mxu0 %v4769
        %5374 = vmatpush.bf16.msra.mxu0 %v4763
        %5375 = vmatmul.bf16.gmra.mxu0 %v2277
        %v5376 = vpop.f32.mrf.mxu0
        %v5377 = vadd.f32 %v5364, %v5376
        %v5378 = vpop.f32.mrf.mxu0
        %5379 = vdwg.mxu0
        %5380 = vmatpush.bf16.msra.mxu0 %v4853
        %5381 = vmatpush.bf16.msra.mxu0 %v4847
        %5382 = vmatpush.bf16.msra.mxu0 %v4841
        %5383 = vmatpush.bf16.msra.mxu0 %v4835
        %5384 = vmatpush.bf16.msra.mxu0 %v4829
        %5385 = vmatpush.bf16.msra.mxu0 %v4823
        %5386 = vmatpush.bf16.msra.mxu0 %v4817
        %5387 = vmatpush.bf16.msra.mxu0 %v4811
        %5388 = vmatmul.bf16.gmra.mxu0 %v2278
        %v5389 = vpop.f32.mrf.mxu0
        %v5390 = vadd.f32 %v5377, %v5389
        %v5391 = vpop.f32.mrf.mxu0
        %5392 = vdwg.mxu0
        %5393 = vmatpush.bf16.msra.mxu0 %v4901
        %5394 = vmatpush.bf16.msra.mxu0 %v4895
        %5395 = vmatpush.bf16.msra.mxu0 %v4889
        %5396 = vmatpush.bf16.msra.mxu0 %v4883
        %5397 = vmatpush.bf16.msra.mxu0 %v4877
        %5398 = vmatpush.bf16.msra.mxu0 %v4871
        %5399 = vmatpush.bf16.msra.mxu0 %v4865
        %5400 = vmatpush.bf16.msra.mxu0 %v4859
        %5401 = vmatmul.bf16.gmra.mxu0 %v2279
        %v5402 = vpop.f32.mrf.mxu0
        %v5403 = vadd.f32 %v5390, %v5402
        %v5404 = vpop.f32.mrf.mxu0
        %5405 = vdwg.mxu0
        %v5407 = vshrl.u32 %v2276, 16
        %v5409 = vshll.u32 %v2276, 16
        %v5411 = vrot.slane %v5409, 1
        %v5412 = vor.u32 %v5407, %v5411
        %v5414 = vshrl.u32 %v2277, 16
        %v5416 = vshll.u32 %v2277, 16
        %v5418 = vrot.slane %v5416, 1
        %v5419 = vor.u32 %v5414, %v5418
        %v5421 = vshrl.u32 %v2278, 16
        %v5423 = vshll.u32 %v2278, 16
        %v5425 = vrot.slane %v5423, 1
        %v5426 = vor.u32 %v5421, %v5425
        %v5428 = vshrl.u32 %v2279, 16
        %v5430 = vshll.u32 %v2279, 16
        %v5432 = vrot.slane %v5430, 1
        %v5433 = vor.u32 %v5428, %v5432
        %v5630 = vunpack.c.l.b16 %v2670
        %v5631 = vunpack.c.h.b16 %v2670
        %v5632 = vunpack.c.l.b16 %v2671
        %v5633 = vunpack.c.h.b16 %v2671
        %v5634 = vunpack.c.l.b16 %v2672
        %v5635 = vunpack.c.h.b16 %v2672
        %v5636 = vunpack.c.l.b16 %v2673
        %v5637 = vunpack.c.h.b16 %v2673
        %v5638 = vunpack.c.l.b16 %v2674
        %v5639 = vunpack.c.h.b16 %v2674
        %v5640 = vunpack.c.l.b16 %v2675
        %v5641 = vunpack.c.h.b16 %v2675
        %v5642 = vunpack.c.l.b16 %v2676
        %v5643 = vunpack.c.h.b16 %v2676
        %v5644 = vunpack.c.l.b16 %v2677
        %v5645 = vunpack.c.h.b16 %v2677
        %v5646 = vunpack.c.l.b16 %v2678
        %v5647 = vunpack.c.h.b16 %v2678
        %v5648 = vunpack.c.l.b16 %v2679
        %v5649 = vunpack.c.h.b16 %v2679
        %v5650 = vunpack.c.l.b16 %v2680
        %v5651 = vunpack.c.h.b16 %v2680
        %v5652 = vunpack.c.l.b16 %v2681
        %v5653 = vunpack.c.h.b16 %v2681
        %v5654 = vunpack.c.l.b16 %v2682
        %v5655 = vunpack.c.h.b16 %v2682
        %v5656 = vunpack.c.l.b16 %v2683
        %v5657 = vunpack.c.h.b16 %v2683
        %v5658 = vunpack.c.l.b16 %v2684
        %v5659 = vunpack.c.h.b16 %v2684
        %v5660 = vunpack.c.l.b16 %v2685
        %v5661 = vunpack.c.h.b16 %v2685
        %v5662 = vunpack.c.l.b16 %v2686
        %v5663 = vunpack.c.h.b16 %v2686
        %v5664 = vunpack.c.l.b16 %v2687
        %v5665 = vunpack.c.h.b16 %v2687
        %v5666 = vunpack.c.l.b16 %v2688
        %v5667 = vunpack.c.h.b16 %v2688
        %v5668 = vunpack.c.l.b16 %v2689
        %v5669 = vunpack.c.h.b16 %v2689
        %v5670 = vunpack.c.l.b16 %v2690
        %v5671 = vunpack.c.h.b16 %v2690
        %v5672 = vunpack.c.l.b16 %v2691
        %v5673 = vunpack.c.h.b16 %v2691
        %v5674 = vunpack.c.l.b16 %v2692
        %v5675 = vunpack.c.h.b16 %v2692
        %v5676 = vunpack.c.l.b16 %v2693
        %v5677 = vunpack.c.h.b16 %v2693
        %v5678 = vunpack.c.l.b16 %v2694
        %v5679 = vunpack.c.h.b16 %v2694
        %v5680 = vunpack.c.l.b16 %v2695
        %v5681 = vunpack.c.h.b16 %v2695
        %v5682 = vunpack.c.l.b16 %v2696
        %v5683 = vunpack.c.h.b16 %v2696
        %v5684 = vunpack.c.l.b16 %v2697
        %v5685 = vunpack.c.h.b16 %v2697
        %v5686 = vunpack.c.l.b16 %v2698
        %v5687 = vunpack.c.h.b16 %v2698
        %v5688 = vunpack.c.l.b16 %v2699
        %v5689 = vunpack.c.h.b16 %v2699
        %v5690 = vunpack.c.l.b16 %v2700
        %v5691 = vunpack.c.h.b16 %v2700
        %v5692 = vunpack.c.l.b16 %v2701
        %v5693 = vunpack.c.h.b16 %v2701
        %v5694 = vunpack.c.l.b16 %v2702
        %v5695 = vunpack.c.h.b16 %v2702
        %v5696 = vunpack.c.l.b16 %v2703
        %v5697 = vunpack.c.h.b16 %v2703
        %v5698 = vunpack.c.l.b16 %v2704
        %v5699 = vunpack.c.h.b16 %v2704
        %v5700 = vunpack.c.l.b16 %v2705
        %v5701 = vunpack.c.h.b16 %v2705
        %v5702 = vunpack.c.l.b16 %v2706
        %v5703 = vunpack.c.h.b16 %v2706
        %v5704 = vunpack.c.l.b16 %v2707
        %v5705 = vunpack.c.h.b16 %v2707
        %v5706 = vunpack.c.l.b16 %v2708
        %v5707 = vunpack.c.h.b16 %v2708
        %v5708 = vunpack.c.l.b16 %v2709
        %v5709 = vunpack.c.h.b16 %v2709
        %v5710 = vunpack.c.l.b16 %v2710
        %v5711 = vunpack.c.h.b16 %v2710
        %v5712 = vunpack.c.l.b16 %v2711
        %v5713 = vunpack.c.h.b16 %v2711
        %v5714 = vunpack.c.l.b16 %v2712
        %v5715 = vunpack.c.h.b16 %v2712
        %v5716 = vunpack.c.l.b16 %v2713
        %v5717 = vunpack.c.h.b16 %v2713
        %v5718 = vunpack.c.l.b16 %v2714
        %v5719 = vunpack.c.h.b16 %v2714
        %v5720 = vunpack.c.l.b16 %v2715
        %v5721 = vunpack.c.h.b16 %v2715
        %v5722 = vunpack.c.l.b16 %v2716
        %v5723 = vunpack.c.h.b16 %v2716
        %v5724 = vunpack.c.l.b16 %v2717
        %v5725 = vunpack.c.h.b16 %v2717
        %v5726 = vunpack.c.l.b16 %v2718
        %v5727 = vunpack.c.h.b16 %v2718
        %v5728 = vunpack.c.l.b16 %v2719
        %v5729 = vunpack.c.h.b16 %v2719
        %v5730 = vunpack.c.l.b16 %v2720
        %v5731 = vunpack.c.h.b16 %v2720
        %v5732 = vunpack.c.l.b16 %v2721
        %v5733 = vunpack.c.h.b16 %v2721
        %v5734 = vunpack.c.l.b16 %v2722
        %v5735 = vunpack.c.h.b16 %v2722
        %v5736 = vunpack.c.l.b16 %v2723
        %v5737 = vunpack.c.h.b16 %v2723
        %v5738 = vunpack.c.l.b16 %v2724
        %v5739 = vunpack.c.h.b16 %v2724
        %v5740 = vunpack.c.l.b16 %v2725
        %v5741 = vunpack.c.h.b16 %v2725
        %v5742 = vunpack.c.l.b16 %v2726
        %v5743 = vunpack.c.h.b16 %v2726
        %v5744 = vunpack.c.l.b16 %v2727
        %v5745 = vunpack.c.h.b16 %v2727
        %v5746 = vunpack.c.l.b16 %v2728
        %v5747 = vunpack.c.h.b16 %v2728
        %v5748 = vunpack.c.l.b16 %v2729
        %v5749 = vunpack.c.h.b16 %v2729
        %v5750 = vunpack.c.l.b16 %v2730
        %v5751 = vunpack.c.h.b16 %v2730
        %v5752 = vunpack.c.l.b16 %v2731
        %v5753 = vunpack.c.h.b16 %v2731
        %v5754 = vunpack.c.l.b16 %v2732
        %v5755 = vunpack.c.h.b16 %v2732
        %v5756 = vunpack.c.l.b16 %v2733
        %v5757 = vunpack.c.h.b16 %v2733
        %v5758 = vunpack.c.l.b16 %v2734
        %v5759 = vunpack.c.h.b16 %v2734
        %v5760 = vunpack.c.l.b16 %v2735
        %v5761 = vunpack.c.h.b16 %v2735
        %v5762 = vunpack.c.l.b16 %v2736
        %v5763 = vunpack.c.h.b16 %v2736
        %v5764 = vunpack.c.l.b16 %v2737
        %v5765 = vunpack.c.h.b16 %v2737
        %v5766 = vunpack.c.l.b16 %v2738
        %v5767 = vunpack.c.h.b16 %v2738
        %v5768 = vunpack.c.l.b16 %v2739
        %v5769 = vunpack.c.h.b16 %v2739
        %v5770 = vunpack.c.l.b16 %v2740
        %v5771 = vunpack.c.h.b16 %v2740
        %v5772 = vunpack.c.l.b16 %v2741
        %v5773 = vunpack.c.h.b16 %v2741
        %v5774 = vunpack.c.l.b16 %v2742
        %v5775 = vunpack.c.h.b16 %v2742
        %v5776 = vunpack.c.l.b16 %v2743
        %v5777 = vunpack.c.h.b16 %v2743
        %v5778 = vunpack.c.l.b16 %v2744
        %v5779 = vunpack.c.h.b16 %v2744
        %v5780 = vunpack.c.l.b16 %v2745
        %v5781 = vunpack.c.h.b16 %v2745
        %v5782 = vunpack.c.l.b16 %v2746
        %v5783 = vunpack.c.h.b16 %v2746
        %v5784 = vunpack.c.l.b16 %v2747
        %v5785 = vunpack.c.h.b16 %v2747
        %v5786 = vunpack.c.l.b16 %v2748
        %v5787 = vunpack.c.h.b16 %v2748
        %v5788 = vunpack.c.l.b16 %v2749
        %v5789 = vunpack.c.h.b16 %v2749
        %v5790 = vunpack.c.l.b16 %v2750
        %v5791 = vunpack.c.h.b16 %v2750
        %v5792 = vunpack.c.l.b16 %v2751
        %v5793 = vunpack.c.h.b16 %v2751
        %v5794 = vunpack.c.l.b16 %v2752
        %v5795 = vunpack.c.h.b16 %v2752
        %v5796 = vunpack.c.l.b16 %v2753
        %v5797 = vunpack.c.h.b16 %v2753
        %v5798 = vunpack.c.l.b16 %v2754
        %v5799 = vunpack.c.h.b16 %v2754
        %v5800 = vunpack.c.l.b16 %v2755
        %v5801 = vunpack.c.h.b16 %v2755
        %v5802 = vunpack.c.l.b16 %v2756
        %v5803 = vunpack.c.h.b16 %v2756
        %v5804 = vunpack.c.l.b16 %v2757
        %v5805 = vunpack.c.h.b16 %v2757
        %v5806 = vunpack.c.l.b16 %v2758
        %v5807 = vunpack.c.h.b16 %v2758
        %v5808 = vunpack.c.l.b16 %v2759
        %v5809 = vunpack.c.h.b16 %v2759
        %v5810 = vunpack.c.l.b16 %v2760
        %v5811 = vunpack.c.h.b16 %v2760
        %v5812 = vunpack.c.l.b16 %v2761
        %v5813 = vunpack.c.h.b16 %v2761
        %v5814 = vunpack.c.l.b16 %v2762
        %v5815 = vunpack.c.h.b16 %v2762
        %v5816 = vunpack.c.l.b16 %v2763
        %v5817 = vunpack.c.h.b16 %v2763
        %v5818 = vunpack.c.l.b16 %v2764
        %v5819 = vunpack.c.h.b16 %v2764
        %v5820 = vunpack.c.l.b16 %v2765
        %v5821 = vunpack.c.h.b16 %v2765
        %v5822 = vunpack.c.l.b16 %v2766
        %v5823 = vunpack.c.h.b16 %v2766
        %v5824 = vunpack.c.l.b16 %v2767
        %v5825 = vunpack.c.h.b16 %v2767
        %v5826 = vunpack.c.l.b16 %v2768
        %v5827 = vunpack.c.h.b16 %v2768
        %v5828 = vunpack.c.l.b16 %v2769
        %v5829 = vunpack.c.h.b16 %v2769
        %v5830 = vunpack.c.l.b16 %v2770
        %v5831 = vunpack.c.h.b16 %v2770
        %v5832 = vunpack.c.l.b16 %v2771
        %v5833 = vunpack.c.h.b16 %v2771
        %v5834 = vunpack.c.l.b16 %v2772
        %v5835 = vunpack.c.h.b16 %v2772
        %v5836 = vunpack.c.l.b16 %v2773
        %v5837 = vunpack.c.h.b16 %v2773
        %v5838 = vunpack.c.l.b16 %v2774
        %v5839 = vunpack.c.h.b16 %v2774
        %v5840 = vunpack.c.l.b16 %v2775
        %v5841 = vunpack.c.h.b16 %v2775
        %v5842 = vunpack.c.l.b16 %v2776
        %v5843 = vunpack.c.h.b16 %v2776
        %v5844 = vunpack.c.l.b16 %v2777
        %v5845 = vunpack.c.h.b16 %v2777
        %v5846 = vunpack.c.l.b16 %v2778
        %v5847 = vunpack.c.h.b16 %v2778
        %v5848 = vunpack.c.l.b16 %v2779
        %v5849 = vunpack.c.h.b16 %v2779
        %v5850 = vunpack.c.l.b16 %v2780
        %v5851 = vunpack.c.h.b16 %v2780
        %v5852 = vunpack.c.l.b16 %v2781
        %v5853 = vunpack.c.h.b16 %v2781
        %v5854 = vunpack.c.l.b16 %v2782
        %v5855 = vunpack.c.h.b16 %v2782
        %v5856 = vunpack.c.l.b16 %v2783
        %v5857 = vunpack.c.h.b16 %v2783
        %v5858 = vunpack.c.l.b16 %v2784
        %v5859 = vunpack.c.h.b16 %v2784
        %v5860 = vunpack.c.l.b16 %v2785
        %v5861 = vunpack.c.h.b16 %v2785
        %v5862 = vunpack.c.l.b16 %v2786
        %v5863 = vunpack.c.h.b16 %v2786
        %v5864 = vunpack.c.l.b16 %v2787
        %v5865 = vunpack.c.h.b16 %v2787
        %v5866 = vunpack.c.l.b16 %v2788
        %v5867 = vunpack.c.h.b16 %v2788
        %v5868 = vunpack.c.l.b16 %v2789
        %v5869 = vunpack.c.h.b16 %v2789
        %v5870 = vunpack.c.l.b16 %v2790
        %v5871 = vunpack.c.h.b16 %v2790
        %v5872 = vunpack.c.l.b16 %v2791
        %v5873 = vunpack.c.h.b16 %v2791
        %v5874 = vunpack.c.l.b16 %v2792
        %v5875 = vunpack.c.h.b16 %v2792
        %v5876 = vunpack.c.l.b16 %v2793
        %v5877 = vunpack.c.h.b16 %v2793
        %v5878 = vunpack.c.l.b16 %v2794
        %v5879 = vunpack.c.h.b16 %v2794
        %v5880 = vunpack.c.l.b16 %v2795
        %v5881 = vunpack.c.h.b16 %v2795
        %v5882 = vunpack.c.l.b16 %v2796
        %v5883 = vunpack.c.h.b16 %v2796
        %v5884 = vunpack.c.l.b16 %v2797
        %v5885 = vunpack.c.h.b16 %v2797
        %v5886 = vunpack.c.l.b16 %v2798
        %v5887 = vunpack.c.h.b16 %v2798
        %v5888 = vunpack.c.l.b16 %v2799
        %v5889 = vunpack.c.h.b16 %v2799
        %v5890 = vunpack.c.l.b16 %v2800
        %v5891 = vunpack.c.h.b16 %v2800
        %v5892 = vunpack.c.l.b16 %v2801
        %v5893 = vunpack.c.h.b16 %v2801
        %v5894 = vunpack.c.l.b16 %v2802
        %v5895 = vunpack.c.h.b16 %v2802
        %v5896 = vunpack.c.l.b16 %v2803
        %v5897 = vunpack.c.h.b16 %v2803
        %v5898 = vunpack.c.l.b16 %v2804
        %v5899 = vunpack.c.h.b16 %v2804
        %v5900 = vunpack.c.l.b16 %v2805
        %v5901 = vunpack.c.h.b16 %v2805
        %v5902 = vunpack.c.l.b16 %v2806
        %v5903 = vunpack.c.h.b16 %v2806
        %v5904 = vunpack.c.l.b16 %v2807
        %v5905 = vunpack.c.h.b16 %v2807
        %v5906 = vunpack.c.l.b16 %v2808
        %v5907 = vunpack.c.h.b16 %v2808
        %v5908 = vunpack.c.l.b16 %v2809
        %v5909 = vunpack.c.h.b16 %v2809
        %v5910 = vunpack.c.l.b16 %v2810
        %v5911 = vunpack.c.h.b16 %v2810
        %v5912 = vunpack.c.l.b16 %v2811
        %v5913 = vunpack.c.h.b16 %v2811
        %v5914 = vunpack.c.l.b16 %v2812
        %v5915 = vunpack.c.h.b16 %v2812
        %v5916 = vunpack.c.l.b16 %v2813
        %v5917 = vunpack.c.h.b16 %v2813
        %v5918 = vunpack.c.l.b16 %v2814
        %v5919 = vunpack.c.h.b16 %v2814
        %v5920 = vunpack.c.l.b16 %v2815
        %v5921 = vunpack.c.h.b16 %v2815
        %v5922 = vunpack.c.l.b16 %v2816
        %v5923 = vunpack.c.h.b16 %v2816
        %v5924 = vunpack.c.l.b16 %v2817
        %v5925 = vunpack.c.h.b16 %v2817
        %v5926 = vunpack.c.l.b16 %v2818
        %v5927 = vunpack.c.h.b16 %v2818
        %v5928 = vunpack.c.l.b16 %v2819
        %v5929 = vunpack.c.h.b16 %v2819
        %v5930 = vunpack.c.l.b16 %v2820
        %v5931 = vunpack.c.h.b16 %v2820
        %v5932 = vunpack.c.l.b16 %v2821
        %v5933 = vunpack.c.h.b16 %v2821
        %v5934 = vunpack.c.l.b16 %v2822
        %v5935 = vunpack.c.h.b16 %v2822
        %v5936 = vunpack.c.l.b16 %v2823
        %v5937 = vunpack.c.h.b16 %v2823
        %v5938 = vunpack.c.l.b16 %v2824
        %v5939 = vunpack.c.h.b16 %v2824
        %v5940 = vunpack.c.l.b16 %v2825
        %v5941 = vunpack.c.h.b16 %v2825
        %v5942 = vunpack.c.l.b16 %v2826
        %v5943 = vunpack.c.h.b16 %v2826
        %v5944 = vunpack.c.l.b16 %v2827
        %v5945 = vunpack.c.h.b16 %v2827
        %v5946 = vunpack.c.l.b16 %v2828
        %v5947 = vunpack.c.h.b16 %v2828
        %v5948 = vunpack.c.l.b16 %v2829
        %v5949 = vunpack.c.h.b16 %v2829
        %v5950 = vunpack.c.l.b16 %v2830
        %v5951 = vunpack.c.h.b16 %v2830
        %v5952 = vunpack.c.l.b16 %v2831
        %v5953 = vunpack.c.h.b16 %v2831
        %v5954 = vunpack.c.l.b16 %v2832
        %v5955 = vunpack.c.h.b16 %v2832
        %v5956 = vunpack.c.l.b16 %v2833
        %v5957 = vunpack.c.h.b16 %v2833
        %v5958 = vunpack.c.l.b16 %v2834
        %v5959 = vunpack.c.h.b16 %v2834
        %v5960 = vunpack.c.l.b16 %v2835
        %v5961 = vunpack.c.h.b16 %v2835
        %v5962 = vunpack.c.l.b16 %v2836
        %v5963 = vunpack.c.h.b16 %v2836
        %v5964 = vunpack.c.l.b16 %v2837
        %v5965 = vunpack.c.h.b16 %v2837
        %v5966 = vunpack.c.l.b16 %v2838
        %v5967 = vunpack.c.h.b16 %v2838
        %v5968 = vunpack.c.l.b16 %v2839
        %v5969 = vunpack.c.h.b16 %v2839
        %v5970 = vunpack.c.l.b16 %v2840
        %v5971 = vunpack.c.h.b16 %v2840
        %v5972 = vunpack.c.l.b16 %v2841
        %v5973 = vunpack.c.h.b16 %v2841
        %v5974 = vunpack.c.l.b16 %v2842
        %v5975 = vunpack.c.h.b16 %v2842
        %v5976 = vunpack.c.l.b16 %v2843
        %v5977 = vunpack.c.h.b16 %v2843
        %v5978 = vunpack.c.l.b16 %v2844
        %v5979 = vunpack.c.h.b16 %v2844
        %v5980 = vunpack.c.l.b16 %v2845
        %v5981 = vunpack.c.h.b16 %v2845
        %v5982 = vunpack.c.l.b16 %v2846
        %v5983 = vunpack.c.h.b16 %v2846
        %v5984 = vunpack.c.l.b16 %v2847
        %v5985 = vunpack.c.h.b16 %v2847
        %v5986 = vunpack.c.l.b16 %v2848
        %v5987 = vunpack.c.h.b16 %v2848
        %v5988 = vunpack.c.l.b16 %v2849
        %v5989 = vunpack.c.h.b16 %v2849
        %v5990 = vunpack.c.l.b16 %v2850
        %v5991 = vunpack.c.h.b16 %v2850
        %v5992 = vunpack.c.l.b16 %v2851
        %v5993 = vunpack.c.h.b16 %v2851
        %v5994 = vunpack.c.l.b16 %v2852
        %v5995 = vunpack.c.h.b16 %v2852
        %v5996 = vunpack.c.l.b16 %v2853
        %v5997 = vunpack.c.h.b16 %v2853
        %v5998 = vunpack.c.l.b16 %v2854
        %v5999 = vunpack.c.h.b16 %v2854
        %v6000 = vunpack.c.l.b16 %v2855
        %v6001 = vunpack.c.h.b16 %v2855
        %v6002 = vunpack.c.l.b16 %v2856
        %v6003 = vunpack.c.h.b16 %v2856
        %v6004 = vunpack.c.l.b16 %v2857
        %v6005 = vunpack.c.h.b16 %v2857
        %v6006 = vunpack.c.l.b16 %v2858
        %v6007 = vunpack.c.h.b16 %v2858
        %v6008 = vunpack.c.l.b16 %v2859
        %v6009 = vunpack.c.h.b16 %v2859
        %v6010 = vunpack.c.l.b16 %v2860
        %v6011 = vunpack.c.h.b16 %v2860
        %v6012 = vunpack.c.l.b16 %v2861
        %v6013 = vunpack.c.h.b16 %v2861
        %v6014 = vpack.c.b16 %v5636, %v5630
        %v6015 = vpack.c.b16 %v5637, %v5631
        %v6016 = vpack.c.b16 %v5638, %v5632
        %v6017 = vpack.c.b16 %v5639, %v5633
        %v6018 = vpack.c.b16 %v5640, %v5634
        %v6019 = vpack.c.b16 %v5641, %v5635
        %v6020 = vpack.c.b16 %v5648, %v5642
        %v6021 = vpack.c.b16 %v5649, %v5643
        %v6022 = vpack.c.b16 %v5650, %v5644
        %v6023 = vpack.c.b16 %v5651, %v5645
        %v6024 = vpack.c.b16 %v5652, %v5646
        %v6025 = vpack.c.b16 %v5653, %v5647
        %v6026 = vpack.c.b16 %v5660, %v5654
        %v6027 = vpack.c.b16 %v5661, %v5655
        %v6028 = vpack.c.b16 %v5662, %v5656
        %v6029 = vpack.c.b16 %v5663, %v5657
        %v6030 = vpack.c.b16 %v5664, %v5658
        %v6031 = vpack.c.b16 %v5665, %v5659
        %v6032 = vpack.c.b16 %v5672, %v5666
        %v6033 = vpack.c.b16 %v5673, %v5667
        %v6034 = vpack.c.b16 %v5674, %v5668
        %v6035 = vpack.c.b16 %v5675, %v5669
        %v6036 = vpack.c.b16 %v5676, %v5670
        %v6037 = vpack.c.b16 %v5677, %v5671
        %v6038 = vpack.c.b16 %v5684, %v5678
        %v6039 = vpack.c.b16 %v5685, %v5679
        %v6040 = vpack.c.b16 %v5686, %v5680
        %v6041 = vpack.c.b16 %v5687, %v5681
        %v6042 = vpack.c.b16 %v5688, %v5682
        %v6043 = vpack.c.b16 %v5689, %v5683
        %v6044 = vpack.c.b16 %v5696, %v5690
        %v6045 = vpack.c.b16 %v5697, %v5691
        %v6046 = vpack.c.b16 %v5698, %v5692
        %v6047 = vpack.c.b16 %v5699, %v5693
        %v6048 = vpack.c.b16 %v5700, %v5694
        %v6049 = vpack.c.b16 %v5701, %v5695
        %v6050 = vpack.c.b16 %v5708, %v5702
        %v6051 = vpack.c.b16 %v5709, %v5703
        %v6052 = vpack.c.b16 %v5710, %v5704
        %v6053 = vpack.c.b16 %v5711, %v5705
        %v6054 = vpack.c.b16 %v5712, %v5706
        %v6055 = vpack.c.b16 %v5713, %v5707
        %v6056 = vpack.c.b16 %v5720, %v5714
        %v6057 = vpack.c.b16 %v5721, %v5715
        %v6058 = vpack.c.b16 %v5722, %v5716
        %v6059 = vpack.c.b16 %v5723, %v5717
        %v6060 = vpack.c.b16 %v5724, %v5718
        %v6061 = vpack.c.b16 %v5725, %v5719
        %v6062 = vpack.c.b16 %v5732, %v5726
        %v6063 = vpack.c.b16 %v5733, %v5727
        %v6064 = vpack.c.b16 %v5734, %v5728
        %v6065 = vpack.c.b16 %v5735, %v5729
        %v6066 = vpack.c.b16 %v5736, %v5730
        %v6067 = vpack.c.b16 %v5737, %v5731
        %v6068 = vpack.c.b16 %v5744, %v5738
        %v6069 = vpack.c.b16 %v5745, %v5739
        %v6070 = vpack.c.b16 %v5746, %v5740
        %v6071 = vpack.c.b16 %v5747, %v5741
        %v6072 = vpack.c.b16 %v5748, %v5742
        %v6073 = vpack.c.b16 %v5749, %v5743
        %v6074 = vpack.c.b16 %v5756, %v5750
        %v6075 = vpack.c.b16 %v5757, %v5751
        %v6076 = vpack.c.b16 %v5758, %v5752
        %v6077 = vpack.c.b16 %v5759, %v5753
        %v6078 = vpack.c.b16 %v5760, %v5754
        %v6079 = vpack.c.b16 %v5761, %v5755
        %v6080 = vpack.c.b16 %v5768, %v5762
        %v6081 = vpack.c.b16 %v5769, %v5763
        %v6082 = vpack.c.b16 %v5770, %v5764
        %v6083 = vpack.c.b16 %v5771, %v5765
        %v6084 = vpack.c.b16 %v5772, %v5766
        %v6085 = vpack.c.b16 %v5773, %v5767
        %v6086 = vpack.c.b16 %v5780, %v5774
        %v6087 = vpack.c.b16 %v5781, %v5775
        %v6088 = vpack.c.b16 %v5782, %v5776
        %v6089 = vpack.c.b16 %v5783, %v5777
        %v6090 = vpack.c.b16 %v5784, %v5778
        %v6091 = vpack.c.b16 %v5785, %v5779
        %v6092 = vpack.c.b16 %v5792, %v5786
        %v6093 = vpack.c.b16 %v5793, %v5787
        %v6094 = vpack.c.b16 %v5794, %v5788
        %v6095 = vpack.c.b16 %v5795, %v5789
        %v6096 = vpack.c.b16 %v5796, %v5790
        %v6097 = vpack.c.b16 %v5797, %v5791
        %v6098 = vpack.c.b16 %v5804, %v5798
        %v6099 = vpack.c.b16 %v5805, %v5799
        %v6100 = vpack.c.b16 %v5806, %v5800
        %v6101 = vpack.c.b16 %v5807, %v5801
        %v6102 = vpack.c.b16 %v5808, %v5802
        %v6103 = vpack.c.b16 %v5809, %v5803
        %v6104 = vpack.c.b16 %v5816, %v5810
        %v6105 = vpack.c.b16 %v5817, %v5811
        %v6106 = vpack.c.b16 %v5818, %v5812
        %v6107 = vpack.c.b16 %v5819, %v5813
        %v6108 = vpack.c.b16 %v5820, %v5814
        %v6109 = vpack.c.b16 %v5821, %v5815
        %v6110 = vpack.c.b16 %v5828, %v5822
        %v6111 = vpack.c.b16 %v5829, %v5823
        %v6112 = vpack.c.b16 %v5830, %v5824
        %v6113 = vpack.c.b16 %v5831, %v5825
        %v6114 = vpack.c.b16 %v5832, %v5826
        %v6115 = vpack.c.b16 %v5833, %v5827
        %v6116 = vpack.c.b16 %v5840, %v5834
        %v6117 = vpack.c.b16 %v5841, %v5835
        %v6118 = vpack.c.b16 %v5842, %v5836
        %v6119 = vpack.c.b16 %v5843, %v5837
        %v6120 = vpack.c.b16 %v5844, %v5838
        %v6121 = vpack.c.b16 %v5845, %v5839
        %v6122 = vpack.c.b16 %v5852, %v5846
        %v6123 = vpack.c.b16 %v5853, %v5847
        %v6124 = vpack.c.b16 %v5854, %v5848
        %v6125 = vpack.c.b16 %v5855, %v5849
        %v6126 = vpack.c.b16 %v5856, %v5850
        %v6127 = vpack.c.b16 %v5857, %v5851
        %v6128 = vpack.c.b16 %v5864, %v5858
        %v6129 = vpack.c.b16 %v5865, %v5859
        %v6130 = vpack.c.b16 %v5866, %v5860
        %v6131 = vpack.c.b16 %v5867, %v5861
        %v6132 = vpack.c.b16 %v5868, %v5862
        %v6133 = vpack.c.b16 %v5869, %v5863
        %v6134 = vpack.c.b16 %v5876, %v5870
        %v6135 = vpack.c.b16 %v5877, %v5871
        %v6136 = vpack.c.b16 %v5878, %v5872
        %v6137 = vpack.c.b16 %v5879, %v5873
        %v6138 = vpack.c.b16 %v5880, %v5874
        %v6139 = vpack.c.b16 %v5881, %v5875
        %v6140 = vpack.c.b16 %v5888, %v5882
        %v6141 = vpack.c.b16 %v5889, %v5883
        %v6142 = vpack.c.b16 %v5890, %v5884
        %v6143 = vpack.c.b16 %v5891, %v5885
        %v6144 = vpack.c.b16 %v5892, %v5886
        %v6145 = vpack.c.b16 %v5893, %v5887
        %v6146 = vpack.c.b16 %v5900, %v5894
        %v6147 = vpack.c.b16 %v5901, %v5895
        %v6148 = vpack.c.b16 %v5902, %v5896
        %v6149 = vpack.c.b16 %v5903, %v5897
        %v6150 = vpack.c.b16 %v5904, %v5898
        %v6151 = vpack.c.b16 %v5905, %v5899
        %v6152 = vpack.c.b16 %v5912, %v5906
        %v6153 = vpack.c.b16 %v5913, %v5907
        %v6154 = vpack.c.b16 %v5914, %v5908
        %v6155 = vpack.c.b16 %v5915, %v5909
        %v6156 = vpack.c.b16 %v5916, %v5910
        %v6157 = vpack.c.b16 %v5917, %v5911
        %v6158 = vpack.c.b16 %v5924, %v5918
        %v6159 = vpack.c.b16 %v5925, %v5919
        %v6160 = vpack.c.b16 %v5926, %v5920
        %v6161 = vpack.c.b16 %v5927, %v5921
        %v6162 = vpack.c.b16 %v5928, %v5922
        %v6163 = vpack.c.b16 %v5929, %v5923
        %v6164 = vpack.c.b16 %v5936, %v5930
        %v6165 = vpack.c.b16 %v5937, %v5931
        %v6166 = vpack.c.b16 %v5938, %v5932
        %v6167 = vpack.c.b16 %v5939, %v5933
        %v6168 = vpack.c.b16 %v5940, %v5934
        %v6169 = vpack.c.b16 %v5941, %v5935
        %v6170 = vpack.c.b16 %v5948, %v5942
        %v6171 = vpack.c.b16 %v5949, %v5943
        %v6172 = vpack.c.b16 %v5950, %v5944
        %v6173 = vpack.c.b16 %v5951, %v5945
        %v6174 = vpack.c.b16 %v5952, %v5946
        %v6175 = vpack.c.b16 %v5953, %v5947
        %v6176 = vpack.c.b16 %v5960, %v5954
        %v6177 = vpack.c.b16 %v5961, %v5955
        %v6178 = vpack.c.b16 %v5962, %v5956
        %v6179 = vpack.c.b16 %v5963, %v5957
        %v6180 = vpack.c.b16 %v5964, %v5958
        %v6181 = vpack.c.b16 %v5965, %v5959
        %v6182 = vpack.c.b16 %v5972, %v5966
        %v6183 = vpack.c.b16 %v5973, %v5967
        %v6184 = vpack.c.b16 %v5974, %v5968
        %v6185 = vpack.c.b16 %v5975, %v5969
        %v6186 = vpack.c.b16 %v5976, %v5970
        %v6187 = vpack.c.b16 %v5977, %v5971
        %v6188 = vpack.c.b16 %v5984, %v5978
        %v6189 = vpack.c.b16 %v5985, %v5979
        %v6190 = vpack.c.b16 %v5986, %v5980
        %v6191 = vpack.c.b16 %v5987, %v5981
        %v6192 = vpack.c.b16 %v5988, %v5982
        %v6193 = vpack.c.b16 %v5989, %v5983
        %v6194 = vpack.c.b16 %v5996, %v5990
        %v6195 = vpack.c.b16 %v5997, %v5991
        %v6196 = vpack.c.b16 %v5998, %v5992
        %v6197 = vpack.c.b16 %v5999, %v5993
        %v6198 = vpack.c.b16 %v6000, %v5994
        %v6199 = vpack.c.b16 %v6001, %v5995
        %v6200 = vpack.c.b16 %v6008, %v6002
        %v6201 = vpack.c.b16 %v6009, %v6003
        %v6202 = vpack.c.b16 %v6010, %v6004
        %v6203 = vpack.c.b16 %v6011, %v6005
        %v6204 = vpack.c.b16 %v6012, %v6006
        %v6205 = vpack.c.b16 %v6013, %v6007
        %6398 = vmatpush.bf16.msra.mxu0 %v6056
        %6399 = vmatpush.bf16.msra.mxu0 %v6050
        %6400 = vmatpush.bf16.msra.mxu0 %v6044
        %6401 = vmatpush.bf16.msra.mxu0 %v6038
        %6402 = vmatpush.bf16.msra.mxu0 %v6032
        %6403 = vmatpush.bf16.msra.mxu0 %v6026
        %6404 = vmatpush.bf16.msra.mxu0 %v6020
        %6405 = vmatpush.bf16.msra.mxu0 %v6014
        %6406 = vmatmul.bf16.gmra.mxu0 %v5412
        %v6407 = vpop.f32.mrf.mxu0
        %v6408 = vadd.f32 0.0, %v6407
        %v6409 = vpop.f32.mrf.mxu0
        %6410 = vdwg.mxu0
        %6411 = vmatpush.bf16.msra.mxu0 %v6104
        %6412 = vmatpush.bf16.msra.mxu0 %v6098
        %6413 = vmatpush.bf16.msra.mxu0 %v6092
        %6414 = vmatpush.bf16.msra.mxu0 %v6086
        %6415 = vmatpush.bf16.msra.mxu0 %v6080
        %6416 = vmatpush.bf16.msra.mxu0 %v6074
        %6417 = vmatpush.bf16.msra.mxu0 %v6068
        %6418 = vmatpush.bf16.msra.mxu0 %v6062
        %6419 = vmatmul.bf16.gmra.mxu0 %v5419
        %v6420 = vpop.f32.mrf.mxu0
        %v6421 = vadd.f32 %v6408, %v6420
        %v6422 = vpop.f32.mrf.mxu0
        %6423 = vdwg.mxu0
        %6424 = vmatpush.bf16.msra.mxu0 %v6152
        %6425 = vmatpush.bf16.msra.mxu0 %v6146
        %6426 = vmatpush.bf16.msra.mxu0 %v6140
        %6427 = vmatpush.bf16.msra.mxu0 %v6134
        %6428 = vmatpush.bf16.msra.mxu0 %v6128
        %6429 = vmatpush.bf16.msra.mxu0 %v6122
        %6430 = vmatpush.bf16.msra.mxu0 %v6116
        %6431 = vmatpush.bf16.msra.mxu0 %v6110
        %6432 = vmatmul.bf16.gmra.mxu0 %v5426
        %v6433 = vpop.f32.mrf.mxu0
        %v6434 = vadd.f32 %v6421, %v6433
        %v6435 = vpop.f32.mrf.mxu0
        %6436 = vdwg.mxu0
        %6437 = vmatpush.bf16.msra.mxu0 %v6200
        %6438 = vmatpush.bf16.msra.mxu0 %v6194
        %6439 = vmatpush.bf16.msra.mxu0 %v6188
        %6440 = vmatpush.bf16.msra.mxu0 %v6182
        %6441 = vmatpush.bf16.msra.mxu0 %v6176
        %6442 = vmatpush.bf16.msra.mxu0 %v6170
        %6443 = vmatpush.bf16.msra.mxu0 %v6164
        %6444 = vmatpush.bf16.msra.mxu0 %v6158
        %6445 = vmatmul.bf16.gmra.mxu0 %v5433
        %v6446 = vpop.f32.mrf.mxu0
        %v6447 = vadd.f32 %v6434, %v6446
        %v6448 = vpop.f32.mrf.mxu0
        %6449 = vdwg.mxu0
        %6450 = vmatpush.bf16.msra.mxu0 %v6057
        %6451 = vmatpush.bf16.msra.mxu0 %v6051
        %6452 = vmatpush.bf16.msra.mxu0 %v6045
        %6453 = vmatpush.bf16.msra.mxu0 %v6039
        %6454 = vmatpush.bf16.msra.mxu0 %v6033
        %6455 = vmatpush.bf16.msra.mxu0 %v6027
        %6456 = vmatpush.bf16.msra.mxu0 %v6021
        %6457 = vmatpush.bf16.msra.mxu0 %v6015
        %6458 = vmatmul.bf16.gmra.mxu0 %v5412
        %v6459 = vpop.f32.mrf.mxu0
        %v6460 = vadd.f32 0.0, %v6459
        %v6461 = vpop.f32.mrf.mxu0
        %6462 = vdwg.mxu0
        %6463 = vmatpush.bf16.msra.mxu0 %v6105
        %6464 = vmatpush.bf16.msra.mxu0 %v6099
        %6465 = vmatpush.bf16.msra.mxu0 %v6093
        %6466 = vmatpush.bf16.msra.mxu0 %v6087
        %6467 = vmatpush.bf16.msra.mxu0 %v6081
        %6468 = vmatpush.bf16.msra.mxu0 %v6075
        %6469 = vmatpush.bf16.msra.mxu0 %v6069
        %6470 = vmatpush.bf16.msra.mxu0 %v6063
        %6471 = vmatmul.bf16.gmra.mxu0 %v5419
        %v6472 = vpop.f32.mrf.mxu0
        %v6473 = vadd.f32 %v6460, %v6472
        %v6474 = vpop.f32.mrf.mxu0
        %6475 = vdwg.mxu0
        %6476 = vmatpush.bf16.msra.mxu0 %v6153
        %6477 = vmatpush.bf16.msra.mxu0 %v6147
        %6478 = vmatpush.bf16.msra.mxu0 %v6141
        %6479 = vmatpush.bf16.msra.mxu0 %v6135
        %6480 = vmatpush.bf16.msra.mxu0 %v6129
        %6481 = vmatpush.bf16.msra.mxu0 %v6123
        %6482 = vmatpush.bf16.msra.mxu0 %v6117
        %6483 = vmatpush.bf16.msra.mxu0 %v6111
        %6484 = vmatmul.bf16.gmra.mxu0 %v5426
        %v6485 = vpop.f32.mrf.mxu0
        %v6486 = vadd.f32 %v6473, %v6485
        %v6487 = vpop.f32.mrf.mxu0
        %6488 = vdwg.mxu0
        %6489 = vmatpush.bf16.msra.mxu0 %v6201
        %6490 = vmatpush.bf16.msra.mxu0 %v6195
        %6491 = vmatpush.bf16.msra.mxu0 %v6189
        %6492 = vmatpush.bf16.msra.mxu0 %v6183
        %6493 = vmatpush.bf16.msra.mxu0 %v6177
        %6494 = vmatpush.bf16.msra.mxu0 %v6171
        %6495 = vmatpush.bf16.msra.mxu0 %v6165
        %6496 = vmatpush.bf16.msra.mxu0 %v6159
        %6497 = vmatmul.bf16.gmra.mxu0 %v5433
        %v6498 = vpop.f32.mrf.mxu0
        %v6499 = vadd.f32 %v6486, %v6498
        %v6500 = vpop.f32.mrf.mxu0
        %6501 = vdwg.mxu0
        %6502 = vmatpush.bf16.msra.mxu0 %v6058
        %6503 = vmatpush.bf16.msra.mxu0 %v6052
        %6504 = vmatpush.bf16.msra.mxu0 %v6046
        %6505 = vmatpush.bf16.msra.mxu0 %v6040
        %6506 = vmatpush.bf16.msra.mxu0 %v6034
        %6507 = vmatpush.bf16.msra.mxu0 %v6028
        %6508 = vmatpush.bf16.msra.mxu0 %v6022
        %6509 = vmatpush.bf16.msra.mxu0 %v6016
        %6510 = vmatmul.bf16.gmra.mxu0 %v5412
        %v6511 = vpop.f32.mrf.mxu0
        %v6512 = vadd.f32 0.0, %v6511
        %v6513 = vpop.f32.mrf.mxu0
        %6514 = vdwg.mxu0
        %6515 = vmatpush.bf16.msra.mxu0 %v6106
        %6516 = vmatpush.bf16.msra.mxu0 %v6100
        %6517 = vmatpush.bf16.msra.mxu0 %v6094
        %6518 = vmatpush.bf16.msra.mxu0 %v6088
        %6519 = vmatpush.bf16.msra.mxu0 %v6082
        %6520 = vmatpush.bf16.msra.mxu0 %v6076
        %6521 = vmatpush.bf16.msra.mxu0 %v6070
        %6522 = vmatpush.bf16.msra.mxu0 %v6064
        %6523 = vmatmul.bf16.gmra.mxu0 %v5419
        %v6524 = vpop.f32.mrf.mxu0
        %v6525 = vadd.f32 %v6512, %v6524
        %v6526 = vpop.f32.mrf.mxu0
        %6527 = vdwg.mxu0
        %6528 = vmatpush.bf16.msra.mxu0 %v6154
        %6529 = vmatpush.bf16.msra.mxu0 %v6148
        %6530 = vmatpush.bf16.msra.mxu0 %v6142
        %6531 = vmatpush.bf16.msra.mxu0 %v6136
        %6532 = vmatpush.bf16.msra.mxu0 %v6130
        %6533 = vmatpush.bf16.msra.mxu0 %v6124
        %6534 = vmatpush.bf16.msra.mxu0 %v6118
        %6535 = vmatpush.bf16.msra.mxu0 %v6112
        %6536 = vmatmul.bf16.gmra.mxu0 %v5426
        %v6537 = vpop.f32.mrf.mxu0
        %v6538 = vadd.f32 %v6525, %v6537
        %v6539 = vpop.f32.mrf.mxu0
        %6540 = vdwg.mxu0
        %6541 = vmatpush.bf16.msra.mxu0 %v6202
        %6542 = vmatpush.bf16.msra.mxu0 %v6196
        %6543 = vmatpush.bf16.msra.mxu0 %v6190
        %6544 = vmatpush.bf16.msra.mxu0 %v6184
        %6545 = vmatpush.bf16.msra.mxu0 %v6178
        %6546 = vmatpush.bf16.msra.mxu0 %v6172
        %6547 = vmatpush.bf16.msra.mxu0 %v6166
        %6548 = vmatpush.bf16.msra.mxu0 %v6160
        %6549 = vmatmul.bf16.gmra.mxu0 %v5433
        %v6550 = vpop.f32.mrf.mxu0
        %v6551 = vadd.f32 %v6538, %v6550
        %v6552 = vpop.f32.mrf.mxu0
        %6553 = vdwg.mxu0
        %6554 = vmatpush.bf16.msra.mxu0 %v6059
        %6555 = vmatpush.bf16.msra.mxu0 %v6053
        %6556 = vmatpush.bf16.msra.mxu0 %v6047
        %6557 = vmatpush.bf16.msra.mxu0 %v6041
        %6558 = vmatpush.bf16.msra.mxu0 %v6035
        %6559 = vmatpush.bf16.msra.mxu0 %v6029
        %6560 = vmatpush.bf16.msra.mxu0 %v6023
        %6561 = vmatpush.bf16.msra.mxu0 %v6017
        %6562 = vmatmul.bf16.gmra.mxu0 %v5412
        %v6563 = vpop.f32.mrf.mxu0
        %v6564 = vadd.f32 0.0, %v6563
        %v6565 = vpop.f32.mrf.mxu0
        %6566 = vdwg.mxu0
        %6567 = vmatpush.bf16.msra.mxu0 %v6107
        %6568 = vmatpush.bf16.msra.mxu0 %v6101
        %6569 = vmatpush.bf16.msra.mxu0 %v6095
        %6570 = vmatpush.bf16.msra.mxu0 %v6089
        %6571 = vmatpush.bf16.msra.mxu0 %v6083
        %6572 = vmatpush.bf16.msra.mxu0 %v6077
        %6573 = vmatpush.bf16.msra.mxu0 %v6071
        %6574 = vmatpush.bf16.msra.mxu0 %v6065
        %6575 = vmatmul.bf16.gmra.mxu0 %v5419
        %v6576 = vpop.f32.mrf.mxu0
        %v6577 = vadd.f32 %v6564, %v6576
        %v6578 = vpop.f32.mrf.mxu0
        %6579 = vdwg.mxu0
        %6580 = vmatpush.bf16.msra.mxu0 %v6155
        %6581 = vmatpush.bf16.msra.mxu0 %v6149
        %6582 = vmatpush.bf16.msra.mxu0 %v6143
        %6583 = vmatpush.bf16.msra.mxu0 %v6137
        %6584 = vmatpush.bf16.msra.mxu0 %v6131
        %6585 = vmatpush.bf16.msra.mxu0 %v6125
        %6586 = vmatpush.bf16.msra.mxu0 %v6119
        %6587 = vmatpush.bf16.msra.mxu0 %v6113
        %6588 = vmatmul.bf16.gmra.mxu0 %v5426
        %v6589 = vpop.f32.mrf.mxu0
        %v6590 = vadd.f32 %v6577, %v6589
        %v6591 = vpop.f32.mrf.mxu0
        %6592 = vdwg.mxu0
        %6593 = vmatpush.bf16.msra.mxu0 %v6203
        %6594 = vmatpush.bf16.msra.mxu0 %v6197
        %6595 = vmatpush.bf16.msra.mxu0 %v6191
        %6596 = vmatpush.bf16.msra.mxu0 %v6185
        %6597 = vmatpush.bf16.msra.mxu0 %v6179
        %6598 = vmatpush.bf16.msra.mxu0 %v6173
        %6599 = vmatpush.bf16.msra.mxu0 %v6167
        %6600 = vmatpush.bf16.msra.mxu0 %v6161
        %6601 = vmatmul.bf16.gmra.mxu0 %v5433
        %v6602 = vpop.f32.mrf.mxu0
        %v6603 = vadd.f32 %v6590, %v6602
        %v6604 = vpop.f32.mrf.mxu0
        %6605 = vdwg.mxu0
        %6606 = vmatpush.bf16.msra.mxu0 %v6060
        %6607 = vmatpush.bf16.msra.mxu0 %v6054
        %6608 = vmatpush.bf16.msra.mxu0 %v6048
        %6609 = vmatpush.bf16.msra.mxu0 %v6042
        %6610 = vmatpush.bf16.msra.mxu0 %v6036
        %6611 = vmatpush.bf16.msra.mxu0 %v6030
        %6612 = vmatpush.bf16.msra.mxu0 %v6024
        %6613 = vmatpush.bf16.msra.mxu0 %v6018
        %6614 = vmatmul.bf16.gmra.mxu0 %v5412
        %v6615 = vpop.f32.mrf.mxu0
        %v6616 = vadd.f32 0.0, %v6615
        %v6617 = vpop.f32.mrf.mxu0
        %6618 = vdwg.mxu0
        %6619 = vmatpush.bf16.msra.mxu0 %v6108
        %6620 = vmatpush.bf16.msra.mxu0 %v6102
        %6621 = vmatpush.bf16.msra.mxu0 %v6096
        %6622 = vmatpush.bf16.msra.mxu0 %v6090
        %6623 = vmatpush.bf16.msra.mxu0 %v6084
        %6624 = vmatpush.bf16.msra.mxu0 %v6078
        %6625 = vmatpush.bf16.msra.mxu0 %v6072
        %6626 = vmatpush.bf16.msra.mxu0 %v6066
        %6627 = vmatmul.bf16.gmra.mxu0 %v5419
        %v6628 = vpop.f32.mrf.mxu0
        %v6629 = vadd.f32 %v6616, %v6628
        %v6630 = vpop.f32.mrf.mxu0
        %6631 = vdwg.mxu0
        %6632 = vmatpush.bf16.msra.mxu0 %v6156
        %6633 = vmatpush.bf16.msra.mxu0 %v6150
        %6634 = vmatpush.bf16.msra.mxu0 %v6144
        %6635 = vmatpush.bf16.msra.mxu0 %v6138
        %6636 = vmatpush.bf16.msra.mxu0 %v6132
        %6637 = vmatpush.bf16.msra.mxu0 %v6126
        %6638 = vmatpush.bf16.msra.mxu0 %v6120
        %6639 = vmatpush.bf16.msra.mxu0 %v6114
        %6640 = vmatmul.bf16.gmra.mxu0 %v5426
        %v6641 = vpop.f32.mrf.mxu0
        %v6642 = vadd.f32 %v6629, %v6641
        %v6643 = vpop.f32.mrf.mxu0
        %6644 = vdwg.mxu0
        %6645 = vmatpush.bf16.msra.mxu0 %v6204
        %6646 = vmatpush.bf16.msra.mxu0 %v6198
        %6647 = vmatpush.bf16.msra.mxu0 %v6192
        %6648 = vmatpush.bf16.msra.mxu0 %v6186
        %6649 = vmatpush.bf16.msra.mxu0 %v6180
        %6650 = vmatpush.bf16.msra.mxu0 %v6174
        %6651 = vmatpush.bf16.msra.mxu0 %v6168
        %6652 = vmatpush.bf16.msra.mxu0 %v6162
        %6653 = vmatmul.bf16.gmra.mxu0 %v5433
        %v6654 = vpop.f32.mrf.mxu0
        %v6655 = vadd.f32 %v6642, %v6654
        %v6656 = vpop.f32.mrf.mxu0
        %6657 = vdwg.mxu0
        %6658 = vmatpush.bf16.msra.mxu0 %v6061
        %6659 = vmatpush.bf16.msra.mxu0 %v6055
        %6660 = vmatpush.bf16.msra.mxu0 %v6049
        %6661 = vmatpush.bf16.msra.mxu0 %v6043
        %6662 = vmatpush.bf16.msra.mxu0 %v6037
        %6663 = vmatpush.bf16.msra.mxu0 %v6031
        %6664 = vmatpush.bf16.msra.mxu0 %v6025
        %6665 = vmatpush.bf16.msra.mxu0 %v6019
        %6666 = vmatmul.bf16.gmra.mxu0 %v5412
        %v6667 = vpop.f32.mrf.mxu0
        %v6668 = vadd.f32 0.0, %v6667
        %v6669 = vpop.f32.mrf.mxu0
        %6670 = vdwg.mxu0
        %6671 = vmatpush.bf16.msra.mxu0 %v6109
        %6672 = vmatpush.bf16.msra.mxu0 %v6103
        %6673 = vmatpush.bf16.msra.mxu0 %v6097
        %6674 = vmatpush.bf16.msra.mxu0 %v6091
        %6675 = vmatpush.bf16.msra.mxu0 %v6085
        %6676 = vmatpush.bf16.msra.mxu0 %v6079
        %6677 = vmatpush.bf16.msra.mxu0 %v6073
        %6678 = vmatpush.bf16.msra.mxu0 %v6067
        %6679 = vmatmul.bf16.gmra.mxu0 %v5419
        %v6680 = vpop.f32.mrf.mxu0
        %v6681 = vadd.f32 %v6668, %v6680
        %v6682 = vpop.f32.mrf.mxu0
        %6683 = vdwg.mxu0
        %6684 = vmatpush.bf16.msra.mxu0 %v6157
        %6685 = vmatpush.bf16.msra.mxu0 %v6151
        %6686 = vmatpush.bf16.msra.mxu0 %v6145
        %6687 = vmatpush.bf16.msra.mxu0 %v6139
        %6688 = vmatpush.bf16.msra.mxu0 %v6133
        %6689 = vmatpush.bf16.msra.mxu0 %v6127
        %6690 = vmatpush.bf16.msra.mxu0 %v6121
        %6691 = vmatpush.bf16.msra.mxu0 %v6115
        %6692 = vmatmul.bf16.gmra.mxu0 %v5426
        %v6693 = vpop.f32.mrf.mxu0
        %v6694 = vadd.f32 %v6681, %v6693
        %v6695 = vpop.f32.mrf.mxu0
        %6696 = vdwg.mxu0
        %6697 = vmatpush.bf16.msra.mxu0 %v6205
        %6698 = vmatpush.bf16.msra.mxu0 %v6199
        %6699 = vmatpush.bf16.msra.mxu0 %v6193
        %6700 = vmatpush.bf16.msra.mxu0 %v6187
        %6701 = vmatpush.bf16.msra.mxu0 %v6181
        %6702 = vmatpush.bf16.msra.mxu0 %v6175
        %6703 = vmatpush.bf16.msra.mxu0 %v6169
        %6704 = vmatpush.bf16.msra.mxu0 %v6163
        %6705 = vmatmul.bf16.gmra.mxu0 %v5433
        %v6706 = vpop.f32.mrf.mxu0
        %v6707 = vadd.f32 %v6694, %v6706
        %v6708 = vpop.f32.mrf.mxu0
        %6709 = vdwg.mxu0
        %v6710 = vadd.f32 %v5143, %v6447
        %v6711 = vadd.f32 %v5195, %v6499
        %v6712 = vadd.f32 %v5247, %v6551
        %v6713 = vadd.f32 %v5299, %v6603
        %v6714 = vadd.f32 %v5351, %v6655
        %v6715 = vadd.f32 %v5403, %v6707
        %6716 = vmatpush.bf16.msra.mxu0 %v3480
        %6717 = vmatpush.bf16.msra.mxu0 %v3474
        %6718 = vmatpush.bf16.msra.mxu0 %v3468
        %6719 = vmatpush.bf16.msra.mxu0 %v3462
        %6720 = vmatpush.bf16.msra.mxu0 %v3456
        %6721 = vmatpush.bf16.msra.mxu0 %v3450
        %6722 = vmatpush.bf16.msra.mxu0 %v3444
        %6723 = vmatpush.bf16.msra.mxu0 %v3438
        %6724 = vmatmul.bf16.gmra.mxu0 %v5412
        %v6725 = vpop.f32.mrf.mxu0
        %v6726 = vadd.f32 0.0, %v6725
        %v6727 = vpop.f32.mrf.mxu0
        %6728 = vdwg.mxu0
        %6729 = vmatpush.bf16.msra.mxu0 %v3528
        %6730 = vmatpush.bf16.msra.mxu0 %v3522
        %6731 = vmatpush.bf16.msra.mxu0 %v3516
        %6732 = vmatpush.bf16.msra.mxu0 %v3510
        %6733 = vmatpush.bf16.msra.mxu0 %v3504
        %6734 = vmatpush.bf16.msra.mxu0 %v3498
        %6735 = vmatpush.bf16.msra.mxu0 %v3492
        %6736 = vmatpush.bf16.msra.mxu0 %v3486
        %6737 = vmatmul.bf16.gmra.mxu0 %v5419
        %v6738 = vpop.f32.mrf.mxu0
        %v6739 = vadd.f32 %v6726, %v6738
        %v6740 = vpop.f32.mrf.mxu0
        %6741 = vdwg.mxu0
        %6742 = vmatpush.bf16.msra.mxu0 %v3576
        %6743 = vmatpush.bf16.msra.mxu0 %v3570
        %6744 = vmatpush.bf16.msra.mxu0 %v3564
        %6745 = vmatpush.bf16.msra.mxu0 %v3558
        %6746 = vmatpush.bf16.msra.mxu0 %v3552
        %6747 = vmatpush.bf16.msra.mxu0 %v3546
        %6748 = vmatpush.bf16.msra.mxu0 %v3540
        %6749 = vmatpush.bf16.msra.mxu0 %v3534
        %6750 = vmatmul.bf16.gmra.mxu0 %v5426
        %v6751 = vpop.f32.mrf.mxu0
        %v6752 = vadd.f32 %v6739, %v6751
        %v6753 = vpop.f32.mrf.mxu0
        %6754 = vdwg.mxu0
        %6755 = vmatpush.bf16.msra.mxu0 %v3624
        %6756 = vmatpush.bf16.msra.mxu0 %v3618
        %6757 = vmatpush.bf16.msra.mxu0 %v3612
        %6758 = vmatpush.bf16.msra.mxu0 %v3606
        %6759 = vmatpush.bf16.msra.mxu0 %v3600
        %6760 = vmatpush.bf16.msra.mxu0 %v3594
        %6761 = vmatpush.bf16.msra.mxu0 %v3588
        %6762 = vmatpush.bf16.msra.mxu0 %v3582
        %6763 = vmatmul.bf16.gmra.mxu0 %v5433
        %v6764 = vpop.f32.mrf.mxu0
        %v6765 = vadd.f32 %v6752, %v6764
        %v6766 = vpop.f32.mrf.mxu0
        %6767 = vdwg.mxu0
        %6768 = vmatpush.bf16.msra.mxu0 %v3481
        %6769 = vmatpush.bf16.msra.mxu0 %v3475
        %6770 = vmatpush.bf16.msra.mxu0 %v3469
        %6771 = vmatpush.bf16.msra.mxu0 %v3463
        %6772 = vmatpush.bf16.msra.mxu0 %v3457
        %6773 = vmatpush.bf16.msra.mxu0 %v3451
        %6774 = vmatpush.bf16.msra.mxu0 %v3445
        %6775 = vmatpush.bf16.msra.mxu0 %v3439
        %6776 = vmatmul.bf16.gmra.mxu0 %v5412
        %v6777 = vpop.f32.mrf.mxu0
        %v6778 = vadd.f32 0.0, %v6777
        %v6779 = vpop.f32.mrf.mxu0
        %6780 = vdwg.mxu0
        %6781 = vmatpush.bf16.msra.mxu0 %v3529
        %6782 = vmatpush.bf16.msra.mxu0 %v3523
        %6783 = vmatpush.bf16.msra.mxu0 %v3517
        %6784 = vmatpush.bf16.msra.mxu0 %v3511
        %6785 = vmatpush.bf16.msra.mxu0 %v3505
        %6786 = vmatpush.bf16.msra.mxu0 %v3499
        %6787 = vmatpush.bf16.msra.mxu0 %v3493
        %6788 = vmatpush.bf16.msra.mxu0 %v3487
        %6789 = vmatmul.bf16.gmra.mxu0 %v5419
        %v6790 = vpop.f32.mrf.mxu0
        %v6791 = vadd.f32 %v6778, %v6790
        %v6792 = vpop.f32.mrf.mxu0
        %6793 = vdwg.mxu0
        %6794 = vmatpush.bf16.msra.mxu0 %v3577
        %6795 = vmatpush.bf16.msra.mxu0 %v3571
        %6796 = vmatpush.bf16.msra.mxu0 %v3565
        %6797 = vmatpush.bf16.msra.mxu0 %v3559
        %6798 = vmatpush.bf16.msra.mxu0 %v3553
        %6799 = vmatpush.bf16.msra.mxu0 %v3547
        %6800 = vmatpush.bf16.msra.mxu0 %v3541
        %6801 = vmatpush.bf16.msra.mxu0 %v3535
        %6802 = vmatmul.bf16.gmra.mxu0 %v5426
        %v6803 = vpop.f32.mrf.mxu0
        %v6804 = vadd.f32 %v6791, %v6803
        %v6805 = vpop.f32.mrf.mxu0
        %6806 = vdwg.mxu0
        %6807 = vmatpush.bf16.msra.mxu0 %v3625
        %6808 = vmatpush.bf16.msra.mxu0 %v3619
        %6809 = vmatpush.bf16.msra.mxu0 %v3613
        %6810 = vmatpush.bf16.msra.mxu0 %v3607
        %6811 = vmatpush.bf16.msra.mxu0 %v3601
        %6812 = vmatpush.bf16.msra.mxu0 %v3595
        %6813 = vmatpush.bf16.msra.mxu0 %v3589
        %6814 = vmatpush.bf16.msra.mxu0 %v3583
        %6815 = vmatmul.bf16.gmra.mxu0 %v5433
        %v6816 = vpop.f32.mrf.mxu0
        %v6817 = vadd.f32 %v6804, %v6816
        %v6818 = vpop.f32.mrf.mxu0
        %6819 = vdwg.mxu0
        %6820 = vmatpush.bf16.msra.mxu0 %v3482
        %6821 = vmatpush.bf16.msra.mxu0 %v3476
        %6822 = vmatpush.bf16.msra.mxu0 %v3470
        %6823 = vmatpush.bf16.msra.mxu0 %v3464
        %6824 = vmatpush.bf16.msra.mxu0 %v3458
        %6825 = vmatpush.bf16.msra.mxu0 %v3452
        %6826 = vmatpush.bf16.msra.mxu0 %v3446
        %6827 = vmatpush.bf16.msra.mxu0 %v3440
        %6828 = vmatmul.bf16.gmra.mxu0 %v5412
        %v6829 = vpop.f32.mrf.mxu0
        %v6830 = vadd.f32 0.0, %v6829
        %v6831 = vpop.f32.mrf.mxu0
        %6832 = vdwg.mxu0
        %6833 = vmatpush.bf16.msra.mxu0 %v3530
        %6834 = vmatpush.bf16.msra.mxu0 %v3524
        %6835 = vmatpush.bf16.msra.mxu0 %v3518
        %6836 = vmatpush.bf16.msra.mxu0 %v3512
        %6837 = vmatpush.bf16.msra.mxu0 %v3506
        %6838 = vmatpush.bf16.msra.mxu0 %v3500
        %6839 = vmatpush.bf16.msra.mxu0 %v3494
        %6840 = vmatpush.bf16.msra.mxu0 %v3488
        %6841 = vmatmul.bf16.gmra.mxu0 %v5419
        %v6842 = vpop.f32.mrf.mxu0
        %v6843 = vadd.f32 %v6830, %v6842
        %v6844 = vpop.f32.mrf.mxu0
        %6845 = vdwg.mxu0
        %6846 = vmatpush.bf16.msra.mxu0 %v3578
        %6847 = vmatpush.bf16.msra.mxu0 %v3572
        %6848 = vmatpush.bf16.msra.mxu0 %v3566
        %6849 = vmatpush.bf16.msra.mxu0 %v3560
        %6850 = vmatpush.bf16.msra.mxu0 %v3554
        %6851 = vmatpush.bf16.msra.mxu0 %v3548
        %6852 = vmatpush.bf16.msra.mxu0 %v3542
        %6853 = vmatpush.bf16.msra.mxu0 %v3536
        %6854 = vmatmul.bf16.gmra.mxu0 %v5426
        %v6855 = vpop.f32.mrf.mxu0
        %v6856 = vadd.f32 %v6843, %v6855
        %v6857 = vpop.f32.mrf.mxu0
        %6858 = vdwg.mxu0
        %6859 = vmatpush.bf16.msra.mxu0 %v3626
        %6860 = vmatpush.bf16.msra.mxu0 %v3620
        %6861 = vmatpush.bf16.msra.mxu0 %v3614
        %6862 = vmatpush.bf16.msra.mxu0 %v3608
        %6863 = vmatpush.bf16.msra.mxu0 %v3602
        %6864 = vmatpush.bf16.msra.mxu0 %v3596
        %6865 = vmatpush.bf16.msra.mxu0 %v3590
        %6866 = vmatpush.bf16.msra.mxu0 %v3584
        %6867 = vmatmul.bf16.gmra.mxu0 %v5433
        %v6868 = vpop.f32.mrf.mxu0
        %v6869 = vadd.f32 %v6856, %v6868
        %v6870 = vpop.f32.mrf.mxu0
        %6871 = vdwg.mxu0
        %6872 = vmatpush.bf16.msra.mxu0 %v3483
        %6873 = vmatpush.bf16.msra.mxu0 %v3477
        %6874 = vmatpush.bf16.msra.mxu0 %v3471
        %6875 = vmatpush.bf16.msra.mxu0 %v3465
        %6876 = vmatpush.bf16.msra.mxu0 %v3459
        %6877 = vmatpush.bf16.msra.mxu0 %v3453
        %6878 = vmatpush.bf16.msra.mxu0 %v3447
        %6879 = vmatpush.bf16.msra.mxu0 %v3441
        %6880 = vmatmul.bf16.gmra.mxu0 %v5412
        %v6881 = vpop.f32.mrf.mxu0
        %v6882 = vadd.f32 0.0, %v6881
        %v6883 = vpop.f32.mrf.mxu0
        %6884 = vdwg.mxu0
        %6885 = vmatpush.bf16.msra.mxu0 %v3531
        %6886 = vmatpush.bf16.msra.mxu0 %v3525
        %6887 = vmatpush.bf16.msra.mxu0 %v3519
        %6888 = vmatpush.bf16.msra.mxu0 %v3513
        %6889 = vmatpush.bf16.msra.mxu0 %v3507
        %6890 = vmatpush.bf16.msra.mxu0 %v3501
        %6891 = vmatpush.bf16.msra.mxu0 %v3495
        %6892 = vmatpush.bf16.msra.mxu0 %v3489
        %6893 = vmatmul.bf16.gmra.mxu0 %v5419
        %v6894 = vpop.f32.mrf.mxu0
        %v6895 = vadd.f32 %v6882, %v6894
        %v6896 = vpop.f32.mrf.mxu0
        %6897 = vdwg.mxu0
        %6898 = vmatpush.bf16.msra.mxu0 %v3579
        %6899 = vmatpush.bf16.msra.mxu0 %v3573
        %6900 = vmatpush.bf16.msra.mxu0 %v3567
        %6901 = vmatpush.bf16.msra.mxu0 %v3561
        %6902 = vmatpush.bf16.msra.mxu0 %v3555
        %6903 = vmatpush.bf16.msra.mxu0 %v3549
        %6904 = vmatpush.bf16.msra.mxu0 %v3543
        %6905 = vmatpush.bf16.msra.mxu0 %v3537
        %6906 = vmatmul.bf16.gmra.mxu0 %v5426
        %v6907 = vpop.f32.mrf.mxu0
        %v6908 = vadd.f32 %v6895, %v6907
        %v6909 = vpop.f32.mrf.mxu0
        %6910 = vdwg.mxu0
        %6911 = vmatpush.bf16.msra.mxu0 %v3627
        %6912 = vmatpush.bf16.msra.mxu0 %v3621
        %6913 = vmatpush.bf16.msra.mxu0 %v3615
        %6914 = vmatpush.bf16.msra.mxu0 %v3609
        %6915 = vmatpush.bf16.msra.mxu0 %v3603
        %6916 = vmatpush.bf16.msra.mxu0 %v3597
        %6917 = vmatpush.bf16.msra.mxu0 %v3591
        %6918 = vmatpush.bf16.msra.mxu0 %v3585
        %6919 = vmatmul.bf16.gmra.mxu0 %v5433
        %v6920 = vpop.f32.mrf.mxu0
        %v6921 = vadd.f32 %v6908, %v6920
        %v6922 = vpop.f32.mrf.mxu0
        %6923 = vdwg.mxu0
        %6924 = vmatpush.bf16.msra.mxu0 %v3484
        %6925 = vmatpush.bf16.msra.mxu0 %v3478
        %6926 = vmatpush.bf16.msra.mxu0 %v3472
        %6927 = vmatpush.bf16.msra.mxu0 %v3466
        %6928 = vmatpush.bf16.msra.mxu0 %v3460
        %6929 = vmatpush.bf16.msra.mxu0 %v3454
        %6930 = vmatpush.bf16.msra.mxu0 %v3448
        %6931 = vmatpush.bf16.msra.mxu0 %v3442
        %6932 = vmatmul.bf16.gmra.mxu0 %v5412
        %v6933 = vpop.f32.mrf.mxu0
        %v6934 = vadd.f32 0.0, %v6933
        %v6935 = vpop.f32.mrf.mxu0
        %6936 = vdwg.mxu0
        %6937 = vmatpush.bf16.msra.mxu0 %v3532
        %6938 = vmatpush.bf16.msra.mxu0 %v3526
        %6939 = vmatpush.bf16.msra.mxu0 %v3520
        %6940 = vmatpush.bf16.msra.mxu0 %v3514
        %6941 = vmatpush.bf16.msra.mxu0 %v3508
        %6942 = vmatpush.bf16.msra.mxu0 %v3502
        %6943 = vmatpush.bf16.msra.mxu0 %v3496
        %6944 = vmatpush.bf16.msra.mxu0 %v3490
        %6945 = vmatmul.bf16.gmra.mxu0 %v5419
        %v6946 = vpop.f32.mrf.mxu0
        %v6947 = vadd.f32 %v6934, %v6946
        %v6948 = vpop.f32.mrf.mxu0
        %6949 = vdwg.mxu0
        %6950 = vmatpush.bf16.msra.mxu0 %v3580
        %6951 = vmatpush.bf16.msra.mxu0 %v3574
        %6952 = vmatpush.bf16.msra.mxu0 %v3568
        %6953 = vmatpush.bf16.msra.mxu0 %v3562
        %6954 = vmatpush.bf16.msra.mxu0 %v3556
        %6955 = vmatpush.bf16.msra.mxu0 %v3550
        %6956 = vmatpush.bf16.msra.mxu0 %v3544
        %6957 = vmatpush.bf16.msra.mxu0 %v3538
        %6958 = vmatmul.bf16.gmra.mxu0 %v5426
        %v6959 = vpop.f32.mrf.mxu0
        %v6960 = vadd.f32 %v6947, %v6959
        %v6961 = vpop.f32.mrf.mxu0
        %6962 = vdwg.mxu0
        %6963 = vmatpush.bf16.msra.mxu0 %v3628
        %6964 = vmatpush.bf16.msra.mxu0 %v3622
        %6965 = vmatpush.bf16.msra.mxu0 %v3616
        %6966 = vmatpush.bf16.msra.mxu0 %v3610
        %6967 = vmatpush.bf16.msra.mxu0 %v3604
        %6968 = vmatpush.bf16.msra.mxu0 %v3598
        %6969 = vmatpush.bf16.msra.mxu0 %v3592
        %6970 = vmatpush.bf16.msra.mxu0 %v3586
        %6971 = vmatmul.bf16.gmra.mxu0 %v5433
        %v6972 = vpop.f32.mrf.mxu0
        %v6973 = vadd.f32 %v6960, %v6972
        %v6974 = vpop.f32.mrf.mxu0
        %6975 = vdwg.mxu0
        %6976 = vmatpush.bf16.msra.mxu0 %v3485
        %6977 = vmatpush.bf16.msra.mxu0 %v3479
        %6978 = vmatpush.bf16.msra.mxu0 %v3473
        %6979 = vmatpush.bf16.msra.mxu0 %v3467
        %6980 = vmatpush.bf16.msra.mxu0 %v3461
        %6981 = vmatpush.bf16.msra.mxu0 %v3455
        %6982 = vmatpush.bf16.msra.mxu0 %v3449
        %6983 = vmatpush.bf16.msra.mxu0 %v3443
        %6984 = vmatmul.bf16.gmra.mxu0 %v5412
        %v6985 = vpop.f32.mrf.mxu0
        %v6986 = vadd.f32 0.0, %v6985
        %v6987 = vpop.f32.mrf.mxu0
        %6988 = vdwg.mxu0
        %6989 = vmatpush.bf16.msra.mxu0 %v3533
        %6990 = vmatpush.bf16.msra.mxu0 %v3527
        %6991 = vmatpush.bf16.msra.mxu0 %v3521
        %6992 = vmatpush.bf16.msra.mxu0 %v3515
        %6993 = vmatpush.bf16.msra.mxu0 %v3509
        %6994 = vmatpush.bf16.msra.mxu0 %v3503
        %6995 = vmatpush.bf16.msra.mxu0 %v3497
        %6996 = vmatpush.bf16.msra.mxu0 %v3491
        %6997 = vmatmul.bf16.gmra.mxu0 %v5419
        %v6998 = vpop.f32.mrf.mxu0
        %v6999 = vadd.f32 %v6986, %v6998
        %v7000 = vpop.f32.mrf.mxu0
        %7001 = vdwg.mxu0
        %7002 = vmatpush.bf16.msra.mxu0 %v3581
        %7003 = vmatpush.bf16.msra.mxu0 %v3575
        %7004 = vmatpush.bf16.msra.mxu0 %v3569
        %7005 = vmatpush.bf16.msra.mxu0 %v3563
        %7006 = vmatpush.bf16.msra.mxu0 %v3557
        %7007 = vmatpush.bf16.msra.mxu0 %v3551
        %7008 = vmatpush.bf16.msra.mxu0 %v3545
        %7009 = vmatpush.bf16.msra.mxu0 %v3539
        %7010 = vmatmul.bf16.gmra.mxu0 %v5426
        %v7011 = vpop.f32.mrf.mxu0
        %v7012 = vadd.f32 %v6999, %v7011
        %v7013 = vpop.f32.mrf.mxu0
        %7014 = vdwg.mxu0
        %7015 = vmatpush.bf16.msra.mxu0 %v3629
        %7016 = vmatpush.bf16.msra.mxu0 %v3623
        %7017 = vmatpush.bf16.msra.mxu0 %v3617
        %7018 = vmatpush.bf16.msra.mxu0 %v3611
        %7019 = vmatpush.bf16.msra.mxu0 %v3605
        %7020 = vmatpush.bf16.msra.mxu0 %v3599
        %7021 = vmatpush.bf16.msra.mxu0 %v3593
        %7022 = vmatpush.bf16.msra.mxu0 %v3587
        %7023 = vmatmul.bf16.gmra.mxu0 %v5433
        %v7024 = vpop.f32.mrf.mxu0
        %v7025 = vadd.f32 %v7012, %v7024
        %v7026 = vpop.f32.mrf.mxu0
        %7027 = vdwg.mxu0
        %7028 = vmatpush.bf16.msra.mxu0 %v4752
        %7029 = vmatpush.bf16.msra.mxu0 %v4746
        %7030 = vmatpush.bf16.msra.mxu0 %v4740
        %7031 = vmatpush.bf16.msra.mxu0 %v4734
        %7032 = vmatpush.bf16.msra.mxu0 %v4728
        %7033 = vmatpush.bf16.msra.mxu0 %v4722
        %7034 = vmatpush.bf16.msra.mxu0 %v4716
        %7035 = vmatpush.bf16.msra.mxu0 %v4710
        %7036 = vmatmul.bf16.gmra.mxu0 %v2280
        %v7037 = vpop.f32.mrf.mxu0
        %v7038 = vadd.f32 %v6765, %v7037
        %v7039 = vpop.f32.mrf.mxu0
        %7040 = vdwg.mxu0
        %7041 = vmatpush.bf16.msra.mxu0 %v4800
        %7042 = vmatpush.bf16.msra.mxu0 %v4794
        %7043 = vmatpush.bf16.msra.mxu0 %v4788
        %7044 = vmatpush.bf16.msra.mxu0 %v4782
        %7045 = vmatpush.bf16.msra.mxu0 %v4776
        %7046 = vmatpush.bf16.msra.mxu0 %v4770
        %7047 = vmatpush.bf16.msra.mxu0 %v4764
        %7048 = vmatpush.bf16.msra.mxu0 %v4758
        %7049 = vmatmul.bf16.gmra.mxu0 %v2281
        %v7050 = vpop.f32.mrf.mxu0
        %v7051 = vadd.f32 %v7038, %v7050
        %v7052 = vpop.f32.mrf.mxu0
        %7053 = vdwg.mxu0
        %7054 = vmatpush.bf16.msra.mxu0 %v4848
        %7055 = vmatpush.bf16.msra.mxu0 %v4842
        %7056 = vmatpush.bf16.msra.mxu0 %v4836
        %7057 = vmatpush.bf16.msra.mxu0 %v4830
        %7058 = vmatpush.bf16.msra.mxu0 %v4824
        %7059 = vmatpush.bf16.msra.mxu0 %v4818
        %7060 = vmatpush.bf16.msra.mxu0 %v4812
        %7061 = vmatpush.bf16.msra.mxu0 %v4806
        %7062 = vmatmul.bf16.gmra.mxu0 %v2282
        %v7063 = vpop.f32.mrf.mxu0
        %v7064 = vadd.f32 %v7051, %v7063
        %v7065 = vpop.f32.mrf.mxu0
        %7066 = vdwg.mxu0
        %7067 = vmatpush.bf16.msra.mxu0 %v4896
        %7068 = vmatpush.bf16.msra.mxu0 %v4890
        %7069 = vmatpush.bf16.msra.mxu0 %v4884
        %7070 = vmatpush.bf16.msra.mxu0 %v4878
        %7071 = vmatpush.bf16.msra.mxu0 %v4872
        %7072 = vmatpush.bf16.msra.mxu0 %v4866
        %7073 = vmatpush.bf16.msra.mxu0 %v4860
        %7074 = vmatpush.bf16.msra.mxu0 %v4854
        %7075 = vmatmul.bf16.gmra.mxu0 %v2283
        %v7076 = vpop.f32.mrf.mxu0
        %v7077 = vadd.f32 %v7064, %v7076
        %v7078 = vpop.f32.mrf.mxu0
        %7079 = vdwg.mxu0
        %7080 = vmatpush.bf16.msra.mxu0 %v4753
        %7081 = vmatpush.bf16.msra.mxu0 %v4747
        %7082 = vmatpush.bf16.msra.mxu0 %v4741
        %7083 = vmatpush.bf16.msra.mxu0 %v4735
        %7084 = vmatpush.bf16.msra.mxu0 %v4729
        %7085 = vmatpush.bf16.msra.mxu0 %v4723
        %7086 = vmatpush.bf16.msra.mxu0 %v4717
        %7087 = vmatpush.bf16.msra.mxu0 %v4711
        %7088 = vmatmul.bf16.gmra.mxu0 %v2280
        %v7089 = vpop.f32.mrf.mxu0
        %v7090 = vadd.f32 %v6817, %v7089
        %v7091 = vpop.f32.mrf.mxu0
        %7092 = vdwg.mxu0
        %7093 = vmatpush.bf16.msra.mxu0 %v4801
        %7094 = vmatpush.bf16.msra.mxu0 %v4795
        %7095 = vmatpush.bf16.msra.mxu0 %v4789
        %7096 = vmatpush.bf16.msra.mxu0 %v4783
        %7097 = vmatpush.bf16.msra.mxu0 %v4777
        %7098 = vmatpush.bf16.msra.mxu0 %v4771
        %7099 = vmatpush.bf16.msra.mxu0 %v4765
        %7100 = vmatpush.bf16.msra.mxu0 %v4759
        %7101 = vmatmul.bf16.gmra.mxu0 %v2281
        %v7102 = vpop.f32.mrf.mxu0
        %v7103 = vadd.f32 %v7090, %v7102
        %v7104 = vpop.f32.mrf.mxu0
        %7105 = vdwg.mxu0
        %7106 = vmatpush.bf16.msra.mxu0 %v4849
        %7107 = vmatpush.bf16.msra.mxu0 %v4843
        %7108 = vmatpush.bf16.msra.mxu0 %v4837
        %7109 = vmatpush.bf16.msra.mxu0 %v4831
        %7110 = vmatpush.bf16.msra.mxu0 %v4825
        %7111 = vmatpush.bf16.msra.mxu0 %v4819
        %7112 = vmatpush.bf16.msra.mxu0 %v4813
        %7113 = vmatpush.bf16.msra.mxu0 %v4807
        %7114 = vmatmul.bf16.gmra.mxu0 %v2282
        %v7115 = vpop.f32.mrf.mxu0
        %v7116 = vadd.f32 %v7103, %v7115
        %v7117 = vpop.f32.mrf.mxu0
        %7118 = vdwg.mxu0
        %7119 = vmatpush.bf16.msra.mxu0 %v4897
        %7120 = vmatpush.bf16.msra.mxu0 %v4891
        %7121 = vmatpush.bf16.msra.mxu0 %v4885
        %7122 = vmatpush.bf16.msra.mxu0 %v4879
        %7123 = vmatpush.bf16.msra.mxu0 %v4873
        %7124 = vmatpush.bf16.msra.mxu0 %v4867
        %7125 = vmatpush.bf16.msra.mxu0 %v4861
        %7126 = vmatpush.bf16.msra.mxu0 %v4855
        %7127 = vmatmul.bf16.gmra.mxu0 %v2283
        %v7128 = vpop.f32.mrf.mxu0
        %v7129 = vadd.f32 %v7116, %v7128
        %v7130 = vpop.f32.mrf.mxu0
        %7131 = vdwg.mxu0
        %7132 = vmatpush.bf16.msra.mxu0 %v4754
        %7133 = vmatpush.bf16.msra.mxu0 %v4748
        %7134 = vmatpush.bf16.msra.mxu0 %v4742
        %7135 = vmatpush.bf16.msra.mxu0 %v4736
        %7136 = vmatpush.bf16.msra.mxu0 %v4730
        %7137 = vmatpush.bf16.msra.mxu0 %v4724
        %7138 = vmatpush.bf16.msra.mxu0 %v4718
        %7139 = vmatpush.bf16.msra.mxu0 %v4712
        %7140 = vmatmul.bf16.gmra.mxu0 %v2280
        %v7141 = vpop.f32.mrf.mxu0
        %v7142 = vadd.f32 %v6869, %v7141
        %v7143 = vpop.f32.mrf.mxu0
        %7144 = vdwg.mxu0
        %7145 = vmatpush.bf16.msra.mxu0 %v4802
        %7146 = vmatpush.bf16.msra.mxu0 %v4796
        %7147 = vmatpush.bf16.msra.mxu0 %v4790
        %7148 = vmatpush.bf16.msra.mxu0 %v4784
        %7149 = vmatpush.bf16.msra.mxu0 %v4778
        %7150 = vmatpush.bf16.msra.mxu0 %v4772
        %7151 = vmatpush.bf16.msra.mxu0 %v4766
        %7152 = vmatpush.bf16.msra.mxu0 %v4760
        %7153 = vmatmul.bf16.gmra.mxu0 %v2281
        %v7154 = vpop.f32.mrf.mxu0
        %v7155 = vadd.f32 %v7142, %v7154
        %v7156 = vpop.f32.mrf.mxu0
        %7157 = vdwg.mxu0
        %7158 = vmatpush.bf16.msra.mxu0 %v4850
        %7159 = vmatpush.bf16.msra.mxu0 %v4844
        %7160 = vmatpush.bf16.msra.mxu0 %v4838
        %7161 = vmatpush.bf16.msra.mxu0 %v4832
        %7162 = vmatpush.bf16.msra.mxu0 %v4826
        %7163 = vmatpush.bf16.msra.mxu0 %v4820
        %7164 = vmatpush.bf16.msra.mxu0 %v4814
        %7165 = vmatpush.bf16.msra.mxu0 %v4808
        %7166 = vmatmul.bf16.gmra.mxu0 %v2282
        %v7167 = vpop.f32.mrf.mxu0
        %v7168 = vadd.f32 %v7155, %v7167
        %v7169 = vpop.f32.mrf.mxu0
        %7170 = vdwg.mxu0
        %7171 = vmatpush.bf16.msra.mxu0 %v4898
        %7172 = vmatpush.bf16.msra.mxu0 %v4892
        %7173 = vmatpush.bf16.msra.mxu0 %v4886
        %7174 = vmatpush.bf16.msra.mxu0 %v4880
        %7175 = vmatpush.bf16.msra.mxu0 %v4874
        %7176 = vmatpush.bf16.msra.mxu0 %v4868
        %7177 = vmatpush.bf16.msra.mxu0 %v4862
        %7178 = vmatpush.bf16.msra.mxu0 %v4856
        %7179 = vmatmul.bf16.gmra.mxu0 %v2283
        %v7180 = vpop.f32.mrf.mxu0
        %v7181 = vadd.f32 %v7168, %v7180
        %v7182 = vpop.f32.mrf.mxu0
        %7183 = vdwg.mxu0
        %7184 = vmatpush.bf16.msra.mxu0 %v4755
        %7185 = vmatpush.bf16.msra.mxu0 %v4749
        %7186 = vmatpush.bf16.msra.mxu0 %v4743
        %7187 = vmatpush.bf16.msra.mxu0 %v4737
        %7188 = vmatpush.bf16.msra.mxu0 %v4731
        %7189 = vmatpush.bf16.msra.mxu0 %v4725
        %7190 = vmatpush.bf16.msra.mxu0 %v4719
        %7191 = vmatpush.bf16.msra.mxu0 %v4713
        %7192 = vmatmul.bf16.gmra.mxu0 %v2280
        %v7193 = vpop.f32.mrf.mxu0
        %v7194 = vadd.f32 %v6921, %v7193
        %v7195 = vpop.f32.mrf.mxu0
        %7196 = vdwg.mxu0
        %7197 = vmatpush.bf16.msra.mxu0 %v4803
        %7198 = vmatpush.bf16.msra.mxu0 %v4797
        %7199 = vmatpush.bf16.msra.mxu0 %v4791
        %7200 = vmatpush.bf16.msra.mxu0 %v4785
        %7201 = vmatpush.bf16.msra.mxu0 %v4779
        %7202 = vmatpush.bf16.msra.mxu0 %v4773
        %7203 = vmatpush.bf16.msra.mxu0 %v4767
        %7204 = vmatpush.bf16.msra.mxu0 %v4761
        %7205 = vmatmul.bf16.gmra.mxu0 %v2281
        %v7206 = vpop.f32.mrf.mxu0
        %v7207 = vadd.f32 %v7194, %v7206
        %v7208 = vpop.f32.mrf.mxu0
        %7209 = vdwg.mxu0
        %7210 = vmatpush.bf16.msra.mxu0 %v4851
        %7211 = vmatpush.bf16.msra.mxu0 %v4845
        %7212 = vmatpush.bf16.msra.mxu0 %v4839
        %7213 = vmatpush.bf16.msra.mxu0 %v4833
        %7214 = vmatpush.bf16.msra.mxu0 %v4827
        %7215 = vmatpush.bf16.msra.mxu0 %v4821
        %7216 = vmatpush.bf16.msra.mxu0 %v4815
        %7217 = vmatpush.bf16.msra.mxu0 %v4809
        %7218 = vmatmul.bf16.gmra.mxu0 %v2282
        %v7219 = vpop.f32.mrf.mxu0
        %v7220 = vadd.f32 %v7207, %v7219
        %v7221 = vpop.f32.mrf.mxu0
        %7222 = vdwg.mxu0
        %7223 = vmatpush.bf16.msra.mxu0 %v4899
        %7224 = vmatpush.bf16.msra.mxu0 %v4893
        %7225 = vmatpush.bf16.msra.mxu0 %v4887
        %7226 = vmatpush.bf16.msra.mxu0 %v4881
        %7227 = vmatpush.bf16.msra.mxu0 %v4875
        %7228 = vmatpush.bf16.msra.mxu0 %v4869
        %7229 = vmatpush.bf16.msra.mxu0 %v4863
        %7230 = vmatpush.bf16.msra.mxu0 %v4857
        %7231 = vmatmul.bf16.gmra.mxu0 %v2283
        %v7232 = vpop.f32.mrf.mxu0
        %v7233 = vadd.f32 %v7220, %v7232
        %v7234 = vpop.f32.mrf.mxu0
        %7235 = vdwg.mxu0
        %7236 = vmatpush.bf16.msra.mxu0 %v4756
        %7237 = vmatpush.bf16.msra.mxu0 %v4750
        %7238 = vmatpush.bf16.msra.mxu0 %v4744
        %7239 = vmatpush.bf16.msra.mxu0 %v4738
        %7240 = vmatpush.bf16.msra.mxu0 %v4732
        %7241 = vmatpush.bf16.msra.mxu0 %v4726
        %7242 = vmatpush.bf16.msra.mxu0 %v4720
        %7243 = vmatpush.bf16.msra.mxu0 %v4714
        %7244 = vmatmul.bf16.gmra.mxu0 %v2280
        %v7245 = vpop.f32.mrf.mxu0
        %v7246 = vadd.f32 %v6973, %v7245
        %v7247 = vpop.f32.mrf.mxu0
        %7248 = vdwg.mxu0
        %7249 = vmatpush.bf16.msra.mxu0 %v4804
        %7250 = vmatpush.bf16.msra.mxu0 %v4798
        %7251 = vmatpush.bf16.msra.mxu0 %v4792
        %7252 = vmatpush.bf16.msra.mxu0 %v4786
        %7253 = vmatpush.bf16.msra.mxu0 %v4780
        %7254 = vmatpush.bf16.msra.mxu0 %v4774
        %7255 = vmatpush.bf16.msra.mxu0 %v4768
        %7256 = vmatpush.bf16.msra.mxu0 %v4762
        %7257 = vmatmul.bf16.gmra.mxu0 %v2281
        %v7258 = vpop.f32.mrf.mxu0
        %v7259 = vadd.f32 %v7246, %v7258
        %v7260 = vpop.f32.mrf.mxu0
        %7261 = vdwg.mxu0
        %7262 = vmatpush.bf16.msra.mxu0 %v4852
        %7263 = vmatpush.bf16.msra.mxu0 %v4846
        %7264 = vmatpush.bf16.msra.mxu0 %v4840
        %7265 = vmatpush.bf16.msra.mxu0 %v4834
        %7266 = vmatpush.bf16.msra.mxu0 %v4828
        %7267 = vmatpush.bf16.msra.mxu0 %v4822
        %7268 = vmatpush.bf16.msra.mxu0 %v4816
        %7269 = vmatpush.bf16.msra.mxu0 %v4810
        %7270 = vmatmul.bf16.gmra.mxu0 %v2282
        %v7271 = vpop.f32.mrf.mxu0
        %v7272 = vadd.f32 %v7259, %v7271
        %v7273 = vpop.f32.mrf.mxu0
        %7274 = vdwg.mxu0
        %7275 = vmatpush.bf16.msra.mxu0 %v4900
        %7276 = vmatpush.bf16.msra.mxu0 %v4894
        %7277 = vmatpush.bf16.msra.mxu0 %v4888
        %7278 = vmatpush.bf16.msra.mxu0 %v4882
        %7279 = vmatpush.bf16.msra.mxu0 %v4876
        %7280 = vmatpush.bf16.msra.mxu0 %v4870
        %7281 = vmatpush.bf16.msra.mxu0 %v4864
        %7282 = vmatpush.bf16.msra.mxu0 %v4858
        %7283 = vmatmul.bf16.gmra.mxu0 %v2283
        %v7284 = vpop.f32.mrf.mxu0
        %v7285 = vadd.f32 %v7272, %v7284
        %v7286 = vpop.f32.mrf.mxu0
        %7287 = vdwg.mxu0
        %7288 = vmatpush.bf16.msra.mxu0 %v4757
        %7289 = vmatpush.bf16.msra.mxu0 %v4751
        %7290 = vmatpush.bf16.msra.mxu0 %v4745
        %7291 = vmatpush.bf16.msra.mxu0 %v4739
        %7292 = vmatpush.bf16.msra.mxu0 %v4733
        %7293 = vmatpush.bf16.msra.mxu0 %v4727
        %7294 = vmatpush.bf16.msra.mxu0 %v4721
        %7295 = vmatpush.bf16.msra.mxu0 %v4715
        %7296 = vmatmul.bf16.gmra.mxu0 %v2280
        %v7297 = vpop.f32.mrf.mxu0
        %v7298 = vadd.f32 %v7025, %v7297
        %v7299 = vpop.f32.mrf.mxu0
        %7300 = vdwg.mxu0
        %7301 = vmatpush.bf16.msra.mxu0 %v4805
        %7302 = vmatpush.bf16.msra.mxu0 %v4799
        %7303 = vmatpush.bf16.msra.mxu0 %v4793
        %7304 = vmatpush.bf16.msra.mxu0 %v4787
        %7305 = vmatpush.bf16.msra.mxu0 %v4781
        %7306 = vmatpush.bf16.msra.mxu0 %v4775
        %7307 = vmatpush.bf16.msra.mxu0 %v4769
        %7308 = vmatpush.bf16.msra.mxu0 %v4763
        %7309 = vmatmul.bf16.gmra.mxu0 %v2281
        %v7310 = vpop.f32.mrf.mxu0
        %v7311 = vadd.f32 %v7298, %v7310
        %v7312 = vpop.f32.mrf.mxu0
        %7313 = vdwg.mxu0
        %7314 = vmatpush.bf16.msra.mxu0 %v4853
        %7315 = vmatpush.bf16.msra.mxu0 %v4847
        %7316 = vmatpush.bf16.msra.mxu0 %v4841
        %7317 = vmatpush.bf16.msra.mxu0 %v4835
        %7318 = vmatpush.bf16.msra.mxu0 %v4829
        %7319 = vmatpush.bf16.msra.mxu0 %v4823
        %7320 = vmatpush.bf16.msra.mxu0 %v4817
        %7321 = vmatpush.bf16.msra.mxu0 %v4811
        %7322 = vmatmul.bf16.gmra.mxu0 %v2282
        %v7323 = vpop.f32.mrf.mxu0
        %v7324 = vadd.f32 %v7311, %v7323
        %v7325 = vpop.f32.mrf.mxu0
        %7326 = vdwg.mxu0
        %7327 = vmatpush.bf16.msra.mxu0 %v4901
        %7328 = vmatpush.bf16.msra.mxu0 %v4895
        %7329 = vmatpush.bf16.msra.mxu0 %v4889
        %7330 = vmatpush.bf16.msra.mxu0 %v4883
        %7331 = vmatpush.bf16.msra.mxu0 %v4877
        %7332 = vmatpush.bf16.msra.mxu0 %v4871
        %7333 = vmatpush.bf16.msra.mxu0 %v4865
        %7334 = vmatpush.bf16.msra.mxu0 %v4859
        %7335 = vmatmul.bf16.gmra.mxu0 %v2283
        %v7336 = vpop.f32.mrf.mxu0
        %v7337 = vadd.f32 %v7324, %v7336
        %v7338 = vpop.f32.mrf.mxu0
        %7339 = vdwg.mxu0
        %v7341 = vshrl.u32 %v2280, 16
        %v7343 = vshll.u32 %v2280, 16
        %v7345 = vrot.slane %v7343, 1
        %v7346 = vor.u32 %v7341, %v7345
        %v7348 = vshrl.u32 %v2281, 16
        %v7350 = vshll.u32 %v2281, 16
        %v7352 = vrot.slane %v7350, 1
        %v7353 = vor.u32 %v7348, %v7352
        %v7355 = vshrl.u32 %v2282, 16
        %v7357 = vshll.u32 %v2282, 16
        %v7359 = vrot.slane %v7357, 1
        %v7360 = vor.u32 %v7355, %v7359
        %v7362 = vshrl.u32 %v2283, 16
        %v7364 = vshll.u32 %v2283, 16
        %v7366 = vrot.slane %v7364, 1
        %v7367 = vor.u32 %v7362, %v7366
        %7372 = vmatpush.bf16.msra.mxu0 %v6056
        %7373 = vmatpush.bf16.msra.mxu0 %v6050
        %7374 = vmatpush.bf16.msra.mxu0 %v6044
        %7375 = vmatpush.bf16.msra.mxu0 %v6038
        %7376 = vmatpush.bf16.msra.mxu0 %v6032
        %7377 = vmatpush.bf16.msra.mxu0 %v6026
        %7378 = vmatpush.bf16.msra.mxu0 %v6020
        %7379 = vmatpush.bf16.msra.mxu0 %v6014
        %7380 = vmatmul.bf16.gmra.mxu0 %v7346
        %v7381 = vpop.f32.mrf.mxu0
        %v7382 = vadd.f32 0.0, %v7381
        %v7383 = vpop.f32.mrf.mxu0
        %7384 = vdwg.mxu0
        %7385 = vmatpush.bf16.msra.mxu0 %v6104
        %7386 = vmatpush.bf16.msra.mxu0 %v6098
        %7387 = vmatpush.bf16.msra.mxu0 %v6092
        %7388 = vmatpush.bf16.msra.mxu0 %v6086
        %7389 = vmatpush.bf16.msra.mxu0 %v6080
        %7390 = vmatpush.bf16.msra.mxu0 %v6074
        %7391 = vmatpush.bf16.msra.mxu0 %v6068
        %7392 = vmatpush.bf16.msra.mxu0 %v6062
        %7393 = vmatmul.bf16.gmra.mxu0 %v7353
        %v7394 = vpop.f32.mrf.mxu0
        %v7395 = vadd.f32 %v7382, %v7394
        %v7396 = vpop.f32.mrf.mxu0
        %7397 = vdwg.mxu0
        %7398 = vmatpush.bf16.msra.mxu0 %v6152
        %7399 = vmatpush.bf16.msra.mxu0 %v6146
        %7400 = vmatpush.bf16.msra.mxu0 %v6140
        %7401 = vmatpush.bf16.msra.mxu0 %v6134
        %7402 = vmatpush.bf16.msra.mxu0 %v6128
        %7403 = vmatpush.bf16.msra.mxu0 %v6122
        %7404 = vmatpush.bf16.msra.mxu0 %v6116
        %7405 = vmatpush.bf16.msra.mxu0 %v6110
        %7406 = vmatmul.bf16.gmra.mxu0 %v7360
        %v7407 = vpop.f32.mrf.mxu0
        %v7408 = vadd.f32 %v7395, %v7407
        %v7409 = vpop.f32.mrf.mxu0
        %7410 = vdwg.mxu0
        %7411 = vmatpush.bf16.msra.mxu0 %v6200
        %7412 = vmatpush.bf16.msra.mxu0 %v6194
        %7413 = vmatpush.bf16.msra.mxu0 %v6188
        %7414 = vmatpush.bf16.msra.mxu0 %v6182
        %7415 = vmatpush.bf16.msra.mxu0 %v6176
        %7416 = vmatpush.bf16.msra.mxu0 %v6170
        %7417 = vmatpush.bf16.msra.mxu0 %v6164
        %7418 = vmatpush.bf16.msra.mxu0 %v6158
        %7419 = vmatmul.bf16.gmra.mxu0 %v7367
        %v7420 = vpop.f32.mrf.mxu0
        %v7421 = vadd.f32 %v7408, %v7420
        %v7422 = vpop.f32.mrf.mxu0
        %7423 = vdwg.mxu0
        %7424 = vmatpush.bf16.msra.mxu0 %v6057
        %7425 = vmatpush.bf16.msra.mxu0 %v6051
        %7426 = vmatpush.bf16.msra.mxu0 %v6045
        %7427 = vmatpush.bf16.msra.mxu0 %v6039
        %7428 = vmatpush.bf16.msra.mxu0 %v6033
        %7429 = vmatpush.bf16.msra.mxu0 %v6027
        %7430 = vmatpush.bf16.msra.mxu0 %v6021
        %7431 = vmatpush.bf16.msra.mxu0 %v6015
        %7432 = vmatmul.bf16.gmra.mxu0 %v7346
        %v7433 = vpop.f32.mrf.mxu0
        %v7434 = vadd.f32 0.0, %v7433
        %v7435 = vpop.f32.mrf.mxu0
        %7436 = vdwg.mxu0
        %7437 = vmatpush.bf16.msra.mxu0 %v6105
        %7438 = vmatpush.bf16.msra.mxu0 %v6099
        %7439 = vmatpush.bf16.msra.mxu0 %v6093
        %7440 = vmatpush.bf16.msra.mxu0 %v6087
        %7441 = vmatpush.bf16.msra.mxu0 %v6081
        %7442 = vmatpush.bf16.msra.mxu0 %v6075
        %7443 = vmatpush.bf16.msra.mxu0 %v6069
        %7444 = vmatpush.bf16.msra.mxu0 %v6063
        %7445 = vmatmul.bf16.gmra.mxu0 %v7353
        %v7446 = vpop.f32.mrf.mxu0
        %v7447 = vadd.f32 %v7434, %v7446
        %v7448 = vpop.f32.mrf.mxu0
        %7449 = vdwg.mxu0
        %7450 = vmatpush.bf16.msra.mxu0 %v6153
        %7451 = vmatpush.bf16.msra.mxu0 %v6147
        %7452 = vmatpush.bf16.msra.mxu0 %v6141
        %7453 = vmatpush.bf16.msra.mxu0 %v6135
        %7454 = vmatpush.bf16.msra.mxu0 %v6129
        %7455 = vmatpush.bf16.msra.mxu0 %v6123
        %7456 = vmatpush.bf16.msra.mxu0 %v6117
        %7457 = vmatpush.bf16.msra.mxu0 %v6111
        %7458 = vmatmul.bf16.gmra.mxu0 %v7360
        %v7459 = vpop.f32.mrf.mxu0
        %v7460 = vadd.f32 %v7447, %v7459
        %v7461 = vpop.f32.mrf.mxu0
        %7462 = vdwg.mxu0
        %7463 = vmatpush.bf16.msra.mxu0 %v6201
        %7464 = vmatpush.bf16.msra.mxu0 %v6195
        %7465 = vmatpush.bf16.msra.mxu0 %v6189
        %7466 = vmatpush.bf16.msra.mxu0 %v6183
        %7467 = vmatpush.bf16.msra.mxu0 %v6177
        %7468 = vmatpush.bf16.msra.mxu0 %v6171
        %7469 = vmatpush.bf16.msra.mxu0 %v6165
        %7470 = vmatpush.bf16.msra.mxu0 %v6159
        %7471 = vmatmul.bf16.gmra.mxu0 %v7367
        %v7472 = vpop.f32.mrf.mxu0
        %v7473 = vadd.f32 %v7460, %v7472
        %v7474 = vpop.f32.mrf.mxu0
        %7475 = vdwg.mxu0
        %7476 = vmatpush.bf16.msra.mxu0 %v6058
        %7477 = vmatpush.bf16.msra.mxu0 %v6052
        %7478 = vmatpush.bf16.msra.mxu0 %v6046
        %7479 = vmatpush.bf16.msra.mxu0 %v6040
        %7480 = vmatpush.bf16.msra.mxu0 %v6034
        %7481 = vmatpush.bf16.msra.mxu0 %v6028
        %7482 = vmatpush.bf16.msra.mxu0 %v6022
        %7483 = vmatpush.bf16.msra.mxu0 %v6016
        %7484 = vmatmul.bf16.gmra.mxu0 %v7346
        %v7485 = vpop.f32.mrf.mxu0
        %v7486 = vadd.f32 0.0, %v7485
        %v7487 = vpop.f32.mrf.mxu0
        %7488 = vdwg.mxu0
        %7489 = vmatpush.bf16.msra.mxu0 %v6106
        %7490 = vmatpush.bf16.msra.mxu0 %v6100
        %7491 = vmatpush.bf16.msra.mxu0 %v6094
        %7492 = vmatpush.bf16.msra.mxu0 %v6088
        %7493 = vmatpush.bf16.msra.mxu0 %v6082
        %7494 = vmatpush.bf16.msra.mxu0 %v6076
        %7495 = vmatpush.bf16.msra.mxu0 %v6070
        %7496 = vmatpush.bf16.msra.mxu0 %v6064
        %7497 = vmatmul.bf16.gmra.mxu0 %v7353
        %v7498 = vpop.f32.mrf.mxu0
        %v7499 = vadd.f32 %v7486, %v7498
        %v7500 = vpop.f32.mrf.mxu0
        %7501 = vdwg.mxu0
        %7502 = vmatpush.bf16.msra.mxu0 %v6154
        %7503 = vmatpush.bf16.msra.mxu0 %v6148
        %7504 = vmatpush.bf16.msra.mxu0 %v6142
        %7505 = vmatpush.bf16.msra.mxu0 %v6136
        %7506 = vmatpush.bf16.msra.mxu0 %v6130
        %7507 = vmatpush.bf16.msra.mxu0 %v6124
        %7508 = vmatpush.bf16.msra.mxu0 %v6118
        %7509 = vmatpush.bf16.msra.mxu0 %v6112
        %7510 = vmatmul.bf16.gmra.mxu0 %v7360
        %v7511 = vpop.f32.mrf.mxu0
        %v7512 = vadd.f32 %v7499, %v7511
        %v7513 = vpop.f32.mrf.mxu0
        %7514 = vdwg.mxu0
        %7515 = vmatpush.bf16.msra.mxu0 %v6202
        %7516 = vmatpush.bf16.msra.mxu0 %v6196
        %7517 = vmatpush.bf16.msra.mxu0 %v6190
        %7518 = vmatpush.bf16.msra.mxu0 %v6184
        %7519 = vmatpush.bf16.msra.mxu0 %v6178
        %7520 = vmatpush.bf16.msra.mxu0 %v6172
        %7521 = vmatpush.bf16.msra.mxu0 %v6166
        %7522 = vmatpush.bf16.msra.mxu0 %v6160
        %7523 = vmatmul.bf16.gmra.mxu0 %v7367
        %v7524 = vpop.f32.mrf.mxu0
        %v7525 = vadd.f32 %v7512, %v7524
        %v7526 = vpop.f32.mrf.mxu0
        %7527 = vdwg.mxu0
        %7528 = vmatpush.bf16.msra.mxu0 %v6059
        %7529 = vmatpush.bf16.msra.mxu0 %v6053
        %7530 = vmatpush.bf16.msra.mxu0 %v6047
        %7531 = vmatpush.bf16.msra.mxu0 %v6041
        %7532 = vmatpush.bf16.msra.mxu0 %v6035
        %7533 = vmatpush.bf16.msra.mxu0 %v6029
        %7534 = vmatpush.bf16.msra.mxu0 %v6023
        %7535 = vmatpush.bf16.msra.mxu0 %v6017
        %7536 = vmatmul.bf16.gmra.mxu0 %v7346
        %v7537 = vpop.f32.mrf.mxu0
        %v7538 = vadd.f32 0.0, %v7537
        %v7539 = vpop.f32.mrf.mxu0
        %7540 = vdwg.mxu0
        %7541 = vmatpush.bf16.msra.mxu0 %v6107
        %7542 = vmatpush.bf16.msra.mxu0 %v6101
        %7543 = vmatpush.bf16.msra.mxu0 %v6095
        %7544 = vmatpush.bf16.msra.mxu0 %v6089
        %7545 = vmatpush.bf16.msra.mxu0 %v6083
        %7546 = vmatpush.bf16.msra.mxu0 %v6077
        %7547 = vmatpush.bf16.msra.mxu0 %v6071
        %7548 = vmatpush.bf16.msra.mxu0 %v6065
        %7549 = vmatmul.bf16.gmra.mxu0 %v7353
        %v7550 = vpop.f32.mrf.mxu0
        %v7551 = vadd.f32 %v7538, %v7550
        %v7552 = vpop.f32.mrf.mxu0
        %7553 = vdwg.mxu0
        %7554 = vmatpush.bf16.msra.mxu0 %v6155
        %7555 = vmatpush.bf16.msra.mxu0 %v6149
        %7556 = vmatpush.bf16.msra.mxu0 %v6143
        %7557 = vmatpush.bf16.msra.mxu0 %v6137
        %7558 = vmatpush.bf16.msra.mxu0 %v6131
        %7559 = vmatpush.bf16.msra.mxu0 %v6125
        %7560 = vmatpush.bf16.msra.mxu0 %v6119
        %7561 = vmatpush.bf16.msra.mxu0 %v6113
        %7562 = vmatmul.bf16.gmra.mxu0 %v7360
        %v7563 = vpop.f32.mrf.mxu0
        %v7564 = vadd.f32 %v7551, %v7563
        %v7565 = vpop.f32.mrf.mxu0
        %7566 = vdwg.mxu0
        %7567 = vmatpush.bf16.msra.mxu0 %v6203
        %7568 = vmatpush.bf16.msra.mxu0 %v6197
        %7569 = vmatpush.bf16.msra.mxu0 %v6191
        %7570 = vmatpush.bf16.msra.mxu0 %v6185
        %7571 = vmatpush.bf16.msra.mxu0 %v6179
        %7572 = vmatpush.bf16.msra.mxu0 %v6173
        %7573 = vmatpush.bf16.msra.mxu0 %v6167
        %7574 = vmatpush.bf16.msra.mxu0 %v6161
        %7575 = vmatmul.bf16.gmra.mxu0 %v7367
        %v7576 = vpop.f32.mrf.mxu0
        %v7577 = vadd.f32 %v7564, %v7576
        %v7578 = vpop.f32.mrf.mxu0
        %7579 = vdwg.mxu0
        %7580 = vmatpush.bf16.msra.mxu0 %v6060
        %7581 = vmatpush.bf16.msra.mxu0 %v6054
        %7582 = vmatpush.bf16.msra.mxu0 %v6048
        %7583 = vmatpush.bf16.msra.mxu0 %v6042
        %7584 = vmatpush.bf16.msra.mxu0 %v6036
        %7585 = vmatpush.bf16.msra.mxu0 %v6030
        %7586 = vmatpush.bf16.msra.mxu0 %v6024
        %7587 = vmatpush.bf16.msra.mxu0 %v6018
        %7588 = vmatmul.bf16.gmra.mxu0 %v7346
        %v7589 = vpop.f32.mrf.mxu0
        %v7590 = vadd.f32 0.0, %v7589
        %v7591 = vpop.f32.mrf.mxu0
        %7592 = vdwg.mxu0
        %7593 = vmatpush.bf16.msra.mxu0 %v6108
        %7594 = vmatpush.bf16.msra.mxu0 %v6102
        %7595 = vmatpush.bf16.msra.mxu0 %v6096
        %7596 = vmatpush.bf16.msra.mxu0 %v6090
        %7597 = vmatpush.bf16.msra.mxu0 %v6084
        %7598 = vmatpush.bf16.msra.mxu0 %v6078
        %7599 = vmatpush.bf16.msra.mxu0 %v6072
        %7600 = vmatpush.bf16.msra.mxu0 %v6066
        %7601 = vmatmul.bf16.gmra.mxu0 %v7353
        %v7602 = vpop.f32.mrf.mxu0
        %v7603 = vadd.f32 %v7590, %v7602
        %v7604 = vpop.f32.mrf.mxu0
        %7605 = vdwg.mxu0
        %7606 = vmatpush.bf16.msra.mxu0 %v6156
        %7607 = vmatpush.bf16.msra.mxu0 %v6150
        %7608 = vmatpush.bf16.msra.mxu0 %v6144
        %7609 = vmatpush.bf16.msra.mxu0 %v6138
        %7610 = vmatpush.bf16.msra.mxu0 %v6132
        %7611 = vmatpush.bf16.msra.mxu0 %v6126
        %7612 = vmatpush.bf16.msra.mxu0 %v6120
        %7613 = vmatpush.bf16.msra.mxu0 %v6114
        %7614 = vmatmul.bf16.gmra.mxu0 %v7360
        %v7615 = vpop.f32.mrf.mxu0
        %v7616 = vadd.f32 %v7603, %v7615
        %v7617 = vpop.f32.mrf.mxu0
        %7618 = vdwg.mxu0
        %7619 = vmatpush.bf16.msra.mxu0 %v6204
        %7620 = vmatpush.bf16.msra.mxu0 %v6198
        %7621 = vmatpush.bf16.msra.mxu0 %v6192
        %7622 = vmatpush.bf16.msra.mxu0 %v6186
        %7623 = vmatpush.bf16.msra.mxu0 %v6180
        %7624 = vmatpush.bf16.msra.mxu0 %v6174
        %7625 = vmatpush.bf16.msra.mxu0 %v6168
        %7626 = vmatpush.bf16.msra.mxu0 %v6162
        %7627 = vmatmul.bf16.gmra.mxu0 %v7367
        %v7628 = vpop.f32.mrf.mxu0
        %v7629 = vadd.f32 %v7616, %v7628
        %v7630 = vpop.f32.mrf.mxu0
        %7631 = vdwg.mxu0
        %7632 = vmatpush.bf16.msra.mxu0 %v6061
        %7633 = vmatpush.bf16.msra.mxu0 %v6055
        %7634 = vmatpush.bf16.msra.mxu0 %v6049
        %7635 = vmatpush.bf16.msra.mxu0 %v6043
        %7636 = vmatpush.bf16.msra.mxu0 %v6037
        %7637 = vmatpush.bf16.msra.mxu0 %v6031
        %7638 = vmatpush.bf16.msra.mxu0 %v6025
        %7639 = vmatpush.bf16.msra.mxu0 %v6019
        %7640 = vmatmul.bf16.gmra.mxu0 %v7346
        %v7641 = vpop.f32.mrf.mxu0
        %v7642 = vadd.f32 0.0, %v7641
        %v7643 = vpop.f32.mrf.mxu0
        %7644 = vdwg.mxu0
        %7645 = vmatpush.bf16.msra.mxu0 %v6109
        %7646 = vmatpush.bf16.msra.mxu0 %v6103
        %7647 = vmatpush.bf16.msra.mxu0 %v6097
        %7648 = vmatpush.bf16.msra.mxu0 %v6091
        %7649 = vmatpush.bf16.msra.mxu0 %v6085
        %7650 = vmatpush.bf16.msra.mxu0 %v6079
        %7651 = vmatpush.bf16.msra.mxu0 %v6073
        %7652 = vmatpush.bf16.msra.mxu0 %v6067
        %7653 = vmatmul.bf16.gmra.mxu0 %v7353
        %v7654 = vpop.f32.mrf.mxu0
        %v7655 = vadd.f32 %v7642, %v7654
        %v7656 = vpop.f32.mrf.mxu0
        %7657 = vdwg.mxu0
        %7658 = vmatpush.bf16.msra.mxu0 %v6157
        %7659 = vmatpush.bf16.msra.mxu0 %v6151
        %7660 = vmatpush.bf16.msra.mxu0 %v6145
        %7661 = vmatpush.bf16.msra.mxu0 %v6139
        %7662 = vmatpush.bf16.msra.mxu0 %v6133
        %7663 = vmatpush.bf16.msra.mxu0 %v6127
        %7664 = vmatpush.bf16.msra.mxu0 %v6121
        %7665 = vmatpush.bf16.msra.mxu0 %v6115
        %7666 = vmatmul.bf16.gmra.mxu0 %v7360
        %v7667 = vpop.f32.mrf.mxu0
        %v7668 = vadd.f32 %v7655, %v7667
        %v7669 = vpop.f32.mrf.mxu0
        %7670 = vdwg.mxu0
        %7671 = vmatpush.bf16.msra.mxu0 %v6205
        %7672 = vmatpush.bf16.msra.mxu0 %v6199
        %7673 = vmatpush.bf16.msra.mxu0 %v6193
        %7674 = vmatpush.bf16.msra.mxu0 %v6187
        %7675 = vmatpush.bf16.msra.mxu0 %v6181
        %7676 = vmatpush.bf16.msra.mxu0 %v6175
        %7677 = vmatpush.bf16.msra.mxu0 %v6169
        %7678 = vmatpush.bf16.msra.mxu0 %v6163
        %7679 = vmatmul.bf16.gmra.mxu0 %v7367
        %v7680 = vpop.f32.mrf.mxu0
        %v7681 = vadd.f32 %v7668, %v7680
        %v7682 = vpop.f32.mrf.mxu0
        %7683 = vdwg.mxu0
        %v7684 = vadd.f32 %v7077, %v7421
        %v7685 = vadd.f32 %v7129, %v7473
        %v7686 = vadd.f32 %v7181, %v7525
        %v7687 = vadd.f32 %v7233, %v7577
        %v7688 = vadd.f32 %v7285, %v7629
        %v7689 = vadd.f32 %v7337, %v7681
        %v7690 = vmax.f32 %v6710, %v7684
        %v7691 = vmax.f32 %v6711, %v7685
        %v7692 = vmax.f32 %v6712, %v7686
        %v7693 = vmax.f32 %v6713, %v7687
        %v7694 = vmax.f32 %v6714, %v7688
        %v7695 = vmax.f32 %v6715, %v7689
        %v7696 = vmax.f32 %v7690, %v7693
        %v7697 = vmax.f32 %v7691, %v7694
        %v7698 = vmax.f32 %v7692, %v7695
        %v7699 = vld [vmem:[#allocation8] sm:$0x7]
        %v7701 = vperm.slane %v7699, 0
        %v7702 = vperm.slane %v7699, 1
        %v7703 = vperm.slane %v7699, 2
        %v7707 = vadd.f32 %v7696, %v7701
        %v7708 = vadd.f32 %v7697, %v7702
        %v7709 = vadd.f32 %v7698, %v7703
        %v7710 = vmax.f32 %v7707, 0.0
        %v7711 = vmax.f32 %v7708, 0.0
        %v7712 = vmax.f32 %v7709, 0.0
        %v7713 = vpack.c.bf16 %v7710, %v7710
        %v7714 = vpack.c.bf16 %v7711, %v7711
        %v7715 = vpack.c.bf16 %v7712, %v7712
        %v7716 = vld [vmem:[#allocation10] sm:$0xf]
        %v7717 = vld [vmem:[#allocation10 + $0x4] sm:$0xf]
        %v7718 = vld [vmem:[#allocation10 + $0x8] sm:$0xf]
        %v7719 = vld [vmem:[#allocation10 + $0xc] sm:$0xf]
        %v7720 = vld [vmem:[#allocation10 + $0x10] sm:$0xf]
        %v7721 = vld [vmem:[#allocation10 + $0x14] sm:$0xf]
        %v7722 = vld [vmem:[#allocation10 + $0x18] sm:$0xf]
        %v7723 = vld [vmem:[#allocation10 + $0x1c] sm:$0xf]
        %v7724 = vld [vmem:[#allocation10 + $0x20] sm:$0xf]
        %v7725 = vld [vmem:[#allocation10 + $0x24] sm:$0xf]
        %v7726 = vld [vmem:[#allocation10 + $0x28] sm:$0xf]
        %v7727 = vld [vmem:[#allocation10 + $0x2c] sm:$0xf]
        %v7728 = vld [vmem:[#allocation10 + $0x30] sm:$0xf]
        %v7729 = vld [vmem:[#allocation10 + $0x34] sm:$0xf]
        %v7730 = vld [vmem:[#allocation10 + $0x38] sm:$0xf]
        %v7731 = vld [vmem:[#allocation10 + $0x3c] sm:$0xf]
        %v7732 = vld [vmem:[#allocation10 + $0x40] sm:$0xf]
        %v7733 = vld [vmem:[#allocation10 + $0x44] sm:$0xf]
        %v7734 = vld [vmem:[#allocation10 + $0x48] sm:$0xf]
        %v7735 = vld [vmem:[#allocation10 + $0x4c] sm:$0xf]
        %v7736 = vld [vmem:[#allocation10 + $0x50] sm:$0xf]
        %v7737 = vld [vmem:[#allocation10 + $0x54] sm:$0xf]
        %v7738 = vld [vmem:[#allocation10 + $0x58] sm:$0xf]
        %v7739 = vld [vmem:[#allocation10 + $0x5c] sm:$0xf]
        %v7740 = vld [vmem:[#allocation10 + $0x60] sm:$0xf]
        %v7741 = vld [vmem:[#allocation10 + $0x64] sm:$0xf]
        %v7742 = vld [vmem:[#allocation10 + $0x68] sm:$0xf]
        %v7743 = vld [vmem:[#allocation10 + $0x6c] sm:$0xf]
        %v7744 = vld [vmem:[#allocation10 + $0x70] sm:$0xf]
        %v7745 = vld [vmem:[#allocation10 + $0x74] sm:$0xf]
        %v7746 = vld [vmem:[#allocation10 + $0x78] sm:$0xf]
        %v7747 = vld [vmem:[#allocation10 + $0x7c] sm:$0xf]
        %v7748 = vld [vmem:[#allocation10 + $0x80] sm:$0xf]
        %v7749 = vld [vmem:[#allocation10 + $0x84] sm:$0xf]
        %v7750 = vld [vmem:[#allocation10 + $0x88] sm:$0xf]
        %v7751 = vld [vmem:[#allocation10 + $0x8c] sm:$0xf]
        %v7752 = vld [vmem:[#allocation10 + $0x90] sm:$0xf]
        %v7753 = vld [vmem:[#allocation10 + $0x94] sm:$0xf]
        %v7754 = vld [vmem:[#allocation10 + $0x98] sm:$0xf]
        %v7755 = vld [vmem:[#allocation10 + $0x9c] sm:$0xf]
        %v7756 = vld [vmem:[#allocation10 + $0xa0] sm:$0xf]
        %v7757 = vld [vmem:[#allocation10 + $0xa4] sm:$0xf]
        %v7758 = vld [vmem:[#allocation10 + $0xa8] sm:$0xf]
        %v7759 = vld [vmem:[#allocation10 + $0xac] sm:$0xf]
        %v7760 = vld [vmem:[#allocation10 + $0xb0] sm:$0xf]
        %v7761 = vld [vmem:[#allocation10 + $0xb4] sm:$0xf]
        %v7762 = vld [vmem:[#allocation10 + $0xb8] sm:$0xf]
        %v7763 = vld [vmem:[#allocation10 + $0xbc] sm:$0xf]
        %s7764 = scalar_lea.vmem [#allocation10], 192
        %v7765 = vld [vmem:[%s7764] sm:$0xf]
        %v7766 = vld [vmem:[%s7764 + $0x4] sm:$0xf]
        %v7767 = vld [vmem:[%s7764 + $0x8] sm:$0xf]
        %v7768 = vld [vmem:[%s7764 + $0xc] sm:$0xf]
        %v7769 = vld [vmem:[%s7764 + $0x10] sm:$0xf]
        %v7770 = vld [vmem:[%s7764 + $0x14] sm:$0xf]
        %v7771 = vld [vmem:[%s7764 + $0x18] sm:$0xf]
        %v7772 = vld [vmem:[%s7764 + $0x1c] sm:$0xf]
        %v7773 = vld [vmem:[%s7764 + $0x20] sm:$0xf]
        %v7774 = vld [vmem:[%s7764 + $0x24] sm:$0xf]
        %v7775 = vld [vmem:[%s7764 + $0x28] sm:$0xf]
        %v7776 = vld [vmem:[%s7764 + $0x2c] sm:$0xf]
        %v7777 = vld [vmem:[%s7764 + $0x30] sm:$0xf]
        %v7778 = vld [vmem:[%s7764 + $0x34] sm:$0xf]
        %v7779 = vld [vmem:[%s7764 + $0x38] sm:$0xf]
        %v7780 = vld [vmem:[%s7764 + $0x3c] sm:$0xf]
        %v7781 = vld [vmem:[%s7764 + $0x40] sm:$0xf]
        %v7782 = vld [vmem:[%s7764 + $0x44] sm:$0xf]
        %v7783 = vld [vmem:[%s7764 + $0x48] sm:$0xf]
        %v7784 = vld [vmem:[%s7764 + $0x4c] sm:$0xf]
        %v7785 = vld [vmem:[%s7764 + $0x50] sm:$0xf]
        %v7786 = vld [vmem:[%s7764 + $0x54] sm:$0xf]
        %v7787 = vld [vmem:[%s7764 + $0x58] sm:$0xf]
        %v7788 = vld [vmem:[%s7764 + $0x5c] sm:$0xf]
        %v7789 = vld [vmem:[%s7764 + $0x60] sm:$0xf]
        %v7790 = vld [vmem:[%s7764 + $0x64] sm:$0xf]
        %v7791 = vld [vmem:[%s7764 + $0x68] sm:$0xf]
        %v7792 = vld [vmem:[%s7764 + $0x6c] sm:$0xf]
        %v7793 = vld [vmem:[%s7764 + $0x70] sm:$0xf]
        %v7794 = vld [vmem:[%s7764 + $0x74] sm:$0xf]
        %v7795 = vld [vmem:[%s7764 + $0x78] sm:$0xf]
        %v7796 = vld [vmem:[%s7764 + $0x7c] sm:$0xf]
        %v7797 = vld [vmem:[%s7764 + $0x80] sm:$0xf]
        %v7798 = vld [vmem:[%s7764 + $0x84] sm:$0xf]
        %v7799 = vld [vmem:[%s7764 + $0x88] sm:$0xf]
        %v7800 = vld [vmem:[%s7764 + $0x8c] sm:$0xf]
        %v7801 = vld [vmem:[%s7764 + $0x90] sm:$0xf]
        %v7802 = vld [vmem:[%s7764 + $0x94] sm:$0xf]
        %v7803 = vld [vmem:[%s7764 + $0x98] sm:$0xf]
        %v7804 = vld [vmem:[%s7764 + $0x9c] sm:$0xf]
        %v7805 = vld [vmem:[%s7764 + $0xa0] sm:$0xf]
        %v7806 = vld [vmem:[%s7764 + $0xa4] sm:$0xf]
        %v7807 = vld [vmem:[%s7764 + $0xa8] sm:$0xf]
        %v7808 = vld [vmem:[%s7764 + $0xac] sm:$0xf]
        %v7809 = vld [vmem:[%s7764 + $0xb0] sm:$0xf]
        %v7810 = vld [vmem:[%s7764 + $0xb4] sm:$0xf]
        %v7811 = vld [vmem:[%s7764 + $0xb8] sm:$0xf]
        %v7812 = vld [vmem:[%s7764 + $0xbc] sm:$0xf]
        %v7814 = vshrl.u32 %v7713, 16
        %v7817 = vshrl.u32 %v7714, 16
        %v7820 = vshrl.u32 %v7715, 16
        %v7873 = vunpack.c.l.b16 %v7765
        %v7874 = vunpack.c.l.b16 %v7766
        %v7875 = vunpack.c.l.b16 %v7767
        %v7876 = vunpack.c.l.b16 %v7768
        %v7877 = vunpack.c.l.b16 %v7769
        %v7878 = vunpack.c.l.b16 %v7770
        %v7879 = vunpack.c.l.b16 %v7771
        %v7880 = vunpack.c.l.b16 %v7772
        %v7881 = vunpack.c.l.b16 %v7773
        %v7882 = vunpack.c.l.b16 %v7774
        %v7883 = vunpack.c.l.b16 %v7775
        %v7884 = vunpack.c.l.b16 %v7776
        %v7885 = vunpack.c.l.b16 %v7777
        %v7886 = vunpack.c.l.b16 %v7778
        %v7887 = vunpack.c.l.b16 %v7779
        %v7888 = vunpack.c.l.b16 %v7780
        %v7889 = vunpack.c.l.b16 %v7781
        %v7890 = vunpack.c.l.b16 %v7782
        %v7891 = vunpack.c.l.b16 %v7783
        %v7892 = vunpack.c.l.b16 %v7784
        %v7893 = vunpack.c.l.b16 %v7785
        %v7894 = vunpack.c.l.b16 %v7786
        %v7895 = vunpack.c.l.b16 %v7787
        %v7896 = vunpack.c.l.b16 %v7788
        %v7897 = vunpack.c.l.b16 %v7789
        %v7898 = vunpack.c.l.b16 %v7790
        %v7899 = vunpack.c.l.b16 %v7791
        %v7900 = vunpack.c.l.b16 %v7792
        %v7901 = vunpack.c.l.b16 %v7793
        %v7902 = vunpack.c.l.b16 %v7794
        %v7903 = vunpack.c.l.b16 %v7795
        %v7904 = vunpack.c.l.b16 %v7796
        %v7905 = vunpack.c.l.b16 %v7797
        %v7906 = vunpack.c.l.b16 %v7798
        %v7907 = vunpack.c.l.b16 %v7799
        %v7908 = vunpack.c.l.b16 %v7800
        %v7909 = vunpack.c.l.b16 %v7801
        %v7910 = vunpack.c.l.b16 %v7802
        %v7911 = vunpack.c.l.b16 %v7803
        %v7912 = vunpack.c.l.b16 %v7804
        %v7913 = vunpack.c.l.b16 %v7805
        %v7914 = vunpack.c.l.b16 %v7806
        %v7915 = vunpack.c.l.b16 %v7807
        %v7916 = vunpack.c.l.b16 %v7808
        %v7917 = vunpack.c.l.b16 %v7809
        %v7918 = vunpack.c.l.b16 %v7810
        %v7919 = vunpack.c.l.b16 %v7811
        %v7920 = vunpack.c.l.b16 %v7812
        %v7921 = vpack.c.b16 %v7874, %v7873
        %v7922 = vpack.c.b16 %v7876, %v7875
        %v7923 = vpack.c.b16 %v7878, %v7877
        %v7924 = vpack.c.b16 %v7880, %v7879
        %v7925 = vpack.c.b16 %v7882, %v7881
        %v7926 = vpack.c.b16 %v7884, %v7883
        %v7927 = vpack.c.b16 %v7886, %v7885
        %v7928 = vpack.c.b16 %v7888, %v7887
        %v7929 = vpack.c.b16 %v7890, %v7889
        %v7930 = vpack.c.b16 %v7892, %v7891
        %v7931 = vpack.c.b16 %v7894, %v7893
        %v7932 = vpack.c.b16 %v7896, %v7895
        %v7933 = vpack.c.b16 %v7898, %v7897
        %v7934 = vpack.c.b16 %v7900, %v7899
        %v7935 = vpack.c.b16 %v7902, %v7901
        %v7936 = vpack.c.b16 %v7904, %v7903
        %v7937 = vpack.c.b16 %v7906, %v7905
        %v7938 = vpack.c.b16 %v7908, %v7907
        %v7939 = vpack.c.b16 %v7910, %v7909
        %v7940 = vpack.c.b16 %v7912, %v7911
        %v7941 = vpack.c.b16 %v7914, %v7913
        %v7942 = vpack.c.b16 %v7916, %v7915
        %v7943 = vpack.c.b16 %v7918, %v7917
        %v7944 = vpack.c.b16 %v7920, %v7919
        %7969 = vmatpush.bf16.msra.mxu0 %v7928
        %7970 = vmatpush.bf16.msra.mxu0 %v7927
        %7971 = vmatpush.bf16.msra.mxu0 %v7926
        %7972 = vmatpush.bf16.msra.mxu0 %v7925
        %7973 = vmatpush.bf16.msra.mxu0 %v7924
        %7974 = vmatpush.bf16.msra.mxu0 %v7923
        %7975 = vmatpush.bf16.msra.mxu0 %v7922
        %7976 = vmatpush.bf16.msra.mxu0 %v7921
        %7977 = vmatmul.bf16.gmra.mxu0 %v7814
        %v7978 = vpop.f32.mrf.mxu0
        %v7979 = vadd.f32 0.0, %v7978
        %v7980 = vpop.f32.mrf.mxu0
        %7981 = vdwg.mxu0
        %7982 = vmatpush.bf16.msra.mxu0 %v7936
        %7983 = vmatpush.bf16.msra.mxu0 %v7935
        %7984 = vmatpush.bf16.msra.mxu0 %v7934
        %7985 = vmatpush.bf16.msra.mxu0 %v7933
        %7986 = vmatpush.bf16.msra.mxu0 %v7932
        %7987 = vmatpush.bf16.msra.mxu0 %v7931
        %7988 = vmatpush.bf16.msra.mxu0 %v7930
        %7989 = vmatpush.bf16.msra.mxu0 %v7929
        %7990 = vmatmul.bf16.gmra.mxu0 %v7817
        %v7991 = vpop.f32.mrf.mxu0
        %v7992 = vadd.f32 %v7979, %v7991
        %v7993 = vpop.f32.mrf.mxu0
        %7994 = vdwg.mxu0
        %7995 = vmatpush.bf16.msra.mxu0 %v7944
        %7996 = vmatpush.bf16.msra.mxu0 %v7943
        %7997 = vmatpush.bf16.msra.mxu0 %v7942
        %7998 = vmatpush.bf16.msra.mxu0 %v7941
        %7999 = vmatpush.bf16.msra.mxu0 %v7940
        %8000 = vmatpush.bf16.msra.mxu0 %v7939
        %8001 = vmatpush.bf16.msra.mxu0 %v7938
        %8002 = vmatpush.bf16.msra.mxu0 %v7937
        %8003 = vmatmul.bf16.gmra.mxu0 %v7820
        %v8004 = vpop.f32.mrf.mxu0
        %v8005 = vadd.f32 %v7992, %v8004
        %v8006 = vpop.f32.mrf.mxu0
        %8007 = vdwg.mxu0
        %v8056 = vunpack.c.l.b16 %v7716
        %v8057 = vunpack.c.l.b16 %v7717
        %v8058 = vunpack.c.l.b16 %v7718
        %v8059 = vunpack.c.l.b16 %v7719
        %v8060 = vunpack.c.l.b16 %v7720
        %v8061 = vunpack.c.l.b16 %v7721
        %v8062 = vunpack.c.l.b16 %v7722
        %v8063 = vunpack.c.l.b16 %v7723
        %v8064 = vunpack.c.l.b16 %v7724
        %v8065 = vunpack.c.l.b16 %v7725
        %v8066 = vunpack.c.l.b16 %v7726
        %v8067 = vunpack.c.l.b16 %v7727
        %v8068 = vunpack.c.l.b16 %v7728
        %v8069 = vunpack.c.l.b16 %v7729
        %v8070 = vunpack.c.l.b16 %v7730
        %v8071 = vunpack.c.l.b16 %v7731
        %v8072 = vunpack.c.l.b16 %v7732
        %v8073 = vunpack.c.l.b16 %v7733
        %v8074 = vunpack.c.l.b16 %v7734
        %v8075 = vunpack.c.l.b16 %v7735
        %v8076 = vunpack.c.l.b16 %v7736
        %v8077 = vunpack.c.l.b16 %v7737
        %v8078 = vunpack.c.l.b16 %v7738
        %v8079 = vunpack.c.l.b16 %v7739
        %v8080 = vunpack.c.l.b16 %v7740
        %v8081 = vunpack.c.l.b16 %v7741
        %v8082 = vunpack.c.l.b16 %v7742
        %v8083 = vunpack.c.l.b16 %v7743
        %v8084 = vunpack.c.l.b16 %v7744
        %v8085 = vunpack.c.l.b16 %v7745
        %v8086 = vunpack.c.l.b16 %v7746
        %v8087 = vunpack.c.l.b16 %v7747
        %v8088 = vunpack.c.l.b16 %v7748
        %v8089 = vunpack.c.l.b16 %v7749
        %v8090 = vunpack.c.l.b16 %v7750
        %v8091 = vunpack.c.l.b16 %v7751
        %v8092 = vunpack.c.l.b16 %v7752
        %v8093 = vunpack.c.l.b16 %v7753
        %v8094 = vunpack.c.l.b16 %v7754
        %v8095 = vunpack.c.l.b16 %v7755
        %v8096 = vunpack.c.l.b16 %v7756
        %v8097 = vunpack.c.l.b16 %v7757
        %v8098 = vunpack.c.l.b16 %v7758
        %v8099 = vunpack.c.l.b16 %v7759
        %v8100 = vunpack.c.l.b16 %v7760
        %v8101 = vunpack.c.l.b16 %v7761
        %v8102 = vunpack.c.l.b16 %v7762
        %v8103 = vunpack.c.l.b16 %v7763
        %v8104 = vpack.c.b16 %v8057, %v8056
        %v8105 = vpack.c.b16 %v8059, %v8058
        %v8106 = vpack.c.b16 %v8061, %v8060
        %v8107 = vpack.c.b16 %v8063, %v8062
        %v8108 = vpack.c.b16 %v8065, %v8064
        %v8109 = vpack.c.b16 %v8067, %v8066
        %v8110 = vpack.c.b16 %v8069, %v8068
        %v8111 = vpack.c.b16 %v8071, %v8070
        %v8112 = vpack.c.b16 %v8073, %v8072
        %v8113 = vpack.c.b16 %v8075, %v8074
        %v8114 = vpack.c.b16 %v8077, %v8076
        %v8115 = vpack.c.b16 %v8079, %v8078
        %v8116 = vpack.c.b16 %v8081, %v8080
        %v8117 = vpack.c.b16 %v8083, %v8082
        %v8118 = vpack.c.b16 %v8085, %v8084
        %v8119 = vpack.c.b16 %v8087, %v8086
        %v8120 = vpack.c.b16 %v8089, %v8088
        %v8121 = vpack.c.b16 %v8091, %v8090
        %v8122 = vpack.c.b16 %v8093, %v8092
        %v8123 = vpack.c.b16 %v8095, %v8094
        %v8124 = vpack.c.b16 %v8097, %v8096
        %v8125 = vpack.c.b16 %v8099, %v8098
        %v8126 = vpack.c.b16 %v8101, %v8100
        %v8127 = vpack.c.b16 %v8103, %v8102
        %8152 = vmatpush.bf16.msra.mxu0 %v8111
        %8153 = vmatpush.bf16.msra.mxu0 %v8110
        %8154 = vmatpush.bf16.msra.mxu0 %v8109
        %8155 = vmatpush.bf16.msra.mxu0 %v8108
        %8156 = vmatpush.bf16.msra.mxu0 %v8107
        %8157 = vmatpush.bf16.msra.mxu0 %v8106
        %8158 = vmatpush.bf16.msra.mxu0 %v8105
        %8159 = vmatpush.bf16.msra.mxu0 %v8104
        %8160 = vmatmul.bf16.gmra.mxu0 %v7713
        %v8161 = vpop.f32.mrf.mxu0
        %v8162 = vadd.f32 %v8005, %v8161
        %v8163 = vpop.f32.mrf.mxu0
        %8164 = vdwg.mxu0
        %8165 = vmatpush.bf16.msra.mxu0 %v8119
        %8166 = vmatpush.bf16.msra.mxu0 %v8118
        %8167 = vmatpush.bf16.msra.mxu0 %v8117
        %8168 = vmatpush.bf16.msra.mxu0 %v8116
        %8169 = vmatpush.bf16.msra.mxu0 %v8115
        %8170 = vmatpush.bf16.msra.mxu0 %v8114
        %8171 = vmatpush.bf16.msra.mxu0 %v8113
        %8172 = vmatpush.bf16.msra.mxu0 %v8112
        %8173 = vmatmul.bf16.gmra.mxu0 %v7714
        %v8174 = vpop.f32.mrf.mxu0
        %v8175 = vadd.f32 %v8162, %v8174
        %v8176 = vpop.f32.mrf.mxu0
        %8177 = vdwg.mxu0
        %8178 = vmatpush.bf16.msra.mxu0 %v8127
        %8179 = vmatpush.bf16.msra.mxu0 %v8126
        %8180 = vmatpush.bf16.msra.mxu0 %v8125
        %8181 = vmatpush.bf16.msra.mxu0 %v8124
        %8182 = vmatpush.bf16.msra.mxu0 %v8123
        %8183 = vmatpush.bf16.msra.mxu0 %v8122
        %8184 = vmatpush.bf16.msra.mxu0 %v8121
        %8185 = vmatpush.bf16.msra.mxu0 %v8120
        %8186 = vmatmul.bf16.gmra.mxu0 %v7715
        %v8187 = vpop.f32.mrf.mxu0
        %v8188 = vadd.f32 %v8175, %v8187
        %v8189 = vpop.f32.mrf.mxu0
        %8190 = vdwg.mxu0
        %s8191 = scalar_lea.vmem [#allocation10], 384
        %v8192 = vld [vmem:[%s8191] sm:$0xf]
        %v8193 = vld [vmem:[%s8191 + $0x4] sm:$0xf]
        %v8194 = vld [vmem:[%s8191 + $0x8] sm:$0xf]
        %v8195 = vld [vmem:[%s8191 + $0xc] sm:$0xf]
        %v8196 = vld [vmem:[%s8191 + $0x10] sm:$0xf]
        %v8197 = vld [vmem:[%s8191 + $0x14] sm:$0xf]
        %v8198 = vld [vmem:[%s8191 + $0x18] sm:$0xf]
        %v8199 = vld [vmem:[%s8191 + $0x1c] sm:$0xf]
        %v8200 = vld [vmem:[%s8191 + $0x20] sm:$0xf]
        %v8201 = vld [vmem:[%s8191 + $0x24] sm:$0xf]
        %v8202 = vld [vmem:[%s8191 + $0x28] sm:$0xf]
        %v8203 = vld [vmem:[%s8191 + $0x2c] sm:$0xf]
        %v8204 = vld [vmem:[%s8191 + $0x30] sm:$0xf]
        %v8205 = vld [vmem:[%s8191 + $0x34] sm:$0xf]
        %v8206 = vld [vmem:[%s8191 + $0x38] sm:$0xf]
        %v8207 = vld [vmem:[%s8191 + $0x3c] sm:$0xf]
        %v8208 = vld [vmem:[%s8191 + $0x40] sm:$0xf]
        %v8209 = vld [vmem:[%s8191 + $0x44] sm:$0xf]
        %v8210 = vld [vmem:[%s8191 + $0x48] sm:$0xf]
        %v8211 = vld [vmem:[%s8191 + $0x4c] sm:$0xf]
        %v8212 = vld [vmem:[%s8191 + $0x50] sm:$0xf]
        %v8213 = vld [vmem:[%s8191 + $0x54] sm:$0xf]
        %v8214 = vld [vmem:[%s8191 + $0x58] sm:$0xf]
        %v8215 = vld [vmem:[%s8191 + $0x5c] sm:$0xf]
        %v8216 = vld [vmem:[%s8191 + $0x60] sm:$0xf]
        %v8217 = vld [vmem:[%s8191 + $0x64] sm:$0xf]
        %v8218 = vld [vmem:[%s8191 + $0x68] sm:$0xf]
        %v8219 = vld [vmem:[%s8191 + $0x6c] sm:$0xf]
        %v8220 = vld [vmem:[%s8191 + $0x70] sm:$0xf]
        %v8221 = vld [vmem:[%s8191 + $0x74] sm:$0xf]
        %v8222 = vld [vmem:[%s8191 + $0x78] sm:$0xf]
        %v8223 = vld [vmem:[%s8191 + $0x7c] sm:$0xf]
        %v8224 = vld [vmem:[%s8191 + $0x80] sm:$0xf]
        %v8225 = vld [vmem:[%s8191 + $0x84] sm:$0xf]
        %v8226 = vld [vmem:[%s8191 + $0x88] sm:$0xf]
        %v8227 = vld [vmem:[%s8191 + $0x8c] sm:$0xf]
        %v8228 = vld [vmem:[%s8191 + $0x90] sm:$0xf]
        %v8229 = vld [vmem:[%s8191 + $0x94] sm:$0xf]
        %v8230 = vld [vmem:[%s8191 + $0x98] sm:$0xf]
        %v8231 = vld [vmem:[%s8191 + $0x9c] sm:$0xf]
        %v8232 = vld [vmem:[%s8191 + $0xa0] sm:$0xf]
        %v8233 = vld [vmem:[%s8191 + $0xa4] sm:$0xf]
        %v8234 = vld [vmem:[%s8191 + $0xa8] sm:$0xf]
        %v8235 = vld [vmem:[%s8191 + $0xac] sm:$0xf]
        %v8236 = vld [vmem:[%s8191 + $0xb0] sm:$0xf]
        %v8237 = vld [vmem:[%s8191 + $0xb4] sm:$0xf]
        %v8238 = vld [vmem:[%s8191 + $0xb8] sm:$0xf]
        %v8239 = vld [vmem:[%s8191 + $0xbc] sm:$0xf]
        %v8243 = vrot.slane %v7713, 1
        %v8244 = vrot.slane %v7714, 1
        %v8245 = vrot.slane %v7715, 1
        %v8297 = vunpack.c.l.b16 %v8192
        %v8298 = vunpack.c.l.b16 %v8193
        %v8299 = vunpack.c.l.b16 %v8194
        %v8300 = vunpack.c.l.b16 %v8195
        %v8301 = vunpack.c.l.b16 %v8196
        %v8302 = vunpack.c.l.b16 %v8197
        %v8303 = vunpack.c.l.b16 %v8198
        %v8304 = vunpack.c.l.b16 %v8199
        %v8305 = vunpack.c.l.b16 %v8200
        %v8306 = vunpack.c.l.b16 %v8201
        %v8307 = vunpack.c.l.b16 %v8202
        %v8308 = vunpack.c.l.b16 %v8203
        %v8309 = vunpack.c.l.b16 %v8204
        %v8310 = vunpack.c.l.b16 %v8205
        %v8311 = vunpack.c.l.b16 %v8206
        %v8312 = vunpack.c.l.b16 %v8207
        %v8313 = vunpack.c.l.b16 %v8208
        %v8314 = vunpack.c.l.b16 %v8209
        %v8315 = vunpack.c.l.b16 %v8210
        %v8316 = vunpack.c.l.b16 %v8211
        %v8317 = vunpack.c.l.b16 %v8212
        %v8318 = vunpack.c.l.b16 %v8213
        %v8319 = vunpack.c.l.b16 %v8214
        %v8320 = vunpack.c.l.b16 %v8215
        %v8321 = vunpack.c.l.b16 %v8216
        %v8322 = vunpack.c.l.b16 %v8217
        %v8323 = vunpack.c.l.b16 %v8218
        %v8324 = vunpack.c.l.b16 %v8219
        %v8325 = vunpack.c.l.b16 %v8220
        %v8326 = vunpack.c.l.b16 %v8221
        %v8327 = vunpack.c.l.b16 %v8222
        %v8328 = vunpack.c.l.b16 %v8223
        %v8329 = vunpack.c.l.b16 %v8224
        %v8330 = vunpack.c.l.b16 %v8225
        %v8331 = vunpack.c.l.b16 %v8226
        %v8332 = vunpack.c.l.b16 %v8227
        %v8333 = vunpack.c.l.b16 %v8228
        %v8334 = vunpack.c.l.b16 %v8229
        %v8335 = vunpack.c.l.b16 %v8230
        %v8336 = vunpack.c.l.b16 %v8231
        %v8337 = vunpack.c.l.b16 %v8232
        %v8338 = vunpack.c.l.b16 %v8233
        %v8339 = vunpack.c.l.b16 %v8234
        %v8340 = vunpack.c.l.b16 %v8235
        %v8341 = vunpack.c.l.b16 %v8236
        %v8342 = vunpack.c.l.b16 %v8237
        %v8343 = vunpack.c.l.b16 %v8238
        %v8344 = vunpack.c.l.b16 %v8239
        %v8345 = vpack.c.b16 %v8298, %v8297
        %v8346 = vpack.c.b16 %v8300, %v8299
        %v8347 = vpack.c.b16 %v8302, %v8301
        %v8348 = vpack.c.b16 %v8304, %v8303
        %v8349 = vpack.c.b16 %v8306, %v8305
        %v8350 = vpack.c.b16 %v8308, %v8307
        %v8351 = vpack.c.b16 %v8310, %v8309
        %v8352 = vpack.c.b16 %v8312, %v8311
        %v8353 = vpack.c.b16 %v8314, %v8313
        %v8354 = vpack.c.b16 %v8316, %v8315
        %v8355 = vpack.c.b16 %v8318, %v8317
        %v8356 = vpack.c.b16 %v8320, %v8319
        %v8357 = vpack.c.b16 %v8322, %v8321
        %v8358 = vpack.c.b16 %v8324, %v8323
        %v8359 = vpack.c.b16 %v8326, %v8325
        %v8360 = vpack.c.b16 %v8328, %v8327
        %v8361 = vpack.c.b16 %v8330, %v8329
        %v8362 = vpack.c.b16 %v8332, %v8331
        %v8363 = vpack.c.b16 %v8334, %v8333
        %v8364 = vpack.c.b16 %v8336, %v8335
        %v8365 = vpack.c.b16 %v8338, %v8337
        %v8366 = vpack.c.b16 %v8340, %v8339
        %v8367 = vpack.c.b16 %v8342, %v8341
        %v8368 = vpack.c.b16 %v8344, %v8343
        %8393 = vmatpush.bf16.msra.mxu0 %v8352
        %8394 = vmatpush.bf16.msra.mxu0 %v8351
        %8395 = vmatpush.bf16.msra.mxu0 %v8350
        %8396 = vmatpush.bf16.msra.mxu0 %v8349
        %8397 = vmatpush.bf16.msra.mxu0 %v8348
        %8398 = vmatpush.bf16.msra.mxu0 %v8347
        %8399 = vmatpush.bf16.msra.mxu0 %v8346
        %8400 = vmatpush.bf16.msra.mxu0 %v8345
        %8401 = vmatmul.bf16.gmra.mxu0 %v8243
        %v8402 = vpop.f32.mrf.mxu0
        %v8403 = vadd.f32 0.0, %v8402
        %v8404 = vpop.f32.mrf.mxu0
        %8405 = vdwg.mxu0
        %8406 = vmatpush.bf16.msra.mxu0 %v8360
        %8407 = vmatpush.bf16.msra.mxu0 %v8359
        %8408 = vmatpush.bf16.msra.mxu0 %v8358
        %8409 = vmatpush.bf16.msra.mxu0 %v8357
        %8410 = vmatpush.bf16.msra.mxu0 %v8356
        %8411 = vmatpush.bf16.msra.mxu0 %v8355
        %8412 = vmatpush.bf16.msra.mxu0 %v8354
        %8413 = vmatpush.bf16.msra.mxu0 %v8353
        %8414 = vmatmul.bf16.gmra.mxu0 %v8244
        %v8415 = vpop.f32.mrf.mxu0
        %v8416 = vadd.f32 %v8403, %v8415
        %v8417 = vpop.f32.mrf.mxu0
        %8418 = vdwg.mxu0
        %8419 = vmatpush.bf16.msra.mxu0 %v8368
        %8420 = vmatpush.bf16.msra.mxu0 %v8367
        %8421 = vmatpush.bf16.msra.mxu0 %v8366
        %8422 = vmatpush.bf16.msra.mxu0 %v8365
        %8423 = vmatpush.bf16.msra.mxu0 %v8364
        %8424 = vmatpush.bf16.msra.mxu0 %v8363
        %8425 = vmatpush.bf16.msra.mxu0 %v8362
        %8426 = vmatpush.bf16.msra.mxu0 %v8361
        %8427 = vmatmul.bf16.gmra.mxu0 %v8245
        %v8428 = vpop.f32.mrf.mxu0
        %v8429 = vadd.f32 %v8416, %v8428
        %v8430 = vpop.f32.mrf.mxu0
        %8431 = vdwg.mxu0
        %v8432 = vadd.f32 %v8188, %v8429
        %s8433 = scalar_lea.vmem [#allocation10], 576
        %v8434 = vld [vmem:[%s8433] sm:$0xf]
        %v8435 = vld [vmem:[%s8433 + $0x4] sm:$0xf]
        %v8436 = vld [vmem:[%s8433 + $0x8] sm:$0xf]
        %v8437 = vld [vmem:[%s8433 + $0xc] sm:$0xf]
        %v8438 = vld [vmem:[%s8433 + $0x10] sm:$0xf]
        %v8439 = vld [vmem:[%s8433 + $0x14] sm:$0xf]
        %v8440 = vld [vmem:[%s8433 + $0x18] sm:$0xf]
        %v8441 = vld [vmem:[%s8433 + $0x1c] sm:$0xf]
        %v8442 = vld [vmem:[%s8433 + $0x20] sm:$0xf]
        %v8443 = vld [vmem:[%s8433 + $0x24] sm:$0xf]
        %v8444 = vld [vmem:[%s8433 + $0x28] sm:$0xf]
        %v8445 = vld [vmem:[%s8433 + $0x2c] sm:$0xf]
        %v8446 = vld [vmem:[%s8433 + $0x30] sm:$0xf]
        %v8447 = vld [vmem:[%s8433 + $0x34] sm:$0xf]
        %v8448 = vld [vmem:[%s8433 + $0x38] sm:$0xf]
        %v8449 = vld [vmem:[%s8433 + $0x3c] sm:$0xf]
        %v8450 = vld [vmem:[%s8433 + $0x40] sm:$0xf]
        %v8451 = vld [vmem:[%s8433 + $0x44] sm:$0xf]
        %v8452 = vld [vmem:[%s8433 + $0x48] sm:$0xf]
        %v8453 = vld [vmem:[%s8433 + $0x4c] sm:$0xf]
        %v8454 = vld [vmem:[%s8433 + $0x50] sm:$0xf]
        %v8455 = vld [vmem:[%s8433 + $0x54] sm:$0xf]
        %v8456 = vld [vmem:[%s8433 + $0x58] sm:$0xf]
        %v8457 = vld [vmem:[%s8433 + $0x5c] sm:$0xf]
        %v8458 = vld [vmem:[%s8433 + $0x60] sm:$0xf]
        %v8459 = vld [vmem:[%s8433 + $0x64] sm:$0xf]
        %v8460 = vld [vmem:[%s8433 + $0x68] sm:$0xf]
        %v8461 = vld [vmem:[%s8433 + $0x6c] sm:$0xf]
        %v8462 = vld [vmem:[%s8433 + $0x70] sm:$0xf]
        %v8463 = vld [vmem:[%s8433 + $0x74] sm:$0xf]
        %v8464 = vld [vmem:[%s8433 + $0x78] sm:$0xf]
        %v8465 = vld [vmem:[%s8433 + $0x7c] sm:$0xf]
        %v8466 = vld [vmem:[%s8433 + $0x80] sm:$0xf]
        %v8467 = vld [vmem:[%s8433 + $0x84] sm:$0xf]
        %v8468 = vld [vmem:[%s8433 + $0x88] sm:$0xf]
        %v8469 = vld [vmem:[%s8433 + $0x8c] sm:$0xf]
        %v8470 = vld [vmem:[%s8433 + $0x90] sm:$0xf]
        %v8471 = vld [vmem:[%s8433 + $0x94] sm:$0xf]
        %v8472 = vld [vmem:[%s8433 + $0x98] sm:$0xf]
        %v8473 = vld [vmem:[%s8433 + $0x9c] sm:$0xf]
        %v8474 = vld [vmem:[%s8433 + $0xa0] sm:$0xf]
        %v8475 = vld [vmem:[%s8433 + $0xa4] sm:$0xf]
        %v8476 = vld [vmem:[%s8433 + $0xa8] sm:$0xf]
        %v8477 = vld [vmem:[%s8433 + $0xac] sm:$0xf]
        %v8478 = vld [vmem:[%s8433 + $0xb0] sm:$0xf]
        %v8479 = vld [vmem:[%s8433 + $0xb4] sm:$0xf]
        %v8480 = vld [vmem:[%s8433 + $0xb8] sm:$0xf]
        %v8481 = vld [vmem:[%s8433 + $0xbc] sm:$0xf]
        %v8482 = vrot.slane %v7814, 1
        %v8483 = vrot.slane %v7817, 1
        %v8484 = vrot.slane %v7820, 1
        %v8536 = vunpack.c.l.b16 %v8434
        %v8537 = vunpack.c.l.b16 %v8435
        %v8538 = vunpack.c.l.b16 %v8436
        %v8539 = vunpack.c.l.b16 %v8437
        %v8540 = vunpack.c.l.b16 %v8438
        %v8541 = vunpack.c.l.b16 %v8439
        %v8542 = vunpack.c.l.b16 %v8440
        %v8543 = vunpack.c.l.b16 %v8441
        %v8544 = vunpack.c.l.b16 %v8442
        %v8545 = vunpack.c.l.b16 %v8443
        %v8546 = vunpack.c.l.b16 %v8444
        %v8547 = vunpack.c.l.b16 %v8445
        %v8548 = vunpack.c.l.b16 %v8446
        %v8549 = vunpack.c.l.b16 %v8447
        %v8550 = vunpack.c.l.b16 %v8448
        %v8551 = vunpack.c.l.b16 %v8449
        %v8552 = vunpack.c.l.b16 %v8450
        %v8553 = vunpack.c.l.b16 %v8451
        %v8554 = vunpack.c.l.b16 %v8452
        %v8555 = vunpack.c.l.b16 %v8453
        %v8556 = vunpack.c.l.b16 %v8454
        %v8557 = vunpack.c.l.b16 %v8455
        %v8558 = vunpack.c.l.b16 %v8456
        %v8559 = vunpack.c.l.b16 %v8457
        %v8560 = vunpack.c.l.b16 %v8458
        %v8561 = vunpack.c.l.b16 %v8459
        %v8562 = vunpack.c.l.b16 %v8460
        %v8563 = vunpack.c.l.b16 %v8461
        %v8564 = vunpack.c.l.b16 %v8462
        %v8565 = vunpack.c.l.b16 %v8463
        %v8566 = vunpack.c.l.b16 %v8464
        %v8567 = vunpack.c.l.b16 %v8465
        %v8568 = vunpack.c.l.b16 %v8466
        %v8569 = vunpack.c.l.b16 %v8467
        %v8570 = vunpack.c.l.b16 %v8468
        %v8571 = vunpack.c.l.b16 %v8469
        %v8572 = vunpack.c.l.b16 %v8470
        %v8573 = vunpack.c.l.b16 %v8471
        %v8574 = vunpack.c.l.b16 %v8472
        %v8575 = vunpack.c.l.b16 %v8473
        %v8576 = vunpack.c.l.b16 %v8474
        %v8577 = vunpack.c.l.b16 %v8475
        %v8578 = vunpack.c.l.b16 %v8476
        %v8579 = vunpack.c.l.b16 %v8477
        %v8580 = vunpack.c.l.b16 %v8478
        %v8581 = vunpack.c.l.b16 %v8479
        %v8582 = vunpack.c.l.b16 %v8480
        %v8583 = vunpack.c.l.b16 %v8481
        %v8584 = vpack.c.b16 %v8537, %v8536
        %v8585 = vpack.c.b16 %v8539, %v8538
        %v8586 = vpack.c.b16 %v8541, %v8540
        %v8587 = vpack.c.b16 %v8543, %v8542
        %v8588 = vpack.c.b16 %v8545, %v8544
        %v8589 = vpack.c.b16 %v8547, %v8546
        %v8590 = vpack.c.b16 %v8549, %v8548
        %v8591 = vpack.c.b16 %v8551, %v8550
        %v8592 = vpack.c.b16 %v8553, %v8552
        %v8593 = vpack.c.b16 %v8555, %v8554
        %v8594 = vpack.c.b16 %v8557, %v8556
        %v8595 = vpack.c.b16 %v8559, %v8558
        %v8596 = vpack.c.b16 %v8561, %v8560
        %v8597 = vpack.c.b16 %v8563, %v8562
        %v8598 = vpack.c.b16 %v8565, %v8564
        %v8599 = vpack.c.b16 %v8567, %v8566
        %v8600 = vpack.c.b16 %v8569, %v8568
        %v8601 = vpack.c.b16 %v8571, %v8570
        %v8602 = vpack.c.b16 %v8573, %v8572
        %v8603 = vpack.c.b16 %v8575, %v8574
        %v8604 = vpack.c.b16 %v8577, %v8576
        %v8605 = vpack.c.b16 %v8579, %v8578
        %v8606 = vpack.c.b16 %v8581, %v8580
        %v8607 = vpack.c.b16 %v8583, %v8582
        %8632 = vmatpush.bf16.msra.mxu0 %v8591
        %8633 = vmatpush.bf16.msra.mxu0 %v8590
        %8634 = vmatpush.bf16.msra.mxu0 %v8589
        %8635 = vmatpush.bf16.msra.mxu0 %v8588
        %8636 = vmatpush.bf16.msra.mxu0 %v8587
        %8637 = vmatpush.bf16.msra.mxu0 %v8586
        %8638 = vmatpush.bf16.msra.mxu0 %v8585
        %8639 = vmatpush.bf16.msra.mxu0 %v8584
        %8640 = vmatmul.bf16.gmra.mxu0 %v8482
        %v8641 = vpop.f32.mrf.mxu0
        %v8642 = vadd.f32 0.0, %v8641
        %v8643 = vpop.f32.mrf.mxu0
        %8644 = vdwg.mxu0
        %8645 = vmatpush.bf16.msra.mxu0 %v8599
        %8646 = vmatpush.bf16.msra.mxu0 %v8598
        %8647 = vmatpush.bf16.msra.mxu0 %v8597
        %8648 = vmatpush.bf16.msra.mxu0 %v8596
        %8649 = vmatpush.bf16.msra.mxu0 %v8595
        %8650 = vmatpush.bf16.msra.mxu0 %v8594
        %8651 = vmatpush.bf16.msra.mxu0 %v8593
        %8652 = vmatpush.bf16.msra.mxu0 %v8592
        %8653 = vmatmul.bf16.gmra.mxu0 %v8483
        %v8654 = vpop.f32.mrf.mxu0
        %v8655 = vadd.f32 %v8642, %v8654
        %v8656 = vpop.f32.mrf.mxu0
        %8657 = vdwg.mxu0
        %8658 = vmatpush.bf16.msra.mxu0 %v8607
        %8659 = vmatpush.bf16.msra.mxu0 %v8606
        %8660 = vmatpush.bf16.msra.mxu0 %v8605
        %8661 = vmatpush.bf16.msra.mxu0 %v8604
        %8662 = vmatpush.bf16.msra.mxu0 %v8603
        %8663 = vmatpush.bf16.msra.mxu0 %v8602
        %8664 = vmatpush.bf16.msra.mxu0 %v8601
        %8665 = vmatpush.bf16.msra.mxu0 %v8600
        %8666 = vmatmul.bf16.gmra.mxu0 %v8484
        %v8667 = vpop.f32.mrf.mxu0
        %v8668 = vadd.f32 %v8655, %v8667
        %v8669 = vpop.f32.mrf.mxu0
        %8670 = vdwg.mxu0
        %v8671 = vadd.f32 %v8432, %v8668
        %s8672 = scalar_lea.vmem [#allocation10], 768
        %v8673 = vld [vmem:[%s8672] sm:$0xf]
        %v8674 = vld [vmem:[%s8672 + $0x4] sm:$0xf]
        %v8675 = vld [vmem:[%s8672 + $0x8] sm:$0xf]
        %v8676 = vld [vmem:[%s8672 + $0xc] sm:$0xf]
        %v8677 = vld [vmem:[%s8672 + $0x10] sm:$0xf]
        %v8678 = vld [vmem:[%s8672 + $0x14] sm:$0xf]
        %v8679 = vld [vmem:[%s8672 + $0x18] sm:$0xf]
        %v8680 = vld [vmem:[%s8672 + $0x1c] sm:$0xf]
        %v8681 = vld [vmem:[%s8672 + $0x20] sm:$0xf]
        %v8682 = vld [vmem:[%s8672 + $0x24] sm:$0xf]
        %v8683 = vld [vmem:[%s8672 + $0x28] sm:$0xf]
        %v8684 = vld [vmem:[%s8672 + $0x2c] sm:$0xf]
        %v8685 = vld [vmem:[%s8672 + $0x30] sm:$0xf]
        %v8686 = vld [vmem:[%s8672 + $0x34] sm:$0xf]
        %v8687 = vld [vmem:[%s8672 + $0x38] sm:$0xf]
        %v8688 = vld [vmem:[%s8672 + $0x3c] sm:$0xf]
        %v8689 = vld [vmem:[%s8672 + $0x40] sm:$0xf]
        %v8690 = vld [vmem:[%s8672 + $0x44] sm:$0xf]
        %v8691 = vld [vmem:[%s8672 + $0x48] sm:$0xf]
        %v8692 = vld [vmem:[%s8672 + $0x4c] sm:$0xf]
        %v8693 = vld [vmem:[%s8672 + $0x50] sm:$0xf]
        %v8694 = vld [vmem:[%s8672 + $0x54] sm:$0xf]
        %v8695 = vld [vmem:[%s8672 + $0x58] sm:$0xf]
        %v8696 = vld [vmem:[%s8672 + $0x5c] sm:$0xf]
        %v8697 = vld [vmem:[%s8672 + $0x60] sm:$0xf]
        %v8698 = vld [vmem:[%s8672 + $0x64] sm:$0xf]
        %v8699 = vld [vmem:[%s8672 + $0x68] sm:$0xf]
        %v8700 = vld [vmem:[%s8672 + $0x6c] sm:$0xf]
        %v8701 = vld [vmem:[%s8672 + $0x70] sm:$0xf]
        %v8702 = vld [vmem:[%s8672 + $0x74] sm:$0xf]
        %v8703 = vld [vmem:[%s8672 + $0x78] sm:$0xf]
        %v8704 = vld [vmem:[%s8672 + $0x7c] sm:$0xf]
        %v8705 = vld [vmem:[%s8672 + $0x80] sm:$0xf]
        %v8706 = vld [vmem:[%s8672 + $0x84] sm:$0xf]
        %v8707 = vld [vmem:[%s8672 + $0x88] sm:$0xf]
        %v8708 = vld [vmem:[%s8672 + $0x8c] sm:$0xf]
        %v8709 = vld [vmem:[%s8672 + $0x90] sm:$0xf]
        %v8710 = vld [vmem:[%s8672 + $0x94] sm:$0xf]
        %v8711 = vld [vmem:[%s8672 + $0x98] sm:$0xf]
        %v8712 = vld [vmem:[%s8672 + $0x9c] sm:$0xf]
        %v8713 = vld [vmem:[%s8672 + $0xa0] sm:$0xf]
        %v8714 = vld [vmem:[%s8672 + $0xa4] sm:$0xf]
        %v8715 = vld [vmem:[%s8672 + $0xa8] sm:$0xf]
        %v8716 = vld [vmem:[%s8672 + $0xac] sm:$0xf]
        %v8717 = vld [vmem:[%s8672 + $0xb0] sm:$0xf]
        %v8718 = vld [vmem:[%s8672 + $0xb4] sm:$0xf]
        %v8719 = vld [vmem:[%s8672 + $0xb8] sm:$0xf]
        %v8720 = vld [vmem:[%s8672 + $0xbc] sm:$0xf]
        %v8721 = vrot.slane %v7713, 2
        %v8722 = vrot.slane %v7714, 2
        %v8723 = vrot.slane %v7715, 2
        %v8775 = vunpack.c.l.b16 %v8673
        %v8776 = vunpack.c.l.b16 %v8674
        %v8777 = vunpack.c.l.b16 %v8675
        %v8778 = vunpack.c.l.b16 %v8676
        %v8779 = vunpack.c.l.b16 %v8677
        %v8780 = vunpack.c.l.b16 %v8678
        %v8781 = vunpack.c.l.b16 %v8679
        %v8782 = vunpack.c.l.b16 %v8680
        %v8783 = vunpack.c.l.b16 %v8681
        %v8784 = vunpack.c.l.b16 %v8682
        %v8785 = vunpack.c.l.b16 %v8683
        %v8786 = vunpack.c.l.b16 %v8684
        %v8787 = vunpack.c.l.b16 %v8685
        %v8788 = vunpack.c.l.b16 %v8686
        %v8789 = vunpack.c.l.b16 %v8687
        %v8790 = vunpack.c.l.b16 %v8688
        %v8791 = vunpack.c.l.b16 %v8689
        %v8792 = vunpack.c.l.b16 %v8690
        %v8793 = vunpack.c.l.b16 %v8691
        %v8794 = vunpack.c.l.b16 %v8692
        %v8795 = vunpack.c.l.b16 %v8693
        %v8796 = vunpack.c.l.b16 %v8694
        %v8797 = vunpack.c.l.b16 %v8695
        %v8798 = vunpack.c.l.b16 %v8696
        %v8799 = vunpack.c.l.b16 %v8697
        %v8800 = vunpack.c.l.b16 %v8698
        %v8801 = vunpack.c.l.b16 %v8699
        %v8802 = vunpack.c.l.b16 %v8700
        %v8803 = vunpack.c.l.b16 %v8701
        %v8804 = vunpack.c.l.b16 %v8702
        %v8805 = vunpack.c.l.b16 %v8703
        %v8806 = vunpack.c.l.b16 %v8704
        %v8807 = vunpack.c.l.b16 %v8705
        %v8808 = vunpack.c.l.b16 %v8706
        %v8809 = vunpack.c.l.b16 %v8707
        %v8810 = vunpack.c.l.b16 %v8708
        %v8811 = vunpack.c.l.b16 %v8709
        %v8812 = vunpack.c.l.b16 %v8710
        %v8813 = vunpack.c.l.b16 %v8711
        %v8814 = vunpack.c.l.b16 %v8712
        %v8815 = vunpack.c.l.b16 %v8713
        %v8816 = vunpack.c.l.b16 %v8714
        %v8817 = vunpack.c.l.b16 %v8715
        %v8818 = vunpack.c.l.b16 %v8716
        %v8819 = vunpack.c.l.b16 %v8717
        %v8820 = vunpack.c.l.b16 %v8718
        %v8821 = vunpack.c.l.b16 %v8719
        %v8822 = vunpack.c.l.b16 %v8720
        %v8823 = vpack.c.b16 %v8776, %v8775
        %v8824 = vpack.c.b16 %v8778, %v8777
        %v8825 = vpack.c.b16 %v8780, %v8779
        %v8826 = vpack.c.b16 %v8782, %v8781
        %v8827 = vpack.c.b16 %v8784, %v8783
        %v8828 = vpack.c.b16 %v8786, %v8785
        %v8829 = vpack.c.b16 %v8788, %v8787
        %v8830 = vpack.c.b16 %v8790, %v8789
        %v8831 = vpack.c.b16 %v8792, %v8791
        %v8832 = vpack.c.b16 %v8794, %v8793
        %v8833 = vpack.c.b16 %v8796, %v8795
        %v8834 = vpack.c.b16 %v8798, %v8797
        %v8835 = vpack.c.b16 %v8800, %v8799
        %v8836 = vpack.c.b16 %v8802, %v8801
        %v8837 = vpack.c.b16 %v8804, %v8803
        %v8838 = vpack.c.b16 %v8806, %v8805
        %v8839 = vpack.c.b16 %v8808, %v8807
        %v8840 = vpack.c.b16 %v8810, %v8809
        %v8841 = vpack.c.b16 %v8812, %v8811
        %v8842 = vpack.c.b16 %v8814, %v8813
        %v8843 = vpack.c.b16 %v8816, %v8815
        %v8844 = vpack.c.b16 %v8818, %v8817
        %v8845 = vpack.c.b16 %v8820, %v8819
        %v8846 = vpack.c.b16 %v8822, %v8821
        %8871 = vmatpush.bf16.msra.mxu0 %v8830
        %8872 = vmatpush.bf16.msra.mxu0 %v8829
        %8873 = vmatpush.bf16.msra.mxu0 %v8828
        %8874 = vmatpush.bf16.msra.mxu0 %v8827
        %8875 = vmatpush.bf16.msra.mxu0 %v8826
        %8876 = vmatpush.bf16.msra.mxu0 %v8825
        %8877 = vmatpush.bf16.msra.mxu0 %v8824
        %8878 = vmatpush.bf16.msra.mxu0 %v8823
        %8879 = vmatmul.bf16.gmra.mxu0 %v8721
        %v8880 = vpop.f32.mrf.mxu0
        %v8881 = vadd.f32 0.0, %v8880
        %v8882 = vpop.f32.mrf.mxu0
        %8883 = vdwg.mxu0
        %8884 = vmatpush.bf16.msra.mxu0 %v8838
        %8885 = vmatpush.bf16.msra.mxu0 %v8837
        %8886 = vmatpush.bf16.msra.mxu0 %v8836
        %8887 = vmatpush.bf16.msra.mxu0 %v8835
        %8888 = vmatpush.bf16.msra.mxu0 %v8834
        %8889 = vmatpush.bf16.msra.mxu0 %v8833
        %8890 = vmatpush.bf16.msra.mxu0 %v8832
        %8891 = vmatpush.bf16.msra.mxu0 %v8831
        %8892 = vmatmul.bf16.gmra.mxu0 %v8722
        %v8893 = vpop.f32.mrf.mxu0
        %v8894 = vadd.f32 %v8881, %v8893
        %v8895 = vpop.f32.mrf.mxu0
        %8896 = vdwg.mxu0
        %8897 = vmatpush.bf16.msra.mxu0 %v8846
        %8898 = vmatpush.bf16.msra.mxu0 %v8845
        %8899 = vmatpush.bf16.msra.mxu0 %v8844
        %8900 = vmatpush.bf16.msra.mxu0 %v8843
        %8901 = vmatpush.bf16.msra.mxu0 %v8842
        %8902 = vmatpush.bf16.msra.mxu0 %v8841
        %8903 = vmatpush.bf16.msra.mxu0 %v8840
        %8904 = vmatpush.bf16.msra.mxu0 %v8839
        %8905 = vmatmul.bf16.gmra.mxu0 %v8723
        %v8906 = vpop.f32.mrf.mxu0
        %v8907 = vadd.f32 %v8894, %v8906
        %v8908 = vpop.f32.mrf.mxu0
        %8909 = vdwg.mxu0
        %v8910 = vadd.f32 %v8671, %v8907
        %v8911 = vld [vmem:[#allocation11] sm:$0x1]
        %v8912 = vadd.f32 %v8910, %v8911
        %v8913 = vmax.f32 %v8912, 0.0
        %v8914 = vpack.c.bf16 %v8913, %v8913
        %v8915 = vld [vmem:[%s10] sm:$0xf]
        %v8916 = vld [vmem:[%s10 + $0x4] sm:$0xf]
        %v8917 = vld [vmem:[%s10 + $0x8] sm:$0xf]
        %v8918 = vld [vmem:[%s10 + $0xc] sm:$0xf]
        %v8919 = vld [vmem:[%s10 + $0x10] sm:$0xf]
        %v8920 = vld [vmem:[%s10 + $0x14] sm:$0xf]
        %v8921 = vld [vmem:[%s10 + $0x18] sm:$0xf]
        %v8922 = vld [vmem:[%s10 + $0x1c] sm:$0xf]
        %v8923 = vld [vmem:[%s10 + $0x20] sm:$0xf]
        %v8924 = vld [vmem:[%s10 + $0x24] sm:$0xf]
        %v8925 = vld [vmem:[%s10 + $0x28] sm:$0xf]
        %v8926 = vld [vmem:[%s10 + $0x2c] sm:$0xf]
        %v8927 = vld [vmem:[%s10 + $0x30] sm:$0xf]
        %v8928 = vld [vmem:[%s10 + $0x34] sm:$0xf]
        %v8929 = vld [vmem:[%s10 + $0x38] sm:$0xf]
        %v8930 = vld [vmem:[%s10 + $0x3c] sm:$0xf]
        %v8931 = vld [vmem:[#allocation13] sm:$0x1]
        %v8948 = vunpack.c.l.b16 %v8915
        %v8949 = vunpack.c.l.b16 %v8916
        %v8950 = vunpack.c.l.b16 %v8917
        %v8951 = vunpack.c.l.b16 %v8918
        %v8952 = vunpack.c.l.b16 %v8919
        %v8953 = vunpack.c.l.b16 %v8920
        %v8954 = vunpack.c.l.b16 %v8921
        %v8955 = vunpack.c.l.b16 %v8922
        %v8956 = vunpack.c.l.b16 %v8923
        %v8957 = vunpack.c.l.b16 %v8924
        %v8958 = vunpack.c.l.b16 %v8925
        %v8959 = vunpack.c.l.b16 %v8926
        %v8960 = vunpack.c.l.b16 %v8927
        %v8961 = vunpack.c.l.b16 %v8928
        %v8962 = vunpack.c.l.b16 %v8929
        %v8963 = vunpack.c.l.b16 %v8930
        %v8964 = vpack.c.b16 %v8949, %v8948
        %v8965 = vpack.c.b16 %v8951, %v8950
        %v8966 = vpack.c.b16 %v8953, %v8952
        %v8967 = vpack.c.b16 %v8955, %v8954
        %v8968 = vpack.c.b16 %v8957, %v8956
        %v8969 = vpack.c.b16 %v8959, %v8958
        %v8970 = vpack.c.b16 %v8961, %v8960
        %v8971 = vpack.c.b16 %v8963, %v8962
        %8980 = vmatpush.bf16.msra.mxu0 %v8971
        %8981 = vmatpush.bf16.msra.mxu0 %v8970
        %8982 = vmatpush.bf16.msra.mxu0 %v8969
        %8983 = vmatpush.bf16.msra.mxu0 %v8968
        %8984 = vmatpush.bf16.msra.mxu0 %v8967
        %8985 = vmatpush.bf16.msra.mxu0 %v8966
        %8986 = vmatpush.bf16.msra.mxu0 %v8965
        %8987 = vmatpush.bf16.msra.mxu0 %v8964
        %8988 = vmatmul.bf16.gmra.mxu0 %v8914
        %v8989 = vpop.f32.mrf.mxu0
        %v8990 = vadd.f32 %v8931, %v8989
        %v8991 = vpop.f32.mrf.mxu0
        %8992 = vdwg.mxu0
        %vm8993 = vcmask 73728
        %v8994 = vsel %vm8993, %v8990, -inf
        %8995 = vmax.xlane.f32.xlu0 %v8994
        %v8996 = vpop.xlane.xlu0 %8995
        %v8997 = vsub.f32 %v8990, %v8996
        %v8998 = vmul.f32 %v8997, 1.442695
        %v8999 = vpow.pop %v8998
        %v9000 = vsel %vm8993, %v8999, 0.0
        %9001 = vadd.xlane.f32.xlu0 %v9000
        %v9002 = vpop.xlane.xlu0 %9001
        %v9003 = vrcp.pop %v9002
        %v9004 = vmul.f32 %v8999, %v9003
        %9005 = vst.msk [vmem:[%s550] sm:$0x1] %vm8993, %v9004
        %s9006 = sand.u32 %s310, 1
        %s9007 = scalar_lea.sflag [#allocation4], %s9006
        %s9008 = sand.u32 %s310, 1
        %s9009 = scalar_lea.vmem [#allocation14], %s9008
        // Predicated region
        $region97: #{cnn_forward.1} parent=67 // pred_check
          %p9010 = pneg %p320
        $region98: #{cnn_forward.1} parent=67 // pred_check_branch
          %9012 = sbr.rel (%p9010) target = $region100
        $region99: #{cnn_forward.1} parent=67 // pred_region
          %9014 = vsyncadd %s9007, 0
          %s9015 = scalar_lea.hbm %s12, %s30
          %s9017 = sshll.u32 %s9009, 4
          %s9018 = int_to_ptr.vmem [resolvable:$true] %s9017
          %s9019 = sshll.u32 %s9015, 4
          %s9020 = int_to_ptr.hbm [resolvable:$true] %s9019
          %9022 = dma.vmem_to_hbm [thread:$0]  %s9018, 16, %s9020, %s9007
        $region100: #{cnn_forward.1} parent=67 // pred_fallthru
          _
      $region68: #{cnn_forward.1} parent=5 // pred_fallthru
        _
      %p9023 = scmp.le.s32.totalorder 2, %s25
      // Predicated region
      $region101: #{cnn_forward.1} parent=5 // pred_check
        %p9024 = pneg %p9023
      $region102: #{cnn_forward.1} parent=5 // pred_check_branch
        %9026 = sbr.rel (%p9024) target = $region104
      $region103: #{cnn_forward.1} parent=5 // pred_region
        %s9027 = ssub.s32 %s25, 2
        // Predicated region
        $region105: #{cnn_forward.1} parent=103 // pred_check
          %p9028 = pneg %p326
        $region106: #{cnn_forward.1} parent=103 // pred_check_branch
          %9030 = sbr.rel (%p9028) target = $region108
        $region107: #{cnn_forward.1} parent=103 // pred_region
          %s9031 = sand.u32 %s311, 1
          %s9032 = scalar_lea.sflag [#allocation4], %s9031
          %s9033 = sand.u32 %s311, 1
          %s9034 = scalar_lea.vmem [#allocation14], %s9033
          %9036 = dma.done %s9032, 16
        $region108: #{cnn_forward.1} parent=103 // pred_fallthru
          _
      $region104: #{cnn_forward.1} parent=5 // pred_fallthru
        _
    $region6: #{cnn_forward.1} parent=1 // loop_footer
      %s29 = sadd.s32 1, %s25
    $region7: #{cnn_forward.1} parent=1 // loop_footer_branch
      %24 = sbr.rel target = $region3
    $region8: #{cnn_forward.1} parent=1 // loop_exit
      _
    %9037 = vsyncpa [#allocation3], 1
    %s9038 = scalar_lea.sflag [#allocation3], 1
    %9039 = vsyncpa %s9038, 1
    %9040 = vsyncpa [#allocation6], 1
    %9041 = vsyncpa [#allocation9], 1
    %9042 = vsyncpa [#allocation12], 1
    %9043 = vsyncpa [#allocation4], 1
    %s9044 = scalar_lea.sflag [#allocation4], 1
    %9045 = vsyncpa %s9044, 1

</llo_original>
